<compile_context>
chip_gen: v7x
topology: tpu7x:2x2x1
jax: 0.10.0
libtpu: 0.0.40
codegen_flags: <defaults>
</compile_context>

<pallas_src>
import functools

import jax
import jax.numpy as jnp
from jax.experimental import pallas as pl
from jax.experimental.pallas import tpu as pltpu

# ----------------------------- synthetic config ------------------------------
COORD_DIM    = 2
IN_CHANNELS  = 16                 # latent feature width (decoder in_channels)
OUT_CHANNELS = 4                  # physical output channels
HIDDEN       = 32                 # out_gno_channel_mlp_hidden_layers = [32]
PROJ_HIDDEN  = 32                 # gno_config.projection_channels
GNO_RADIUS   = 0.40
SCALES       = (1.0, 2.0)
KMLP_IN      = 2 * COORD_DIM      # 'linear' transform, no node embedding

B       = 2
M_LAT   = 64                      # latent nodes (source, shared over batch)
N_QUERY = 128                     # physical query nodes per batch item


# ------------------------------ fused decoder kernel -------------------------
def _magno_decoder_kernel(xq_ref, f_ref, pk_ref, pkw_ref, o_ref, *,
                          r2_list, offs):
    x = xq_ref[0]                      # (NQ, D)  query coords, this batch item
    f = f_ref[0]                       # (ML, C)  latent features, this batch item
    nq, d_dim = x.shape
    ml, c_in = f.shape
    mlh = pkw_ref.shape[1]             # ML * H

    def pk(name):                      # static-offset slice of packed params
        o, r, c = offs[name]
        return pk_ref[o:o + r, 0:c]

    # ---- compact pairwise squared distances (NQ, ML), pure VPU --------------
    yt = pk('yt')                      # (D, ML)
    d2 = None
    for dd in range(d_dim):
        diff = x[:, dd:dd + 1] - yt[dd:dd + 1, :]
        d2 = diff * diff if d2 is None else d2 + diff * diff

    # ---- same distances, element-repeated / lane-dense (NQ, ML*H) -----------
    # pkw rows: [0,D)=tile(w1x_d,ML)  [D,2D)=tile(w1y_d,ML)
    #           [2D,3D)=repeat(y_d,H) [3D]=tile(b1,ML)
    d2r = None
    for dd in range(d_dim):
        yr = pkw_ref[2 * d_dim + dd:2 * d_dim + dd + 1, :]
        diffr = x[:, dd:dd + 1] - yr
        d2r = diffr * diffr if d2r is None else d2r + diffr * diffr

    # ---- fold both radius scales into one weight field ----------------------
    wgt = None                         # (NQ, ML)    for the b2 bias term
    wr = None                          # (NQ, ML*H)  per-element weights
    for r2 in r2_list:
        msk = (d2 <= r2).astype(jnp.float32)
        inv = 1.0 / jnp.maximum(jnp.sum(msk, axis=1, keepdims=True), 1.0)
        w_c = msk * inv
        w_r = (d2r <= r2).astype(jnp.float32) * inv
        wgt = w_c if wgt is None else wgt + w_c
        wr = w_r if wr is None else wr + w_r

    # ---- lane-dense first kernel-MLP layer + GELU (no (NQ,ML,H) tensor) -----
    ay = pkw_ref[3 * d_dim:3 * d_dim + 1, :]                 # tiled b1 (1, ML*H)
    for dd in range(d_dim):
        ay = ay + (pkw_ref[2 * d_dim + dd:2 * d_dim + dd + 1, :]    # repeat(y_d)
                   * pkw_ref[d_dim + dd:d_dim + dd + 1, :])         # tile(w1y_d)
    a = ay
    for dd in range(d_dim):
        a = a + x[:, dd:dd + 1] * pkw_ref[dd:dd + 1, :]             # tile(w1x_d)
    gw = jax.nn.gelu(a, approximate=True) * wr               # (NQ, ML*H)

    # ---- single K=ML*H MXU matmul --------------------------------------------
    w2 = pk('w2')                                            # (H, C)
    t = (f[:, None, :] * w2[None, :, :]).reshape(mlh, c_in)  # (ML*H, C)
    dec = jnp.dot(gw, t, preferred_element_type=jnp.float32)            # (NQ, C)
    dec = dec + jnp.dot(wgt, f, preferred_element_type=jnp.float32) * pk('b2')

    # ---- projection ChannelMLP, transposed so the output store is lane-dense -
    dec_t = dec.T                                            # (C, NQ)
    h2 = jax.nn.gelu(
        jnp.dot(pk('wp1t'), dec_t, preferred_element_type=jnp.float32)
        + pk('bp1c'), approximate=True)                      # (P, NQ)
    o_ref[0] = (jnp.dot(pk('wp2t'), h2, preferred_element_type=jnp.float32)
                + pk('bp2c'))                                # (Cout, NQ)


def magno_decoder(latent_coord, rndata, query_coord, params):
    """latent_coord (ML,D), rndata (B,ML,C_in), query_coord (B,NQ,D) -> (B,NQ,C_out)."""
    w1, b1, w2, b2, wp1, bp1, wp2, bp2 = params
    bsz, nq, d = query_coord.shape
    ml = latent_coord.shape[0]
    c_in = rndata.shape[2]
    h = w1.shape[1]
    p = wp1.shape[1]
    c_out = wp2.shape[1]

    w1y, w1x = w1[:d], w1[d:]

    # wide (1, ML*H) constant rows: pure tiling/duplication (layout plumbing).
    wide = ([jnp.tile(w1x[dd], ml) for dd in range(d)]
            + [jnp.tile(w1y[dd], ml) for dd in range(d)]
            + [jnp.repeat(latent_coord[:, dd], h) for dd in range(d)]
            + [jnp.tile(b1, ml)])
    pkw = jnp.stack(wide, axis=0).astype(jnp.float32)         # (3D+1, ML*H)

    # small parameter blocks packed into ONE array (static row offsets).
    width = max(ml, h, p, c_in, c_out)
    entries = [
        ('yt',   latent_coord.T),          # (D, ML)
        ('w2',   w2),                      # (H, C)
        ('b2',   b2[None, :]),             # (1, C)
        ('wp1t', wp1.T),                   # (P, C)
        ('wp2t', wp2.T),                   # (Cout, P)
        ('bp1c', bp1[:, None]),            # (P, 1)
        ('bp2c', bp2[:, None]),            # (Cout, 1)
    ]
    offs, cur = {}, 0
    for name, arr in entries:
        cur = -(-cur // 8) * 8                     # 8-align each section start
        offs[name] = (cur, arr.shape[0], arr.shape[1])
        cur += arr.shape[0]
    n_rows = -(-cur // 8) * 8
    pk = jnp.zeros((n_rows, width), jnp.float32)
    for name, arr in entries:
        o, r, c = offs[name]
        pk = pk.at[o:o + r, 0:c].set(arr.astype(jnp.float32))

    r2_list = tuple(float((GNO_RADIUS * s) ** 2) for s in SCALES)
    kernel = functools.partial(_magno_decoder_kernel, r2_list=r2_list, offs=offs)

    out_t = pl.pallas_call(
        kernel,
        out_shape=jax.ShapeDtypeStruct((bsz, c_out, nq), jnp.float32),
        grid=(bsz,),
        in_specs=[
            pl.BlockSpec((1, nq, d), lambda b_: (b_, 0, 0)),        # query coords
            pl.BlockSpec((1, ml, c_in), lambda b_: (b_, 0, 0)),     # rndata (f_y)
            pl.BlockSpec(pk.shape, lambda b_: (0, 0)),              # packed params
            pl.BlockSpec(pkw.shape, lambda b_: (0, 0)),             # wide rows
        ],
        out_specs=pl.BlockSpec((1, c_out, nq), lambda b_: (b_, 0, 0)),
        compiler_params=pltpu.CompilerParams(
            dimension_semantics=("parallel",),          # one batch per TC (v7x)
            vmem_limit_bytes=32 * 1024 * 1024),
    )(query_coord, rndata, pk, pkw)

    return jnp.transpose(out_t, (0, 2, 1))                # back to (B, NQ, C_out)


# ------------------------------ pure-JAX reference ---------------------------
def reference(latent_coord, rndata, query_coord, params):
    w1, b1, w2, b2, wp1, bp1, wp2, bp2 = params
    bsz, nq, d = query_coord.shape
    ml = latent_coord.shape[0]
    c_in = rndata.shape[2]

    yy = jnp.broadcast_to(latent_coord[None, None, :, :], (bsz, nq, ml, d))
    xx = jnp.broadcast_to(query_coord[:, :, None, :], (bsz, nq, ml, d))
    feat = jnp.concatenate([yy, xx], axis=-1)                          # (B,NQ,ML,2D)
    kmat = jax.nn.gelu(feat @ w1 + b1, approximate=True) @ w2 + b2     # (B,NQ,ML,C)
    contrib = kmat * rndata[:, None, :, :]

    d2 = jnp.sum((query_coord[:, :, None, :] - latent_coord[None, None, :, :]) ** 2,
                 axis=-1)                                              # (B,NQ,ML)
    dec = jnp.zeros((bsz, nq, c_in), jnp.float32)
    for s in SCALES:
        msk = (d2 <= (GNO_RADIUS * s) ** 2).astype(jnp.float32)
        cnt = jnp.maximum(msk.sum(-1, keepdims=True), 1.0)
        dec = dec + jnp.einsum('bqm,bqmc->bqc', msk, contrib) / cnt

    hproj = jax.nn.gelu(dec @ wp1 + bp1, approximate=True)
    return hproj @ wp2 + bp2                                           # (B,NQ,Cout)


# ------------------------------------ main ------------------------------------
if __name__ == "__main__":
    key = jax.random.PRNGKey(0)
    ks = jax.random.split(key, 10)

    # deterministic "parameters"
    w1 = 0.5 * jax.random.normal(ks[0], (KMLP_IN, HIDDEN), jnp.float32)
    b1 = 0.1 * jax.random.normal(ks[1], (HIDDEN,), jnp.float32)
    w2 = 0.3 * jax.random.normal(ks[2], (HIDDEN, IN_CHANNELS), jnp.float32)
    b2 = 0.1 * jax.random.normal(ks[3], (IN_CHANNELS,), jnp.float32)
    wp1 = 0.3 * jax.random.normal(ks[4], (IN_CHANNELS, PROJ_HIDDEN), jnp.float32)
    bp1 = 0.1 * jax.random.normal(ks[5], (PROJ_HIDDEN,), jnp.float32)
    wp2 = 0.3 * jax.random.normal(ks[6], (PROJ_HIDDEN, OUT_CHANNELS), jnp.float32)
    bp2 = 0.1 * jax.random.normal(ks[7], (OUT_CHANNELS,), jnp.float32)
    params = (w1, b1, w2, b2, wp1, bp1, wp2, bp2)

    # deterministic inputs
    g = (jnp.arange(8, dtype=jnp.float32) + 0.5) / 8.0
    latent_coord = jnp.stack(jnp.meshgrid(g, g, indexing="ij"),
                             axis=-1).reshape(M_LAT, COORD_DIM)
    rndata = jax.random.normal(ks[8], (B, M_LAT, IN_CHANNELS), jnp.float32)
    query_coord = jax.random.uniform(ks[9], (B, N_QUERY, COORD_DIM), jnp.float32)

    out = magno_decoder(latent_coord, rndata, query_coord, params)
    out = jax.block_until_ready(out)
    assert out.shape == (B, N_QUERY, OUT_CHANNELS), out.shape

    ref = jax.block_until_ready(reference(latent_coord, rndata, query_coord, params))
    max_err = float(jnp.max(jnp.abs(out - ref)))
    assert max_err < 2e-3, f"mismatch vs reference: {max_err}"

    print("KERNEL_OK")
</pallas_src>

<mosaic_0001>
module attributes {stable_mosaic.version = 11 : i64} {
  func.func @_magno_decoder_kernel(%arg0: i32, %arg1: memref<1x128x2xf32, #tpu.memory_space<vmem>>, %arg2: memref<1x64x16xf32, #tpu.memory_space<vmem>>, %arg3: memref<128x64xf32, #tpu.memory_space<vmem>>, %arg4: memref<7x2048xf32, #tpu.memory_space<vmem>>, %arg5: memref<1x4x128xf32, #tpu.memory_space<vmem>>) attributes {dimension_semantics = [#tpu.dimension_semantics<parallel>], iteration_bounds = array<i64: 2>, scalar_prefetch = 0 : i64, scratch_operands = 0 : i64, tpu.core_type = #tpu.core_type<tc>, window_params = [{transform_indices = @transform_0, window_bounds = array<i64: 1, 128, 2>}, {transform_indices = @transform_1, window_bounds = array<i64: 1, 64, 16>}, {pipeline_mode = #tpu.pipeline_mode<synchronous>, transform_indices = @transform_2, window_bounds = array<i64: 128, 64>}, {pipeline_mode = #tpu.pipeline_mode<synchronous>, transform_indices = @transform_3, window_bounds = array<i64: 7, 2048>}, {transform_indices = @transform_4, window_bounds = array<i64: 1, 4, 128>}]} {
    %c0 = arith.constant 0 : index
    %c0_0 = arith.constant 0 : index
    %c0_1 = arith.constant 0 : index
    %0 = vector.load %arg1[%c0, %c0_0, %c0_1] : memref<1x128x2xf32, #tpu.memory_space<vmem>>, vector<1x128x2xf32>
    %1 = vector.shape_cast %0 : vector<1x128x2xf32> to vector<128x2xf32>
    %c0_2 = arith.constant 0 : index
    %c0_3 = arith.constant 0 : index
    %c0_4 = arith.constant 0 : index
    %2 = vector.load %arg2[%c0_2, %c0_3, %c0_4] : memref<1x64x16xf32, #tpu.memory_space<vmem>>, vector<1x64x16xf32>
    %3 = vector.shape_cast %2 : vector<1x64x16xf32> to vector<64x16xf32>
    %c0_5 = arith.constant 0 : index
    %c0_6 = arith.constant 0 : index
    %4 = vector.load %arg3[%c0_5, %c0_6] : memref<128x64xf32, #tpu.memory_space<vmem>>, vector<2x64xf32>
    %5 = vector.extract_strided_slice %1 {offsets = [0, 0], sizes = [128, 1], strides = [1, 1]} : vector<128x2xf32> to vector<128x1xf32>
    %6 = vector.extract_strided_slice %4 {offsets = [0, 0], sizes = [1, 64], strides = [1, 1]} : vector<2x64xf32> to vector<1x64xf32>
    %7 = vector.broadcast %5 : vector<128x1xf32> to vector<128x64xf32>
    %8 = vector.broadcast %6 : vector<1x64xf32> to vector<128x64xf32>
    %9 = arith.subf %7, %8 : vector<128x64xf32>
    %10 = arith.mulf %9, %9 : vector<128x64xf32>
    %11 = vector.extract_strided_slice %1 {offsets = [0, 1], sizes = [128, 1], strides = [1, 1]} : vector<128x2xf32> to vector<128x1xf32>
    %12 = vector.extract_strided_slice %4 {offsets = [1, 0], sizes = [1, 64], strides = [1, 1]} : vector<2x64xf32> to vector<1x64xf32>
    %13 = vector.broadcast %11 : vector<128x1xf32> to vector<128x64xf32>
    %14 = vector.broadcast %12 : vector<1x64xf32> to vector<128x64xf32>
    %15 = arith.subf %13, %14 : vector<128x64xf32>
    %16 = arith.mulf %15, %15 : vector<128x64xf32>
    %17 = arith.addf %10, %16 : vector<128x64xf32>
    %c4 = arith.constant 4 : index
    %c0_7 = arith.constant 0 : index
    %18 = vector.load %arg4[%c4, %c0_7] : memref<7x2048xf32, #tpu.memory_space<vmem>>, vector<1x2048xf32>
    %19 = vector.extract_strided_slice %1 {offsets = [0, 0], sizes = [128, 1], strides = [1, 1]} : vector<128x2xf32> to vector<128x1xf32>
    %20 = vector.broadcast %19 : vector<128x1xf32> to vector<128x2048xf32>
    %21 = vector.broadcast %18 : vector<1x2048xf32> to vector<128x2048xf32>
    %22 = arith.subf %20, %21 : vector<128x2048xf32>
    %23 = arith.mulf %22, %22 : vector<128x2048xf32>
    %c5 = arith.constant 5 : index
    %c0_8 = arith.constant 0 : index
    %24 = vector.load %arg4[%c5, %c0_8] : memref<7x2048xf32, #tpu.memory_space<vmem>>, vector<1x2048xf32>
    %25 = vector.extract_strided_slice %1 {offsets = [0, 1], sizes = [128, 1], strides = [1, 1]} : vector<128x2xf32> to vector<128x1xf32>
    %26 = vector.broadcast %25 : vector<128x1xf32> to vector<128x2048xf32>
    %27 = vector.broadcast %24 : vector<1x2048xf32> to vector<128x2048xf32>
    %28 = arith.subf %26, %27 : vector<128x2048xf32>
    %29 = arith.mulf %28, %28 : vector<128x2048xf32>
    %30 = arith.addf %23, %29 : vector<128x2048xf32>
    %cst = arith.constant 1.600000e-01 : f32
    %31 = vector.broadcast %cst : f32 to vector<128x64xf32>
    %32 = arith.cmpf ole, %17, %31 : vector<128x64xf32>
    %33 = arith.extui %32 : vector<128x64xi1> to vector<128x64xi32>
    %34 = arith.sitofp %33 : vector<128x64xi32> to vector<128x64xf32>
    %cst_9 = arith.constant dense<0.000000e+00> : vector<128xf32>
    %35 = vector.multi_reduction <add>, %34, %cst_9 [1] : vector<128x64xf32> to vector<128xf32>
    %36 = vector.shape_cast %35 : vector<128xf32> to vector<128x1xf32>
    %cst_10 = arith.constant 1.000000e+00 : f32
    %37 = vector.broadcast %cst_10 : f32 to vector<128x1xf32>
    %38 = arith.maximumf %36, %37 : vector<128x1xf32>
    %cst_11 = arith.constant 1.000000e+00 : f32
    %39 = vector.broadcast %cst_11 : f32 to vector<128x1xf32>
    %40 = arith.divf %39, %38 : vector<128x1xf32>
    %41 = vector.broadcast %40 : vector<128x1xf32> to vector<128x64xf32>
    %42 = arith.mulf %34, %41 : vector<128x64xf32>
    %cst_12 = arith.constant 1.600000e-01 : f32
    %43 = vector.broadcast %cst_12 : f32 to vector<128x2048xf32>
    %44 = arith.cmpf ole, %30, %43 : vector<128x2048xf32>
    %45 = arith.extui %44 : vector<128x2048xi1> to vector<128x2048xi32>
    %46 = arith.sitofp %45 : vector<128x2048xi32> to vector<128x2048xf32>
    %47 = vector.broadcast %40 : vector<128x1xf32> to vector<128x2048xf32>
    %48 = arith.mulf %46, %47 : vector<128x2048xf32>
    %cst_13 = arith.constant 6.400000e-01 : f32
    %49 = vector.broadcast %cst_13 : f32 to vector<128x64xf32>
    %50 = arith.cmpf ole, %17, %49 : vector<128x64xf32>
    %51 = arith.extui %50 : vector<128x64xi1> to vector<128x64xi32>
    %52 = arith.sitofp %51 : vector<128x64xi32> to vector<128x64xf32>
    %cst_14 = arith.constant dense<0.000000e+00> : vector<128xf32>
    %53 = vector.multi_reduction <add>, %52, %cst_14 [1] : vector<128x64xf32> to vector<128xf32>
    %54 = vector.shape_cast %53 : vector<128xf32> to vector<128x1xf32>
    %cst_15 = arith.constant 1.000000e+00 : f32
    %55 = vector.broadcast %cst_15 : f32 to vector<128x1xf32>
    %56 = arith.maximumf %54, %55 : vector<128x1xf32>
    %cst_16 = arith.constant 1.000000e+00 : f32
    %57 = vector.broadcast %cst_16 : f32 to vector<128x1xf32>
    %58 = arith.divf %57, %56 : vector<128x1xf32>
    %59 = vector.broadcast %58 : vector<128x1xf32> to vector<128x64xf32>
    %60 = arith.mulf %52, %59 : vector<128x64xf32>
    %cst_17 = arith.constant 6.400000e-01 : f32
    %61 = vector.broadcast %cst_17 : f32 to vector<128x2048xf32>
    %62 = arith.cmpf ole, %30, %61 : vector<128x2048xf32>
    %63 = arith.extui %62 : vector<128x2048xi1> to vector<128x2048xi32>
    %64 = arith.sitofp %63 : vector<128x2048xi32> to vector<128x2048xf32>
    %65 = vector.broadcast %58 : vector<128x1xf32> to vector<128x2048xf32>
    %66 = arith.mulf %64, %65 : vector<128x2048xf32>
    %67 = arith.addf %42, %60 : vector<128x64xf32>
    %68 = arith.addf %48, %66 : vector<128x2048xf32>
    %c6 = arith.constant 6 : index
    %c0_18 = arith.constant 0 : index
    %69 = vector.load %arg4[%c6, %c0_18] : memref<7x2048xf32, #tpu.memory_space<vmem>>, vector<1x2048xf32>
    %c4_19 = arith.constant 4 : index
    %c0_20 = arith.constant 0 : index
    %70 = vector.load %arg4[%c4_19, %c0_20] : memref<7x2048xf32, #tpu.memory_space<vmem>>, vector<1x2048xf32>
    %c2 = arith.constant 2 : index
    %c0_21 = arith.constant 0 : index
    %71 = vector.load %arg4[%c2, %c0_21] : memref<7x2048xf32, #tpu.memory_space<vmem>>, vector<1x2048xf32>
    %72 = arith.mulf %70, %71 : vector<1x2048xf32>
    %73 = arith.addf %69, %72 : vector<1x2048xf32>
    %c5_22 = arith.constant 5 : index
    %c0_23 = arith.constant 0 : index
    %74 = vector.load %arg4[%c5_22, %c0_23] : memref<7x2048xf32, #tpu.memory_space<vmem>>, vector<1x2048xf32>
    %c3 = arith.constant 3 : index
    %c0_24 = arith.constant 0 : index
    %75 = vector.load %arg4[%c3, %c0_24] : memref<7x2048xf32, #tpu.memory_space<vmem>>, vector<1x2048xf32>
    %76 = arith.mulf %74, %75 : vector<1x2048xf32>
    %77 = arith.addf %73, %76 : vector<1x2048xf32>
    %78 = vector.extract_strided_slice %1 {offsets = [0, 0], sizes = [128, 1], strides = [1, 1]} : vector<128x2xf32> to vector<128x1xf32>
    %c0_25 = arith.constant 0 : index
    %c0_26 = arith.constant 0 : index
    %79 = vector.load %arg4[%c0_25, %c0_26] : memref<7x2048xf32, #tpu.memory_space<vmem>>, vector<1x2048xf32>
    %80 = vector.broadcast %78 : vector<128x1xf32> to vector<128x2048xf32>
    %81 = vector.broadcast %79 : vector<1x2048xf32> to vector<128x2048xf32>
    %82 = arith.mulf %80, %81 : vector<128x2048xf32>
    %83 = vector.broadcast %77 : vector<1x2048xf32> to vector<128x2048xf32>
    %84 = arith.addf %83, %82 : vector<128x2048xf32>
    %85 = vector.extract_strided_slice %1 {offsets = [0, 1], sizes = [128, 1], strides = [1, 1]} : vector<128x2xf32> to vector<128x1xf32>
    %c1 = arith.constant 1 : index
    %c0_27 = arith.constant 0 : index
    %86 = vector.load %arg4[%c1, %c0_27] : memref<7x2048xf32, #tpu.memory_space<vmem>>, vector<1x2048xf32>
    %87 = vector.broadcast %85 : vector<128x1xf32> to vector<128x2048xf32>
    %88 = vector.broadcast %86 : vector<1x2048xf32> to vector<128x2048xf32>
    %89 = arith.mulf %87, %88 : vector<128x2048xf32>
    %90 = arith.addf %84, %89 : vector<128x2048xf32>
    %91 = arith.mulf %90, %90 : vector<128x2048xf32>
    %92 = arith.mulf %90, %91 : vector<128x2048xf32>
    %cst_28 = arith.constant 4.471500e-02 : f32
    %93 = vector.broadcast %cst_28 : f32 to vector<128x2048xf32>
    %94 = arith.mulf %93, %92 : vector<128x2048xf32>
    %95 = arith.addf %90, %94 : vector<128x2048xf32>
    %cst_29 = arith.constant 0.797884583 : f32
    %96 = vector.broadcast %cst_29 : f32 to vector<128x2048xf32>
    %97 = arith.mulf %96, %95 : vector<128x2048xf32>
    %98 = math.tanh %97 : vector<128x2048xf32>
    %cst_30 = arith.constant 1.000000e+00 : f32
    %99 = vector.broadcast %cst_30 : f32 to vector<128x2048xf32>
    %100 = arith.addf %99, %98 : vector<128x2048xf32>
    %cst_31 = arith.constant 5.000000e-01 : f32
    %101 = vector.broadcast %cst_31 : f32 to vector<128x2048xf32>
    %102 = arith.mulf %101, %100 : vector<128x2048xf32>
    %103 = arith.mulf %90, %102 : vector<128x2048xf32>
    %104 = arith.mulf %103, %68 : vector<128x2048xf32>
    %c8 = arith.constant 8 : index
    %c0_32 = arith.constant 0 : index
    %105 = vector.load %arg3[%c8, %c0_32] : memref<128x64xf32, #tpu.memory_space<vmem>>, vector<32x16xf32>
    %106 = vector.shape_cast %3 : vector<64x16xf32> to vector<64x1x16xf32>
    %107 = vector.shape_cast %105 : vector<32x16xf32> to vector<1x32x16xf32>
    %108 = vector.broadcast %106 : vector<64x1x16xf32> to vector<64x32x16xf32>
    %109 = vector.broadcast %107 : vector<1x32x16xf32> to vector<64x32x16xf32>
    %110 = arith.mulf %108, %109 : vector<64x32x16xf32>
    %111 = vector.shape_cast %110 : vector<64x32x16xf32> to vector<2048x16xf32>
    %cst_33 = arith.constant dense<0.000000e+00> : vector<128x16xf32>
    %112 = tpu.matmul %104, %111, %cst_33 {dimension_numbers = #tpu.dot_dimension_numbers<[1], [0], [0], [1], [0, 0, 1, 1], [], []>} : vector<128x2048xf32>, vector<2048x16xf32>, vector<128x16xf32> -> vector<128x16xf32>
    %cst_34 = arith.constant dense<0.000000e+00> : vector<128x16xf32>
    %113 = tpu.matmul %67, %3, %cst_34 {dimension_numbers = #tpu.dot_dimension_numbers<[1], [0], [0], [1], [0, 0, 1, 1], [], []>} : vector<128x64xf32>, vector<64x16xf32>, vector<128x16xf32> -> vector<128x16xf32>
    %c40 = arith.constant 40 : index
    %c0_35 = arith.constant 0 : index
    %114 = vector.load %arg3[%c40, %c0_35] : memref<128x64xf32, #tpu.memory_space<vmem>>, vector<1x16xf32>
    %115 = vector.broadcast %114 : vector<1x16xf32> to vector<128x16xf32>
    %116 = arith.mulf %113, %115 : vector<128x16xf32>
    %117 = arith.addf %112, %116 : vector<128x16xf32>
    %118 = tpu.transpose %117, [1, 0] : vector<128x16xf32> -> vector<16x128xf32>
    %c48 = arith.constant 48 : index
    %c0_36 = arith.constant 0 : index
    %119 = vector.load %arg3[%c48, %c0_36] : memref<128x64xf32, #tpu.memory_space<vmem>>, vector<32x16xf32>
    %cst_37 = arith.constant dense<0.000000e+00> : vector<32x128xf32>
    %120 = tpu.matmul %119, %118, %cst_37 {dimension_numbers = #tpu.dot_dimension_numbers<[1], [0], [0], [1], [0, 0, 1, 1], [], []>} : vector<32x16xf32>, vector<16x128xf32>, vector<32x128xf32> -> vector<32x128xf32>
    %c88 = arith.constant 88 : index
    %c0_38 = arith.constant 0 : index
    %121 = vector.load %arg3[%c88, %c0_38] : memref<128x64xf32, #tpu.memory_space<vmem>>, vector<32x1xf32>
    %122 = vector.broadcast %121 : vector<32x1xf32> to vector<32x128xf32>
    %123 = arith.addf %120, %122 : vector<32x128xf32>
    %124 = arith.mulf %123, %123 : vector<32x128xf32>
    %125 = arith.mulf %123, %124 : vector<32x128xf32>
    %cst_39 = arith.constant 4.471500e-02 : f32
    %126 = vector.broadcast %cst_39 : f32 to vector<32x128xf32>
    %127 = arith.mulf %126, %125 : vector<32x128xf32>
    %128 = arith.addf %123, %127 : vector<32x128xf32>
    %cst_40 = arith.constant 0.797884583 : f32
    %129 = vector.broadcast %cst_40 : f32 to vector<32x128xf32>
    %130 = arith.mulf %129, %128 : vector<32x128xf32>
    %131 = math.tanh %130 : vector<32x128xf32>
    %cst_41 = arith.constant 1.000000e+00 : f32
    %132 = vector.broadcast %cst_41 : f32 to vector<32x128xf32>
    %133 = arith.addf %132, %131 : vector<32x128xf32>
    %cst_42 = arith.constant 5.000000e-01 : f32
    %134 = vector.broadcast %cst_42 : f32 to vector<32x128xf32>
    %135 = arith.mulf %134, %133 : vector<32x128xf32>
    %136 = arith.mulf %123, %135 : vector<32x128xf32>
    %c80 = arith.constant 80 : index
    %c0_43 = arith.constant 0 : index
    %137 = vector.load %arg3[%c80, %c0_43] : memref<128x64xf32, #tpu.memory_space<vmem>>, vector<4x32xf32>
    %cst_44 = arith.constant dense<0.000000e+00> : vector<4x128xf32>
    %138 = tpu.matmul %137, %136, %cst_44 {dimension_numbers = #tpu.dot_dimension_numbers<[1], [0], [0], [1], [0, 0, 1, 1], [], []>} : vector<4x32xf32>, vector<32x128xf32>, vector<4x128xf32> -> vector<4x128xf32>
    %c120 = arith.constant 120 : index
    %c0_45 = arith.constant 0 : index
    %139 = vector.load %arg3[%c120, %c0_45] : memref<128x64xf32, #tpu.memory_space<vmem>>, vector<4x1xf32>
    %140 = vector.broadcast %139 : vector<4x1xf32> to vector<4x128xf32>
    %141 = arith.addf %138, %140 : vector<4x128xf32>
    %c0_46 = arith.constant 0 : index
    %c0_47 = arith.constant 0 : index
    %c0_48 = arith.constant 0 : index
    %142 = vector.load %arg5[%c0_46, %c0_47, %c0_48] : memref<1x4x128xf32, #tpu.memory_space<vmem>>, vector<1x4x128xf32>
    %143 = vector.shape_cast %142 : vector<1x4x128xf32> to vector<4x128xf32>
    %144 = vector.shape_cast %141 : vector<4x128xf32> to vector<1x4x128xf32>
    tpu.vector_store %arg5[%c0_46, %c0_47, %c0_48], %144 {strides = array<i32>} : memref<1x4x128xf32, #tpu.memory_space<vmem>>, vector<1x4x128xf32>,
    return
  }
  func.func @transform_0(%arg0: i32) -> (i32, i32, i32) {
    %c0_i32 = arith.constant 0 : i32
    %c0_i32_0 = arith.constant 0 : i32
    %c0_i32_1 = arith.constant 0 : i32
    return %arg0, %c0_i32, %c0_i32_0 : i32, i32, i32
  }
  func.func @transform_1(%arg0: i32) -> (i32, i32, i32) {
    %c0_i32 = arith.constant 0 : i32
    %c0_i32_0 = arith.constant 0 : i32
    %c0_i32_1 = arith.constant 0 : i32
    return %arg0, %c0_i32, %c0_i32_0 : i32, i32, i32
  }
  func.func @transform_2(%arg0: i32) -> (i32, i32) {
    %c0_i32 = arith.constant 0 : i32
    %c0_i32_0 = arith.constant 0 : i32
    %c0_i32_1 = arith.constant 0 : i32
    return %c0_i32, %c0_i32_0 : i32, i32
  }
  func.func @transform_3(%arg0: i32) -> (i32, i32) {
    %c0_i32 = arith.constant 0 : i32
    %c0_i32_0 = arith.constant 0 : i32
    %c0_i32_1 = arith.constant 0 : i32
    return %c0_i32, %c0_i32_0 : i32, i32
  }
  func.func @transform_4(%arg0: i32) -> (i32, i32, i32) {
    %c0_i32 = arith.constant 0 : i32
    %c0_i32_0 = arith.constant 0 : i32
    %c0_i32_1 = arith.constant 0 : i32
    return %arg0, %c0_i32, %c0_i32_0 : i32, i32, i32
  }
}

</mosaic_0001>

<llo_original>
// kernel: tpu_custom_call.1
$region0: #{tpu_custom_call.1}
  #allocation0 [shape = 'u32[]', space=smem, size = 0x4, offset = 0x4, fixed_abs, tag = 'smem constant byte address 0x4 - core index']
  #allocation1 [shape = 'u32[144,128]{1,0:T(1,128)}', space=vmem, size = 0x12000, scoped, tag = 'internal scratch']
  %s0 = inlined_call_operand.vmem [shape: f32[2,128,2], index: 0, kind: input, shape index: {}]
  %s1 = inlined_call_operand.vmem [shape: f32[2,64,16], index: 1, kind: input, shape index: {}]
  %s2 = inlined_call_operand.vmem [shape: f32[128,64], index: 2, kind: input, shape index: {}]
  %s3 = inlined_call_operand.vmem [shape: f32[7,2048], index: 3, kind: input, shape index: {}]
  %s4 = inlined_call_operand.hbm [shape: f32[2,4,128], index: 4, kind: output, shape index: {}]
  %s5 = sld [smem:[#allocation0]]
  $region49: #{tpu_custom_call.1} parent=0
    _
  %s7 = ssub.s32 1, %s5
  %s8 = scalar_select 0, %s7, %s5
  $region1: #{tpu_custom_call.1} parent=0
    #allocation2 [shape = 'u8[4096]{0}', space=vmem, size = 0x1000, scoped, tag = 'output window, operand 0']
    #allocation3 [shape = 's32[2]{0}', space=sflag, size = 0x8, scoped, tag = 'scoped memory for tpu_custom_call.1']
    %9 = vsyncpa [#allocation3], 0
    %s10 = scalar_lea.sflag [#allocation3], 1
    %11 = vsyncpa %s10, 0
    loop: start=0, step=1, limit=4
    $region2: #{tpu_custom_call.1} parent=1 // loop_pre_header
      _
    $region3: #{tpu_custom_call.1} parent=1 // loop_header
      %s13 = sphi 0, %s17
      %p14 = scmp.ge.s32.totalorder %s13, 4
      %s23 = sphi 0, %s25
      %s26 = sphi 0, %s23
      %s27 = sphi 0, %s26
      %s43 = sphi 0, %s27
      %s49 = sphi 0, %s51
      %s52 = sphi 0, %s49
      %s53 = sphi 0, %s52
      %s69 = sphi 0, %s53
      %s73 = sphi 0, %s73
      %s75 = sphi 0, %s73
      %s76 = sphi 0, %s75
      %s90 = sphi 0, %s76
      %s94 = sphi 0, %s94
      %s96 = sphi 0, %s94
      %s97 = sphi 0, %s96
      %s111 = sphi 0, %s97
      %s117 = sphi 0, %s119
      %s120 = sphi 0, %s117
      %s121 = sphi 0, %s120
      %s137 = sphi 0, %s121
    $region4: #{tpu_custom_call.1} parent=1 // loop_header_branch
      %16 = sbr.rel (%p14) target = $region8
    $region5: #{tpu_custom_call.1} parent=1 // loop_body
      %s18 = ssub.s32 %s13, 1
      %s19 = ssub.s32 %s13, 2
      %s20 = sadd.s32 %s13, 1
      %s21 = ssub.s32 %s13, %s20
      %p22 = scmp.eq.s32.totalorder %s21, 0
      %s24 = sadd.s32 %s23, 1
      %s25 = scalar_select %p22, %s23, %s24
      %p28 = pneg %p22
      %p29 = scmp.eq.s32.totalorder %s13, 1
      %p30 = por %p28, %p29
      %p31 = scmp.ne.s32.totalorder %s23, %s26
      %p32 = scmp.eq.s32.totalorder %s13, 0
      %p33 = por %p31, %p32
      %p34 = scmp.ne.s32.totalorder %s23, %s26
      %p35 = scmp.eq.s32.totalorder %s18, 1
      %p36 = por %p34, %p35
      %p37 = scmp.ne.s32.totalorder %s26, %s27
      %p38 = scmp.eq.s32.totalorder %s18, 0
      %p39 = por %p37, %p38
      %p40 = scmp.ne.s32.totalorder %s26, %s27
      %p41 = scmp.eq.s32.totalorder %s19, 1
      %p42 = por %p40, %p41
      %p44 = scmp.ne.s32.totalorder %s27, %s43
      %p45 = scmp.eq.s32.totalorder %s19, 0
      %p46 = por %p44, %p45
      %s47 = ssub.s32 %s13, %s20
      %p48 = scmp.eq.s32.totalorder %s47, 0
      %s50 = sadd.s32 %s49, 1
      %s51 = scalar_select %p48, %s49, %s50
      %p54 = pneg %p48
      %p55 = scmp.eq.s32.totalorder %s13, 1
      %p56 = por %p54, %p55
      %p57 = scmp.ne.s32.totalorder %s49, %s52
      %p58 = scmp.eq.s32.totalorder %s13, 0
      %p59 = por %p57, %p58
      %p60 = scmp.ne.s32.totalorder %s49, %s52
      %p61 = scmp.eq.s32.totalorder %s18, 1
      %p62 = por %p60, %p61
      %p63 = scmp.ne.s32.totalorder %s52, %s53
      %p64 = scmp.eq.s32.totalorder %s18, 0
      %p65 = por %p63, %p64
      %p66 = scmp.ne.s32.totalorder %s52, %s53
      %p67 = scmp.eq.s32.totalorder %s19, 1
      %p68 = por %p66, %p67
      %p70 = scmp.ne.s32.totalorder %s53, %s69
      %p71 = scmp.eq.s32.totalorder %s19, 0
      %p72 = por %p70, %p71
      %s74 = sadd.s32 %s73, 1
      %p77 = scmp.eq.s32.totalorder %s13, 1
      %p78 = scmp.ne.s32.totalorder %s73, %s75
      %p79 = scmp.eq.s32.totalorder %s13, 0
      %p80 = por %p78, %p79
      %p81 = scmp.ne.s32.totalorder %s73, %s75
      %p82 = scmp.eq.s32.totalorder %s18, 1
      %p83 = por %p81, %p82
      %p84 = scmp.ne.s32.totalorder %s75, %s76
      %p85 = scmp.eq.s32.totalorder %s18, 0
      %p86 = por %p84, %p85
      %p87 = scmp.ne.s32.totalorder %s75, %s76
      %p88 = scmp.eq.s32.totalorder %s19, 1
      %p89 = por %p87, %p88
      %p91 = scmp.ne.s32.totalorder %s76, %s90
      %p92 = scmp.eq.s32.totalorder %s19, 0
      %p93 = por %p91, %p92
      %s95 = sadd.s32 %s94, 1
      %p98 = scmp.eq.s32.totalorder %s13, 1
      %p99 = scmp.ne.s32.totalorder %s94, %s96
      %p100 = scmp.eq.s32.totalorder %s13, 0
      %p101 = por %p99, %p100
      %p102 = scmp.ne.s32.totalorder %s94, %s96
      %p103 = scmp.eq.s32.totalorder %s18, 1
      %p104 = por %p102, %p103
      %p105 = scmp.ne.s32.totalorder %s96, %s97
      %p106 = scmp.eq.s32.totalorder %s18, 0
      %p107 = por %p105, %p106
      %p108 = scmp.ne.s32.totalorder %s96, %s97
      %p109 = scmp.eq.s32.totalorder %s19, 1
      %p110 = por %p108, %p109
      %p112 = scmp.ne.s32.totalorder %s97, %s111
      %p113 = scmp.eq.s32.totalorder %s19, 0
      %p114 = por %p112, %p113
      %s115 = ssub.s32 %s13, %s20
      %p116 = scmp.eq.s32.totalorder %s115, 0
      %s118 = sadd.s32 %s117, 1
      %s119 = scalar_select %p116, %s117, %s118
      %p122 = pneg %p116
      %p123 = scmp.eq.s32.totalorder %s13, 1
      %p124 = por %p122, %p123
      %p125 = scmp.ne.s32.totalorder %s117, %s120
      %p126 = scmp.eq.s32.totalorder %s13, 0
      %p127 = por %p125, %p126
      %p128 = scmp.ne.s32.totalorder %s117, %s120
      %p129 = scmp.eq.s32.totalorder %s18, 1
      %p130 = por %p128, %p129
      %p131 = scmp.ne.s32.totalorder %s120, %s121
      %p132 = scmp.eq.s32.totalorder %s18, 0
      %p133 = por %p131, %p132
      %p134 = scmp.ne.s32.totalorder %s120, %s121
      %p135 = scmp.eq.s32.totalorder %s19, 1
      %p136 = por %p134, %p135
      %p138 = scmp.ne.s32.totalorder %s121, %s137
      %p139 = scmp.eq.s32.totalorder %s19, 0
      %p140 = por %p138, %p139
      %p141 = scmp.le.s32.totalorder 1, %s13
      %p142 = scmp.lt.s32.totalorder %s13, 3
      %p143 = pnand %p141, %p142
      %p144 = pneg %p143
      // Predicated region
      $region9: #{tpu_custom_call.1} parent=5 // pred_check
        _
      $region10: #{tpu_custom_call.1} parent=5 // pred_check_branch
        %146 = sbr.rel (%p143) target = $region12
      $region11: #{tpu_custom_call.1} parent=5 // pred_region
        %s147 = ssub.s32 %s13, 1
        // Predicated region
        $region13: #{tpu_custom_call.1} parent=11 // pred_check
          %p148 = pneg %p86
        $region14: #{tpu_custom_call.1} parent=11 // pred_check_branch
          %150 = sbr.rel (%p148) target = $region16
        $region15: #{tpu_custom_call.1} parent=11 // pred_region
          _
        $region16: #{tpu_custom_call.1} parent=11 // pred_fallthru
          _
        // Predicated region
        $region17: #{tpu_custom_call.1} parent=11 // pred_check
          %p151 = pneg %p107
        $region18: #{tpu_custom_call.1} parent=11 // pred_check_branch
          %153 = sbr.rel (%p151) target = $region20
        $region19: #{tpu_custom_call.1} parent=11 // pred_region
          _
        $region20: #{tpu_custom_call.1} parent=11 // pred_fallthru
          _
      $region12: #{tpu_custom_call.1} parent=5 // pred_fallthru
        _
      %p154 = scmp.lt.s32.totalorder %s13, 2
      // Predicated region
      $region21: #{tpu_custom_call.1} parent=5 // pred_check
        %p155 = pneg %p154
      $region22: #{tpu_custom_call.1} parent=5 // pred_check_branch
        %157 = sbr.rel (%p155) target = $region24
      $region23: #{tpu_custom_call.1} parent=5 // pred_region
        // Predicated region
        $region25: #{tpu_custom_call.1} parent=23 // pred_check
          %p158 = pneg %p33
        $region26: #{tpu_custom_call.1} parent=23 // pred_check_branch
          %160 = sbr.rel (%p158) target = $region28
        $region27: #{tpu_custom_call.1} parent=23 // pred_region
          %p161 = scmp.lt.s32.totalorder %s13, 1
          %s162 = scalar_select %p161, %s13, 1
          %s163 = smul.addr %s162, 16
          %s164 = smul.addr %s163, 8
          %s165 = scalar_lea.vmem %s0, %s164
        $region28: #{tpu_custom_call.1} parent=23 // pred_fallthru
          _
        // Predicated region
        $region29: #{tpu_custom_call.1} parent=23 // pred_check
          %p166 = pneg %p59
        $region30: #{tpu_custom_call.1} parent=23 // pred_check_branch
          %168 = sbr.rel (%p166) target = $region32
        $region31: #{tpu_custom_call.1} parent=23 // pred_region
          %p169 = scmp.lt.s32.totalorder %s13, 1
          %s170 = scalar_select %p169, %s13, 1
          %s171 = smul.addr %s170, 8
          %s172 = smul.addr %s171, 8
          %s173 = scalar_lea.vmem %s1, %s172
        $region32: #{tpu_custom_call.1} parent=23 // pred_fallthru
          _
      $region24: #{tpu_custom_call.1} parent=5 // pred_fallthru
        _
      %p174 = scmp.le.s32.totalorder 1, %s13
      %p175 = scmp.lt.s32.totalorder %s13, 3
      %p176 = pnand %p174, %p175
      %p177 = pneg %p176
      // Predicated region
      $region33: #{tpu_custom_call.1} parent=5 // pred_check
        _
      $region34: #{tpu_custom_call.1} parent=5 // pred_check_branch
        %179 = sbr.rel (%p176) target = $region36
      $region35: #{tpu_custom_call.1} parent=5 // pred_region
        %s180 = ssub.s32 %s13, 1
        %p181 = scmp.lt.s32.totalorder %s18, 1
        %s182 = scalar_select %p181, %s18, 1
        %s183 = smul.addr %s182, 16
        %s184 = smul.addr %s183, 8
        %s185 = scalar_lea.vmem %s0, %s184
        %p186 = pneg %p39
        %p187 = pneg %p36
        %p188 = scmp.lt.s32.totalorder %s18, 1
        %s189 = scalar_select %p188, %s18, 1
        %s190 = smul.addr %s189, 8
        %s191 = smul.addr %s190, 8
        %s192 = scalar_lea.vmem %s1, %s191
        %p193 = pneg %p65
        %p194 = pneg %p62
        %p195 = pneg %p86
        %p196 = pneg %p83
        %p197 = pneg %p107
        %p198 = pneg %p104
        %p199 = pneg %p133
        %p200 = pneg %p130
        %s201 = sand.u32 %s120, 1
        %s202 = scalar_lea.sflag [#allocation3], %s201
        %s203 = sand.u32 %s120, 1
        %s204 = smul.addr %s203, 4
        %s205 = scalar_lea.vmem [#allocation2], %s204
        %p206 = scmp.lt.s32.totalorder %s18, 1
        %s207 = scalar_select %p206, %s18, 1
        %s208 = smul.addr %s207, 16
        %s209 = smul.addr %s208, 8
        %s210 = scalar_lea.vmem %s0, %s209
        %p211 = scmp.lt.s32.totalorder %s18, 1
        %s212 = scalar_select %p211, %s18, 1
        %s213 = smul.addr %s212, 8
        %s214 = smul.addr %s213, 8
        %s215 = scalar_lea.vmem %s1, %s214
        %v216 = vld [vmem:[%s210] sm:$0xff]
        %v217 = vld [vmem:[%s210 + $0x8] sm:$0xff]
        %v218 = vld [vmem:[%s210 + $0x10] sm:$0xff]
        %v219 = vld [vmem:[%s210 + $0x18] sm:$0xff]
        %v220 = vld [vmem:[%s210 + $0x20] sm:$0xff]
        %v221 = vld [vmem:[%s210 + $0x28] sm:$0xff]
        %v222 = vld [vmem:[%s210 + $0x30] sm:$0xff]
        %v223 = vld [vmem:[%s210 + $0x38] sm:$0xff]
        %v224 = vld [vmem:[%s210 + $0x40] sm:$0xff]
        %v225 = vld [vmem:[%s210 + $0x48] sm:$0xff]
        %v226 = vld [vmem:[%s210 + $0x50] sm:$0xff]
        %v227 = vld [vmem:[%s210 + $0x58] sm:$0xff]
        %v228 = vld [vmem:[%s210 + $0x60] sm:$0xff]
        %v229 = vld [vmem:[%s210 + $0x68] sm:$0xff]
        %v230 = vld [vmem:[%s210 + $0x70] sm:$0xff]
        %v231 = vld [vmem:[%s210 + $0x78] sm:$0xff]
        %v232 = vld [vmem:[%s215] sm:$0xff]
        %v233 = vld [vmem:[%s215 + $0x8] sm:$0xff]
        %v234 = vld [vmem:[%s215 + $0x10] sm:$0xff]
        %v235 = vld [vmem:[%s215 + $0x18] sm:$0xff]
        %v236 = vld [vmem:[%s215 + $0x20] sm:$0xff]
        %v237 = vld [vmem:[%s215 + $0x28] sm:$0xff]
        %v238 = vld [vmem:[%s215 + $0x30] sm:$0xff]
        %v239 = vld [vmem:[%s215 + $0x38] sm:$0xff]
        %v240 = vld [vmem:[%s2] sm:$0x3]
        %242 = vset.pattern.permute.xlu0 0
        %243 = vperm.xlu0 %242, %v216
        %v244 = vpop.permute.xlu0 %243
        %247 = vset.pattern.permute.xlu0 0
        %248 = vperm.xlu0 %247, %v217
        %v249 = vpop.permute.xlu0 %248
        %252 = vset.pattern.permute.xlu0 0
        %253 = vperm.xlu0 %252, %v218
        %v254 = vpop.permute.xlu0 %253
        %257 = vset.pattern.permute.xlu0 0
        %258 = vperm.xlu0 %257, %v219
        %v259 = vpop.permute.xlu0 %258
        %262 = vset.pattern.permute.xlu0 0
        %263 = vperm.xlu0 %262, %v220
        %v264 = vpop.permute.xlu0 %263
        %267 = vset.pattern.permute.xlu0 0
        %268 = vperm.xlu0 %267, %v221
        %v269 = vpop.permute.xlu0 %268
        %272 = vset.pattern.permute.xlu0 0
        %273 = vperm.xlu0 %272, %v222
        %v274 = vpop.permute.xlu0 %273
        %277 = vset.pattern.permute.xlu0 0
        %278 = vperm.xlu0 %277, %v223
        %v279 = vpop.permute.xlu0 %278
        %282 = vset.pattern.permute.xlu0 0
        %283 = vperm.xlu0 %282, %v224
        %v284 = vpop.permute.xlu0 %283
        %287 = vset.pattern.permute.xlu0 0
        %288 = vperm.xlu0 %287, %v225
        %v289 = vpop.permute.xlu0 %288
        %292 = vset.pattern.permute.xlu0 0
        %293 = vperm.xlu0 %292, %v226
        %v294 = vpop.permute.xlu0 %293
        %297 = vset.pattern.permute.xlu0 0
        %298 = vperm.xlu0 %297, %v227
        %v299 = vpop.permute.xlu0 %298
        %302 = vset.pattern.permute.xlu0 0
        %303 = vperm.xlu0 %302, %v228
        %v304 = vpop.permute.xlu0 %303
        %307 = vset.pattern.permute.xlu0 0
        %308 = vperm.xlu0 %307, %v229
        %v309 = vpop.permute.xlu0 %308
        %312 = vset.pattern.permute.xlu0 0
        %313 = vperm.xlu0 %312, %v230
        %v314 = vpop.permute.xlu0 %313
        %317 = vset.pattern.permute.xlu0 0
        %318 = vperm.xlu0 %317, %v231
        %v319 = vpop.permute.xlu0 %318
        %v321 = vlaneseq
        %v322 = vshrl.u32 %v321, 7
        %v323 = vsub.s32 0, %v322
        %v324 = vrot.slane %v240, %v323
        %v325 = vsub.f32 %v244, %v324
        %v326 = vsub.f32 %v249, %v324
        %v327 = vsub.f32 %v254, %v324
        %v328 = vsub.f32 %v259, %v324
        %v329 = vsub.f32 %v264, %v324
        %v330 = vsub.f32 %v269, %v324
        %v331 = vsub.f32 %v274, %v324
        %v332 = vsub.f32 %v279, %v324
        %v333 = vsub.f32 %v284, %v324
        %v334 = vsub.f32 %v289, %v324
        %v335 = vsub.f32 %v294, %v324
        %v336 = vsub.f32 %v299, %v324
        %v337 = vsub.f32 %v304, %v324
        %v338 = vsub.f32 %v309, %v324
        %v339 = vsub.f32 %v314, %v324
        %v340 = vsub.f32 %v319, %v324
        %v341 = vmul.f32 %v325, %v325
        %v342 = vmul.f32 %v326, %v326
        %v343 = vmul.f32 %v327, %v327
        %v344 = vmul.f32 %v328, %v328
        %v345 = vmul.f32 %v329, %v329
        %v346 = vmul.f32 %v330, %v330
        %v347 = vmul.f32 %v331, %v331
        %v348 = vmul.f32 %v332, %v332
        %v349 = vmul.f32 %v333, %v333
        %v350 = vmul.f32 %v334, %v334
        %v351 = vmul.f32 %v335, %v335
        %v352 = vmul.f32 %v336, %v336
        %v353 = vmul.f32 %v337, %v337
        %v354 = vmul.f32 %v338, %v338
        %v355 = vmul.f32 %v339, %v339
        %v356 = vmul.f32 %v340, %v340
        %357 = vset.pattern.permute.xlu0 1
        %358 = vperm.xlu0 %357, %v216
        %v359 = vpop.permute.xlu0 %358
        %361 = vset.pattern.permute.xlu0 1
        %362 = vperm.xlu0 %361, %v217
        %v363 = vpop.permute.xlu0 %362
        %365 = vset.pattern.permute.xlu0 1
        %366 = vperm.xlu0 %365, %v218
        %v367 = vpop.permute.xlu0 %366
        %369 = vset.pattern.permute.xlu0 1
        %370 = vperm.xlu0 %369, %v219
        %v371 = vpop.permute.xlu0 %370
        %373 = vset.pattern.permute.xlu0 1
        %374 = vperm.xlu0 %373, %v220
        %v375 = vpop.permute.xlu0 %374
        %377 = vset.pattern.permute.xlu0 1
        %378 = vperm.xlu0 %377, %v221
        %v379 = vpop.permute.xlu0 %378
        %381 = vset.pattern.permute.xlu0 1
        %382 = vperm.xlu0 %381, %v222
        %v383 = vpop.permute.xlu0 %382
        %385 = vset.pattern.permute.xlu0 1
        %386 = vperm.xlu0 %385, %v223
        %v387 = vpop.permute.xlu0 %386
        %389 = vset.pattern.permute.xlu0 1
        %390 = vperm.xlu0 %389, %v224
        %v391 = vpop.permute.xlu0 %390
        %393 = vset.pattern.permute.xlu0 1
        %394 = vperm.xlu0 %393, %v225
        %v395 = vpop.permute.xlu0 %394
        %397 = vset.pattern.permute.xlu0 1
        %398 = vperm.xlu0 %397, %v226
        %v399 = vpop.permute.xlu0 %398
        %401 = vset.pattern.permute.xlu0 1
        %402 = vperm.xlu0 %401, %v227
        %v403 = vpop.permute.xlu0 %402
        %405 = vset.pattern.permute.xlu0 1
        %406 = vperm.xlu0 %405, %v228
        %v407 = vpop.permute.xlu0 %406
        %409 = vset.pattern.permute.xlu0 1
        %410 = vperm.xlu0 %409, %v229
        %v411 = vpop.permute.xlu0 %410
        %413 = vset.pattern.permute.xlu0 1
        %414 = vperm.xlu0 %413, %v230
        %v415 = vpop.permute.xlu0 %414
        %417 = vset.pattern.permute.xlu0 1
        %418 = vperm.xlu0 %417, %v231
        %v419 = vpop.permute.xlu0 %418
        %v421 = vlaneseq
        %v422 = vshrl.u32 %v421, 7
        %v423 = vsub.s32 1, %v422
        %v424 = vrot.slane %v240, %v423
        %v425 = vsub.f32 %v359, %v424
        %v426 = vsub.f32 %v363, %v424
        %v427 = vsub.f32 %v367, %v424
        %v428 = vsub.f32 %v371, %v424
        %v429 = vsub.f32 %v375, %v424
        %v430 = vsub.f32 %v379, %v424
        %v431 = vsub.f32 %v383, %v424
        %v432 = vsub.f32 %v387, %v424
        %v433 = vsub.f32 %v391, %v424
        %v434 = vsub.f32 %v395, %v424
        %v435 = vsub.f32 %v399, %v424
        %v436 = vsub.f32 %v403, %v424
        %v437 = vsub.f32 %v407, %v424
        %v438 = vsub.f32 %v411, %v424
        %v439 = vsub.f32 %v415, %v424
        %v440 = vsub.f32 %v419, %v424
        %v441 = vmul.f32 %v425, %v425
        %v442 = vmul.f32 %v426, %v426
        %v443 = vmul.f32 %v427, %v427
        %v444 = vmul.f32 %v428, %v428
        %v445 = vmul.f32 %v429, %v429
        %v446 = vmul.f32 %v430, %v430
        %v447 = vmul.f32 %v431, %v431
        %v448 = vmul.f32 %v432, %v432
        %v449 = vmul.f32 %v433, %v433
        %v450 = vmul.f32 %v434, %v434
        %v451 = vmul.f32 %v435, %v435
        %v452 = vmul.f32 %v436, %v436
        %v453 = vmul.f32 %v437, %v437
        %v454 = vmul.f32 %v438, %v438
        %v455 = vmul.f32 %v439, %v439
        %v456 = vmul.f32 %v440, %v440
        %v457 = vadd.f32 %v341, %v441
        %v458 = vadd.f32 %v342, %v442
        %v459 = vadd.f32 %v343, %v443
        %v460 = vadd.f32 %v344, %v444
        %v461 = vadd.f32 %v345, %v445
        %v462 = vadd.f32 %v346, %v446
        %v463 = vadd.f32 %v347, %v447
        %v464 = vadd.f32 %v348, %v448
        %v465 = vadd.f32 %v349, %v449
        %v466 = vadd.f32 %v350, %v450
        %v467 = vadd.f32 %v351, %v451
        %v468 = vadd.f32 %v352, %v452
        %v469 = vadd.f32 %v353, %v453
        %v470 = vadd.f32 %v354, %v454
        %v471 = vadd.f32 %v355, %v455
        %v472 = vadd.f32 %v356, %v456
        %s473 = scalar_lea.vmem %s3, 4
        %v474 = vld [vmem:[%s473] ss:$8 sm:$0xf]
        %v475 = vld [vmem:[%s473] ss:$8 sm:$0xf0]
        %v476 = vor.u32 %v474, %v475
        %s477 = scalar_lea.vmem %s3, 68
        %v478 = vld [vmem:[%s477] ss:$8 sm:$0xf]
        %v479 = vld [vmem:[%s477] ss:$8 sm:$0xf0]
        %v480 = vor.u32 %v478, %v479
        %v483 = vlaneseq
        %v484 = vshrl.u32 %v483, 7
        %v485 = vsub.s32 0, %v484
        %v486 = vrot.slane %v476, %v485
        %v487 = vlaneseq
        %v488 = vshrl.u32 %v487, 7
        %v489 = vsub.s32 1, %v488
        %v490 = vrot.slane %v476, %v489
        %v491 = vlaneseq
        %v492 = vshrl.u32 %v491, 7
        %v493 = vsub.s32 2, %v492
        %v494 = vrot.slane %v476, %v493
        %v495 = vlaneseq
        %v496 = vshrl.u32 %v495, 7
        %v497 = vsub.s32 3, %v496
        %v498 = vrot.slane %v476, %v497
        %v499 = vlaneseq
        %v500 = vshrl.u32 %v499, 7
        %v501 = vsub.s32 4, %v500
        %v502 = vrot.slane %v476, %v501
        %v503 = vlaneseq
        %v504 = vshrl.u32 %v503, 7
        %v505 = vsub.s32 5, %v504
        %v506 = vrot.slane %v476, %v505
        %v507 = vlaneseq
        %v508 = vshrl.u32 %v507, 7
        %v509 = vsub.s32 6, %v508
        %v510 = vrot.slane %v476, %v509
        %v511 = vlaneseq
        %v512 = vshrl.u32 %v511, 7
        %v513 = vsub.s32 7, %v512
        %v514 = vrot.slane %v476, %v513
        %v515 = vlaneseq
        %v516 = vshrl.u32 %v515, 7
        %v517 = vsub.s32 0, %v516
        %v518 = vrot.slane %v480, %v517
        %v519 = vlaneseq
        %v520 = vshrl.u32 %v519, 7
        %v521 = vsub.s32 1, %v520
        %v522 = vrot.slane %v480, %v521
        %v523 = vlaneseq
        %v524 = vshrl.u32 %v523, 7
        %v525 = vsub.s32 2, %v524
        %v526 = vrot.slane %v480, %v525
        %v527 = vlaneseq
        %v528 = vshrl.u32 %v527, 7
        %v529 = vsub.s32 3, %v528
        %v530 = vrot.slane %v480, %v529
        %v531 = vlaneseq
        %v532 = vshrl.u32 %v531, 7
        %v533 = vsub.s32 4, %v532
        %v534 = vrot.slane %v480, %v533
        %v535 = vlaneseq
        %v536 = vshrl.u32 %v535, 7
        %v537 = vsub.s32 5, %v536
        %v538 = vrot.slane %v480, %v537
        %v539 = vlaneseq
        %v540 = vshrl.u32 %v539, 7
        %v541 = vsub.s32 6, %v540
        %v542 = vrot.slane %v480, %v541
        %v543 = vlaneseq
        %v544 = vshrl.u32 %v543, 7
        %v545 = vsub.s32 7, %v544
        %v546 = vrot.slane %v480, %v545
        %v563 = vsub.f32 %v244, %v486
        %v564 = vsub.f32 %v244, %v490
        %v565 = vsub.f32 %v244, %v494
        %v566 = vsub.f32 %v244, %v498
        %v567 = vsub.f32 %v244, %v502
        %v568 = vsub.f32 %v244, %v506
        %v569 = vsub.f32 %v244, %v510
        %v570 = vsub.f32 %v244, %v514
        %v571 = vsub.f32 %v244, %v518
        %v572 = vsub.f32 %v244, %v522
        %v573 = vsub.f32 %v244, %v526
        %v574 = vsub.f32 %v244, %v530
        %v575 = vsub.f32 %v244, %v534
        %v576 = vsub.f32 %v244, %v538
        %v577 = vsub.f32 %v244, %v542
        %v578 = vsub.f32 %v244, %v546
        %v579 = vsub.f32 %v249, %v486
        %v580 = vsub.f32 %v249, %v490
        %v581 = vsub.f32 %v249, %v494
        %v582 = vsub.f32 %v249, %v498
        %v583 = vsub.f32 %v249, %v502
        %v584 = vsub.f32 %v249, %v506
        %v585 = vsub.f32 %v249, %v510
        %v586 = vsub.f32 %v249, %v514
        %v587 = vsub.f32 %v249, %v518
        %v588 = vsub.f32 %v249, %v522
        %v589 = vsub.f32 %v249, %v526
        %v590 = vsub.f32 %v249, %v530
        %v591 = vsub.f32 %v249, %v534
        %v592 = vsub.f32 %v249, %v538
        %v593 = vsub.f32 %v249, %v542
        %v594 = vsub.f32 %v249, %v546
        %v595 = vsub.f32 %v254, %v486
        %v596 = vsub.f32 %v254, %v490
        %v597 = vsub.f32 %v254, %v494
        %v598 = vsub.f32 %v254, %v498
        %v599 = vsub.f32 %v254, %v502
        %v600 = vsub.f32 %v254, %v506
        %v601 = vsub.f32 %v254, %v510
        %v602 = vsub.f32 %v254, %v514
        %v603 = vsub.f32 %v254, %v518
        %v604 = vsub.f32 %v254, %v522
        %v605 = vsub.f32 %v254, %v526
        %v606 = vsub.f32 %v254, %v530
        %v607 = vsub.f32 %v254, %v534
        %v608 = vsub.f32 %v254, %v538
        %v609 = vsub.f32 %v254, %v542
        %v610 = vsub.f32 %v254, %v546
        %v611 = vsub.f32 %v259, %v486
        %v612 = vsub.f32 %v259, %v490
        %v613 = vsub.f32 %v259, %v494
        %v614 = vsub.f32 %v259, %v498
        %v615 = vsub.f32 %v259, %v502
        %v616 = vsub.f32 %v259, %v506
        %v617 = vsub.f32 %v259, %v510
        %v618 = vsub.f32 %v259, %v514
        %v619 = vsub.f32 %v259, %v518
        %v620 = vsub.f32 %v259, %v522
        %v621 = vsub.f32 %v259, %v526
        %v622 = vsub.f32 %v259, %v530
        %v623 = vsub.f32 %v259, %v534
        %v624 = vsub.f32 %v259, %v538
        %v625 = vsub.f32 %v259, %v542
        %v626 = vsub.f32 %v259, %v546
        %v627 = vsub.f32 %v264, %v486
        %v628 = vsub.f32 %v264, %v490
        %v629 = vsub.f32 %v264, %v494
        %v630 = vsub.f32 %v264, %v498
        %v631 = vsub.f32 %v264, %v502
        %v632 = vsub.f32 %v264, %v506
        %v633 = vsub.f32 %v264, %v510
        %v634 = vsub.f32 %v264, %v514
        %v635 = vsub.f32 %v264, %v518
        %v636 = vsub.f32 %v264, %v522
        %v637 = vsub.f32 %v264, %v526
        %v638 = vsub.f32 %v264, %v530
        %v639 = vsub.f32 %v264, %v534
        %v640 = vsub.f32 %v264, %v538
        %v641 = vsub.f32 %v264, %v542
        %v642 = vsub.f32 %v264, %v546
        %v643 = vsub.f32 %v269, %v486
        %v644 = vsub.f32 %v269, %v490
        %v645 = vsub.f32 %v269, %v494
        %v646 = vsub.f32 %v269, %v498
        %v647 = vsub.f32 %v269, %v502
        %v648 = vsub.f32 %v269, %v506
        %v649 = vsub.f32 %v269, %v510
        %v650 = vsub.f32 %v269, %v514
        %v651 = vsub.f32 %v269, %v518
        %v652 = vsub.f32 %v269, %v522
        %v653 = vsub.f32 %v269, %v526
        %v654 = vsub.f32 %v269, %v530
        %v655 = vsub.f32 %v269, %v534
        %v656 = vsub.f32 %v269, %v538
        %v657 = vsub.f32 %v269, %v542
        %v658 = vsub.f32 %v269, %v546
        %v659 = vsub.f32 %v274, %v486
        %v660 = vsub.f32 %v274, %v490
        %v661 = vsub.f32 %v274, %v494
        %v662 = vsub.f32 %v274, %v498
        %v663 = vsub.f32 %v274, %v502
        %v664 = vsub.f32 %v274, %v506
        %v665 = vsub.f32 %v274, %v510
        %v666 = vsub.f32 %v274, %v514
        %v667 = vsub.f32 %v274, %v518
        %v668 = vsub.f32 %v274, %v522
        %v669 = vsub.f32 %v274, %v526
        %v670 = vsub.f32 %v274, %v530
        %v671 = vsub.f32 %v274, %v534
        %v672 = vsub.f32 %v274, %v538
        %v673 = vsub.f32 %v274, %v542
        %v674 = vsub.f32 %v274, %v546
        %v675 = vsub.f32 %v279, %v486
        %v676 = vsub.f32 %v279, %v490
        %v677 = vsub.f32 %v279, %v494
        %v678 = vsub.f32 %v279, %v498
        %v679 = vsub.f32 %v279, %v502
        %v680 = vsub.f32 %v279, %v506
        %v681 = vsub.f32 %v279, %v510
        %v682 = vsub.f32 %v279, %v514
        %v683 = vsub.f32 %v279, %v518
        %v684 = vsub.f32 %v279, %v522
        %v685 = vsub.f32 %v279, %v526
        %v686 = vsub.f32 %v279, %v530
        %v687 = vsub.f32 %v279, %v534
        %v688 = vsub.f32 %v279, %v538
        %v689 = vsub.f32 %v279, %v542
        %v690 = vsub.f32 %v279, %v546
        %v691 = vsub.f32 %v284, %v486
        %v692 = vsub.f32 %v284, %v490
        %v693 = vsub.f32 %v284, %v494
        %v694 = vsub.f32 %v284, %v498
        %v695 = vsub.f32 %v284, %v502
        %v696 = vsub.f32 %v284, %v506
        %v697 = vsub.f32 %v284, %v510
        %v698 = vsub.f32 %v284, %v514
        %v699 = vsub.f32 %v284, %v518
        %v700 = vsub.f32 %v284, %v522
        %v701 = vsub.f32 %v284, %v526
        %v702 = vsub.f32 %v284, %v530
        %v703 = vsub.f32 %v284, %v534
        %v704 = vsub.f32 %v284, %v538
        %v705 = vsub.f32 %v284, %v542
        %v706 = vsub.f32 %v284, %v546
        %v707 = vsub.f32 %v289, %v486
        %v708 = vsub.f32 %v289, %v490
        %v709 = vsub.f32 %v289, %v494
        %v710 = vsub.f32 %v289, %v498
        %v711 = vsub.f32 %v289, %v502
        %v712 = vsub.f32 %v289, %v506
        %v713 = vsub.f32 %v289, %v510
        %v714 = vsub.f32 %v289, %v514
        %v715 = vsub.f32 %v289, %v518
        %v716 = vsub.f32 %v289, %v522
        %v717 = vsub.f32 %v289, %v526
        %v718 = vsub.f32 %v289, %v530
        %v719 = vsub.f32 %v289, %v534
        %v720 = vsub.f32 %v289, %v538
        %v721 = vsub.f32 %v289, %v542
        %v722 = vsub.f32 %v289, %v546
        %v723 = vsub.f32 %v294, %v486
        %v724 = vsub.f32 %v294, %v490
        %v725 = vsub.f32 %v294, %v494
        %v726 = vsub.f32 %v294, %v498
        %v727 = vsub.f32 %v294, %v502
        %v728 = vsub.f32 %v294, %v506
        %v729 = vsub.f32 %v294, %v510
        %v730 = vsub.f32 %v294, %v514
        %v731 = vsub.f32 %v294, %v518
        %v732 = vsub.f32 %v294, %v522
        %v733 = vsub.f32 %v294, %v526
        %v734 = vsub.f32 %v294, %v530
        %v735 = vsub.f32 %v294, %v534
        %v736 = vsub.f32 %v294, %v538
        %v737 = vsub.f32 %v294, %v542
        %v738 = vsub.f32 %v294, %v546
        %v739 = vsub.f32 %v299, %v486
        %v740 = vsub.f32 %v299, %v490
        %v741 = vsub.f32 %v299, %v494
        %v742 = vsub.f32 %v299, %v498
        %v743 = vsub.f32 %v299, %v502
        %v744 = vsub.f32 %v299, %v506
        %v745 = vsub.f32 %v299, %v510
        %v746 = vsub.f32 %v299, %v514
        %v747 = vsub.f32 %v299, %v518
        %v748 = vsub.f32 %v299, %v522
        %v749 = vsub.f32 %v299, %v526
        %v750 = vsub.f32 %v299, %v530
        %v751 = vsub.f32 %v299, %v534
        %v752 = vsub.f32 %v299, %v538
        %v753 = vsub.f32 %v299, %v542
        %v754 = vsub.f32 %v299, %v546
        %v755 = vsub.f32 %v304, %v486
        %v756 = vsub.f32 %v304, %v490
        %v757 = vsub.f32 %v304, %v494
        %v758 = vsub.f32 %v304, %v498
        %v759 = vsub.f32 %v304, %v502
        %v760 = vsub.f32 %v304, %v506
        %v761 = vsub.f32 %v304, %v510
        %v762 = vsub.f32 %v304, %v514
        %v763 = vsub.f32 %v304, %v518
        %v764 = vsub.f32 %v304, %v522
        %v765 = vsub.f32 %v304, %v526
        %v766 = vsub.f32 %v304, %v530
        %v767 = vsub.f32 %v304, %v534
        %v768 = vsub.f32 %v304, %v538
        %v769 = vsub.f32 %v304, %v542
        %v770 = vsub.f32 %v304, %v546
        %v771 = vsub.f32 %v309, %v486
        %v772 = vsub.f32 %v309, %v490
        %v773 = vsub.f32 %v309, %v494
        %v774 = vsub.f32 %v309, %v498
        %v775 = vsub.f32 %v309, %v502
        %v776 = vsub.f32 %v309, %v506
        %v777 = vsub.f32 %v309, %v510
        %v778 = vsub.f32 %v309, %v514
        %v779 = vsub.f32 %v309, %v518
        %v780 = vsub.f32 %v309, %v522
        %v781 = vsub.f32 %v309, %v526
        %v782 = vsub.f32 %v309, %v530
        %v783 = vsub.f32 %v309, %v534
        %v784 = vsub.f32 %v309, %v538
        %v785 = vsub.f32 %v309, %v542
        %v786 = vsub.f32 %v309, %v546
        %v787 = vsub.f32 %v314, %v486
        %v788 = vsub.f32 %v314, %v490
        %v789 = vsub.f32 %v314, %v494
        %v790 = vsub.f32 %v314, %v498
        %v791 = vsub.f32 %v314, %v502
        %v792 = vsub.f32 %v314, %v506
        %v793 = vsub.f32 %v314, %v510
        %v794 = vsub.f32 %v314, %v514
        %v795 = vsub.f32 %v314, %v518
        %v796 = vsub.f32 %v314, %v522
        %v797 = vsub.f32 %v314, %v526
        %v798 = vsub.f32 %v314, %v530
        %v799 = vsub.f32 %v314, %v534
        %v800 = vsub.f32 %v314, %v538
        %v801 = vsub.f32 %v314, %v542
        %v802 = vsub.f32 %v314, %v546
        %v803 = vsub.f32 %v319, %v486
        %v804 = vsub.f32 %v319, %v490
        %v805 = vsub.f32 %v319, %v494
        %v806 = vsub.f32 %v319, %v498
        %v807 = vsub.f32 %v319, %v502
        %v808 = vsub.f32 %v319, %v506
        %v809 = vsub.f32 %v319, %v510
        %v810 = vsub.f32 %v319, %v514
        %v811 = vsub.f32 %v319, %v518
        %v812 = vsub.f32 %v319, %v522
        %v813 = vsub.f32 %v319, %v526
        %v814 = vsub.f32 %v319, %v530
        %v815 = vsub.f32 %v319, %v534
        %v816 = vsub.f32 %v319, %v538
        %v817 = vsub.f32 %v319, %v542
        %v818 = vsub.f32 %v319, %v546
        %v819 = vmul.f32 %v563, %v563
        %v820 = vmul.f32 %v564, %v564
        %v821 = vmul.f32 %v565, %v565
        %v822 = vmul.f32 %v566, %v566
        %v823 = vmul.f32 %v567, %v567
        %v824 = vmul.f32 %v568, %v568
        %v825 = vmul.f32 %v569, %v569
        %v826 = vmul.f32 %v570, %v570
        %v827 = vmul.f32 %v571, %v571
        %v828 = vmul.f32 %v572, %v572
        %v829 = vmul.f32 %v573, %v573
        %v830 = vmul.f32 %v574, %v574
        %v831 = vmul.f32 %v575, %v575
        %v832 = vmul.f32 %v576, %v576
        %v833 = vmul.f32 %v577, %v577
        %v834 = vmul.f32 %v578, %v578
        %v835 = vmul.f32 %v579, %v579
        %v836 = vmul.f32 %v580, %v580
        %v837 = vmul.f32 %v581, %v581
        %v838 = vmul.f32 %v582, %v582
        %v839 = vmul.f32 %v583, %v583
        %v840 = vmul.f32 %v584, %v584
        %v841 = vmul.f32 %v585, %v585
        %v842 = vmul.f32 %v586, %v586
        %v843 = vmul.f32 %v587, %v587
        %v844 = vmul.f32 %v588, %v588
        %v845 = vmul.f32 %v589, %v589
        %v846 = vmul.f32 %v590, %v590
        %v847 = vmul.f32 %v591, %v591
        %v848 = vmul.f32 %v592, %v592
        %v849 = vmul.f32 %v593, %v593
        %v850 = vmul.f32 %v594, %v594
        %v851 = vmul.f32 %v595, %v595
        %v852 = vmul.f32 %v596, %v596
        %v853 = vmul.f32 %v597, %v597
        %v854 = vmul.f32 %v598, %v598
        %v855 = vmul.f32 %v599, %v599
        %v856 = vmul.f32 %v600, %v600
        %v857 = vmul.f32 %v601, %v601
        %v858 = vmul.f32 %v602, %v602
        %v859 = vmul.f32 %v603, %v603
        %v860 = vmul.f32 %v604, %v604
        %v861 = vmul.f32 %v605, %v605
        %v862 = vmul.f32 %v606, %v606
        %v863 = vmul.f32 %v607, %v607
        %v864 = vmul.f32 %v608, %v608
        %v865 = vmul.f32 %v609, %v609
        %v866 = vmul.f32 %v610, %v610
        %v867 = vmul.f32 %v611, %v611
        %v868 = vmul.f32 %v612, %v612
        %v869 = vmul.f32 %v613, %v613
        %v870 = vmul.f32 %v614, %v614
        %v871 = vmul.f32 %v615, %v615
        %v872 = vmul.f32 %v616, %v616
        %v873 = vmul.f32 %v617, %v617
        %v874 = vmul.f32 %v618, %v618
        %v875 = vmul.f32 %v619, %v619
        %v876 = vmul.f32 %v620, %v620
        %v877 = vmul.f32 %v621, %v621
        %v878 = vmul.f32 %v622, %v622
        %v879 = vmul.f32 %v623, %v623
        %v880 = vmul.f32 %v624, %v624
        %v881 = vmul.f32 %v625, %v625
        %v882 = vmul.f32 %v626, %v626
        %v883 = vmul.f32 %v627, %v627
        %v884 = vmul.f32 %v628, %v628
        %v885 = vmul.f32 %v629, %v629
        %v886 = vmul.f32 %v630, %v630
        %v887 = vmul.f32 %v631, %v631
        %v888 = vmul.f32 %v632, %v632
        %v889 = vmul.f32 %v633, %v633
        %v890 = vmul.f32 %v634, %v634
        %v891 = vmul.f32 %v635, %v635
        %v892 = vmul.f32 %v636, %v636
        %v893 = vmul.f32 %v637, %v637
        %v894 = vmul.f32 %v638, %v638
        %v895 = vmul.f32 %v639, %v639
        %v896 = vmul.f32 %v640, %v640
        %v897 = vmul.f32 %v641, %v641
        %v898 = vmul.f32 %v642, %v642
        %v899 = vmul.f32 %v643, %v643
        %v900 = vmul.f32 %v644, %v644
        %v901 = vmul.f32 %v645, %v645
        %v902 = vmul.f32 %v646, %v646
        %v903 = vmul.f32 %v647, %v647
        %v904 = vmul.f32 %v648, %v648
        %v905 = vmul.f32 %v649, %v649
        %v906 = vmul.f32 %v650, %v650
        %v907 = vmul.f32 %v651, %v651
        %v908 = vmul.f32 %v652, %v652
        %v909 = vmul.f32 %v653, %v653
        %v910 = vmul.f32 %v654, %v654
        %v911 = vmul.f32 %v655, %v655
        %v912 = vmul.f32 %v656, %v656
        %v913 = vmul.f32 %v657, %v657
        %v914 = vmul.f32 %v658, %v658
        %v915 = vmul.f32 %v659, %v659
        %v916 = vmul.f32 %v660, %v660
        %v917 = vmul.f32 %v661, %v661
        %v918 = vmul.f32 %v662, %v662
        %v919 = vmul.f32 %v663, %v663
        %v920 = vmul.f32 %v664, %v664
        %v921 = vmul.f32 %v665, %v665
        %v922 = vmul.f32 %v666, %v666
        %v923 = vmul.f32 %v667, %v667
        %v924 = vmul.f32 %v668, %v668
        %v925 = vmul.f32 %v669, %v669
        %v926 = vmul.f32 %v670, %v670
        %v927 = vmul.f32 %v671, %v671
        %v928 = vmul.f32 %v672, %v672
        %v929 = vmul.f32 %v673, %v673
        %v930 = vmul.f32 %v674, %v674
        %v931 = vmul.f32 %v675, %v675
        %v932 = vmul.f32 %v676, %v676
        %v933 = vmul.f32 %v677, %v677
        %v934 = vmul.f32 %v678, %v678
        %v935 = vmul.f32 %v679, %v679
        %v936 = vmul.f32 %v680, %v680
        %v937 = vmul.f32 %v681, %v681
        %v938 = vmul.f32 %v682, %v682
        %v939 = vmul.f32 %v683, %v683
        %v940 = vmul.f32 %v684, %v684
        %v941 = vmul.f32 %v685, %v685
        %v942 = vmul.f32 %v686, %v686
        %v943 = vmul.f32 %v687, %v687
        %v944 = vmul.f32 %v688, %v688
        %v945 = vmul.f32 %v689, %v689
        %v946 = vmul.f32 %v690, %v690
        %v947 = vmul.f32 %v691, %v691
        %v948 = vmul.f32 %v692, %v692
        %v949 = vmul.f32 %v693, %v693
        %v950 = vmul.f32 %v694, %v694
        %v951 = vmul.f32 %v695, %v695
        %v952 = vmul.f32 %v696, %v696
        %v953 = vmul.f32 %v697, %v697
        %v954 = vmul.f32 %v698, %v698
        %v955 = vmul.f32 %v699, %v699
        %v956 = vmul.f32 %v700, %v700
        %v957 = vmul.f32 %v701, %v701
        %v958 = vmul.f32 %v702, %v702
        %v959 = vmul.f32 %v703, %v703
        %v960 = vmul.f32 %v704, %v704
        %v961 = vmul.f32 %v705, %v705
        %v962 = vmul.f32 %v706, %v706
        %v963 = vmul.f32 %v707, %v707
        %v964 = vmul.f32 %v708, %v708
        %v965 = vmul.f32 %v709, %v709
        %v966 = vmul.f32 %v710, %v710
        %v967 = vmul.f32 %v711, %v711
        %v968 = vmul.f32 %v712, %v712
        %v969 = vmul.f32 %v713, %v713
        %v970 = vmul.f32 %v714, %v714
        %v971 = vmul.f32 %v715, %v715
        %v972 = vmul.f32 %v716, %v716
        %v973 = vmul.f32 %v717, %v717
        %v974 = vmul.f32 %v718, %v718
        %v975 = vmul.f32 %v719, %v719
        %v976 = vmul.f32 %v720, %v720
        %v977 = vmul.f32 %v721, %v721
        %v978 = vmul.f32 %v722, %v722
        %v979 = vmul.f32 %v723, %v723
        %v980 = vmul.f32 %v724, %v724
        %v981 = vmul.f32 %v725, %v725
        %v982 = vmul.f32 %v726, %v726
        %v983 = vmul.f32 %v727, %v727
        %v984 = vmul.f32 %v728, %v728
        %v985 = vmul.f32 %v729, %v729
        %v986 = vmul.f32 %v730, %v730
        %v987 = vmul.f32 %v731, %v731
        %v988 = vmul.f32 %v732, %v732
        %v989 = vmul.f32 %v733, %v733
        %v990 = vmul.f32 %v734, %v734
        %v991 = vmul.f32 %v735, %v735
        %v992 = vmul.f32 %v736, %v736
        %v993 = vmul.f32 %v737, %v737
        %v994 = vmul.f32 %v738, %v738
        %v995 = vmul.f32 %v739, %v739
        %v996 = vmul.f32 %v740, %v740
        %v997 = vmul.f32 %v741, %v741
        %v998 = vmul.f32 %v742, %v742
        %v999 = vmul.f32 %v743, %v743
        %v1000 = vmul.f32 %v744, %v744
        %v1001 = vmul.f32 %v745, %v745
        %v1002 = vmul.f32 %v746, %v746
        %v1003 = vmul.f32 %v747, %v747
        %v1004 = vmul.f32 %v748, %v748
        %v1005 = vmul.f32 %v749, %v749
        %v1006 = vmul.f32 %v750, %v750
        %v1007 = vmul.f32 %v751, %v751
        %v1008 = vmul.f32 %v752, %v752
        %v1009 = vmul.f32 %v753, %v753
        %v1010 = vmul.f32 %v754, %v754
        %v1011 = vmul.f32 %v755, %v755
        %v1012 = vmul.f32 %v756, %v756
        %v1013 = vmul.f32 %v757, %v757
        %v1014 = vmul.f32 %v758, %v758
        %v1015 = vmul.f32 %v759, %v759
        %v1016 = vmul.f32 %v760, %v760
        %v1017 = vmul.f32 %v761, %v761
        %v1018 = vmul.f32 %v762, %v762
        %v1019 = vmul.f32 %v763, %v763
        %v1020 = vmul.f32 %v764, %v764
        %v1021 = vmul.f32 %v765, %v765
        %v1022 = vmul.f32 %v766, %v766
        %v1023 = vmul.f32 %v767, %v767
        %v1024 = vmul.f32 %v768, %v768
        %v1025 = vmul.f32 %v769, %v769
        %v1026 = vmul.f32 %v770, %v770
        %v1027 = vmul.f32 %v771, %v771
        %v1028 = vmul.f32 %v772, %v772
        %v1029 = vmul.f32 %v773, %v773
        %v1030 = vmul.f32 %v774, %v774
        %v1031 = vmul.f32 %v775, %v775
        %v1032 = vmul.f32 %v776, %v776
        %v1033 = vmul.f32 %v777, %v777
        %v1034 = vmul.f32 %v778, %v778
        %v1035 = vmul.f32 %v779, %v779
        %v1036 = vmul.f32 %v780, %v780
        %v1037 = vmul.f32 %v781, %v781
        %v1038 = vmul.f32 %v782, %v782
        %v1039 = vmul.f32 %v783, %v783
        %v1040 = vmul.f32 %v784, %v784
        %v1041 = vmul.f32 %v785, %v785
        %v1042 = vmul.f32 %v786, %v786
        %v1043 = vmul.f32 %v787, %v787
        %v1044 = vmul.f32 %v788, %v788
        %v1045 = vmul.f32 %v789, %v789
        %v1046 = vmul.f32 %v790, %v790
        %v1047 = vmul.f32 %v791, %v791
        %v1048 = vmul.f32 %v792, %v792
        %v1049 = vmul.f32 %v793, %v793
        %v1050 = vmul.f32 %v794, %v794
        %v1051 = vmul.f32 %v795, %v795
        %v1052 = vmul.f32 %v796, %v796
        %v1053 = vmul.f32 %v797, %v797
        %v1054 = vmul.f32 %v798, %v798
        %v1055 = vmul.f32 %v799, %v799
        %v1056 = vmul.f32 %v800, %v800
        %v1057 = vmul.f32 %v801, %v801
        %v1058 = vmul.f32 %v802, %v802
        %v1059 = vmul.f32 %v803, %v803
        %v1060 = vmul.f32 %v804, %v804
        %v1061 = vmul.f32 %v805, %v805
        %v1062 = vmul.f32 %v806, %v806
        %v1063 = vmul.f32 %v807, %v807
        %v1064 = vmul.f32 %v808, %v808
        %v1065 = vmul.f32 %v809, %v809
        %v1066 = vmul.f32 %v810, %v810
        %v1067 = vmul.f32 %v811, %v811
        %v1068 = vmul.f32 %v812, %v812
        %v1069 = vmul.f32 %v813, %v813
        %v1070 = vmul.f32 %v814, %v814
        %v1071 = vmul.f32 %v815, %v815
        %v1072 = vmul.f32 %v816, %v816
        %v1073 = vmul.f32 %v817, %v817
        %v1074 = vmul.f32 %v818, %v818
        %s1075 = scalar_lea.vmem %s3, 5
        %v1076 = vld [vmem:[%s1075] ss:$8 sm:$0xf]
        %v1077 = vld [vmem:[%s1075] ss:$8 sm:$0xf0]
        %v1078 = vor.u32 %v1076, %v1077
        %s1079 = scalar_lea.vmem %s3, 69
        %v1080 = vld [vmem:[%s1079] ss:$8 sm:$0xf]
        %v1081 = vld [vmem:[%s1079] ss:$8 sm:$0xf0]
        %v1082 = vor.u32 %v1080, %v1081
        %v1085 = vlaneseq
        %v1086 = vshrl.u32 %v1085, 7
        %v1087 = vsub.s32 0, %v1086
        %v1088 = vrot.slane %v1078, %v1087
        %v1089 = vlaneseq
        %v1090 = vshrl.u32 %v1089, 7
        %v1091 = vsub.s32 1, %v1090
        %v1092 = vrot.slane %v1078, %v1091
        %v1093 = vlaneseq
        %v1094 = vshrl.u32 %v1093, 7
        %v1095 = vsub.s32 2, %v1094
        %v1096 = vrot.slane %v1078, %v1095
        %v1097 = vlaneseq
        %v1098 = vshrl.u32 %v1097, 7
        %v1099 = vsub.s32 3, %v1098
        %v1100 = vrot.slane %v1078, %v1099
        %v1101 = vlaneseq
        %v1102 = vshrl.u32 %v1101, 7
        %v1103 = vsub.s32 4, %v1102
        %v1104 = vrot.slane %v1078, %v1103
        %v1105 = vlaneseq
        %v1106 = vshrl.u32 %v1105, 7
        %v1107 = vsub.s32 5, %v1106
        %v1108 = vrot.slane %v1078, %v1107
        %v1109 = vlaneseq
        %v1110 = vshrl.u32 %v1109, 7
        %v1111 = vsub.s32 6, %v1110
        %v1112 = vrot.slane %v1078, %v1111
        %v1113 = vlaneseq
        %v1114 = vshrl.u32 %v1113, 7
        %v1115 = vsub.s32 7, %v1114
        %v1116 = vrot.slane %v1078, %v1115
        %v1117 = vlaneseq
        %v1118 = vshrl.u32 %v1117, 7
        %v1119 = vsub.s32 0, %v1118
        %v1120 = vrot.slane %v1082, %v1119
        %v1121 = vlaneseq
        %v1122 = vshrl.u32 %v1121, 7
        %v1123 = vsub.s32 1, %v1122
        %v1124 = vrot.slane %v1082, %v1123
        %v1125 = vlaneseq
        %v1126 = vshrl.u32 %v1125, 7
        %v1127 = vsub.s32 2, %v1126
        %v1128 = vrot.slane %v1082, %v1127
        %v1129 = vlaneseq
        %v1130 = vshrl.u32 %v1129, 7
        %v1131 = vsub.s32 3, %v1130
        %v1132 = vrot.slane %v1082, %v1131
        %v1133 = vlaneseq
        %v1134 = vshrl.u32 %v1133, 7
        %v1135 = vsub.s32 4, %v1134
        %v1136 = vrot.slane %v1082, %v1135
        %v1137 = vlaneseq
        %v1138 = vshrl.u32 %v1137, 7
        %v1139 = vsub.s32 5, %v1138
        %v1140 = vrot.slane %v1082, %v1139
        %v1141 = vlaneseq
        %v1142 = vshrl.u32 %v1141, 7
        %v1143 = vsub.s32 6, %v1142
        %v1144 = vrot.slane %v1082, %v1143
        %v1145 = vlaneseq
        %v1146 = vshrl.u32 %v1145, 7
        %v1147 = vsub.s32 7, %v1146
        %v1148 = vrot.slane %v1082, %v1147
        %v1165 = vsub.f32 %v359, %v1088
        %v1166 = vsub.f32 %v359, %v1092
        %v1167 = vsub.f32 %v359, %v1096
        %v1168 = vsub.f32 %v359, %v1100
        %v1169 = vsub.f32 %v359, %v1104
        %v1170 = vsub.f32 %v359, %v1108
        %v1171 = vsub.f32 %v359, %v1112
        %v1172 = vsub.f32 %v359, %v1116
        %v1173 = vsub.f32 %v359, %v1120
        %v1174 = vsub.f32 %v359, %v1124
        %v1175 = vsub.f32 %v359, %v1128
        %v1176 = vsub.f32 %v359, %v1132
        %v1177 = vsub.f32 %v359, %v1136
        %v1178 = vsub.f32 %v359, %v1140
        %v1179 = vsub.f32 %v359, %v1144
        %v1180 = vsub.f32 %v359, %v1148
        %v1181 = vsub.f32 %v363, %v1088
        %v1182 = vsub.f32 %v363, %v1092
        %v1183 = vsub.f32 %v363, %v1096
        %v1184 = vsub.f32 %v363, %v1100
        %v1185 = vsub.f32 %v363, %v1104
        %v1186 = vsub.f32 %v363, %v1108
        %v1187 = vsub.f32 %v363, %v1112
        %v1188 = vsub.f32 %v363, %v1116
        %v1189 = vsub.f32 %v363, %v1120
        %v1190 = vsub.f32 %v363, %v1124
        %v1191 = vsub.f32 %v363, %v1128
        %v1192 = vsub.f32 %v363, %v1132
        %v1193 = vsub.f32 %v363, %v1136
        %v1194 = vsub.f32 %v363, %v1140
        %v1195 = vsub.f32 %v363, %v1144
        %v1196 = vsub.f32 %v363, %v1148
        %v1197 = vsub.f32 %v367, %v1088
        %v1198 = vsub.f32 %v367, %v1092
        %v1199 = vsub.f32 %v367, %v1096
        %v1200 = vsub.f32 %v367, %v1100
        %v1201 = vsub.f32 %v367, %v1104
        %v1202 = vsub.f32 %v367, %v1108
        %v1203 = vsub.f32 %v367, %v1112
        %v1204 = vsub.f32 %v367, %v1116
        %v1205 = vsub.f32 %v367, %v1120
        %v1206 = vsub.f32 %v367, %v1124
        %v1207 = vsub.f32 %v367, %v1128
        %v1208 = vsub.f32 %v367, %v1132
        %v1209 = vsub.f32 %v367, %v1136
        %v1210 = vsub.f32 %v367, %v1140
        %v1211 = vsub.f32 %v367, %v1144
        %v1212 = vsub.f32 %v367, %v1148
        %v1213 = vsub.f32 %v371, %v1088
        %v1214 = vsub.f32 %v371, %v1092
        %v1215 = vsub.f32 %v371, %v1096
        %v1216 = vsub.f32 %v371, %v1100
        %v1217 = vsub.f32 %v371, %v1104
        %v1218 = vsub.f32 %v371, %v1108
        %v1219 = vsub.f32 %v371, %v1112
        %v1220 = vsub.f32 %v371, %v1116
        %v1221 = vsub.f32 %v371, %v1120
        %v1222 = vsub.f32 %v371, %v1124
        %v1223 = vsub.f32 %v371, %v1128
        %v1224 = vsub.f32 %v371, %v1132
        %v1225 = vsub.f32 %v371, %v1136
        %v1226 = vsub.f32 %v371, %v1140
        %v1227 = vsub.f32 %v371, %v1144
        %v1228 = vsub.f32 %v371, %v1148
        %v1229 = vsub.f32 %v375, %v1088
        %v1230 = vsub.f32 %v375, %v1092
        %v1231 = vsub.f32 %v375, %v1096
        %v1232 = vsub.f32 %v375, %v1100
        %v1233 = vsub.f32 %v375, %v1104
        %v1234 = vsub.f32 %v375, %v1108
        %v1235 = vsub.f32 %v375, %v1112
        %v1236 = vsub.f32 %v375, %v1116
        %v1237 = vsub.f32 %v375, %v1120
        %v1238 = vsub.f32 %v375, %v1124
        %v1239 = vsub.f32 %v375, %v1128
        %v1240 = vsub.f32 %v375, %v1132
        %v1241 = vsub.f32 %v375, %v1136
        %v1242 = vsub.f32 %v375, %v1140
        %v1243 = vsub.f32 %v375, %v1144
        %v1244 = vsub.f32 %v375, %v1148
        %v1245 = vsub.f32 %v379, %v1088
        %v1246 = vsub.f32 %v379, %v1092
        %v1247 = vsub.f32 %v379, %v1096
        %v1248 = vsub.f32 %v379, %v1100
        %v1249 = vsub.f32 %v379, %v1104
        %v1250 = vsub.f32 %v379, %v1108
        %v1251 = vsub.f32 %v379, %v1112
        %v1252 = vsub.f32 %v379, %v1116
        %v1253 = vsub.f32 %v379, %v1120
        %v1254 = vsub.f32 %v379, %v1124
        %v1255 = vsub.f32 %v379, %v1128
        %v1256 = vsub.f32 %v379, %v1132
        %v1257 = vsub.f32 %v379, %v1136
        %v1258 = vsub.f32 %v379, %v1140
        %v1259 = vsub.f32 %v379, %v1144
        %v1260 = vsub.f32 %v379, %v1148
        %v1261 = vsub.f32 %v383, %v1088
        %v1262 = vsub.f32 %v383, %v1092
        %v1263 = vsub.f32 %v383, %v1096
        %v1264 = vsub.f32 %v383, %v1100
        %v1265 = vsub.f32 %v383, %v1104
        %v1266 = vsub.f32 %v383, %v1108
        %v1267 = vsub.f32 %v383, %v1112
        %v1268 = vsub.f32 %v383, %v1116
        %v1269 = vsub.f32 %v383, %v1120
        %v1270 = vsub.f32 %v383, %v1124
        %v1271 = vsub.f32 %v383, %v1128
        %v1272 = vsub.f32 %v383, %v1132
        %v1273 = vsub.f32 %v383, %v1136
        %v1274 = vsub.f32 %v383, %v1140
        %v1275 = vsub.f32 %v383, %v1144
        %v1276 = vsub.f32 %v383, %v1148
        %v1277 = vsub.f32 %v387, %v1088
        %v1278 = vsub.f32 %v387, %v1092
        %v1279 = vsub.f32 %v387, %v1096
        %v1280 = vsub.f32 %v387, %v1100
        %v1281 = vsub.f32 %v387, %v1104
        %v1282 = vsub.f32 %v387, %v1108
        %v1283 = vsub.f32 %v387, %v1112
        %v1284 = vsub.f32 %v387, %v1116
        %v1285 = vsub.f32 %v387, %v1120
        %v1286 = vsub.f32 %v387, %v1124
        %v1287 = vsub.f32 %v387, %v1128
        %v1288 = vsub.f32 %v387, %v1132
        %v1289 = vsub.f32 %v387, %v1136
        %v1290 = vsub.f32 %v387, %v1140
        %v1291 = vsub.f32 %v387, %v1144
        %v1292 = vsub.f32 %v387, %v1148
        %v1293 = vsub.f32 %v391, %v1088
        %v1294 = vsub.f32 %v391, %v1092
        %v1295 = vsub.f32 %v391, %v1096
        %v1296 = vsub.f32 %v391, %v1100
        %v1297 = vsub.f32 %v391, %v1104
        %v1298 = vsub.f32 %v391, %v1108
        %v1299 = vsub.f32 %v391, %v1112
        %v1300 = vsub.f32 %v391, %v1116
        %v1301 = vsub.f32 %v391, %v1120
        %v1302 = vsub.f32 %v391, %v1124
        %v1303 = vsub.f32 %v391, %v1128
        %v1304 = vsub.f32 %v391, %v1132
        %v1305 = vsub.f32 %v391, %v1136
        %v1306 = vsub.f32 %v391, %v1140
        %v1307 = vsub.f32 %v391, %v1144
        %v1308 = vsub.f32 %v391, %v1148
        %v1309 = vsub.f32 %v395, %v1088
        %v1310 = vsub.f32 %v395, %v1092
        %v1311 = vsub.f32 %v395, %v1096
        %v1312 = vsub.f32 %v395, %v1100
        %v1313 = vsub.f32 %v395, %v1104
        %v1314 = vsub.f32 %v395, %v1108
        %v1315 = vsub.f32 %v395, %v1112
        %v1316 = vsub.f32 %v395, %v1116
        %v1317 = vsub.f32 %v395, %v1120
        %v1318 = vsub.f32 %v395, %v1124
        %v1319 = vsub.f32 %v395, %v1128
        %v1320 = vsub.f32 %v395, %v1132
        %v1321 = vsub.f32 %v395, %v1136
        %v1322 = vsub.f32 %v395, %v1140
        %v1323 = vsub.f32 %v395, %v1144
        %v1324 = vsub.f32 %v395, %v1148
        %v1325 = vsub.f32 %v399, %v1088
        %v1326 = vsub.f32 %v399, %v1092
        %v1327 = vsub.f32 %v399, %v1096
        %v1328 = vsub.f32 %v399, %v1100
        %v1329 = vsub.f32 %v399, %v1104
        %v1330 = vsub.f32 %v399, %v1108
        %v1331 = vsub.f32 %v399, %v1112
        %v1332 = vsub.f32 %v399, %v1116
        %v1333 = vsub.f32 %v399, %v1120
        %v1334 = vsub.f32 %v399, %v1124
        %v1335 = vsub.f32 %v399, %v1128
        %v1336 = vsub.f32 %v399, %v1132
        %v1337 = vsub.f32 %v399, %v1136
        %v1338 = vsub.f32 %v399, %v1140
        %v1339 = vsub.f32 %v399, %v1144
        %v1340 = vsub.f32 %v399, %v1148
        %v1341 = vsub.f32 %v403, %v1088
        %v1342 = vsub.f32 %v403, %v1092
        %v1343 = vsub.f32 %v403, %v1096
        %v1344 = vsub.f32 %v403, %v1100
        %v1345 = vsub.f32 %v403, %v1104
        %v1346 = vsub.f32 %v403, %v1108
        %v1347 = vsub.f32 %v403, %v1112
        %v1348 = vsub.f32 %v403, %v1116
        %v1349 = vsub.f32 %v403, %v1120
        %v1350 = vsub.f32 %v403, %v1124
        %v1351 = vsub.f32 %v403, %v1128
        %v1352 = vsub.f32 %v403, %v1132
        %v1353 = vsub.f32 %v403, %v1136
        %v1354 = vsub.f32 %v403, %v1140
        %v1355 = vsub.f32 %v403, %v1144
        %v1356 = vsub.f32 %v403, %v1148
        %v1357 = vsub.f32 %v407, %v1088
        %v1358 = vsub.f32 %v407, %v1092
        %v1359 = vsub.f32 %v407, %v1096
        %v1360 = vsub.f32 %v407, %v1100
        %v1361 = vsub.f32 %v407, %v1104
        %v1362 = vsub.f32 %v407, %v1108
        %v1363 = vsub.f32 %v407, %v1112
        %v1364 = vsub.f32 %v407, %v1116
        %v1365 = vsub.f32 %v407, %v1120
        %v1366 = vsub.f32 %v407, %v1124
        %v1367 = vsub.f32 %v407, %v1128
        %v1368 = vsub.f32 %v407, %v1132
        %v1369 = vsub.f32 %v407, %v1136
        %v1370 = vsub.f32 %v407, %v1140
        %v1371 = vsub.f32 %v407, %v1144
        %v1372 = vsub.f32 %v407, %v1148
        %v1373 = vsub.f32 %v411, %v1088
        %v1374 = vsub.f32 %v411, %v1092
        %v1375 = vsub.f32 %v411, %v1096
        %v1376 = vsub.f32 %v411, %v1100
        %v1377 = vsub.f32 %v411, %v1104
        %v1378 = vsub.f32 %v411, %v1108
        %v1379 = vsub.f32 %v411, %v1112
        %v1380 = vsub.f32 %v411, %v1116
        %v1381 = vsub.f32 %v411, %v1120
        %v1382 = vsub.f32 %v411, %v1124
        %v1383 = vsub.f32 %v411, %v1128
        %v1384 = vsub.f32 %v411, %v1132
        %v1385 = vsub.f32 %v411, %v1136
        %v1386 = vsub.f32 %v411, %v1140
        %v1387 = vsub.f32 %v411, %v1144
        %v1388 = vsub.f32 %v411, %v1148
        %v1389 = vsub.f32 %v415, %v1088
        %v1390 = vsub.f32 %v415, %v1092
        %v1391 = vsub.f32 %v415, %v1096
        %v1392 = vsub.f32 %v415, %v1100
        %v1393 = vsub.f32 %v415, %v1104
        %v1394 = vsub.f32 %v415, %v1108
        %v1395 = vsub.f32 %v415, %v1112
        %v1396 = vsub.f32 %v415, %v1116
        %v1397 = vsub.f32 %v415, %v1120
        %v1398 = vsub.f32 %v415, %v1124
        %v1399 = vsub.f32 %v415, %v1128
        %v1400 = vsub.f32 %v415, %v1132
        %v1401 = vsub.f32 %v415, %v1136
        %v1402 = vsub.f32 %v415, %v1140
        %v1403 = vsub.f32 %v415, %v1144
        %v1404 = vsub.f32 %v415, %v1148
        %v1405 = vsub.f32 %v419, %v1088
        %v1406 = vsub.f32 %v419, %v1092
        %v1407 = vsub.f32 %v419, %v1096
        %v1408 = vsub.f32 %v419, %v1100
        %v1409 = vsub.f32 %v419, %v1104
        %v1410 = vsub.f32 %v419, %v1108
        %v1411 = vsub.f32 %v419, %v1112
        %v1412 = vsub.f32 %v419, %v1116
        %v1413 = vsub.f32 %v419, %v1120
        %v1414 = vsub.f32 %v419, %v1124
        %v1415 = vsub.f32 %v419, %v1128
        %v1416 = vsub.f32 %v419, %v1132
        %v1417 = vsub.f32 %v419, %v1136
        %v1418 = vsub.f32 %v419, %v1140
        %v1419 = vsub.f32 %v419, %v1144
        %v1420 = vsub.f32 %v419, %v1148
        %v1421 = vmul.f32 %v1165, %v1165
        %v1422 = vmul.f32 %v1166, %v1166
        %v1423 = vmul.f32 %v1167, %v1167
        %v1424 = vmul.f32 %v1168, %v1168
        %v1425 = vmul.f32 %v1169, %v1169
        %v1426 = vmul.f32 %v1170, %v1170
        %v1427 = vmul.f32 %v1171, %v1171
        %v1428 = vmul.f32 %v1172, %v1172
        %v1429 = vmul.f32 %v1173, %v1173
        %v1430 = vmul.f32 %v1174, %v1174
        %v1431 = vmul.f32 %v1175, %v1175
        %v1432 = vmul.f32 %v1176, %v1176
        %v1433 = vmul.f32 %v1177, %v1177
        %v1434 = vmul.f32 %v1178, %v1178
        %v1435 = vmul.f32 %v1179, %v1179
        %v1436 = vmul.f32 %v1180, %v1180
        %v1437 = vmul.f32 %v1181, %v1181
        %v1438 = vmul.f32 %v1182, %v1182
        %v1439 = vmul.f32 %v1183, %v1183
        %v1440 = vmul.f32 %v1184, %v1184
        %v1441 = vmul.f32 %v1185, %v1185
        %v1442 = vmul.f32 %v1186, %v1186
        %v1443 = vmul.f32 %v1187, %v1187
        %v1444 = vmul.f32 %v1188, %v1188
        %v1445 = vmul.f32 %v1189, %v1189
        %v1446 = vmul.f32 %v1190, %v1190
        %v1447 = vmul.f32 %v1191, %v1191
        %v1448 = vmul.f32 %v1192, %v1192
        %v1449 = vmul.f32 %v1193, %v1193
        %v1450 = vmul.f32 %v1194, %v1194
        %v1451 = vmul.f32 %v1195, %v1195
        %v1452 = vmul.f32 %v1196, %v1196
        %v1453 = vmul.f32 %v1197, %v1197
        %v1454 = vmul.f32 %v1198, %v1198
        %v1455 = vmul.f32 %v1199, %v1199
        %v1456 = vmul.f32 %v1200, %v1200
        %v1457 = vmul.f32 %v1201, %v1201
        %v1458 = vmul.f32 %v1202, %v1202
        %v1459 = vmul.f32 %v1203, %v1203
        %v1460 = vmul.f32 %v1204, %v1204
        %v1461 = vmul.f32 %v1205, %v1205
        %v1462 = vmul.f32 %v1206, %v1206
        %v1463 = vmul.f32 %v1207, %v1207
        %v1464 = vmul.f32 %v1208, %v1208
        %v1465 = vmul.f32 %v1209, %v1209
        %v1466 = vmul.f32 %v1210, %v1210
        %v1467 = vmul.f32 %v1211, %v1211
        %v1468 = vmul.f32 %v1212, %v1212
        %v1469 = vmul.f32 %v1213, %v1213
        %v1470 = vmul.f32 %v1214, %v1214
        %v1471 = vmul.f32 %v1215, %v1215
        %v1472 = vmul.f32 %v1216, %v1216
        %v1473 = vmul.f32 %v1217, %v1217
        %v1474 = vmul.f32 %v1218, %v1218
        %v1475 = vmul.f32 %v1219, %v1219
        %v1476 = vmul.f32 %v1220, %v1220
        %v1477 = vmul.f32 %v1221, %v1221
        %v1478 = vmul.f32 %v1222, %v1222
        %v1479 = vmul.f32 %v1223, %v1223
        %v1480 = vmul.f32 %v1224, %v1224
        %v1481 = vmul.f32 %v1225, %v1225
        %v1482 = vmul.f32 %v1226, %v1226
        %v1483 = vmul.f32 %v1227, %v1227
        %v1484 = vmul.f32 %v1228, %v1228
        %v1485 = vmul.f32 %v1229, %v1229
        %v1486 = vmul.f32 %v1230, %v1230
        %v1487 = vmul.f32 %v1231, %v1231
        %v1488 = vmul.f32 %v1232, %v1232
        %v1489 = vmul.f32 %v1233, %v1233
        %v1490 = vmul.f32 %v1234, %v1234
        %v1491 = vmul.f32 %v1235, %v1235
        %v1492 = vmul.f32 %v1236, %v1236
        %v1493 = vmul.f32 %v1237, %v1237
        %v1494 = vmul.f32 %v1238, %v1238
        %v1495 = vmul.f32 %v1239, %v1239
        %v1496 = vmul.f32 %v1240, %v1240
        %v1497 = vmul.f32 %v1241, %v1241
        %v1498 = vmul.f32 %v1242, %v1242
        %v1499 = vmul.f32 %v1243, %v1243
        %v1500 = vmul.f32 %v1244, %v1244
        %v1501 = vmul.f32 %v1245, %v1245
        %v1502 = vmul.f32 %v1246, %v1246
        %v1503 = vmul.f32 %v1247, %v1247
        %v1504 = vmul.f32 %v1248, %v1248
        %v1505 = vmul.f32 %v1249, %v1249
        %v1506 = vmul.f32 %v1250, %v1250
        %v1507 = vmul.f32 %v1251, %v1251
        %v1508 = vmul.f32 %v1252, %v1252
        %v1509 = vmul.f32 %v1253, %v1253
        %v1510 = vmul.f32 %v1254, %v1254
        %v1511 = vmul.f32 %v1255, %v1255
        %v1512 = vmul.f32 %v1256, %v1256
        %v1513 = vmul.f32 %v1257, %v1257
        %v1514 = vmul.f32 %v1258, %v1258
        %v1515 = vmul.f32 %v1259, %v1259
        %v1516 = vmul.f32 %v1260, %v1260
        %v1517 = vmul.f32 %v1261, %v1261
        %v1518 = vmul.f32 %v1262, %v1262
        %v1519 = vmul.f32 %v1263, %v1263
        %v1520 = vmul.f32 %v1264, %v1264
        %v1521 = vmul.f32 %v1265, %v1265
        %v1522 = vmul.f32 %v1266, %v1266
        %v1523 = vmul.f32 %v1267, %v1267
        %v1524 = vmul.f32 %v1268, %v1268
        %v1525 = vmul.f32 %v1269, %v1269
        %v1526 = vmul.f32 %v1270, %v1270
        %v1527 = vmul.f32 %v1271, %v1271
        %v1528 = vmul.f32 %v1272, %v1272
        %v1529 = vmul.f32 %v1273, %v1273
        %v1530 = vmul.f32 %v1274, %v1274
        %v1531 = vmul.f32 %v1275, %v1275
        %v1532 = vmul.f32 %v1276, %v1276
        %v1533 = vmul.f32 %v1277, %v1277
        %v1534 = vmul.f32 %v1278, %v1278
        %v1535 = vmul.f32 %v1279, %v1279
        %v1536 = vmul.f32 %v1280, %v1280
        %v1537 = vmul.f32 %v1281, %v1281
        %v1538 = vmul.f32 %v1282, %v1282
        %v1539 = vmul.f32 %v1283, %v1283
        %v1540 = vmul.f32 %v1284, %v1284
        %v1541 = vmul.f32 %v1285, %v1285
        %v1542 = vmul.f32 %v1286, %v1286
        %v1543 = vmul.f32 %v1287, %v1287
        %v1544 = vmul.f32 %v1288, %v1288
        %v1545 = vmul.f32 %v1289, %v1289
        %v1546 = vmul.f32 %v1290, %v1290
        %v1547 = vmul.f32 %v1291, %v1291
        %v1548 = vmul.f32 %v1292, %v1292
        %v1549 = vmul.f32 %v1293, %v1293
        %v1550 = vmul.f32 %v1294, %v1294
        %v1551 = vmul.f32 %v1295, %v1295
        %v1552 = vmul.f32 %v1296, %v1296
        %v1553 = vmul.f32 %v1297, %v1297
        %v1554 = vmul.f32 %v1298, %v1298
        %v1555 = vmul.f32 %v1299, %v1299
        %v1556 = vmul.f32 %v1300, %v1300
        %v1557 = vmul.f32 %v1301, %v1301
        %v1558 = vmul.f32 %v1302, %v1302
        %v1559 = vmul.f32 %v1303, %v1303
        %v1560 = vmul.f32 %v1304, %v1304
        %v1561 = vmul.f32 %v1305, %v1305
        %v1562 = vmul.f32 %v1306, %v1306
        %v1563 = vmul.f32 %v1307, %v1307
        %v1564 = vmul.f32 %v1308, %v1308
        %v1565 = vmul.f32 %v1309, %v1309
        %v1566 = vmul.f32 %v1310, %v1310
        %v1567 = vmul.f32 %v1311, %v1311
        %v1568 = vmul.f32 %v1312, %v1312
        %v1569 = vmul.f32 %v1313, %v1313
        %v1570 = vmul.f32 %v1314, %v1314
        %v1571 = vmul.f32 %v1315, %v1315
        %v1572 = vmul.f32 %v1316, %v1316
        %v1573 = vmul.f32 %v1317, %v1317
        %v1574 = vmul.f32 %v1318, %v1318
        %v1575 = vmul.f32 %v1319, %v1319
        %v1576 = vmul.f32 %v1320, %v1320
        %v1577 = vmul.f32 %v1321, %v1321
        %v1578 = vmul.f32 %v1322, %v1322
        %v1579 = vmul.f32 %v1323, %v1323
        %v1580 = vmul.f32 %v1324, %v1324
        %v1581 = vmul.f32 %v1325, %v1325
        %v1582 = vmul.f32 %v1326, %v1326
        %v1583 = vmul.f32 %v1327, %v1327
        %v1584 = vmul.f32 %v1328, %v1328
        %v1585 = vmul.f32 %v1329, %v1329
        %v1586 = vmul.f32 %v1330, %v1330
        %v1587 = vmul.f32 %v1331, %v1331
        %v1588 = vmul.f32 %v1332, %v1332
        %v1589 = vmul.f32 %v1333, %v1333
        %v1590 = vmul.f32 %v1334, %v1334
        %v1591 = vmul.f32 %v1335, %v1335
        %v1592 = vmul.f32 %v1336, %v1336
        %v1593 = vmul.f32 %v1337, %v1337
        %v1594 = vmul.f32 %v1338, %v1338
        %v1595 = vmul.f32 %v1339, %v1339
        %v1596 = vmul.f32 %v1340, %v1340
        %v1597 = vmul.f32 %v1341, %v1341
        %v1598 = vmul.f32 %v1342, %v1342
        %v1599 = vmul.f32 %v1343, %v1343
        %v1600 = vmul.f32 %v1344, %v1344
        %v1601 = vmul.f32 %v1345, %v1345
        %v1602 = vmul.f32 %v1346, %v1346
        %v1603 = vmul.f32 %v1347, %v1347
        %v1604 = vmul.f32 %v1348, %v1348
        %v1605 = vmul.f32 %v1349, %v1349
        %v1606 = vmul.f32 %v1350, %v1350
        %v1607 = vmul.f32 %v1351, %v1351
        %v1608 = vmul.f32 %v1352, %v1352
        %v1609 = vmul.f32 %v1353, %v1353
        %v1610 = vmul.f32 %v1354, %v1354
        %v1611 = vmul.f32 %v1355, %v1355
        %v1612 = vmul.f32 %v1356, %v1356
        %v1613 = vmul.f32 %v1357, %v1357
        %v1614 = vmul.f32 %v1358, %v1358
        %v1615 = vmul.f32 %v1359, %v1359
        %v1616 = vmul.f32 %v1360, %v1360
        %v1617 = vmul.f32 %v1361, %v1361
        %v1618 = vmul.f32 %v1362, %v1362
        %v1619 = vmul.f32 %v1363, %v1363
        %v1620 = vmul.f32 %v1364, %v1364
        %v1621 = vmul.f32 %v1365, %v1365
        %v1622 = vmul.f32 %v1366, %v1366
        %v1623 = vmul.f32 %v1367, %v1367
        %v1624 = vmul.f32 %v1368, %v1368
        %v1625 = vmul.f32 %v1369, %v1369
        %v1626 = vmul.f32 %v1370, %v1370
        %v1627 = vmul.f32 %v1371, %v1371
        %v1628 = vmul.f32 %v1372, %v1372
        %v1629 = vmul.f32 %v1373, %v1373
        %v1630 = vmul.f32 %v1374, %v1374
        %v1631 = vmul.f32 %v1375, %v1375
        %v1632 = vmul.f32 %v1376, %v1376
        %v1633 = vmul.f32 %v1377, %v1377
        %v1634 = vmul.f32 %v1378, %v1378
        %v1635 = vmul.f32 %v1379, %v1379
        %v1636 = vmul.f32 %v1380, %v1380
        %v1637 = vmul.f32 %v1381, %v1381
        %v1638 = vmul.f32 %v1382, %v1382
        %v1639 = vmul.f32 %v1383, %v1383
        %v1640 = vmul.f32 %v1384, %v1384
        %v1641 = vmul.f32 %v1385, %v1385
        %v1642 = vmul.f32 %v1386, %v1386
        %v1643 = vmul.f32 %v1387, %v1387
        %v1644 = vmul.f32 %v1388, %v1388
        %v1645 = vmul.f32 %v1389, %v1389
        %v1646 = vmul.f32 %v1390, %v1390
        %v1647 = vmul.f32 %v1391, %v1391
        %v1648 = vmul.f32 %v1392, %v1392
        %v1649 = vmul.f32 %v1393, %v1393
        %v1650 = vmul.f32 %v1394, %v1394
        %v1651 = vmul.f32 %v1395, %v1395
        %v1652 = vmul.f32 %v1396, %v1396
        %v1653 = vmul.f32 %v1397, %v1397
        %v1654 = vmul.f32 %v1398, %v1398
        %v1655 = vmul.f32 %v1399, %v1399
        %v1656 = vmul.f32 %v1400, %v1400
        %v1657 = vmul.f32 %v1401, %v1401
        %v1658 = vmul.f32 %v1402, %v1402
        %v1659 = vmul.f32 %v1403, %v1403
        %v1660 = vmul.f32 %v1404, %v1404
        %v1661 = vmul.f32 %v1405, %v1405
        %v1662 = vmul.f32 %v1406, %v1406
        %v1663 = vmul.f32 %v1407, %v1407
        %v1664 = vmul.f32 %v1408, %v1408
        %v1665 = vmul.f32 %v1409, %v1409
        %v1666 = vmul.f32 %v1410, %v1410
        %v1667 = vmul.f32 %v1411, %v1411
        %v1668 = vmul.f32 %v1412, %v1412
        %v1669 = vmul.f32 %v1413, %v1413
        %v1670 = vmul.f32 %v1414, %v1414
        %v1671 = vmul.f32 %v1415, %v1415
        %v1672 = vmul.f32 %v1416, %v1416
        %v1673 = vmul.f32 %v1417, %v1417
        %v1674 = vmul.f32 %v1418, %v1418
        %v1675 = vmul.f32 %v1419, %v1419
        %v1676 = vmul.f32 %v1420, %v1420
        %v1677 = vadd.f32 %v819, %v1421
        %v1678 = vadd.f32 %v820, %v1422
        %v1679 = vadd.f32 %v821, %v1423
        %v1680 = vadd.f32 %v822, %v1424
        %v1681 = vadd.f32 %v823, %v1425
        %v1682 = vadd.f32 %v824, %v1426
        %v1683 = vadd.f32 %v825, %v1427
        %v1684 = vadd.f32 %v826, %v1428
        %v1685 = vadd.f32 %v827, %v1429
        %v1686 = vadd.f32 %v828, %v1430
        %v1687 = vadd.f32 %v829, %v1431
        %v1688 = vadd.f32 %v830, %v1432
        %v1689 = vadd.f32 %v831, %v1433
        %v1690 = vadd.f32 %v832, %v1434
        %v1691 = vadd.f32 %v833, %v1435
        %v1692 = vadd.f32 %v834, %v1436
        %v1693 = vadd.f32 %v835, %v1437
        %v1694 = vadd.f32 %v836, %v1438
        %v1695 = vadd.f32 %v837, %v1439
        %v1696 = vadd.f32 %v838, %v1440
        %v1697 = vadd.f32 %v839, %v1441
        %v1698 = vadd.f32 %v840, %v1442
        %v1699 = vadd.f32 %v841, %v1443
        %v1700 = vadd.f32 %v842, %v1444
        %v1701 = vadd.f32 %v843, %v1445
        %v1702 = vadd.f32 %v844, %v1446
        %v1703 = vadd.f32 %v845, %v1447
        %v1704 = vadd.f32 %v846, %v1448
        %v1705 = vadd.f32 %v847, %v1449
        %v1706 = vadd.f32 %v848, %v1450
        %v1707 = vadd.f32 %v849, %v1451
        %v1708 = vadd.f32 %v850, %v1452
        %v1709 = vadd.f32 %v851, %v1453
        %v1710 = vadd.f32 %v852, %v1454
        %v1711 = vadd.f32 %v853, %v1455
        %v1712 = vadd.f32 %v854, %v1456
        %v1713 = vadd.f32 %v855, %v1457
        %v1714 = vadd.f32 %v856, %v1458
        %v1715 = vadd.f32 %v857, %v1459
        %v1716 = vadd.f32 %v858, %v1460
        %v1717 = vadd.f32 %v859, %v1461
        %v1718 = vadd.f32 %v860, %v1462
        %v1719 = vadd.f32 %v861, %v1463
        %v1720 = vadd.f32 %v862, %v1464
        %v1721 = vadd.f32 %v863, %v1465
        %v1722 = vadd.f32 %v864, %v1466
        %v1723 = vadd.f32 %v865, %v1467
        %v1724 = vadd.f32 %v866, %v1468
        %v1725 = vadd.f32 %v867, %v1469
        %v1726 = vadd.f32 %v868, %v1470
        %v1727 = vadd.f32 %v869, %v1471
        %v1728 = vadd.f32 %v870, %v1472
        %v1729 = vadd.f32 %v871, %v1473
        %v1730 = vadd.f32 %v872, %v1474
        %v1731 = vadd.f32 %v873, %v1475
        %v1732 = vadd.f32 %v874, %v1476
        %v1733 = vadd.f32 %v875, %v1477
        %v1734 = vadd.f32 %v876, %v1478
        %v1735 = vadd.f32 %v877, %v1479
        %v1736 = vadd.f32 %v878, %v1480
        %v1737 = vadd.f32 %v879, %v1481
        %v1738 = vadd.f32 %v880, %v1482
        %v1739 = vadd.f32 %v881, %v1483
        %v1740 = vadd.f32 %v882, %v1484
        %v1741 = vadd.f32 %v883, %v1485
        %v1742 = vadd.f32 %v884, %v1486
        %v1743 = vadd.f32 %v885, %v1487
        %v1744 = vadd.f32 %v886, %v1488
        %v1745 = vadd.f32 %v887, %v1489
        %v1746 = vadd.f32 %v888, %v1490
        %v1747 = vadd.f32 %v889, %v1491
        %v1748 = vadd.f32 %v890, %v1492
        %v1749 = vadd.f32 %v891, %v1493
        %v1750 = vadd.f32 %v892, %v1494
        %v1751 = vadd.f32 %v893, %v1495
        %v1752 = vadd.f32 %v894, %v1496
        %v1753 = vadd.f32 %v895, %v1497
        %v1754 = vadd.f32 %v896, %v1498
        %v1755 = vadd.f32 %v897, %v1499
        %v1756 = vadd.f32 %v898, %v1500
        %v1757 = vadd.f32 %v899, %v1501
        %v1758 = vadd.f32 %v900, %v1502
        %v1759 = vadd.f32 %v901, %v1503
        %v1760 = vadd.f32 %v902, %v1504
        %v1761 = vadd.f32 %v903, %v1505
        %v1762 = vadd.f32 %v904, %v1506
        %v1763 = vadd.f32 %v905, %v1507
        %v1764 = vadd.f32 %v906, %v1508
        %v1765 = vadd.f32 %v907, %v1509
        %v1766 = vadd.f32 %v908, %v1510
        %v1767 = vadd.f32 %v909, %v1511
        %v1768 = vadd.f32 %v910, %v1512
        %v1769 = vadd.f32 %v911, %v1513
        %v1770 = vadd.f32 %v912, %v1514
        %v1771 = vadd.f32 %v913, %v1515
        %v1772 = vadd.f32 %v914, %v1516
        %v1773 = vadd.f32 %v915, %v1517
        %v1774 = vadd.f32 %v916, %v1518
        %v1775 = vadd.f32 %v917, %v1519
        %v1776 = vadd.f32 %v918, %v1520
        %v1777 = vadd.f32 %v919, %v1521
        %v1778 = vadd.f32 %v920, %v1522
        %v1779 = vadd.f32 %v921, %v1523
        %v1780 = vadd.f32 %v922, %v1524
        %v1781 = vadd.f32 %v923, %v1525
        %v1782 = vadd.f32 %v924, %v1526
        %v1783 = vadd.f32 %v925, %v1527
        %v1784 = vadd.f32 %v926, %v1528
        %v1785 = vadd.f32 %v927, %v1529
        %v1786 = vadd.f32 %v928, %v1530
        %v1787 = vadd.f32 %v929, %v1531
        %v1788 = vadd.f32 %v930, %v1532
        %v1789 = vadd.f32 %v931, %v1533
        %v1790 = vadd.f32 %v932, %v1534
        %v1791 = vadd.f32 %v933, %v1535
        %v1792 = vadd.f32 %v934, %v1536
        %v1793 = vadd.f32 %v935, %v1537
        %v1794 = vadd.f32 %v936, %v1538
        %v1795 = vadd.f32 %v937, %v1539
        %v1796 = vadd.f32 %v938, %v1540
        %v1797 = vadd.f32 %v939, %v1541
        %v1798 = vadd.f32 %v940, %v1542
        %v1799 = vadd.f32 %v941, %v1543
        %v1800 = vadd.f32 %v942, %v1544
        %v1801 = vadd.f32 %v943, %v1545
        %v1802 = vadd.f32 %v944, %v1546
        %v1803 = vadd.f32 %v945, %v1547
        %v1804 = vadd.f32 %v946, %v1548
        %v1805 = vadd.f32 %v947, %v1549
        %v1806 = vadd.f32 %v948, %v1550
        %v1807 = vadd.f32 %v949, %v1551
        %v1808 = vadd.f32 %v950, %v1552
        %v1809 = vadd.f32 %v951, %v1553
        %v1810 = vadd.f32 %v952, %v1554
        %v1811 = vadd.f32 %v953, %v1555
        %v1812 = vadd.f32 %v954, %v1556
        %v1813 = vadd.f32 %v955, %v1557
        %v1814 = vadd.f32 %v956, %v1558
        %v1815 = vadd.f32 %v957, %v1559
        %v1816 = vadd.f32 %v958, %v1560
        %v1817 = vadd.f32 %v959, %v1561
        %v1818 = vadd.f32 %v960, %v1562
        %v1819 = vadd.f32 %v961, %v1563
        %v1820 = vadd.f32 %v962, %v1564
        %v1821 = vadd.f32 %v963, %v1565
        %v1822 = vadd.f32 %v964, %v1566
        %v1823 = vadd.f32 %v965, %v1567
        %v1824 = vadd.f32 %v966, %v1568
        %v1825 = vadd.f32 %v967, %v1569
        %v1826 = vadd.f32 %v968, %v1570
        %v1827 = vadd.f32 %v969, %v1571
        %v1828 = vadd.f32 %v970, %v1572
        %v1829 = vadd.f32 %v971, %v1573
        %v1830 = vadd.f32 %v972, %v1574
        %v1831 = vadd.f32 %v973, %v1575
        %v1832 = vadd.f32 %v974, %v1576
        %v1833 = vadd.f32 %v975, %v1577
        %v1834 = vadd.f32 %v976, %v1578
        %v1835 = vadd.f32 %v977, %v1579
        %v1836 = vadd.f32 %v978, %v1580
        %v1837 = vadd.f32 %v979, %v1581
        %v1838 = vadd.f32 %v980, %v1582
        %v1839 = vadd.f32 %v981, %v1583
        %v1840 = vadd.f32 %v982, %v1584
        %v1841 = vadd.f32 %v983, %v1585
        %v1842 = vadd.f32 %v984, %v1586
        %v1843 = vadd.f32 %v985, %v1587
        %v1844 = vadd.f32 %v986, %v1588
        %v1845 = vadd.f32 %v987, %v1589
        %v1846 = vadd.f32 %v988, %v1590
        %v1847 = vadd.f32 %v989, %v1591
        %v1848 = vadd.f32 %v990, %v1592
        %v1849 = vadd.f32 %v991, %v1593
        %v1850 = vadd.f32 %v992, %v1594
        %v1851 = vadd.f32 %v993, %v1595
        %v1852 = vadd.f32 %v994, %v1596
        %v1853 = vadd.f32 %v995, %v1597
        %v1854 = vadd.f32 %v996, %v1598
        %v1855 = vadd.f32 %v997, %v1599
        %v1856 = vadd.f32 %v998, %v1600
        %v1857 = vadd.f32 %v999, %v1601
        %v1858 = vadd.f32 %v1000, %v1602
        %v1859 = vadd.f32 %v1001, %v1603
        %v1860 = vadd.f32 %v1002, %v1604
        %v1861 = vadd.f32 %v1003, %v1605
        %v1862 = vadd.f32 %v1004, %v1606
        %v1863 = vadd.f32 %v1005, %v1607
        %v1864 = vadd.f32 %v1006, %v1608
        %v1865 = vadd.f32 %v1007, %v1609
        %v1866 = vadd.f32 %v1008, %v1610
        %v1867 = vadd.f32 %v1009, %v1611
        %v1868 = vadd.f32 %v1010, %v1612
        %v1869 = vadd.f32 %v1011, %v1613
        %v1870 = vadd.f32 %v1012, %v1614
        %v1871 = vadd.f32 %v1013, %v1615
        %v1872 = vadd.f32 %v1014, %v1616
        %v1873 = vadd.f32 %v1015, %v1617
        %v1874 = vadd.f32 %v1016, %v1618
        %v1875 = vadd.f32 %v1017, %v1619
        %v1876 = vadd.f32 %v1018, %v1620
        %v1877 = vadd.f32 %v1019, %v1621
        %v1878 = vadd.f32 %v1020, %v1622
        %v1879 = vadd.f32 %v1021, %v1623
        %v1880 = vadd.f32 %v1022, %v1624
        %v1881 = vadd.f32 %v1023, %v1625
        %v1882 = vadd.f32 %v1024, %v1626
        %v1883 = vadd.f32 %v1025, %v1627
        %v1884 = vadd.f32 %v1026, %v1628
        %v1885 = vadd.f32 %v1027, %v1629
        %v1886 = vadd.f32 %v1028, %v1630
        %v1887 = vadd.f32 %v1029, %v1631
        %v1888 = vadd.f32 %v1030, %v1632
        %v1889 = vadd.f32 %v1031, %v1633
        %v1890 = vadd.f32 %v1032, %v1634
        %v1891 = vadd.f32 %v1033, %v1635
        %v1892 = vadd.f32 %v1034, %v1636
        %v1893 = vadd.f32 %v1035, %v1637
        %v1894 = vadd.f32 %v1036, %v1638
        %v1895 = vadd.f32 %v1037, %v1639
        %v1896 = vadd.f32 %v1038, %v1640
        %v1897 = vadd.f32 %v1039, %v1641
        %v1898 = vadd.f32 %v1040, %v1642
        %v1899 = vadd.f32 %v1041, %v1643
        %v1900 = vadd.f32 %v1042, %v1644
        %v1901 = vadd.f32 %v1043, %v1645
        %v1902 = vadd.f32 %v1044, %v1646
        %v1903 = vadd.f32 %v1045, %v1647
        %v1904 = vadd.f32 %v1046, %v1648
        %v1905 = vadd.f32 %v1047, %v1649
        %v1906 = vadd.f32 %v1048, %v1650
        %v1907 = vadd.f32 %v1049, %v1651
        %v1908 = vadd.f32 %v1050, %v1652
        %v1909 = vadd.f32 %v1051, %v1653
        %v1910 = vadd.f32 %v1052, %v1654
        %v1911 = vadd.f32 %v1053, %v1655
        %v1912 = vadd.f32 %v1054, %v1656
        %v1913 = vadd.f32 %v1055, %v1657
        %v1914 = vadd.f32 %v1056, %v1658
        %v1915 = vadd.f32 %v1057, %v1659
        %v1916 = vadd.f32 %v1058, %v1660
        %v1917 = vadd.f32 %v1059, %v1661
        %v1918 = vadd.f32 %v1060, %v1662
        %v1919 = vadd.f32 %v1061, %v1663
        %v1920 = vadd.f32 %v1062, %v1664
        %v1921 = vadd.f32 %v1063, %v1665
        %v1922 = vadd.f32 %v1064, %v1666
        %v1923 = vadd.f32 %v1065, %v1667
        %v1924 = vadd.f32 %v1066, %v1668
        %v1925 = vadd.f32 %v1067, %v1669
        %v1926 = vadd.f32 %v1068, %v1670
        %v1927 = vadd.f32 %v1069, %v1671
        %v1928 = vadd.f32 %v1070, %v1672
        %v1929 = vadd.f32 %v1071, %v1673
        %v1930 = vadd.f32 %v1072, %v1674
        %v1931 = vadd.f32 %v1073, %v1675
        %v1932 = vadd.f32 %v1074, %v1676
        %vm1933 = vcmp.le.f32.partialorder %v457, 0.16
        %vm1934 = vcmp.le.f32.partialorder %v458, 0.16
        %vm1935 = vcmp.le.f32.partialorder %v459, 0.16
        %vm1936 = vcmp.le.f32.partialorder %v460, 0.16
        %vm1937 = vcmp.le.f32.partialorder %v461, 0.16
        %vm1938 = vcmp.le.f32.partialorder %v462, 0.16
        %vm1939 = vcmp.le.f32.partialorder %v463, 0.16
        %vm1940 = vcmp.le.f32.partialorder %v464, 0.16
        %vm1941 = vcmp.le.f32.partialorder %v465, 0.16
        %vm1942 = vcmp.le.f32.partialorder %v466, 0.16
        %vm1943 = vcmp.le.f32.partialorder %v467, 0.16
        %vm1944 = vcmp.le.f32.partialorder %v468, 0.16
        %vm1945 = vcmp.le.f32.partialorder %v469, 0.16
        %vm1946 = vcmp.le.f32.partialorder %v470, 0.16
        %vm1947 = vcmp.le.f32.partialorder %v471, 0.16
        %vm1948 = vcmp.le.f32.partialorder %v472, 0.16
        %v1949 = vsel %vm1933, 1, 0
        %v1950 = vsel %vm1934, 1, 0
        %v1951 = vsel %vm1935, 1, 0
        %v1952 = vsel %vm1936, 1, 0
        %v1953 = vsel %vm1937, 1, 0
        %v1954 = vsel %vm1938, 1, 0
        %v1955 = vsel %vm1939, 1, 0
        %v1956 = vsel %vm1940, 1, 0
        %v1957 = vsel %vm1941, 1, 0
        %v1958 = vsel %vm1942, 1, 0
        %v1959 = vsel %vm1943, 1, 0
        %v1960 = vsel %vm1944, 1, 0
        %v1961 = vsel %vm1945, 1, 0
        %v1962 = vsel %vm1946, 1, 0
        %v1963 = vsel %vm1947, 1, 0
        %v1964 = vsel %vm1948, 1, 0
        %v1965 = vcvt.s32.f32 %v1949
        %v1966 = vcvt.s32.f32 %v1950
        %v1967 = vcvt.s32.f32 %v1951
        %v1968 = vcvt.s32.f32 %v1952
        %v1969 = vcvt.s32.f32 %v1953
        %v1970 = vcvt.s32.f32 %v1954
        %v1971 = vcvt.s32.f32 %v1955
        %v1972 = vcvt.s32.f32 %v1956
        %v1973 = vcvt.s32.f32 %v1957
        %v1974 = vcvt.s32.f32 %v1958
        %v1975 = vcvt.s32.f32 %v1959
        %v1976 = vcvt.s32.f32 %v1960
        %v1977 = vcvt.s32.f32 %v1961
        %v1978 = vcvt.s32.f32 %v1962
        %v1979 = vcvt.s32.f32 %v1963
        %v1980 = vcvt.s32.f32 %v1964
        %vm1981 = vcmask 523264
        %v1982 = vsel %vm1981, %v1965, 0.0
        %1983 = vadd.xlane.f32.xlu0 %v1982
        %v1984 = vpop.xlane.xlu0 %1983
        %v1985 = vsel %vm1981, %v1966, 0.0
        %1986 = vadd.xlane.f32.xlu0 %v1985
        %v1987 = vpop.xlane.xlu0 %1986
        %v1988 = vsel %vm1981, %v1967, 0.0
        %1989 = vadd.xlane.f32.xlu0 %v1988
        %v1990 = vpop.xlane.xlu0 %1989
        %v1991 = vsel %vm1981, %v1968, 0.0
        %1992 = vadd.xlane.f32.xlu0 %v1991
        %v1993 = vpop.xlane.xlu0 %1992
        %v1994 = vsel %vm1981, %v1969, 0.0
        %1995 = vadd.xlane.f32.xlu0 %v1994
        %v1996 = vpop.xlane.xlu0 %1995
        %v1997 = vsel %vm1981, %v1970, 0.0
        %1998 = vadd.xlane.f32.xlu0 %v1997
        %v1999 = vpop.xlane.xlu0 %1998
        %v2000 = vsel %vm1981, %v1971, 0.0
        %2001 = vadd.xlane.f32.xlu0 %v2000
        %v2002 = vpop.xlane.xlu0 %2001
        %v2003 = vsel %vm1981, %v1972, 0.0
        %2004 = vadd.xlane.f32.xlu0 %v2003
        %v2005 = vpop.xlane.xlu0 %2004
        %v2006 = vsel %vm1981, %v1973, 0.0
        %2007 = vadd.xlane.f32.xlu0 %v2006
        %v2008 = vpop.xlane.xlu0 %2007
        %v2009 = vsel %vm1981, %v1974, 0.0
        %2010 = vadd.xlane.f32.xlu0 %v2009
        %v2011 = vpop.xlane.xlu0 %2010
        %v2012 = vsel %vm1981, %v1975, 0.0
        %2013 = vadd.xlane.f32.xlu0 %v2012
        %v2014 = vpop.xlane.xlu0 %2013
        %v2015 = vsel %vm1981, %v1976, 0.0
        %2016 = vadd.xlane.f32.xlu0 %v2015
        %v2017 = vpop.xlane.xlu0 %2016
        %v2018 = vsel %vm1981, %v1977, 0.0
        %2019 = vadd.xlane.f32.xlu0 %v2018
        %v2020 = vpop.xlane.xlu0 %2019
        %v2021 = vsel %vm1981, %v1978, 0.0
        %2022 = vadd.xlane.f32.xlu0 %v2021
        %v2023 = vpop.xlane.xlu0 %2022
        %v2024 = vsel %vm1981, %v1979, 0.0
        %2025 = vadd.xlane.f32.xlu0 %v2024
        %v2026 = vpop.xlane.xlu0 %2025
        %v2027 = vsel %vm1981, %v1980, 0.0
        %2028 = vadd.xlane.f32.xlu0 %v2027
        %v2029 = vpop.xlane.xlu0 %2028
        %v2030 = vmax.f32 %v1984, 1.0
        %v2031 = vmax.f32 %v1987, 1.0
        %v2032 = vmax.f32 %v1990, 1.0
        %v2033 = vmax.f32 %v1993, 1.0
        %v2034 = vmax.f32 %v1996, 1.0
        %v2035 = vmax.f32 %v1999, 1.0
        %v2036 = vmax.f32 %v2002, 1.0
        %v2037 = vmax.f32 %v2005, 1.0
        %v2038 = vmax.f32 %v2008, 1.0
        %v2039 = vmax.f32 %v2011, 1.0
        %v2040 = vmax.f32 %v2014, 1.0
        %v2041 = vmax.f32 %v2017, 1.0
        %v2042 = vmax.f32 %v2020, 1.0
        %v2043 = vmax.f32 %v2023, 1.0
        %v2044 = vmax.f32 %v2026, 1.0
        %v2045 = vmax.f32 %v2029, 1.0
        %v2046 = vrcp.pop %v2030
        %v2047 = vmul.f32 1.0, %v2046
        %v2048 = vrcp.pop %v2031
        %v2049 = vmul.f32 1.0, %v2048
        %v2050 = vrcp.pop %v2032
        %v2051 = vmul.f32 1.0, %v2050
        %v2052 = vrcp.pop %v2033
        %v2053 = vmul.f32 1.0, %v2052
        %v2054 = vrcp.pop %v2034
        %v2055 = vmul.f32 1.0, %v2054
        %v2056 = vrcp.pop %v2035
        %v2057 = vmul.f32 1.0, %v2056
        %v2058 = vrcp.pop %v2036
        %v2059 = vmul.f32 1.0, %v2058
        %v2060 = vrcp.pop %v2037
        %v2061 = vmul.f32 1.0, %v2060
        %v2062 = vrcp.pop %v2038
        %v2063 = vmul.f32 1.0, %v2062
        %v2064 = vrcp.pop %v2039
        %v2065 = vmul.f32 1.0, %v2064
        %v2066 = vrcp.pop %v2040
        %v2067 = vmul.f32 1.0, %v2066
        %v2068 = vrcp.pop %v2041
        %v2069 = vmul.f32 1.0, %v2068
        %v2070 = vrcp.pop %v2042
        %v2071 = vmul.f32 1.0, %v2070
        %v2072 = vrcp.pop %v2043
        %v2073 = vmul.f32 1.0, %v2072
        %v2074 = vrcp.pop %v2044
        %v2075 = vmul.f32 1.0, %v2074
        %v2076 = vrcp.pop %v2045
        %v2077 = vmul.f32 1.0, %v2076
        %v2078 = vmul.f32 %v1965, %v2047
        %v2079 = vmul.f32 %v1966, %v2049
        %v2080 = vmul.f32 %v1967, %v2051
        %v2081 = vmul.f32 %v1968, %v2053
        %v2082 = vmul.f32 %v1969, %v2055
        %v2083 = vmul.f32 %v1970, %v2057
        %v2084 = vmul.f32 %v1971, %v2059
        %v2085 = vmul.f32 %v1972, %v2061
        %v2086 = vmul.f32 %v1973, %v2063
        %v2087 = vmul.f32 %v1974, %v2065
        %v2088 = vmul.f32 %v1975, %v2067
        %v2089 = vmul.f32 %v1976, %v2069
        %v2090 = vmul.f32 %v1977, %v2071
        %v2091 = vmul.f32 %v1978, %v2073
        %v2092 = vmul.f32 %v1979, %v2075
        %v2093 = vmul.f32 %v1980, %v2077
        %vm2094 = vcmp.le.f32.partialorder %v1677, 0.16
        %vm2095 = vcmp.le.f32.partialorder %v1678, 0.16
        %vm2096 = vcmp.le.f32.partialorder %v1679, 0.16
        %vm2097 = vcmp.le.f32.partialorder %v1680, 0.16
        %vm2098 = vcmp.le.f32.partialorder %v1681, 0.16
        %vm2099 = vcmp.le.f32.partialorder %v1682, 0.16
        %vm2100 = vcmp.le.f32.partialorder %v1683, 0.16
        %vm2101 = vcmp.le.f32.partialorder %v1684, 0.16
        %vm2102 = vcmp.le.f32.partialorder %v1685, 0.16
        %vm2103 = vcmp.le.f32.partialorder %v1686, 0.16
        %vm2104 = vcmp.le.f32.partialorder %v1687, 0.16
        %vm2105 = vcmp.le.f32.partialorder %v1688, 0.16
        %vm2106 = vcmp.le.f32.partialorder %v1689, 0.16
        %vm2107 = vcmp.le.f32.partialorder %v1690, 0.16
        %vm2108 = vcmp.le.f32.partialorder %v1691, 0.16
        %vm2109 = vcmp.le.f32.partialorder %v1692, 0.16
        %vm2110 = vcmp.le.f32.partialorder %v1693, 0.16
        %vm2111 = vcmp.le.f32.partialorder %v1694, 0.16
        %vm2112 = vcmp.le.f32.partialorder %v1695, 0.16
        %vm2113 = vcmp.le.f32.partialorder %v1696, 0.16
        %vm2114 = vcmp.le.f32.partialorder %v1697, 0.16
        %vm2115 = vcmp.le.f32.partialorder %v1698, 0.16
        %vm2116 = vcmp.le.f32.partialorder %v1699, 0.16
        %vm2117 = vcmp.le.f32.partialorder %v1700, 0.16
        %vm2118 = vcmp.le.f32.partialorder %v1701, 0.16
        %vm2119 = vcmp.le.f32.partialorder %v1702, 0.16
        %vm2120 = vcmp.le.f32.partialorder %v1703, 0.16
        %vm2121 = vcmp.le.f32.partialorder %v1704, 0.16
        %vm2122 = vcmp.le.f32.partialorder %v1705, 0.16
        %vm2123 = vcmp.le.f32.partialorder %v1706, 0.16
        %vm2124 = vcmp.le.f32.partialorder %v1707, 0.16
        %vm2125 = vcmp.le.f32.partialorder %v1708, 0.16
        %vm2126 = vcmp.le.f32.partialorder %v1709, 0.16
        %vm2127 = vcmp.le.f32.partialorder %v1710, 0.16
        %vm2128 = vcmp.le.f32.partialorder %v1711, 0.16
        %vm2129 = vcmp.le.f32.partialorder %v1712, 0.16
        %vm2130 = vcmp.le.f32.partialorder %v1713, 0.16
        %vm2131 = vcmp.le.f32.partialorder %v1714, 0.16
        %vm2132 = vcmp.le.f32.partialorder %v1715, 0.16
        %vm2133 = vcmp.le.f32.partialorder %v1716, 0.16
        %vm2134 = vcmp.le.f32.partialorder %v1717, 0.16
        %vm2135 = vcmp.le.f32.partialorder %v1718, 0.16
        %vm2136 = vcmp.le.f32.partialorder %v1719, 0.16
        %vm2137 = vcmp.le.f32.partialorder %v1720, 0.16
        %vm2138 = vcmp.le.f32.partialorder %v1721, 0.16
        %vm2139 = vcmp.le.f32.partialorder %v1722, 0.16
        %vm2140 = vcmp.le.f32.partialorder %v1723, 0.16
        %vm2141 = vcmp.le.f32.partialorder %v1724, 0.16
        %vm2142 = vcmp.le.f32.partialorder %v1725, 0.16
        %vm2143 = vcmp.le.f32.partialorder %v1726, 0.16
        %vm2144 = vcmp.le.f32.partialorder %v1727, 0.16
        %vm2145 = vcmp.le.f32.partialorder %v1728, 0.16
        %vm2146 = vcmp.le.f32.partialorder %v1729, 0.16
        %vm2147 = vcmp.le.f32.partialorder %v1730, 0.16
        %vm2148 = vcmp.le.f32.partialorder %v1731, 0.16
        %vm2149 = vcmp.le.f32.partialorder %v1732, 0.16
        %vm2150 = vcmp.le.f32.partialorder %v1733, 0.16
        %vm2151 = vcmp.le.f32.partialorder %v1734, 0.16
        %vm2152 = vcmp.le.f32.partialorder %v1735, 0.16
        %vm2153 = vcmp.le.f32.partialorder %v1736, 0.16
        %vm2154 = vcmp.le.f32.partialorder %v1737, 0.16
        %vm2155 = vcmp.le.f32.partialorder %v1738, 0.16
        %vm2156 = vcmp.le.f32.partialorder %v1739, 0.16
        %vm2157 = vcmp.le.f32.partialorder %v1740, 0.16
        %vm2158 = vcmp.le.f32.partialorder %v1741, 0.16
        %vm2159 = vcmp.le.f32.partialorder %v1742, 0.16
        %vm2160 = vcmp.le.f32.partialorder %v1743, 0.16
        %vm2161 = vcmp.le.f32.partialorder %v1744, 0.16
        %vm2162 = vcmp.le.f32.partialorder %v1745, 0.16
        %vm2163 = vcmp.le.f32.partialorder %v1746, 0.16
        %vm2164 = vcmp.le.f32.partialorder %v1747, 0.16
        %vm2165 = vcmp.le.f32.partialorder %v1748, 0.16
        %vm2166 = vcmp.le.f32.partialorder %v1749, 0.16
        %vm2167 = vcmp.le.f32.partialorder %v1750, 0.16
        %vm2168 = vcmp.le.f32.partialorder %v1751, 0.16
        %vm2169 = vcmp.le.f32.partialorder %v1752, 0.16
        %vm2170 = vcmp.le.f32.partialorder %v1753, 0.16
        %vm2171 = vcmp.le.f32.partialorder %v1754, 0.16
        %vm2172 = vcmp.le.f32.partialorder %v1755, 0.16
        %vm2173 = vcmp.le.f32.partialorder %v1756, 0.16
        %vm2174 = vcmp.le.f32.partialorder %v1757, 0.16
        %vm2175 = vcmp.le.f32.partialorder %v1758, 0.16
        %vm2176 = vcmp.le.f32.partialorder %v1759, 0.16
        %vm2177 = vcmp.le.f32.partialorder %v1760, 0.16
        %vm2178 = vcmp.le.f32.partialorder %v1761, 0.16
        %vm2179 = vcmp.le.f32.partialorder %v1762, 0.16
        %vm2180 = vcmp.le.f32.partialorder %v1763, 0.16
        %vm2181 = vcmp.le.f32.partialorder %v1764, 0.16
        %vm2182 = vcmp.le.f32.partialorder %v1765, 0.16
        %vm2183 = vcmp.le.f32.partialorder %v1766, 0.16
        %vm2184 = vcmp.le.f32.partialorder %v1767, 0.16
        %vm2185 = vcmp.le.f32.partialorder %v1768, 0.16
        %vm2186 = vcmp.le.f32.partialorder %v1769, 0.16
        %vm2187 = vcmp.le.f32.partialorder %v1770, 0.16
        %vm2188 = vcmp.le.f32.partialorder %v1771, 0.16
        %vm2189 = vcmp.le.f32.partialorder %v1772, 0.16
        %vm2190 = vcmp.le.f32.partialorder %v1773, 0.16
        %vm2191 = vcmp.le.f32.partialorder %v1774, 0.16
        %vm2192 = vcmp.le.f32.partialorder %v1775, 0.16
        %vm2193 = vcmp.le.f32.partialorder %v1776, 0.16
        %vm2194 = vcmp.le.f32.partialorder %v1777, 0.16
        %vm2195 = vcmp.le.f32.partialorder %v1778, 0.16
        %vm2196 = vcmp.le.f32.partialorder %v1779, 0.16
        %vm2197 = vcmp.le.f32.partialorder %v1780, 0.16
        %vm2198 = vcmp.le.f32.partialorder %v1781, 0.16
        %vm2199 = vcmp.le.f32.partialorder %v1782, 0.16
        %vm2200 = vcmp.le.f32.partialorder %v1783, 0.16
        %vm2201 = vcmp.le.f32.partialorder %v1784, 0.16
        %vm2202 = vcmp.le.f32.partialorder %v1785, 0.16
        %vm2203 = vcmp.le.f32.partialorder %v1786, 0.16
        %vm2204 = vcmp.le.f32.partialorder %v1787, 0.16
        %vm2205 = vcmp.le.f32.partialorder %v1788, 0.16
        %vm2206 = vcmp.le.f32.partialorder %v1789, 0.16
        %vm2207 = vcmp.le.f32.partialorder %v1790, 0.16
        %vm2208 = vcmp.le.f32.partialorder %v1791, 0.16
        %vm2209 = vcmp.le.f32.partialorder %v1792, 0.16
        %vm2210 = vcmp.le.f32.partialorder %v1793, 0.16
        %vm2211 = vcmp.le.f32.partialorder %v1794, 0.16
        %vm2212 = vcmp.le.f32.partialorder %v1795, 0.16
        %vm2213 = vcmp.le.f32.partialorder %v1796, 0.16
        %vm2214 = vcmp.le.f32.partialorder %v1797, 0.16
        %vm2215 = vcmp.le.f32.partialorder %v1798, 0.16
        %vm2216 = vcmp.le.f32.partialorder %v1799, 0.16
        %vm2217 = vcmp.le.f32.partialorder %v1800, 0.16
        %vm2218 = vcmp.le.f32.partialorder %v1801, 0.16
        %vm2219 = vcmp.le.f32.partialorder %v1802, 0.16
        %vm2220 = vcmp.le.f32.partialorder %v1803, 0.16
        %vm2221 = vcmp.le.f32.partialorder %v1804, 0.16
        %vm2222 = vcmp.le.f32.partialorder %v1805, 0.16
        %vm2223 = vcmp.le.f32.partialorder %v1806, 0.16
        %vm2224 = vcmp.le.f32.partialorder %v1807, 0.16
        %vm2225 = vcmp.le.f32.partialorder %v1808, 0.16
        %vm2226 = vcmp.le.f32.partialorder %v1809, 0.16
        %vm2227 = vcmp.le.f32.partialorder %v1810, 0.16
        %vm2228 = vcmp.le.f32.partialorder %v1811, 0.16
        %vm2229 = vcmp.le.f32.partialorder %v1812, 0.16
        %vm2230 = vcmp.le.f32.partialorder %v1813, 0.16
        %vm2231 = vcmp.le.f32.partialorder %v1814, 0.16
        %vm2232 = vcmp.le.f32.partialorder %v1815, 0.16
        %vm2233 = vcmp.le.f32.partialorder %v1816, 0.16
        %vm2234 = vcmp.le.f32.partialorder %v1817, 0.16
        %vm2235 = vcmp.le.f32.partialorder %v1818, 0.16
        %vm2236 = vcmp.le.f32.partialorder %v1819, 0.16
        %vm2237 = vcmp.le.f32.partialorder %v1820, 0.16
        %vm2238 = vcmp.le.f32.partialorder %v1821, 0.16
        %vm2239 = vcmp.le.f32.partialorder %v1822, 0.16
        %vm2240 = vcmp.le.f32.partialorder %v1823, 0.16
        %vm2241 = vcmp.le.f32.partialorder %v1824, 0.16
        %vm2242 = vcmp.le.f32.partialorder %v1825, 0.16
        %vm2243 = vcmp.le.f32.partialorder %v1826, 0.16
        %vm2244 = vcmp.le.f32.partialorder %v1827, 0.16
        %vm2245 = vcmp.le.f32.partialorder %v1828, 0.16
        %vm2246 = vcmp.le.f32.partialorder %v1829, 0.16
        %vm2247 = vcmp.le.f32.partialorder %v1830, 0.16
        %vm2248 = vcmp.le.f32.partialorder %v1831, 0.16
        %vm2249 = vcmp.le.f32.partialorder %v1832, 0.16
        %vm2250 = vcmp.le.f32.partialorder %v1833, 0.16
        %vm2251 = vcmp.le.f32.partialorder %v1834, 0.16
        %vm2252 = vcmp.le.f32.partialorder %v1835, 0.16
        %vm2253 = vcmp.le.f32.partialorder %v1836, 0.16
        %vm2254 = vcmp.le.f32.partialorder %v1837, 0.16
        %vm2255 = vcmp.le.f32.partialorder %v1838, 0.16
        %vm2256 = vcmp.le.f32.partialorder %v1839, 0.16
        %vm2257 = vcmp.le.f32.partialorder %v1840, 0.16
        %vm2258 = vcmp.le.f32.partialorder %v1841, 0.16
        %vm2259 = vcmp.le.f32.partialorder %v1842, 0.16
        %vm2260 = vcmp.le.f32.partialorder %v1843, 0.16
        %vm2261 = vcmp.le.f32.partialorder %v1844, 0.16
        %vm2262 = vcmp.le.f32.partialorder %v1845, 0.16
        %vm2263 = vcmp.le.f32.partialorder %v1846, 0.16
        %vm2264 = vcmp.le.f32.partialorder %v1847, 0.16
        %vm2265 = vcmp.le.f32.partialorder %v1848, 0.16
        %vm2266 = vcmp.le.f32.partialorder %v1849, 0.16
        %vm2267 = vcmp.le.f32.partialorder %v1850, 0.16
        %vm2268 = vcmp.le.f32.partialorder %v1851, 0.16
        %vm2269 = vcmp.le.f32.partialorder %v1852, 0.16
        %vm2270 = vcmp.le.f32.partialorder %v1853, 0.16
        %vm2271 = vcmp.le.f32.partialorder %v1854, 0.16
        %vm2272 = vcmp.le.f32.partialorder %v1855, 0.16
        %vm2273 = vcmp.le.f32.partialorder %v1856, 0.16
        %vm2274 = vcmp.le.f32.partialorder %v1857, 0.16
        %vm2275 = vcmp.le.f32.partialorder %v1858, 0.16
        %vm2276 = vcmp.le.f32.partialorder %v1859, 0.16
        %vm2277 = vcmp.le.f32.partialorder %v1860, 0.16
        %vm2278 = vcmp.le.f32.partialorder %v1861, 0.16
        %vm2279 = vcmp.le.f32.partialorder %v1862, 0.16
        %vm2280 = vcmp.le.f32.partialorder %v1863, 0.16
        %vm2281 = vcmp.le.f32.partialorder %v1864, 0.16
        %vm2282 = vcmp.le.f32.partialorder %v1865, 0.16
        %vm2283 = vcmp.le.f32.partialorder %v1866, 0.16
        %vm2284 = vcmp.le.f32.partialorder %v1867, 0.16
        %vm2285 = vcmp.le.f32.partialorder %v1868, 0.16
        %vm2286 = vcmp.le.f32.partialorder %v1869, 0.16
        %vm2287 = vcmp.le.f32.partialorder %v1870, 0.16
        %vm2288 = vcmp.le.f32.partialorder %v1871, 0.16
        %vm2289 = vcmp.le.f32.partialorder %v1872, 0.16
        %vm2290 = vcmp.le.f32.partialorder %v1873, 0.16
        %vm2291 = vcmp.le.f32.partialorder %v1874, 0.16
        %vm2292 = vcmp.le.f32.partialorder %v1875, 0.16
        %vm2293 = vcmp.le.f32.partialorder %v1876, 0.16
        %vm2294 = vcmp.le.f32.partialorder %v1877, 0.16
        %vm2295 = vcmp.le.f32.partialorder %v1878, 0.16
        %vm2296 = vcmp.le.f32.partialorder %v1879, 0.16
        %vm2297 = vcmp.le.f32.partialorder %v1880, 0.16
        %vm2298 = vcmp.le.f32.partialorder %v1881, 0.16
        %vm2299 = vcmp.le.f32.partialorder %v1882, 0.16
        %vm2300 = vcmp.le.f32.partialorder %v1883, 0.16
        %vm2301 = vcmp.le.f32.partialorder %v1884, 0.16
        %vm2302 = vcmp.le.f32.partialorder %v1885, 0.16
        %vm2303 = vcmp.le.f32.partialorder %v1886, 0.16
        %vm2304 = vcmp.le.f32.partialorder %v1887, 0.16
        %vm2305 = vcmp.le.f32.partialorder %v1888, 0.16
        %vm2306 = vcmp.le.f32.partialorder %v1889, 0.16
        %vm2307 = vcmp.le.f32.partialorder %v1890, 0.16
        %vm2308 = vcmp.le.f32.partialorder %v1891, 0.16
        %vm2309 = vcmp.le.f32.partialorder %v1892, 0.16
        %vm2310 = vcmp.le.f32.partialorder %v1893, 0.16
        %vm2311 = vcmp.le.f32.partialorder %v1894, 0.16
        %vm2312 = vcmp.le.f32.partialorder %v1895, 0.16
        %vm2313 = vcmp.le.f32.partialorder %v1896, 0.16
        %vm2314 = vcmp.le.f32.partialorder %v1897, 0.16
        %vm2315 = vcmp.le.f32.partialorder %v1898, 0.16
        %vm2316 = vcmp.le.f32.partialorder %v1899, 0.16
        %vm2317 = vcmp.le.f32.partialorder %v1900, 0.16
        %vm2318 = vcmp.le.f32.partialorder %v1901, 0.16
        %vm2319 = vcmp.le.f32.partialorder %v1902, 0.16
        %vm2320 = vcmp.le.f32.partialorder %v1903, 0.16
        %vm2321 = vcmp.le.f32.partialorder %v1904, 0.16
        %vm2322 = vcmp.le.f32.partialorder %v1905, 0.16
        %vm2323 = vcmp.le.f32.partialorder %v1906, 0.16
        %vm2324 = vcmp.le.f32.partialorder %v1907, 0.16
        %vm2325 = vcmp.le.f32.partialorder %v1908, 0.16
        %vm2326 = vcmp.le.f32.partialorder %v1909, 0.16
        %vm2327 = vcmp.le.f32.partialorder %v1910, 0.16
        %vm2328 = vcmp.le.f32.partialorder %v1911, 0.16
        %vm2329 = vcmp.le.f32.partialorder %v1912, 0.16
        %vm2330 = vcmp.le.f32.partialorder %v1913, 0.16
        %vm2331 = vcmp.le.f32.partialorder %v1914, 0.16
        %vm2332 = vcmp.le.f32.partialorder %v1915, 0.16
        %vm2333 = vcmp.le.f32.partialorder %v1916, 0.16
        %vm2334 = vcmp.le.f32.partialorder %v1917, 0.16
        %vm2335 = vcmp.le.f32.partialorder %v1918, 0.16
        %vm2336 = vcmp.le.f32.partialorder %v1919, 0.16
        %vm2337 = vcmp.le.f32.partialorder %v1920, 0.16
        %vm2338 = vcmp.le.f32.partialorder %v1921, 0.16
        %vm2339 = vcmp.le.f32.partialorder %v1922, 0.16
        %vm2340 = vcmp.le.f32.partialorder %v1923, 0.16
        %vm2341 = vcmp.le.f32.partialorder %v1924, 0.16
        %vm2342 = vcmp.le.f32.partialorder %v1925, 0.16
        %vm2343 = vcmp.le.f32.partialorder %v1926, 0.16
        %vm2344 = vcmp.le.f32.partialorder %v1927, 0.16
        %vm2345 = vcmp.le.f32.partialorder %v1928, 0.16
        %vm2346 = vcmp.le.f32.partialorder %v1929, 0.16
        %vm2347 = vcmp.le.f32.partialorder %v1930, 0.16
        %vm2348 = vcmp.le.f32.partialorder %v1931, 0.16
        %vm2349 = vcmp.le.f32.partialorder %v1932, 0.16
        %v2350 = vsel %vm2094, 1, 0
        %v2351 = vsel %vm2095, 1, 0
        %v2352 = vsel %vm2096, 1, 0
        %v2353 = vsel %vm2097, 1, 0
        %v2354 = vsel %vm2098, 1, 0
        %v2355 = vsel %vm2099, 1, 0
        %v2356 = vsel %vm2100, 1, 0
        %v2357 = vsel %vm2101, 1, 0
        %v2358 = vsel %vm2102, 1, 0
        %v2359 = vsel %vm2103, 1, 0
        %v2360 = vsel %vm2104, 1, 0
        %v2361 = vsel %vm2105, 1, 0
        %v2362 = vsel %vm2106, 1, 0
        %v2363 = vsel %vm2107, 1, 0
        %v2364 = vsel %vm2108, 1, 0
        %v2365 = vsel %vm2109, 1, 0
        %v2366 = vsel %vm2110, 1, 0
        %v2367 = vsel %vm2111, 1, 0
        %v2368 = vsel %vm2112, 1, 0
        %v2369 = vsel %vm2113, 1, 0
        %v2370 = vsel %vm2114, 1, 0
        %v2371 = vsel %vm2115, 1, 0
        %v2372 = vsel %vm2116, 1, 0
        %v2373 = vsel %vm2117, 1, 0
        %v2374 = vsel %vm2118, 1, 0
        %v2375 = vsel %vm2119, 1, 0
        %v2376 = vsel %vm2120, 1, 0
        %v2377 = vsel %vm2121, 1, 0
        %v2378 = vsel %vm2122, 1, 0
        %v2379 = vsel %vm2123, 1, 0
        %v2380 = vsel %vm2124, 1, 0
        %v2381 = vsel %vm2125, 1, 0
        %v2382 = vsel %vm2126, 1, 0
        %v2383 = vsel %vm2127, 1, 0
        %v2384 = vsel %vm2128, 1, 0
        %v2385 = vsel %vm2129, 1, 0
        %v2386 = vsel %vm2130, 1, 0
        %v2387 = vsel %vm2131, 1, 0
        %v2388 = vsel %vm2132, 1, 0
        %v2389 = vsel %vm2133, 1, 0
        %v2390 = vsel %vm2134, 1, 0
        %v2391 = vsel %vm2135, 1, 0
        %v2392 = vsel %vm2136, 1, 0
        %v2393 = vsel %vm2137, 1, 0
        %v2394 = vsel %vm2138, 1, 0
        %v2395 = vsel %vm2139, 1, 0
        %v2396 = vsel %vm2140, 1, 0
        %v2397 = vsel %vm2141, 1, 0
        %v2398 = vsel %vm2142, 1, 0
        %v2399 = vsel %vm2143, 1, 0
        %v2400 = vsel %vm2144, 1, 0
        %v2401 = vsel %vm2145, 1, 0
        %v2402 = vsel %vm2146, 1, 0
        %v2403 = vsel %vm2147, 1, 0
        %v2404 = vsel %vm2148, 1, 0
        %v2405 = vsel %vm2149, 1, 0
        %v2406 = vsel %vm2150, 1, 0
        %v2407 = vsel %vm2151, 1, 0
        %v2408 = vsel %vm2152, 1, 0
        %v2409 = vsel %vm2153, 1, 0
        %v2410 = vsel %vm2154, 1, 0
        %v2411 = vsel %vm2155, 1, 0
        %v2412 = vsel %vm2156, 1, 0
        %v2413 = vsel %vm2157, 1, 0
        %v2414 = vsel %vm2158, 1, 0
        %v2415 = vsel %vm2159, 1, 0
        %v2416 = vsel %vm2160, 1, 0
        %v2417 = vsel %vm2161, 1, 0
        %v2418 = vsel %vm2162, 1, 0
        %v2419 = vsel %vm2163, 1, 0
        %v2420 = vsel %vm2164, 1, 0
        %v2421 = vsel %vm2165, 1, 0
        %v2422 = vsel %vm2166, 1, 0
        %v2423 = vsel %vm2167, 1, 0
        %v2424 = vsel %vm2168, 1, 0
        %v2425 = vsel %vm2169, 1, 0
        %v2426 = vsel %vm2170, 1, 0
        %v2427 = vsel %vm2171, 1, 0
        %v2428 = vsel %vm2172, 1, 0
        %v2429 = vsel %vm2173, 1, 0
        %v2430 = vsel %vm2174, 1, 0
        %v2431 = vsel %vm2175, 1, 0
        %v2432 = vsel %vm2176, 1, 0
        %v2433 = vsel %vm2177, 1, 0
        %v2434 = vsel %vm2178, 1, 0
        %v2435 = vsel %vm2179, 1, 0
        %v2436 = vsel %vm2180, 1, 0
        %v2437 = vsel %vm2181, 1, 0
        %v2438 = vsel %vm2182, 1, 0
        %v2439 = vsel %vm2183, 1, 0
        %v2440 = vsel %vm2184, 1, 0
        %v2441 = vsel %vm2185, 1, 0
        %v2442 = vsel %vm2186, 1, 0
        %v2443 = vsel %vm2187, 1, 0
        %v2444 = vsel %vm2188, 1, 0
        %v2445 = vsel %vm2189, 1, 0
        %v2446 = vsel %vm2190, 1, 0
        %v2447 = vsel %vm2191, 1, 0
        %v2448 = vsel %vm2192, 1, 0
        %v2449 = vsel %vm2193, 1, 0
        %v2450 = vsel %vm2194, 1, 0
        %v2451 = vsel %vm2195, 1, 0
        %v2452 = vsel %vm2196, 1, 0
        %v2453 = vsel %vm2197, 1, 0
        %v2454 = vsel %vm2198, 1, 0
        %v2455 = vsel %vm2199, 1, 0
        %v2456 = vsel %vm2200, 1, 0
        %v2457 = vsel %vm2201, 1, 0
        %v2458 = vsel %vm2202, 1, 0
        %v2459 = vsel %vm2203, 1, 0
        %v2460 = vsel %vm2204, 1, 0
        %v2461 = vsel %vm2205, 1, 0
        %v2462 = vsel %vm2206, 1, 0
        %v2463 = vsel %vm2207, 1, 0
        %v2464 = vsel %vm2208, 1, 0
        %v2465 = vsel %vm2209, 1, 0
        %v2466 = vsel %vm2210, 1, 0
        %v2467 = vsel %vm2211, 1, 0
        %v2468 = vsel %vm2212, 1, 0
        %v2469 = vsel %vm2213, 1, 0
        %v2470 = vsel %vm2214, 1, 0
        %v2471 = vsel %vm2215, 1, 0
        %v2472 = vsel %vm2216, 1, 0
        %v2473 = vsel %vm2217, 1, 0
        %v2474 = vsel %vm2218, 1, 0
        %v2475 = vsel %vm2219, 1, 0
        %v2476 = vsel %vm2220, 1, 0
        %v2477 = vsel %vm2221, 1, 0
        %v2478 = vsel %vm2222, 1, 0
        %v2479 = vsel %vm2223, 1, 0
        %v2480 = vsel %vm2224, 1, 0
        %v2481 = vsel %vm2225, 1, 0
        %v2482 = vsel %vm2226, 1, 0
        %v2483 = vsel %vm2227, 1, 0
        %v2484 = vsel %vm2228, 1, 0
        %v2485 = vsel %vm2229, 1, 0
        %v2486 = vsel %vm2230, 1, 0
        %v2487 = vsel %vm2231, 1, 0
        %v2488 = vsel %vm2232, 1, 0
        %v2489 = vsel %vm2233, 1, 0
        %v2490 = vsel %vm2234, 1, 0
        %v2491 = vsel %vm2235, 1, 0
        %v2492 = vsel %vm2236, 1, 0
        %v2493 = vsel %vm2237, 1, 0
        %v2494 = vsel %vm2238, 1, 0
        %v2495 = vsel %vm2239, 1, 0
        %v2496 = vsel %vm2240, 1, 0
        %v2497 = vsel %vm2241, 1, 0
        %v2498 = vsel %vm2242, 1, 0
        %v2499 = vsel %vm2243, 1, 0
        %v2500 = vsel %vm2244, 1, 0
        %v2501 = vsel %vm2245, 1, 0
        %v2502 = vsel %vm2246, 1, 0
        %v2503 = vsel %vm2247, 1, 0
        %v2504 = vsel %vm2248, 1, 0
        %v2505 = vsel %vm2249, 1, 0
        %v2506 = vsel %vm2250, 1, 0
        %v2507 = vsel %vm2251, 1, 0
        %v2508 = vsel %vm2252, 1, 0
        %v2509 = vsel %vm2253, 1, 0
        %v2510 = vsel %vm2254, 1, 0
        %v2511 = vsel %vm2255, 1, 0
        %v2512 = vsel %vm2256, 1, 0
        %v2513 = vsel %vm2257, 1, 0
        %v2514 = vsel %vm2258, 1, 0
        %v2515 = vsel %vm2259, 1, 0
        %v2516 = vsel %vm2260, 1, 0
        %v2517 = vsel %vm2261, 1, 0
        %v2518 = vsel %vm2262, 1, 0
        %v2519 = vsel %vm2263, 1, 0
        %v2520 = vsel %vm2264, 1, 0
        %v2521 = vsel %vm2265, 1, 0
        %v2522 = vsel %vm2266, 1, 0
        %v2523 = vsel %vm2267, 1, 0
        %v2524 = vsel %vm2268, 1, 0
        %v2525 = vsel %vm2269, 1, 0
        %v2526 = vsel %vm2270, 1, 0
        %v2527 = vsel %vm2271, 1, 0
        %v2528 = vsel %vm2272, 1, 0
        %v2529 = vsel %vm2273, 1, 0
        %v2530 = vsel %vm2274, 1, 0
        %v2531 = vsel %vm2275, 1, 0
        %v2532 = vsel %vm2276, 1, 0
        %v2533 = vsel %vm2277, 1, 0
        %v2534 = vsel %vm2278, 1, 0
        %v2535 = vsel %vm2279, 1, 0
        %v2536 = vsel %vm2280, 1, 0
        %v2537 = vsel %vm2281, 1, 0
        %v2538 = vsel %vm2282, 1, 0
        %v2539 = vsel %vm2283, 1, 0
        %v2540 = vsel %vm2284, 1, 0
        %v2541 = vsel %vm2285, 1, 0
        %v2542 = vsel %vm2286, 1, 0
        %v2543 = vsel %vm2287, 1, 0
        %v2544 = vsel %vm2288, 1, 0
        %v2545 = vsel %vm2289, 1, 0
        %v2546 = vsel %vm2290, 1, 0
        %v2547 = vsel %vm2291, 1, 0
        %v2548 = vsel %vm2292, 1, 0
        %v2549 = vsel %vm2293, 1, 0
        %v2550 = vsel %vm2294, 1, 0
        %v2551 = vsel %vm2295, 1, 0
        %v2552 = vsel %vm2296, 1, 0
        %v2553 = vsel %vm2297, 1, 0
        %v2554 = vsel %vm2298, 1, 0
        %v2555 = vsel %vm2299, 1, 0
        %v2556 = vsel %vm2300, 1, 0
        %v2557 = vsel %vm2301, 1, 0
        %v2558 = vsel %vm2302, 1, 0
        %v2559 = vsel %vm2303, 1, 0
        %v2560 = vsel %vm2304, 1, 0
        %v2561 = vsel %vm2305, 1, 0
        %v2562 = vsel %vm2306, 1, 0
        %v2563 = vsel %vm2307, 1, 0
        %v2564 = vsel %vm2308, 1, 0
        %v2565 = vsel %vm2309, 1, 0
        %v2566 = vsel %vm2310, 1, 0
        %v2567 = vsel %vm2311, 1, 0
        %v2568 = vsel %vm2312, 1, 0
        %v2569 = vsel %vm2313, 1, 0
        %v2570 = vsel %vm2314, 1, 0
        %v2571 = vsel %vm2315, 1, 0
        %v2572 = vsel %vm2316, 1, 0
        %v2573 = vsel %vm2317, 1, 0
        %v2574 = vsel %vm2318, 1, 0
        %v2575 = vsel %vm2319, 1, 0
        %v2576 = vsel %vm2320, 1, 0
        %v2577 = vsel %vm2321, 1, 0
        %v2578 = vsel %vm2322, 1, 0
        %v2579 = vsel %vm2323, 1, 0
        %v2580 = vsel %vm2324, 1, 0
        %v2581 = vsel %vm2325, 1, 0
        %v2582 = vsel %vm2326, 1, 0
        %v2583 = vsel %vm2327, 1, 0
        %v2584 = vsel %vm2328, 1, 0
        %v2585 = vsel %vm2329, 1, 0
        %v2586 = vsel %vm2330, 1, 0
        %v2587 = vsel %vm2331, 1, 0
        %v2588 = vsel %vm2332, 1, 0
        %v2589 = vsel %vm2333, 1, 0
        %v2590 = vsel %vm2334, 1, 0
        %v2591 = vsel %vm2335, 1, 0
        %v2592 = vsel %vm2336, 1, 0
        %v2593 = vsel %vm2337, 1, 0
        %v2594 = vsel %vm2338, 1, 0
        %v2595 = vsel %vm2339, 1, 0
        %v2596 = vsel %vm2340, 1, 0
        %v2597 = vsel %vm2341, 1, 0
        %v2598 = vsel %vm2342, 1, 0
        %v2599 = vsel %vm2343, 1, 0
        %v2600 = vsel %vm2344, 1, 0
        %v2601 = vsel %vm2345, 1, 0
        %v2602 = vsel %vm2346, 1, 0
        %v2603 = vsel %vm2347, 1, 0
        %v2604 = vsel %vm2348, 1, 0
        %v2605 = vsel %vm2349, 1, 0
        %v2606 = vcvt.s32.f32 %v2350
        %v2607 = vcvt.s32.f32 %v2351
        %v2608 = vcvt.s32.f32 %v2352
        %v2609 = vcvt.s32.f32 %v2353
        %v2610 = vcvt.s32.f32 %v2354
        %v2611 = vcvt.s32.f32 %v2355
        %v2612 = vcvt.s32.f32 %v2356
        %v2613 = vcvt.s32.f32 %v2357
        %v2614 = vcvt.s32.f32 %v2358
        %v2615 = vcvt.s32.f32 %v2359
        %v2616 = vcvt.s32.f32 %v2360
        %v2617 = vcvt.s32.f32 %v2361
        %v2618 = vcvt.s32.f32 %v2362
        %v2619 = vcvt.s32.f32 %v2363
        %v2620 = vcvt.s32.f32 %v2364
        %v2621 = vcvt.s32.f32 %v2365
        %v2622 = vcvt.s32.f32 %v2366
        %v2623 = vcvt.s32.f32 %v2367
        %v2624 = vcvt.s32.f32 %v2368
        %v2625 = vcvt.s32.f32 %v2369
        %v2626 = vcvt.s32.f32 %v2370
        %v2627 = vcvt.s32.f32 %v2371
        %v2628 = vcvt.s32.f32 %v2372
        %v2629 = vcvt.s32.f32 %v2373
        %v2630 = vcvt.s32.f32 %v2374
        %v2631 = vcvt.s32.f32 %v2375
        %v2632 = vcvt.s32.f32 %v2376
        %v2633 = vcvt.s32.f32 %v2377
        %v2634 = vcvt.s32.f32 %v2378
        %v2635 = vcvt.s32.f32 %v2379
        %v2636 = vcvt.s32.f32 %v2380
        %v2637 = vcvt.s32.f32 %v2381
        %v2638 = vcvt.s32.f32 %v2382
        %v2639 = vcvt.s32.f32 %v2383
        %v2640 = vcvt.s32.f32 %v2384
        %v2641 = vcvt.s32.f32 %v2385
        %v2642 = vcvt.s32.f32 %v2386
        %v2643 = vcvt.s32.f32 %v2387
        %v2644 = vcvt.s32.f32 %v2388
        %v2645 = vcvt.s32.f32 %v2389
        %v2646 = vcvt.s32.f32 %v2390
        %v2647 = vcvt.s32.f32 %v2391
        %v2648 = vcvt.s32.f32 %v2392
        %v2649 = vcvt.s32.f32 %v2393
        %v2650 = vcvt.s32.f32 %v2394
        %v2651 = vcvt.s32.f32 %v2395
        %v2652 = vcvt.s32.f32 %v2396
        %v2653 = vcvt.s32.f32 %v2397
        %v2654 = vcvt.s32.f32 %v2398
        %v2655 = vcvt.s32.f32 %v2399
        %v2656 = vcvt.s32.f32 %v2400
        %v2657 = vcvt.s32.f32 %v2401
        %v2658 = vcvt.s32.f32 %v2402
        %v2659 = vcvt.s32.f32 %v2403
        %v2660 = vcvt.s32.f32 %v2404
        %v2661 = vcvt.s32.f32 %v2405
        %v2662 = vcvt.s32.f32 %v2406
        %v2663 = vcvt.s32.f32 %v2407
        %v2664 = vcvt.s32.f32 %v2408
        %v2665 = vcvt.s32.f32 %v2409
        %v2666 = vcvt.s32.f32 %v2410
        %v2667 = vcvt.s32.f32 %v2411
        %v2668 = vcvt.s32.f32 %v2412
        %v2669 = vcvt.s32.f32 %v2413
        %v2670 = vcvt.s32.f32 %v2414
        %v2671 = vcvt.s32.f32 %v2415
        %v2672 = vcvt.s32.f32 %v2416
        %v2673 = vcvt.s32.f32 %v2417
        %v2674 = vcvt.s32.f32 %v2418
        %v2675 = vcvt.s32.f32 %v2419
        %v2676 = vcvt.s32.f32 %v2420
        %v2677 = vcvt.s32.f32 %v2421
        %v2678 = vcvt.s32.f32 %v2422
        %v2679 = vcvt.s32.f32 %v2423
        %v2680 = vcvt.s32.f32 %v2424
        %v2681 = vcvt.s32.f32 %v2425
        %v2682 = vcvt.s32.f32 %v2426
        %v2683 = vcvt.s32.f32 %v2427
        %v2684 = vcvt.s32.f32 %v2428
        %v2685 = vcvt.s32.f32 %v2429
        %v2686 = vcvt.s32.f32 %v2430
        %v2687 = vcvt.s32.f32 %v2431
        %v2688 = vcvt.s32.f32 %v2432
        %v2689 = vcvt.s32.f32 %v2433
        %v2690 = vcvt.s32.f32 %v2434
        %v2691 = vcvt.s32.f32 %v2435
        %v2692 = vcvt.s32.f32 %v2436
        %v2693 = vcvt.s32.f32 %v2437
        %v2694 = vcvt.s32.f32 %v2438
        %v2695 = vcvt.s32.f32 %v2439
        %v2696 = vcvt.s32.f32 %v2440
        %v2697 = vcvt.s32.f32 %v2441
        %v2698 = vcvt.s32.f32 %v2442
        %v2699 = vcvt.s32.f32 %v2443
        %v2700 = vcvt.s32.f32 %v2444
        %v2701 = vcvt.s32.f32 %v2445
        %v2702 = vcvt.s32.f32 %v2446
        %v2703 = vcvt.s32.f32 %v2447
        %v2704 = vcvt.s32.f32 %v2448
        %v2705 = vcvt.s32.f32 %v2449
        %v2706 = vcvt.s32.f32 %v2450
        %v2707 = vcvt.s32.f32 %v2451
        %v2708 = vcvt.s32.f32 %v2452
        %v2709 = vcvt.s32.f32 %v2453
        %v2710 = vcvt.s32.f32 %v2454
        %v2711 = vcvt.s32.f32 %v2455
        %v2712 = vcvt.s32.f32 %v2456
        %v2713 = vcvt.s32.f32 %v2457
        %v2714 = vcvt.s32.f32 %v2458
        %v2715 = vcvt.s32.f32 %v2459
        %v2716 = vcvt.s32.f32 %v2460
        %v2717 = vcvt.s32.f32 %v2461
        %v2718 = vcvt.s32.f32 %v2462
        %v2719 = vcvt.s32.f32 %v2463
        %v2720 = vcvt.s32.f32 %v2464
        %v2721 = vcvt.s32.f32 %v2465
        %v2722 = vcvt.s32.f32 %v2466
        %v2723 = vcvt.s32.f32 %v2467
        %v2724 = vcvt.s32.f32 %v2468
        %v2725 = vcvt.s32.f32 %v2469
        %v2726 = vcvt.s32.f32 %v2470
        %v2727 = vcvt.s32.f32 %v2471
        %v2728 = vcvt.s32.f32 %v2472
        %v2729 = vcvt.s32.f32 %v2473
        %v2730 = vcvt.s32.f32 %v2474
        %v2731 = vcvt.s32.f32 %v2475
        %v2732 = vcvt.s32.f32 %v2476
        %v2733 = vcvt.s32.f32 %v2477
        %v2734 = vcvt.s32.f32 %v2478
        %v2735 = vcvt.s32.f32 %v2479
        %v2736 = vcvt.s32.f32 %v2480
        %v2737 = vcvt.s32.f32 %v2481
        %v2738 = vcvt.s32.f32 %v2482
        %v2739 = vcvt.s32.f32 %v2483
        %v2740 = vcvt.s32.f32 %v2484
        %v2741 = vcvt.s32.f32 %v2485
        %v2742 = vcvt.s32.f32 %v2486
        %v2743 = vcvt.s32.f32 %v2487
        %v2744 = vcvt.s32.f32 %v2488
        %v2745 = vcvt.s32.f32 %v2489
        %v2746 = vcvt.s32.f32 %v2490
        %v2747 = vcvt.s32.f32 %v2491
        %v2748 = vcvt.s32.f32 %v2492
        %v2749 = vcvt.s32.f32 %v2493
        %v2750 = vcvt.s32.f32 %v2494
        %v2751 = vcvt.s32.f32 %v2495
        %v2752 = vcvt.s32.f32 %v2496
        %v2753 = vcvt.s32.f32 %v2497
        %v2754 = vcvt.s32.f32 %v2498
        %v2755 = vcvt.s32.f32 %v2499
        %v2756 = vcvt.s32.f32 %v2500
        %v2757 = vcvt.s32.f32 %v2501
        %v2758 = vcvt.s32.f32 %v2502
        %v2759 = vcvt.s32.f32 %v2503
        %v2760 = vcvt.s32.f32 %v2504
        %v2761 = vcvt.s32.f32 %v2505
        %v2762 = vcvt.s32.f32 %v2506
        %v2763 = vcvt.s32.f32 %v2507
        %v2764 = vcvt.s32.f32 %v2508
        %v2765 = vcvt.s32.f32 %v2509
        %v2766 = vcvt.s32.f32 %v2510
        %v2767 = vcvt.s32.f32 %v2511
        %v2768 = vcvt.s32.f32 %v2512
        %v2769 = vcvt.s32.f32 %v2513
        %v2770 = vcvt.s32.f32 %v2514
        %v2771 = vcvt.s32.f32 %v2515
        %v2772 = vcvt.s32.f32 %v2516
        %v2773 = vcvt.s32.f32 %v2517
        %v2774 = vcvt.s32.f32 %v2518
        %v2775 = vcvt.s32.f32 %v2519
        %v2776 = vcvt.s32.f32 %v2520
        %v2777 = vcvt.s32.f32 %v2521
        %v2778 = vcvt.s32.f32 %v2522
        %v2779 = vcvt.s32.f32 %v2523
        %v2780 = vcvt.s32.f32 %v2524
        %v2781 = vcvt.s32.f32 %v2525
        %v2782 = vcvt.s32.f32 %v2526
        %v2783 = vcvt.s32.f32 %v2527
        %v2784 = vcvt.s32.f32 %v2528
        %v2785 = vcvt.s32.f32 %v2529
        %v2786 = vcvt.s32.f32 %v2530
        %v2787 = vcvt.s32.f32 %v2531
        %v2788 = vcvt.s32.f32 %v2532
        %v2789 = vcvt.s32.f32 %v2533
        %v2790 = vcvt.s32.f32 %v2534
        %v2791 = vcvt.s32.f32 %v2535
        %v2792 = vcvt.s32.f32 %v2536
        %v2793 = vcvt.s32.f32 %v2537
        %v2794 = vcvt.s32.f32 %v2538
        %v2795 = vcvt.s32.f32 %v2539
        %v2796 = vcvt.s32.f32 %v2540
        %v2797 = vcvt.s32.f32 %v2541
        %v2798 = vcvt.s32.f32 %v2542
        %v2799 = vcvt.s32.f32 %v2543
        %v2800 = vcvt.s32.f32 %v2544
        %v2801 = vcvt.s32.f32 %v2545
        %v2802 = vcvt.s32.f32 %v2546
        %v2803 = vcvt.s32.f32 %v2547
        %v2804 = vcvt.s32.f32 %v2548
        %v2805 = vcvt.s32.f32 %v2549
        %v2806 = vcvt.s32.f32 %v2550
        %v2807 = vcvt.s32.f32 %v2551
        %v2808 = vcvt.s32.f32 %v2552
        %v2809 = vcvt.s32.f32 %v2553
        %v2810 = vcvt.s32.f32 %v2554
        %v2811 = vcvt.s32.f32 %v2555
        %v2812 = vcvt.s32.f32 %v2556
        %v2813 = vcvt.s32.f32 %v2557
        %v2814 = vcvt.s32.f32 %v2558
        %v2815 = vcvt.s32.f32 %v2559
        %v2816 = vcvt.s32.f32 %v2560
        %v2817 = vcvt.s32.f32 %v2561
        %v2818 = vcvt.s32.f32 %v2562
        %v2819 = vcvt.s32.f32 %v2563
        %v2820 = vcvt.s32.f32 %v2564
        %v2821 = vcvt.s32.f32 %v2565
        %v2822 = vcvt.s32.f32 %v2566
        %v2823 = vcvt.s32.f32 %v2567
        %v2824 = vcvt.s32.f32 %v2568
        %v2825 = vcvt.s32.f32 %v2569
        %v2826 = vcvt.s32.f32 %v2570
        %v2827 = vcvt.s32.f32 %v2571
        %v2828 = vcvt.s32.f32 %v2572
        %v2829 = vcvt.s32.f32 %v2573
        %v2830 = vcvt.s32.f32 %v2574
        %v2831 = vcvt.s32.f32 %v2575
        %v2832 = vcvt.s32.f32 %v2576
        %v2833 = vcvt.s32.f32 %v2577
        %v2834 = vcvt.s32.f32 %v2578
        %v2835 = vcvt.s32.f32 %v2579
        %v2836 = vcvt.s32.f32 %v2580
        %v2837 = vcvt.s32.f32 %v2581
        %v2838 = vcvt.s32.f32 %v2582
        %v2839 = vcvt.s32.f32 %v2583
        %v2840 = vcvt.s32.f32 %v2584
        %v2841 = vcvt.s32.f32 %v2585
        %v2842 = vcvt.s32.f32 %v2586
        %v2843 = vcvt.s32.f32 %v2587
        %v2844 = vcvt.s32.f32 %v2588
        %v2845 = vcvt.s32.f32 %v2589
        %v2846 = vcvt.s32.f32 %v2590
        %v2847 = vcvt.s32.f32 %v2591
        %v2848 = vcvt.s32.f32 %v2592
        %v2849 = vcvt.s32.f32 %v2593
        %v2850 = vcvt.s32.f32 %v2594
        %v2851 = vcvt.s32.f32 %v2595
        %v2852 = vcvt.s32.f32 %v2596
        %v2853 = vcvt.s32.f32 %v2597
        %v2854 = vcvt.s32.f32 %v2598
        %v2855 = vcvt.s32.f32 %v2599
        %v2856 = vcvt.s32.f32 %v2600
        %v2857 = vcvt.s32.f32 %v2601
        %v2858 = vcvt.s32.f32 %v2602
        %v2859 = vcvt.s32.f32 %v2603
        %v2860 = vcvt.s32.f32 %v2604
        %v2861 = vcvt.s32.f32 %v2605
        %v2862 = vmul.f32 %v2606, %v2047
        %v2863 = vmul.f32 %v2607, %v2047
        %v2864 = vmul.f32 %v2608, %v2047
        %v2865 = vmul.f32 %v2609, %v2047
        %v2866 = vmul.f32 %v2610, %v2047
        %v2867 = vmul.f32 %v2611, %v2047
        %v2868 = vmul.f32 %v2612, %v2047
        %v2869 = vmul.f32 %v2613, %v2047
        %v2870 = vmul.f32 %v2614, %v2047
        %v2871 = vmul.f32 %v2615, %v2047
        %v2872 = vmul.f32 %v2616, %v2047
        %v2873 = vmul.f32 %v2617, %v2047
        %v2874 = vmul.f32 %v2618, %v2047
        %v2875 = vmul.f32 %v2619, %v2047
        %v2876 = vmul.f32 %v2620, %v2047
        %v2877 = vmul.f32 %v2621, %v2047
        %v2878 = vmul.f32 %v2622, %v2049
        %v2879 = vmul.f32 %v2623, %v2049
        %v2880 = vmul.f32 %v2624, %v2049
        %v2881 = vmul.f32 %v2625, %v2049
        %v2882 = vmul.f32 %v2626, %v2049
        %v2883 = vmul.f32 %v2627, %v2049
        %v2884 = vmul.f32 %v2628, %v2049
        %v2885 = vmul.f32 %v2629, %v2049
        %v2886 = vmul.f32 %v2630, %v2049
        %v2887 = vmul.f32 %v2631, %v2049
        %v2888 = vmul.f32 %v2632, %v2049
        %v2889 = vmul.f32 %v2633, %v2049
        %v2890 = vmul.f32 %v2634, %v2049
        %v2891 = vmul.f32 %v2635, %v2049
        %v2892 = vmul.f32 %v2636, %v2049
        %v2893 = vmul.f32 %v2637, %v2049
        %v2894 = vmul.f32 %v2638, %v2051
        %v2895 = vmul.f32 %v2639, %v2051
        %v2896 = vmul.f32 %v2640, %v2051
        %v2897 = vmul.f32 %v2641, %v2051
        %v2898 = vmul.f32 %v2642, %v2051
        %v2899 = vmul.f32 %v2643, %v2051
        %v2900 = vmul.f32 %v2644, %v2051
        %v2901 = vmul.f32 %v2645, %v2051
        %v2902 = vmul.f32 %v2646, %v2051
        %v2903 = vmul.f32 %v2647, %v2051
        %v2904 = vmul.f32 %v2648, %v2051
        %v2905 = vmul.f32 %v2649, %v2051
        %v2906 = vmul.f32 %v2650, %v2051
        %v2907 = vmul.f32 %v2651, %v2051
        %v2908 = vmul.f32 %v2652, %v2051
        %v2909 = vmul.f32 %v2653, %v2051
        %v2910 = vmul.f32 %v2654, %v2053
        %v2911 = vmul.f32 %v2655, %v2053
        %v2912 = vmul.f32 %v2656, %v2053
        %v2913 = vmul.f32 %v2657, %v2053
        %v2914 = vmul.f32 %v2658, %v2053
        %v2915 = vmul.f32 %v2659, %v2053
        %v2916 = vmul.f32 %v2660, %v2053
        %v2917 = vmul.f32 %v2661, %v2053
        %v2918 = vmul.f32 %v2662, %v2053
        %v2919 = vmul.f32 %v2663, %v2053
        %v2920 = vmul.f32 %v2664, %v2053
        %v2921 = vmul.f32 %v2665, %v2053
        %v2922 = vmul.f32 %v2666, %v2053
        %v2923 = vmul.f32 %v2667, %v2053
        %v2924 = vmul.f32 %v2668, %v2053
        %v2925 = vmul.f32 %v2669, %v2053
        %v2926 = vmul.f32 %v2670, %v2055
        %v2927 = vmul.f32 %v2671, %v2055
        %v2928 = vmul.f32 %v2672, %v2055
        %v2929 = vmul.f32 %v2673, %v2055
        %v2930 = vmul.f32 %v2674, %v2055
        %v2931 = vmul.f32 %v2675, %v2055
        %v2932 = vmul.f32 %v2676, %v2055
        %v2933 = vmul.f32 %v2677, %v2055
        %v2934 = vmul.f32 %v2678, %v2055
        %v2935 = vmul.f32 %v2679, %v2055
        %v2936 = vmul.f32 %v2680, %v2055
        %v2937 = vmul.f32 %v2681, %v2055
        %v2938 = vmul.f32 %v2682, %v2055
        %v2939 = vmul.f32 %v2683, %v2055
        %v2940 = vmul.f32 %v2684, %v2055
        %v2941 = vmul.f32 %v2685, %v2055
        %v2942 = vmul.f32 %v2686, %v2057
        %v2943 = vmul.f32 %v2687, %v2057
        %v2944 = vmul.f32 %v2688, %v2057
        %v2945 = vmul.f32 %v2689, %v2057
        %v2946 = vmul.f32 %v2690, %v2057
        %v2947 = vmul.f32 %v2691, %v2057
        %v2948 = vmul.f32 %v2692, %v2057
        %v2949 = vmul.f32 %v2693, %v2057
        %v2950 = vmul.f32 %v2694, %v2057
        %v2951 = vmul.f32 %v2695, %v2057
        %v2952 = vmul.f32 %v2696, %v2057
        %v2953 = vmul.f32 %v2697, %v2057
        %v2954 = vmul.f32 %v2698, %v2057
        %v2955 = vmul.f32 %v2699, %v2057
        %v2956 = vmul.f32 %v2700, %v2057
        %v2957 = vmul.f32 %v2701, %v2057
        %v2958 = vmul.f32 %v2702, %v2059
        %v2959 = vmul.f32 %v2703, %v2059
        %v2960 = vmul.f32 %v2704, %v2059
        %v2961 = vmul.f32 %v2705, %v2059
        %v2962 = vmul.f32 %v2706, %v2059
        %v2963 = vmul.f32 %v2707, %v2059
        %v2964 = vmul.f32 %v2708, %v2059
        %v2965 = vmul.f32 %v2709, %v2059
        %v2966 = vmul.f32 %v2710, %v2059
        %v2967 = vmul.f32 %v2711, %v2059
        %v2968 = vmul.f32 %v2712, %v2059
        %v2969 = vmul.f32 %v2713, %v2059
        %v2970 = vmul.f32 %v2714, %v2059
        %v2971 = vmul.f32 %v2715, %v2059
        %v2972 = vmul.f32 %v2716, %v2059
        %v2973 = vmul.f32 %v2717, %v2059
        %v2974 = vmul.f32 %v2718, %v2061
        %v2975 = vmul.f32 %v2719, %v2061
        %v2976 = vmul.f32 %v2720, %v2061
        %v2977 = vmul.f32 %v2721, %v2061
        %v2978 = vmul.f32 %v2722, %v2061
        %v2979 = vmul.f32 %v2723, %v2061
        %v2980 = vmul.f32 %v2724, %v2061
        %v2981 = vmul.f32 %v2725, %v2061
        %v2982 = vmul.f32 %v2726, %v2061
        %v2983 = vmul.f32 %v2727, %v2061
        %v2984 = vmul.f32 %v2728, %v2061
        %v2985 = vmul.f32 %v2729, %v2061
        %v2986 = vmul.f32 %v2730, %v2061
        %v2987 = vmul.f32 %v2731, %v2061
        %v2988 = vmul.f32 %v2732, %v2061
        %v2989 = vmul.f32 %v2733, %v2061
        %v2990 = vmul.f32 %v2734, %v2063
        %v2991 = vmul.f32 %v2735, %v2063
        %v2992 = vmul.f32 %v2736, %v2063
        %v2993 = vmul.f32 %v2737, %v2063
        %v2994 = vmul.f32 %v2738, %v2063
        %v2995 = vmul.f32 %v2739, %v2063
        %v2996 = vmul.f32 %v2740, %v2063
        %v2997 = vmul.f32 %v2741, %v2063
        %v2998 = vmul.f32 %v2742, %v2063
        %v2999 = vmul.f32 %v2743, %v2063
        %v3000 = vmul.f32 %v2744, %v2063
        %v3001 = vmul.f32 %v2745, %v2063
        %v3002 = vmul.f32 %v2746, %v2063
        %v3003 = vmul.f32 %v2747, %v2063
        %v3004 = vmul.f32 %v2748, %v2063
        %v3005 = vmul.f32 %v2749, %v2063
        %v3006 = vmul.f32 %v2750, %v2065
        %v3007 = vmul.f32 %v2751, %v2065
        %v3008 = vmul.f32 %v2752, %v2065
        %v3009 = vmul.f32 %v2753, %v2065
        %v3010 = vmul.f32 %v2754, %v2065
        %v3011 = vmul.f32 %v2755, %v2065
        %v3012 = vmul.f32 %v2756, %v2065
        %v3013 = vmul.f32 %v2757, %v2065
        %v3014 = vmul.f32 %v2758, %v2065
        %v3015 = vmul.f32 %v2759, %v2065
        %v3016 = vmul.f32 %v2760, %v2065
        %v3017 = vmul.f32 %v2761, %v2065
        %v3018 = vmul.f32 %v2762, %v2065
        %v3019 = vmul.f32 %v2763, %v2065
        %v3020 = vmul.f32 %v2764, %v2065
        %v3021 = vmul.f32 %v2765, %v2065
        %v3022 = vmul.f32 %v2766, %v2067
        %v3023 = vmul.f32 %v2767, %v2067
        %v3024 = vmul.f32 %v2768, %v2067
        %v3025 = vmul.f32 %v2769, %v2067
        %v3026 = vmul.f32 %v2770, %v2067
        %v3027 = vmul.f32 %v2771, %v2067
        %v3028 = vmul.f32 %v2772, %v2067
        %v3029 = vmul.f32 %v2773, %v2067
        %v3030 = vmul.f32 %v2774, %v2067
        %v3031 = vmul.f32 %v2775, %v2067
        %v3032 = vmul.f32 %v2776, %v2067
        %v3033 = vmul.f32 %v2777, %v2067
        %v3034 = vmul.f32 %v2778, %v2067
        %v3035 = vmul.f32 %v2779, %v2067
        %v3036 = vmul.f32 %v2780, %v2067
        %v3037 = vmul.f32 %v2781, %v2067
        %v3038 = vmul.f32 %v2782, %v2069
        %v3039 = vmul.f32 %v2783, %v2069
        %v3040 = vmul.f32 %v2784, %v2069
        %v3041 = vmul.f32 %v2785, %v2069
        %v3042 = vmul.f32 %v2786, %v2069
        %v3043 = vmul.f32 %v2787, %v2069
        %v3044 = vmul.f32 %v2788, %v2069
        %v3045 = vmul.f32 %v2789, %v2069
        %v3046 = vmul.f32 %v2790, %v2069
        %v3047 = vmul.f32 %v2791, %v2069
        %v3048 = vmul.f32 %v2792, %v2069
        %v3049 = vmul.f32 %v2793, %v2069
        %v3050 = vmul.f32 %v2794, %v2069
        %v3051 = vmul.f32 %v2795, %v2069
        %v3052 = vmul.f32 %v2796, %v2069
        %v3053 = vmul.f32 %v2797, %v2069
        %v3054 = vmul.f32 %v2798, %v2071
        %v3055 = vmul.f32 %v2799, %v2071
        %v3056 = vmul.f32 %v2800, %v2071
        %v3057 = vmul.f32 %v2801, %v2071
        %v3058 = vmul.f32 %v2802, %v2071
        %v3059 = vmul.f32 %v2803, %v2071
        %v3060 = vmul.f32 %v2804, %v2071
        %v3061 = vmul.f32 %v2805, %v2071
        %v3062 = vmul.f32 %v2806, %v2071
        %v3063 = vmul.f32 %v2807, %v2071
        %v3064 = vmul.f32 %v2808, %v2071
        %v3065 = vmul.f32 %v2809, %v2071
        %v3066 = vmul.f32 %v2810, %v2071
        %v3067 = vmul.f32 %v2811, %v2071
        %v3068 = vmul.f32 %v2812, %v2071
        %v3069 = vmul.f32 %v2813, %v2071
        %v3070 = vmul.f32 %v2814, %v2073
        %v3071 = vmul.f32 %v2815, %v2073
        %v3072 = vmul.f32 %v2816, %v2073
        %v3073 = vmul.f32 %v2817, %v2073
        %v3074 = vmul.f32 %v2818, %v2073
        %v3075 = vmul.f32 %v2819, %v2073
        %v3076 = vmul.f32 %v2820, %v2073
        %v3077 = vmul.f32 %v2821, %v2073
        %v3078 = vmul.f32 %v2822, %v2073
        %v3079 = vmul.f32 %v2823, %v2073
        %v3080 = vmul.f32 %v2824, %v2073
        %v3081 = vmul.f32 %v2825, %v2073
        %v3082 = vmul.f32 %v2826, %v2073
        %v3083 = vmul.f32 %v2827, %v2073
        %v3084 = vmul.f32 %v2828, %v2073
        %v3085 = vmul.f32 %v2829, %v2073
        %v3086 = vmul.f32 %v2830, %v2075
        %v3087 = vmul.f32 %v2831, %v2075
        %v3088 = vmul.f32 %v2832, %v2075
        %v3089 = vmul.f32 %v2833, %v2075
        %v3090 = vmul.f32 %v2834, %v2075
        %v3091 = vmul.f32 %v2835, %v2075
        %v3092 = vmul.f32 %v2836, %v2075
        %v3093 = vmul.f32 %v2837, %v2075
        %v3094 = vmul.f32 %v2838, %v2075
        %v3095 = vmul.f32 %v2839, %v2075
        %v3096 = vmul.f32 %v2840, %v2075
        %v3097 = vmul.f32 %v2841, %v2075
        %v3098 = vmul.f32 %v2842, %v2075
        %v3099 = vmul.f32 %v2843, %v2075
        %v3100 = vmul.f32 %v2844, %v2075
        %v3101 = vmul.f32 %v2845, %v2075
        %v3102 = vmul.f32 %v2846, %v2077
        %v3103 = vmul.f32 %v2847, %v2077
        %v3104 = vmul.f32 %v2848, %v2077
        %v3105 = vmul.f32 %v2849, %v2077
        %v3106 = vmul.f32 %v2850, %v2077
        %v3107 = vmul.f32 %v2851, %v2077
        %v3108 = vmul.f32 %v2852, %v2077
        %v3109 = vmul.f32 %v2853, %v2077
        %v3110 = vmul.f32 %v2854, %v2077
        %v3111 = vmul.f32 %v2855, %v2077
        %v3112 = vmul.f32 %v2856, %v2077
        %v3113 = vmul.f32 %v2857, %v2077
        %v3114 = vmul.f32 %v2858, %v2077
        %v3115 = vmul.f32 %v2859, %v2077
        %v3116 = vmul.f32 %v2860, %v2077
        %v3117 = vmul.f32 %v2861, %v2077
        %vm3118 = vcmp.le.f32.partialorder %v457, 0.64
        %vm3119 = vcmp.le.f32.partialorder %v458, 0.64
        %vm3120 = vcmp.le.f32.partialorder %v459, 0.64
        %vm3121 = vcmp.le.f32.partialorder %v460, 0.64
        %vm3122 = vcmp.le.f32.partialorder %v461, 0.64
        %vm3123 = vcmp.le.f32.partialorder %v462, 0.64
        %vm3124 = vcmp.le.f32.partialorder %v463, 0.64
        %vm3125 = vcmp.le.f32.partialorder %v464, 0.64
        %vm3126 = vcmp.le.f32.partialorder %v465, 0.64
        %vm3127 = vcmp.le.f32.partialorder %v466, 0.64
        %vm3128 = vcmp.le.f32.partialorder %v467, 0.64
        %vm3129 = vcmp.le.f32.partialorder %v468, 0.64
        %vm3130 = vcmp.le.f32.partialorder %v469, 0.64
        %vm3131 = vcmp.le.f32.partialorder %v470, 0.64
        %vm3132 = vcmp.le.f32.partialorder %v471, 0.64
        %vm3133 = vcmp.le.f32.partialorder %v472, 0.64
        %v3134 = vsel %vm3118, 1, 0
        %v3135 = vsel %vm3119, 1, 0
        %v3136 = vsel %vm3120, 1, 0
        %v3137 = vsel %vm3121, 1, 0
        %v3138 = vsel %vm3122, 1, 0
        %v3139 = vsel %vm3123, 1, 0
        %v3140 = vsel %vm3124, 1, 0
        %v3141 = vsel %vm3125, 1, 0
        %v3142 = vsel %vm3126, 1, 0
        %v3143 = vsel %vm3127, 1, 0
        %v3144 = vsel %vm3128, 1, 0
        %v3145 = vsel %vm3129, 1, 0
        %v3146 = vsel %vm3130, 1, 0
        %v3147 = vsel %vm3131, 1, 0
        %v3148 = vsel %vm3132, 1, 0
        %v3149 = vsel %vm3133, 1, 0
        %v3150 = vcvt.s32.f32 %v3134
        %v3151 = vcvt.s32.f32 %v3135
        %v3152 = vcvt.s32.f32 %v3136
        %v3153 = vcvt.s32.f32 %v3137
        %v3154 = vcvt.s32.f32 %v3138
        %v3155 = vcvt.s32.f32 %v3139
        %v3156 = vcvt.s32.f32 %v3140
        %v3157 = vcvt.s32.f32 %v3141
        %v3158 = vcvt.s32.f32 %v3142
        %v3159 = vcvt.s32.f32 %v3143
        %v3160 = vcvt.s32.f32 %v3144
        %v3161 = vcvt.s32.f32 %v3145
        %v3162 = vcvt.s32.f32 %v3146
        %v3163 = vcvt.s32.f32 %v3147
        %v3164 = vcvt.s32.f32 %v3148
        %v3165 = vcvt.s32.f32 %v3149
        %v3166 = vsel %vm1981, %v3150, 0.0
        %3167 = vadd.xlane.f32.xlu0 %v3166
        %v3168 = vpop.xlane.xlu0 %3167
        %v3169 = vsel %vm1981, %v3151, 0.0
        %3170 = vadd.xlane.f32.xlu0 %v3169
        %v3171 = vpop.xlane.xlu0 %3170
        %v3172 = vsel %vm1981, %v3152, 0.0
        %3173 = vadd.xlane.f32.xlu0 %v3172
        %v3174 = vpop.xlane.xlu0 %3173
        %v3175 = vsel %vm1981, %v3153, 0.0
        %3176 = vadd.xlane.f32.xlu0 %v3175
        %v3177 = vpop.xlane.xlu0 %3176
        %v3178 = vsel %vm1981, %v3154, 0.0
        %3179 = vadd.xlane.f32.xlu0 %v3178
        %v3180 = vpop.xlane.xlu0 %3179
        %v3181 = vsel %vm1981, %v3155, 0.0
        %3182 = vadd.xlane.f32.xlu0 %v3181
        %v3183 = vpop.xlane.xlu0 %3182
        %v3184 = vsel %vm1981, %v3156, 0.0
        %3185 = vadd.xlane.f32.xlu0 %v3184
        %v3186 = vpop.xlane.xlu0 %3185
        %v3187 = vsel %vm1981, %v3157, 0.0
        %3188 = vadd.xlane.f32.xlu0 %v3187
        %v3189 = vpop.xlane.xlu0 %3188
        %v3190 = vsel %vm1981, %v3158, 0.0
        %3191 = vadd.xlane.f32.xlu0 %v3190
        %v3192 = vpop.xlane.xlu0 %3191
        %v3193 = vsel %vm1981, %v3159, 0.0
        %3194 = vadd.xlane.f32.xlu0 %v3193
        %v3195 = vpop.xlane.xlu0 %3194
        %v3196 = vsel %vm1981, %v3160, 0.0
        %3197 = vadd.xlane.f32.xlu0 %v3196
        %v3198 = vpop.xlane.xlu0 %3197
        %v3199 = vsel %vm1981, %v3161, 0.0
        %3200 = vadd.xlane.f32.xlu0 %v3199
        %v3201 = vpop.xlane.xlu0 %3200
        %v3202 = vsel %vm1981, %v3162, 0.0
        %3203 = vadd.xlane.f32.xlu0 %v3202
        %v3204 = vpop.xlane.xlu0 %3203
        %v3205 = vsel %vm1981, %v3163, 0.0
        %3206 = vadd.xlane.f32.xlu0 %v3205
        %v3207 = vpop.xlane.xlu0 %3206
        %v3208 = vsel %vm1981, %v3164, 0.0
        %3209 = vadd.xlane.f32.xlu0 %v3208
        %v3210 = vpop.xlane.xlu0 %3209
        %v3211 = vsel %vm1981, %v3165, 0.0
        %3212 = vadd.xlane.f32.xlu0 %v3211
        %v3213 = vpop.xlane.xlu0 %3212
        %v3214 = vmax.f32 %v3168, 1.0
        %v3215 = vmax.f32 %v3171, 1.0
        %v3216 = vmax.f32 %v3174, 1.0
        %v3217 = vmax.f32 %v3177, 1.0
        %v3218 = vmax.f32 %v3180, 1.0
        %v3219 = vmax.f32 %v3183, 1.0
        %v3220 = vmax.f32 %v3186, 1.0
        %v3221 = vmax.f32 %v3189, 1.0
        %v3222 = vmax.f32 %v3192, 1.0
        %v3223 = vmax.f32 %v3195, 1.0
        %v3224 = vmax.f32 %v3198, 1.0
        %v3225 = vmax.f32 %v3201, 1.0
        %v3226 = vmax.f32 %v3204, 1.0
        %v3227 = vmax.f32 %v3207, 1.0
        %v3228 = vmax.f32 %v3210, 1.0
        %v3229 = vmax.f32 %v3213, 1.0
        %v3230 = vrcp.pop %v3214
        %v3231 = vmul.f32 1.0, %v3230
        %v3232 = vrcp.pop %v3215
        %v3233 = vmul.f32 1.0, %v3232
        %v3234 = vrcp.pop %v3216
        %v3235 = vmul.f32 1.0, %v3234
        %v3236 = vrcp.pop %v3217
        %v3237 = vmul.f32 1.0, %v3236
        %v3238 = vrcp.pop %v3218
        %v3239 = vmul.f32 1.0, %v3238
        %v3240 = vrcp.pop %v3219
        %v3241 = vmul.f32 1.0, %v3240
        %v3242 = vrcp.pop %v3220
        %v3243 = vmul.f32 1.0, %v3242
        %v3244 = vrcp.pop %v3221
        %v3245 = vmul.f32 1.0, %v3244
        %v3246 = vrcp.pop %v3222
        %v3247 = vmul.f32 1.0, %v3246
        %v3248 = vrcp.pop %v3223
        %v3249 = vmul.f32 1.0, %v3248
        %v3250 = vrcp.pop %v3224
        %v3251 = vmul.f32 1.0, %v3250
        %v3252 = vrcp.pop %v3225
        %v3253 = vmul.f32 1.0, %v3252
        %v3254 = vrcp.pop %v3226
        %v3255 = vmul.f32 1.0, %v3254
        %v3256 = vrcp.pop %v3227
        %v3257 = vmul.f32 1.0, %v3256
        %v3258 = vrcp.pop %v3228
        %v3259 = vmul.f32 1.0, %v3258
        %v3260 = vrcp.pop %v3229
        %v3261 = vmul.f32 1.0, %v3260
        %v3262 = vmul.f32 %v3150, %v3231
        %v3263 = vmul.f32 %v3151, %v3233
        %v3264 = vmul.f32 %v3152, %v3235
        %v3265 = vmul.f32 %v3153, %v3237
        %v3266 = vmul.f32 %v3154, %v3239
        %v3267 = vmul.f32 %v3155, %v3241
        %v3268 = vmul.f32 %v3156, %v3243
        %v3269 = vmul.f32 %v3157, %v3245
        %v3270 = vmul.f32 %v3158, %v3247
        %v3271 = vmul.f32 %v3159, %v3249
        %v3272 = vmul.f32 %v3160, %v3251
        %v3273 = vmul.f32 %v3161, %v3253
        %v3274 = vmul.f32 %v3162, %v3255
        %v3275 = vmul.f32 %v3163, %v3257
        %v3276 = vmul.f32 %v3164, %v3259
        %v3277 = vmul.f32 %v3165, %v3261
        %vm3278 = vcmp.le.f32.partialorder %v1677, 0.64
        %vm3279 = vcmp.le.f32.partialorder %v1678, 0.64
        %vm3280 = vcmp.le.f32.partialorder %v1679, 0.64
        %vm3281 = vcmp.le.f32.partialorder %v1680, 0.64
        %vm3282 = vcmp.le.f32.partialorder %v1681, 0.64
        %vm3283 = vcmp.le.f32.partialorder %v1682, 0.64
        %vm3284 = vcmp.le.f32.partialorder %v1683, 0.64
        %vm3285 = vcmp.le.f32.partialorder %v1684, 0.64
        %vm3286 = vcmp.le.f32.partialorder %v1685, 0.64
        %vm3287 = vcmp.le.f32.partialorder %v1686, 0.64
        %vm3288 = vcmp.le.f32.partialorder %v1687, 0.64
        %vm3289 = vcmp.le.f32.partialorder %v1688, 0.64
        %vm3290 = vcmp.le.f32.partialorder %v1689, 0.64
        %vm3291 = vcmp.le.f32.partialorder %v1690, 0.64
        %vm3292 = vcmp.le.f32.partialorder %v1691, 0.64
        %vm3293 = vcmp.le.f32.partialorder %v1692, 0.64
        %vm3294 = vcmp.le.f32.partialorder %v1693, 0.64
        %vm3295 = vcmp.le.f32.partialorder %v1694, 0.64
        %vm3296 = vcmp.le.f32.partialorder %v1695, 0.64
        %vm3297 = vcmp.le.f32.partialorder %v1696, 0.64
        %vm3298 = vcmp.le.f32.partialorder %v1697, 0.64
        %vm3299 = vcmp.le.f32.partialorder %v1698, 0.64
        %vm3300 = vcmp.le.f32.partialorder %v1699, 0.64
        %vm3301 = vcmp.le.f32.partialorder %v1700, 0.64
        %vm3302 = vcmp.le.f32.partialorder %v1701, 0.64
        %vm3303 = vcmp.le.f32.partialorder %v1702, 0.64
        %vm3304 = vcmp.le.f32.partialorder %v1703, 0.64
        %vm3305 = vcmp.le.f32.partialorder %v1704, 0.64
        %vm3306 = vcmp.le.f32.partialorder %v1705, 0.64
        %vm3307 = vcmp.le.f32.partialorder %v1706, 0.64
        %vm3308 = vcmp.le.f32.partialorder %v1707, 0.64
        %vm3309 = vcmp.le.f32.partialorder %v1708, 0.64
        %vm3310 = vcmp.le.f32.partialorder %v1709, 0.64
        %vm3311 = vcmp.le.f32.partialorder %v1710, 0.64
        %vm3312 = vcmp.le.f32.partialorder %v1711, 0.64
        %vm3313 = vcmp.le.f32.partialorder %v1712, 0.64
        %vm3314 = vcmp.le.f32.partialorder %v1713, 0.64
        %vm3315 = vcmp.le.f32.partialorder %v1714, 0.64
        %vm3316 = vcmp.le.f32.partialorder %v1715, 0.64
        %vm3317 = vcmp.le.f32.partialorder %v1716, 0.64
        %vm3318 = vcmp.le.f32.partialorder %v1717, 0.64
        %vm3319 = vcmp.le.f32.partialorder %v1718, 0.64
        %vm3320 = vcmp.le.f32.partialorder %v1719, 0.64
        %vm3321 = vcmp.le.f32.partialorder %v1720, 0.64
        %vm3322 = vcmp.le.f32.partialorder %v1721, 0.64
        %vm3323 = vcmp.le.f32.partialorder %v1722, 0.64
        %vm3324 = vcmp.le.f32.partialorder %v1723, 0.64
        %vm3325 = vcmp.le.f32.partialorder %v1724, 0.64
        %vm3326 = vcmp.le.f32.partialorder %v1725, 0.64
        %vm3327 = vcmp.le.f32.partialorder %v1726, 0.64
        %vm3328 = vcmp.le.f32.partialorder %v1727, 0.64
        %vm3329 = vcmp.le.f32.partialorder %v1728, 0.64
        %vm3330 = vcmp.le.f32.partialorder %v1729, 0.64
        %vm3331 = vcmp.le.f32.partialorder %v1730, 0.64
        %vm3332 = vcmp.le.f32.partialorder %v1731, 0.64
        %vm3333 = vcmp.le.f32.partialorder %v1732, 0.64
        %vm3334 = vcmp.le.f32.partialorder %v1733, 0.64
        %vm3335 = vcmp.le.f32.partialorder %v1734, 0.64
        %vm3336 = vcmp.le.f32.partialorder %v1735, 0.64
        %vm3337 = vcmp.le.f32.partialorder %v1736, 0.64
        %vm3338 = vcmp.le.f32.partialorder %v1737, 0.64
        %vm3339 = vcmp.le.f32.partialorder %v1738, 0.64
        %vm3340 = vcmp.le.f32.partialorder %v1739, 0.64
        %vm3341 = vcmp.le.f32.partialorder %v1740, 0.64
        %vm3342 = vcmp.le.f32.partialorder %v1741, 0.64
        %vm3343 = vcmp.le.f32.partialorder %v1742, 0.64
        %vm3344 = vcmp.le.f32.partialorder %v1743, 0.64
        %vm3345 = vcmp.le.f32.partialorder %v1744, 0.64
        %vm3346 = vcmp.le.f32.partialorder %v1745, 0.64
        %vm3347 = vcmp.le.f32.partialorder %v1746, 0.64
        %vm3348 = vcmp.le.f32.partialorder %v1747, 0.64
        %vm3349 = vcmp.le.f32.partialorder %v1748, 0.64
        %vm3350 = vcmp.le.f32.partialorder %v1749, 0.64
        %vm3351 = vcmp.le.f32.partialorder %v1750, 0.64
        %vm3352 = vcmp.le.f32.partialorder %v1751, 0.64
        %vm3353 = vcmp.le.f32.partialorder %v1752, 0.64
        %vm3354 = vcmp.le.f32.partialorder %v1753, 0.64
        %vm3355 = vcmp.le.f32.partialorder %v1754, 0.64
        %vm3356 = vcmp.le.f32.partialorder %v1755, 0.64
        %vm3357 = vcmp.le.f32.partialorder %v1756, 0.64
        %vm3358 = vcmp.le.f32.partialorder %v1757, 0.64
        %vm3359 = vcmp.le.f32.partialorder %v1758, 0.64
        %vm3360 = vcmp.le.f32.partialorder %v1759, 0.64
        %vm3361 = vcmp.le.f32.partialorder %v1760, 0.64
        %vm3362 = vcmp.le.f32.partialorder %v1761, 0.64
        %vm3363 = vcmp.le.f32.partialorder %v1762, 0.64
        %vm3364 = vcmp.le.f32.partialorder %v1763, 0.64
        %vm3365 = vcmp.le.f32.partialorder %v1764, 0.64
        %vm3366 = vcmp.le.f32.partialorder %v1765, 0.64
        %vm3367 = vcmp.le.f32.partialorder %v1766, 0.64
        %vm3368 = vcmp.le.f32.partialorder %v1767, 0.64
        %vm3369 = vcmp.le.f32.partialorder %v1768, 0.64
        %vm3370 = vcmp.le.f32.partialorder %v1769, 0.64
        %vm3371 = vcmp.le.f32.partialorder %v1770, 0.64
        %vm3372 = vcmp.le.f32.partialorder %v1771, 0.64
        %vm3373 = vcmp.le.f32.partialorder %v1772, 0.64
        %vm3374 = vcmp.le.f32.partialorder %v1773, 0.64
        %vm3375 = vcmp.le.f32.partialorder %v1774, 0.64
        %vm3376 = vcmp.le.f32.partialorder %v1775, 0.64
        %vm3377 = vcmp.le.f32.partialorder %v1776, 0.64
        %vm3378 = vcmp.le.f32.partialorder %v1777, 0.64
        %vm3379 = vcmp.le.f32.partialorder %v1778, 0.64
        %vm3380 = vcmp.le.f32.partialorder %v1779, 0.64
        %vm3381 = vcmp.le.f32.partialorder %v1780, 0.64
        %vm3382 = vcmp.le.f32.partialorder %v1781, 0.64
        %vm3383 = vcmp.le.f32.partialorder %v1782, 0.64
        %vm3384 = vcmp.le.f32.partialorder %v1783, 0.64
        %vm3385 = vcmp.le.f32.partialorder %v1784, 0.64
        %vm3386 = vcmp.le.f32.partialorder %v1785, 0.64
        %vm3387 = vcmp.le.f32.partialorder %v1786, 0.64
        %vm3388 = vcmp.le.f32.partialorder %v1787, 0.64
        %vm3389 = vcmp.le.f32.partialorder %v1788, 0.64
        %vm3390 = vcmp.le.f32.partialorder %v1789, 0.64
        %vm3391 = vcmp.le.f32.partialorder %v1790, 0.64
        %vm3392 = vcmp.le.f32.partialorder %v1791, 0.64
        %vm3393 = vcmp.le.f32.partialorder %v1792, 0.64
        %vm3394 = vcmp.le.f32.partialorder %v1793, 0.64
        %vm3395 = vcmp.le.f32.partialorder %v1794, 0.64
        %vm3396 = vcmp.le.f32.partialorder %v1795, 0.64
        %vm3397 = vcmp.le.f32.partialorder %v1796, 0.64
        %vm3398 = vcmp.le.f32.partialorder %v1797, 0.64
        %vm3399 = vcmp.le.f32.partialorder %v1798, 0.64
        %vm3400 = vcmp.le.f32.partialorder %v1799, 0.64
        %vm3401 = vcmp.le.f32.partialorder %v1800, 0.64
        %vm3402 = vcmp.le.f32.partialorder %v1801, 0.64
        %vm3403 = vcmp.le.f32.partialorder %v1802, 0.64
        %vm3404 = vcmp.le.f32.partialorder %v1803, 0.64
        %vm3405 = vcmp.le.f32.partialorder %v1804, 0.64
        %vm3406 = vcmp.le.f32.partialorder %v1805, 0.64
        %vm3407 = vcmp.le.f32.partialorder %v1806, 0.64
        %vm3408 = vcmp.le.f32.partialorder %v1807, 0.64
        %vm3409 = vcmp.le.f32.partialorder %v1808, 0.64
        %vm3410 = vcmp.le.f32.partialorder %v1809, 0.64
        %vm3411 = vcmp.le.f32.partialorder %v1810, 0.64
        %vm3412 = vcmp.le.f32.partialorder %v1811, 0.64
        %vm3413 = vcmp.le.f32.partialorder %v1812, 0.64
        %vm3414 = vcmp.le.f32.partialorder %v1813, 0.64
        %vm3415 = vcmp.le.f32.partialorder %v1814, 0.64
        %vm3416 = vcmp.le.f32.partialorder %v1815, 0.64
        %vm3417 = vcmp.le.f32.partialorder %v1816, 0.64
        %vm3418 = vcmp.le.f32.partialorder %v1817, 0.64
        %vm3419 = vcmp.le.f32.partialorder %v1818, 0.64
        %vm3420 = vcmp.le.f32.partialorder %v1819, 0.64
        %vm3421 = vcmp.le.f32.partialorder %v1820, 0.64
        %vm3422 = vcmp.le.f32.partialorder %v1821, 0.64
        %vm3423 = vcmp.le.f32.partialorder %v1822, 0.64
        %vm3424 = vcmp.le.f32.partialorder %v1823, 0.64
        %vm3425 = vcmp.le.f32.partialorder %v1824, 0.64
        %vm3426 = vcmp.le.f32.partialorder %v1825, 0.64
        %vm3427 = vcmp.le.f32.partialorder %v1826, 0.64
        %vm3428 = vcmp.le.f32.partialorder %v1827, 0.64
        %vm3429 = vcmp.le.f32.partialorder %v1828, 0.64
        %vm3430 = vcmp.le.f32.partialorder %v1829, 0.64
        %vm3431 = vcmp.le.f32.partialorder %v1830, 0.64
        %vm3432 = vcmp.le.f32.partialorder %v1831, 0.64
        %vm3433 = vcmp.le.f32.partialorder %v1832, 0.64
        %vm3434 = vcmp.le.f32.partialorder %v1833, 0.64
        %vm3435 = vcmp.le.f32.partialorder %v1834, 0.64
        %vm3436 = vcmp.le.f32.partialorder %v1835, 0.64
        %vm3437 = vcmp.le.f32.partialorder %v1836, 0.64
        %vm3438 = vcmp.le.f32.partialorder %v1837, 0.64
        %vm3439 = vcmp.le.f32.partialorder %v1838, 0.64
        %vm3440 = vcmp.le.f32.partialorder %v1839, 0.64
        %vm3441 = vcmp.le.f32.partialorder %v1840, 0.64
        %vm3442 = vcmp.le.f32.partialorder %v1841, 0.64
        %vm3443 = vcmp.le.f32.partialorder %v1842, 0.64
        %vm3444 = vcmp.le.f32.partialorder %v1843, 0.64
        %vm3445 = vcmp.le.f32.partialorder %v1844, 0.64
        %vm3446 = vcmp.le.f32.partialorder %v1845, 0.64
        %vm3447 = vcmp.le.f32.partialorder %v1846, 0.64
        %vm3448 = vcmp.le.f32.partialorder %v1847, 0.64
        %vm3449 = vcmp.le.f32.partialorder %v1848, 0.64
        %vm3450 = vcmp.le.f32.partialorder %v1849, 0.64
        %vm3451 = vcmp.le.f32.partialorder %v1850, 0.64
        %vm3452 = vcmp.le.f32.partialorder %v1851, 0.64
        %vm3453 = vcmp.le.f32.partialorder %v1852, 0.64
        %vm3454 = vcmp.le.f32.partialorder %v1853, 0.64
        %vm3455 = vcmp.le.f32.partialorder %v1854, 0.64
        %vm3456 = vcmp.le.f32.partialorder %v1855, 0.64
        %vm3457 = vcmp.le.f32.partialorder %v1856, 0.64
        %vm3458 = vcmp.le.f32.partialorder %v1857, 0.64
        %vm3459 = vcmp.le.f32.partialorder %v1858, 0.64
        %vm3460 = vcmp.le.f32.partialorder %v1859, 0.64
        %vm3461 = vcmp.le.f32.partialorder %v1860, 0.64
        %vm3462 = vcmp.le.f32.partialorder %v1861, 0.64
        %vm3463 = vcmp.le.f32.partialorder %v1862, 0.64
        %vm3464 = vcmp.le.f32.partialorder %v1863, 0.64
        %vm3465 = vcmp.le.f32.partialorder %v1864, 0.64
        %vm3466 = vcmp.le.f32.partialorder %v1865, 0.64
        %vm3467 = vcmp.le.f32.partialorder %v1866, 0.64
        %vm3468 = vcmp.le.f32.partialorder %v1867, 0.64
        %vm3469 = vcmp.le.f32.partialorder %v1868, 0.64
        %vm3470 = vcmp.le.f32.partialorder %v1869, 0.64
        %vm3471 = vcmp.le.f32.partialorder %v1870, 0.64
        %vm3472 = vcmp.le.f32.partialorder %v1871, 0.64
        %vm3473 = vcmp.le.f32.partialorder %v1872, 0.64
        %vm3474 = vcmp.le.f32.partialorder %v1873, 0.64
        %vm3475 = vcmp.le.f32.partialorder %v1874, 0.64
        %vm3476 = vcmp.le.f32.partialorder %v1875, 0.64
        %vm3477 = vcmp.le.f32.partialorder %v1876, 0.64
        %vm3478 = vcmp.le.f32.partialorder %v1877, 0.64
        %vm3479 = vcmp.le.f32.partialorder %v1878, 0.64
        %vm3480 = vcmp.le.f32.partialorder %v1879, 0.64
        %vm3481 = vcmp.le.f32.partialorder %v1880, 0.64
        %vm3482 = vcmp.le.f32.partialorder %v1881, 0.64
        %vm3483 = vcmp.le.f32.partialorder %v1882, 0.64
        %vm3484 = vcmp.le.f32.partialorder %v1883, 0.64
        %vm3485 = vcmp.le.f32.partialorder %v1884, 0.64
        %vm3486 = vcmp.le.f32.partialorder %v1885, 0.64
        %vm3487 = vcmp.le.f32.partialorder %v1886, 0.64
        %vm3488 = vcmp.le.f32.partialorder %v1887, 0.64
        %vm3489 = vcmp.le.f32.partialorder %v1888, 0.64
        %vm3490 = vcmp.le.f32.partialorder %v1889, 0.64
        %vm3491 = vcmp.le.f32.partialorder %v1890, 0.64
        %vm3492 = vcmp.le.f32.partialorder %v1891, 0.64
        %vm3493 = vcmp.le.f32.partialorder %v1892, 0.64
        %vm3494 = vcmp.le.f32.partialorder %v1893, 0.64
        %vm3495 = vcmp.le.f32.partialorder %v1894, 0.64
        %vm3496 = vcmp.le.f32.partialorder %v1895, 0.64
        %vm3497 = vcmp.le.f32.partialorder %v1896, 0.64
        %vm3498 = vcmp.le.f32.partialorder %v1897, 0.64
        %vm3499 = vcmp.le.f32.partialorder %v1898, 0.64
        %vm3500 = vcmp.le.f32.partialorder %v1899, 0.64
        %vm3501 = vcmp.le.f32.partialorder %v1900, 0.64
        %vm3502 = vcmp.le.f32.partialorder %v1901, 0.64
        %vm3503 = vcmp.le.f32.partialorder %v1902, 0.64
        %vm3504 = vcmp.le.f32.partialorder %v1903, 0.64
        %vm3505 = vcmp.le.f32.partialorder %v1904, 0.64
        %vm3506 = vcmp.le.f32.partialorder %v1905, 0.64
        %vm3507 = vcmp.le.f32.partialorder %v1906, 0.64
        %vm3508 = vcmp.le.f32.partialorder %v1907, 0.64
        %vm3509 = vcmp.le.f32.partialorder %v1908, 0.64
        %vm3510 = vcmp.le.f32.partialorder %v1909, 0.64
        %vm3511 = vcmp.le.f32.partialorder %v1910, 0.64
        %vm3512 = vcmp.le.f32.partialorder %v1911, 0.64
        %vm3513 = vcmp.le.f32.partialorder %v1912, 0.64
        %vm3514 = vcmp.le.f32.partialorder %v1913, 0.64
        %vm3515 = vcmp.le.f32.partialorder %v1914, 0.64
        %vm3516 = vcmp.le.f32.partialorder %v1915, 0.64
        %vm3517 = vcmp.le.f32.partialorder %v1916, 0.64
        %vm3518 = vcmp.le.f32.partialorder %v1917, 0.64
        %vm3519 = vcmp.le.f32.partialorder %v1918, 0.64
        %vm3520 = vcmp.le.f32.partialorder %v1919, 0.64
        %vm3521 = vcmp.le.f32.partialorder %v1920, 0.64
        %vm3522 = vcmp.le.f32.partialorder %v1921, 0.64
        %vm3523 = vcmp.le.f32.partialorder %v1922, 0.64
        %vm3524 = vcmp.le.f32.partialorder %v1923, 0.64
        %vm3525 = vcmp.le.f32.partialorder %v1924, 0.64
        %vm3526 = vcmp.le.f32.partialorder %v1925, 0.64
        %vm3527 = vcmp.le.f32.partialorder %v1926, 0.64
        %vm3528 = vcmp.le.f32.partialorder %v1927, 0.64
        %vm3529 = vcmp.le.f32.partialorder %v1928, 0.64
        %vm3530 = vcmp.le.f32.partialorder %v1929, 0.64
        %vm3531 = vcmp.le.f32.partialorder %v1930, 0.64
        %vm3532 = vcmp.le.f32.partialorder %v1931, 0.64
        %vm3533 = vcmp.le.f32.partialorder %v1932, 0.64
        %v3534 = vsel %vm3278, 1, 0
        %v3535 = vsel %vm3279, 1, 0
        %v3536 = vsel %vm3280, 1, 0
        %v3537 = vsel %vm3281, 1, 0
        %v3538 = vsel %vm3282, 1, 0
        %v3539 = vsel %vm3283, 1, 0
        %v3540 = vsel %vm3284, 1, 0
        %v3541 = vsel %vm3285, 1, 0
        %v3542 = vsel %vm3286, 1, 0
        %v3543 = vsel %vm3287, 1, 0
        %v3544 = vsel %vm3288, 1, 0
        %v3545 = vsel %vm3289, 1, 0
        %v3546 = vsel %vm3290, 1, 0
        %v3547 = vsel %vm3291, 1, 0
        %v3548 = vsel %vm3292, 1, 0
        %v3549 = vsel %vm3293, 1, 0
        %v3550 = vsel %vm3294, 1, 0
        %v3551 = vsel %vm3295, 1, 0
        %v3552 = vsel %vm3296, 1, 0
        %v3553 = vsel %vm3297, 1, 0
        %v3554 = vsel %vm3298, 1, 0
        %v3555 = vsel %vm3299, 1, 0
        %v3556 = vsel %vm3300, 1, 0
        %v3557 = vsel %vm3301, 1, 0
        %v3558 = vsel %vm3302, 1, 0
        %v3559 = vsel %vm3303, 1, 0
        %v3560 = vsel %vm3304, 1, 0
        %v3561 = vsel %vm3305, 1, 0
        %v3562 = vsel %vm3306, 1, 0
        %v3563 = vsel %vm3307, 1, 0
        %v3564 = vsel %vm3308, 1, 0
        %v3565 = vsel %vm3309, 1, 0
        %v3566 = vsel %vm3310, 1, 0
        %v3567 = vsel %vm3311, 1, 0
        %v3568 = vsel %vm3312, 1, 0
        %v3569 = vsel %vm3313, 1, 0
        %v3570 = vsel %vm3314, 1, 0
        %v3571 = vsel %vm3315, 1, 0
        %v3572 = vsel %vm3316, 1, 0
        %v3573 = vsel %vm3317, 1, 0
        %v3574 = vsel %vm3318, 1, 0
        %v3575 = vsel %vm3319, 1, 0
        %v3576 = vsel %vm3320, 1, 0
        %v3577 = vsel %vm3321, 1, 0
        %v3578 = vsel %vm3322, 1, 0
        %v3579 = vsel %vm3323, 1, 0
        %v3580 = vsel %vm3324, 1, 0
        %v3581 = vsel %vm3325, 1, 0
        %v3582 = vsel %vm3326, 1, 0
        %v3583 = vsel %vm3327, 1, 0
        %v3584 = vsel %vm3328, 1, 0
        %v3585 = vsel %vm3329, 1, 0
        %v3586 = vsel %vm3330, 1, 0
        %v3587 = vsel %vm3331, 1, 0
        %v3588 = vsel %vm3332, 1, 0
        %v3589 = vsel %vm3333, 1, 0
        %v3590 = vsel %vm3334, 1, 0
        %v3591 = vsel %vm3335, 1, 0
        %v3592 = vsel %vm3336, 1, 0
        %v3593 = vsel %vm3337, 1, 0
        %v3594 = vsel %vm3338, 1, 0
        %v3595 = vsel %vm3339, 1, 0
        %v3596 = vsel %vm3340, 1, 0
        %v3597 = vsel %vm3341, 1, 0
        %v3598 = vsel %vm3342, 1, 0
        %v3599 = vsel %vm3343, 1, 0
        %v3600 = vsel %vm3344, 1, 0
        %v3601 = vsel %vm3345, 1, 0
        %v3602 = vsel %vm3346, 1, 0
        %v3603 = vsel %vm3347, 1, 0
        %v3604 = vsel %vm3348, 1, 0
        %v3605 = vsel %vm3349, 1, 0
        %v3606 = vsel %vm3350, 1, 0
        %v3607 = vsel %vm3351, 1, 0
        %v3608 = vsel %vm3352, 1, 0
        %v3609 = vsel %vm3353, 1, 0
        %v3610 = vsel %vm3354, 1, 0
        %v3611 = vsel %vm3355, 1, 0
        %v3612 = vsel %vm3356, 1, 0
        %v3613 = vsel %vm3357, 1, 0
        %v3614 = vsel %vm3358, 1, 0
        %v3615 = vsel %vm3359, 1, 0
        %v3616 = vsel %vm3360, 1, 0
        %v3617 = vsel %vm3361, 1, 0
        %v3618 = vsel %vm3362, 1, 0
        %v3619 = vsel %vm3363, 1, 0
        %v3620 = vsel %vm3364, 1, 0
        %v3621 = vsel %vm3365, 1, 0
        %v3622 = vsel %vm3366, 1, 0
        %v3623 = vsel %vm3367, 1, 0
        %v3624 = vsel %vm3368, 1, 0
        %v3625 = vsel %vm3369, 1, 0
        %v3626 = vsel %vm3370, 1, 0
        %v3627 = vsel %vm3371, 1, 0
        %v3628 = vsel %vm3372, 1, 0
        %v3629 = vsel %vm3373, 1, 0
        %v3630 = vsel %vm3374, 1, 0
        %v3631 = vsel %vm3375, 1, 0
        %v3632 = vsel %vm3376, 1, 0
        %v3633 = vsel %vm3377, 1, 0
        %v3634 = vsel %vm3378, 1, 0
        %v3635 = vsel %vm3379, 1, 0
        %v3636 = vsel %vm3380, 1, 0
        %v3637 = vsel %vm3381, 1, 0
        %v3638 = vsel %vm3382, 1, 0
        %v3639 = vsel %vm3383, 1, 0
        %v3640 = vsel %vm3384, 1, 0
        %v3641 = vsel %vm3385, 1, 0
        %v3642 = vsel %vm3386, 1, 0
        %v3643 = vsel %vm3387, 1, 0
        %v3644 = vsel %vm3388, 1, 0
        %v3645 = vsel %vm3389, 1, 0
        %v3646 = vsel %vm3390, 1, 0
        %v3647 = vsel %vm3391, 1, 0
        %v3648 = vsel %vm3392, 1, 0
        %v3649 = vsel %vm3393, 1, 0
        %v3650 = vsel %vm3394, 1, 0
        %v3651 = vsel %vm3395, 1, 0
        %v3652 = vsel %vm3396, 1, 0
        %v3653 = vsel %vm3397, 1, 0
        %v3654 = vsel %vm3398, 1, 0
        %v3655 = vsel %vm3399, 1, 0
        %v3656 = vsel %vm3400, 1, 0
        %v3657 = vsel %vm3401, 1, 0
        %v3658 = vsel %vm3402, 1, 0
        %v3659 = vsel %vm3403, 1, 0
        %v3660 = vsel %vm3404, 1, 0
        %v3661 = vsel %vm3405, 1, 0
        %v3662 = vsel %vm3406, 1, 0
        %v3663 = vsel %vm3407, 1, 0
        %v3664 = vsel %vm3408, 1, 0
        %v3665 = vsel %vm3409, 1, 0
        %v3666 = vsel %vm3410, 1, 0
        %v3667 = vsel %vm3411, 1, 0
        %v3668 = vsel %vm3412, 1, 0
        %v3669 = vsel %vm3413, 1, 0
        %v3670 = vsel %vm3414, 1, 0
        %v3671 = vsel %vm3415, 1, 0
        %v3672 = vsel %vm3416, 1, 0
        %v3673 = vsel %vm3417, 1, 0
        %v3674 = vsel %vm3418, 1, 0
        %v3675 = vsel %vm3419, 1, 0
        %v3676 = vsel %vm3420, 1, 0
        %v3677 = vsel %vm3421, 1, 0
        %v3678 = vsel %vm3422, 1, 0
        %v3679 = vsel %vm3423, 1, 0
        %v3680 = vsel %vm3424, 1, 0
        %v3681 = vsel %vm3425, 1, 0
        %v3682 = vsel %vm3426, 1, 0
        %v3683 = vsel %vm3427, 1, 0
        %v3684 = vsel %vm3428, 1, 0
        %v3685 = vsel %vm3429, 1, 0
        %v3686 = vsel %vm3430, 1, 0
        %v3687 = vsel %vm3431, 1, 0
        %v3688 = vsel %vm3432, 1, 0
        %v3689 = vsel %vm3433, 1, 0
        %v3690 = vsel %vm3434, 1, 0
        %v3691 = vsel %vm3435, 1, 0
        %v3692 = vsel %vm3436, 1, 0
        %v3693 = vsel %vm3437, 1, 0
        %v3694 = vsel %vm3438, 1, 0
        %v3695 = vsel %vm3439, 1, 0
        %v3696 = vsel %vm3440, 1, 0
        %v3697 = vsel %vm3441, 1, 0
        %v3698 = vsel %vm3442, 1, 0
        %v3699 = vsel %vm3443, 1, 0
        %v3700 = vsel %vm3444, 1, 0
        %v3701 = vsel %vm3445, 1, 0
        %v3702 = vsel %vm3446, 1, 0
        %v3703 = vsel %vm3447, 1, 0
        %v3704 = vsel %vm3448, 1, 0
        %v3705 = vsel %vm3449, 1, 0
        %v3706 = vsel %vm3450, 1, 0
        %v3707 = vsel %vm3451, 1, 0
        %v3708 = vsel %vm3452, 1, 0
        %v3709 = vsel %vm3453, 1, 0
        %v3710 = vsel %vm3454, 1, 0
        %v3711 = vsel %vm3455, 1, 0
        %v3712 = vsel %vm3456, 1, 0
        %v3713 = vsel %vm3457, 1, 0
        %v3714 = vsel %vm3458, 1, 0
        %v3715 = vsel %vm3459, 1, 0
        %v3716 = vsel %vm3460, 1, 0
        %v3717 = vsel %vm3461, 1, 0
        %v3718 = vsel %vm3462, 1, 0
        %v3719 = vsel %vm3463, 1, 0
        %v3720 = vsel %vm3464, 1, 0
        %v3721 = vsel %vm3465, 1, 0
        %v3722 = vsel %vm3466, 1, 0
        %v3723 = vsel %vm3467, 1, 0
        %v3724 = vsel %vm3468, 1, 0
        %v3725 = vsel %vm3469, 1, 0
        %v3726 = vsel %vm3470, 1, 0
        %v3727 = vsel %vm3471, 1, 0
        %v3728 = vsel %vm3472, 1, 0
        %v3729 = vsel %vm3473, 1, 0
        %v3730 = vsel %vm3474, 1, 0
        %v3731 = vsel %vm3475, 1, 0
        %v3732 = vsel %vm3476, 1, 0
        %v3733 = vsel %vm3477, 1, 0
        %v3734 = vsel %vm3478, 1, 0
        %v3735 = vsel %vm3479, 1, 0
        %v3736 = vsel %vm3480, 1, 0
        %v3737 = vsel %vm3481, 1, 0
        %v3738 = vsel %vm3482, 1, 0
        %v3739 = vsel %vm3483, 1, 0
        %v3740 = vsel %vm3484, 1, 0
        %v3741 = vsel %vm3485, 1, 0
        %v3742 = vsel %vm3486, 1, 0
        %v3743 = vsel %vm3487, 1, 0
        %v3744 = vsel %vm3488, 1, 0
        %v3745 = vsel %vm3489, 1, 0
        %v3746 = vsel %vm3490, 1, 0
        %v3747 = vsel %vm3491, 1, 0
        %v3748 = vsel %vm3492, 1, 0
        %v3749 = vsel %vm3493, 1, 0
        %v3750 = vsel %vm3494, 1, 0
        %v3751 = vsel %vm3495, 1, 0
        %v3752 = vsel %vm3496, 1, 0
        %v3753 = vsel %vm3497, 1, 0
        %v3754 = vsel %vm3498, 1, 0
        %v3755 = vsel %vm3499, 1, 0
        %v3756 = vsel %vm3500, 1, 0
        %v3757 = vsel %vm3501, 1, 0
        %v3758 = vsel %vm3502, 1, 0
        %v3759 = vsel %vm3503, 1, 0
        %v3760 = vsel %vm3504, 1, 0
        %v3761 = vsel %vm3505, 1, 0
        %v3762 = vsel %vm3506, 1, 0
        %v3763 = vsel %vm3507, 1, 0
        %v3764 = vsel %vm3508, 1, 0
        %v3765 = vsel %vm3509, 1, 0
        %v3766 = vsel %vm3510, 1, 0
        %v3767 = vsel %vm3511, 1, 0
        %v3768 = vsel %vm3512, 1, 0
        %v3769 = vsel %vm3513, 1, 0
        %v3770 = vsel %vm3514, 1, 0
        %v3771 = vsel %vm3515, 1, 0
        %v3772 = vsel %vm3516, 1, 0
        %v3773 = vsel %vm3517, 1, 0
        %v3774 = vsel %vm3518, 1, 0
        %v3775 = vsel %vm3519, 1, 0
        %v3776 = vsel %vm3520, 1, 0
        %v3777 = vsel %vm3521, 1, 0
        %v3778 = vsel %vm3522, 1, 0
        %v3779 = vsel %vm3523, 1, 0
        %v3780 = vsel %vm3524, 1, 0
        %v3781 = vsel %vm3525, 1, 0
        %v3782 = vsel %vm3526, 1, 0
        %v3783 = vsel %vm3527, 1, 0
        %v3784 = vsel %vm3528, 1, 0
        %v3785 = vsel %vm3529, 1, 0
        %v3786 = vsel %vm3530, 1, 0
        %v3787 = vsel %vm3531, 1, 0
        %v3788 = vsel %vm3532, 1, 0
        %v3789 = vsel %vm3533, 1, 0
        %v3790 = vcvt.s32.f32 %v3534
        %v3791 = vcvt.s32.f32 %v3535
        %v3792 = vcvt.s32.f32 %v3536
        %v3793 = vcvt.s32.f32 %v3537
        %v3794 = vcvt.s32.f32 %v3538
        %v3795 = vcvt.s32.f32 %v3539
        %v3796 = vcvt.s32.f32 %v3540
        %v3797 = vcvt.s32.f32 %v3541
        %v3798 = vcvt.s32.f32 %v3542
        %v3799 = vcvt.s32.f32 %v3543
        %v3800 = vcvt.s32.f32 %v3544
        %v3801 = vcvt.s32.f32 %v3545
        %v3802 = vcvt.s32.f32 %v3546
        %v3803 = vcvt.s32.f32 %v3547
        %v3804 = vcvt.s32.f32 %v3548
        %v3805 = vcvt.s32.f32 %v3549
        %v3806 = vcvt.s32.f32 %v3550
        %v3807 = vcvt.s32.f32 %v3551
        %v3808 = vcvt.s32.f32 %v3552
        %v3809 = vcvt.s32.f32 %v3553
        %v3810 = vcvt.s32.f32 %v3554
        %v3811 = vcvt.s32.f32 %v3555
        %v3812 = vcvt.s32.f32 %v3556
        %v3813 = vcvt.s32.f32 %v3557
        %v3814 = vcvt.s32.f32 %v3558
        %v3815 = vcvt.s32.f32 %v3559
        %v3816 = vcvt.s32.f32 %v3560
        %v3817 = vcvt.s32.f32 %v3561
        %v3818 = vcvt.s32.f32 %v3562
        %v3819 = vcvt.s32.f32 %v3563
        %v3820 = vcvt.s32.f32 %v3564
        %v3821 = vcvt.s32.f32 %v3565
        %v3822 = vcvt.s32.f32 %v3566
        %v3823 = vcvt.s32.f32 %v3567
        %v3824 = vcvt.s32.f32 %v3568
        %v3825 = vcvt.s32.f32 %v3569
        %v3826 = vcvt.s32.f32 %v3570
        %v3827 = vcvt.s32.f32 %v3571
        %v3828 = vcvt.s32.f32 %v3572
        %v3829 = vcvt.s32.f32 %v3573
        %v3830 = vcvt.s32.f32 %v3574
        %v3831 = vcvt.s32.f32 %v3575
        %v3832 = vcvt.s32.f32 %v3576
        %v3833 = vcvt.s32.f32 %v3577
        %v3834 = vcvt.s32.f32 %v3578
        %v3835 = vcvt.s32.f32 %v3579
        %v3836 = vcvt.s32.f32 %v3580
        %v3837 = vcvt.s32.f32 %v3581
        %v3838 = vcvt.s32.f32 %v3582
        %v3839 = vcvt.s32.f32 %v3583
        %v3840 = vcvt.s32.f32 %v3584
        %v3841 = vcvt.s32.f32 %v3585
        %v3842 = vcvt.s32.f32 %v3586
        %v3843 = vcvt.s32.f32 %v3587
        %v3844 = vcvt.s32.f32 %v3588
        %v3845 = vcvt.s32.f32 %v3589
        %v3846 = vcvt.s32.f32 %v3590
        %v3847 = vcvt.s32.f32 %v3591
        %v3848 = vcvt.s32.f32 %v3592
        %v3849 = vcvt.s32.f32 %v3593
        %v3850 = vcvt.s32.f32 %v3594
        %v3851 = vcvt.s32.f32 %v3595
        %v3852 = vcvt.s32.f32 %v3596
        %v3853 = vcvt.s32.f32 %v3597
        %v3854 = vcvt.s32.f32 %v3598
        %v3855 = vcvt.s32.f32 %v3599
        %v3856 = vcvt.s32.f32 %v3600
        %v3857 = vcvt.s32.f32 %v3601
        %v3858 = vcvt.s32.f32 %v3602
        %v3859 = vcvt.s32.f32 %v3603
        %v3860 = vcvt.s32.f32 %v3604
        %v3861 = vcvt.s32.f32 %v3605
        %v3862 = vcvt.s32.f32 %v3606
        %v3863 = vcvt.s32.f32 %v3607
        %v3864 = vcvt.s32.f32 %v3608
        %v3865 = vcvt.s32.f32 %v3609
        %v3866 = vcvt.s32.f32 %v3610
        %v3867 = vcvt.s32.f32 %v3611
        %v3868 = vcvt.s32.f32 %v3612
        %v3869 = vcvt.s32.f32 %v3613
        %v3870 = vcvt.s32.f32 %v3614
        %v3871 = vcvt.s32.f32 %v3615
        %v3872 = vcvt.s32.f32 %v3616
        %v3873 = vcvt.s32.f32 %v3617
        %v3874 = vcvt.s32.f32 %v3618
        %v3875 = vcvt.s32.f32 %v3619
        %v3876 = vcvt.s32.f32 %v3620
        %v3877 = vcvt.s32.f32 %v3621
        %v3878 = vcvt.s32.f32 %v3622
        %v3879 = vcvt.s32.f32 %v3623
        %v3880 = vcvt.s32.f32 %v3624
        %v3881 = vcvt.s32.f32 %v3625
        %v3882 = vcvt.s32.f32 %v3626
        %v3883 = vcvt.s32.f32 %v3627
        %v3884 = vcvt.s32.f32 %v3628
        %v3885 = vcvt.s32.f32 %v3629
        %v3886 = vcvt.s32.f32 %v3630
        %v3887 = vcvt.s32.f32 %v3631
        %v3888 = vcvt.s32.f32 %v3632
        %v3889 = vcvt.s32.f32 %v3633
        %v3890 = vcvt.s32.f32 %v3634
        %v3891 = vcvt.s32.f32 %v3635
        %v3892 = vcvt.s32.f32 %v3636
        %v3893 = vcvt.s32.f32 %v3637
        %v3894 = vcvt.s32.f32 %v3638
        %v3895 = vcvt.s32.f32 %v3639
        %v3896 = vcvt.s32.f32 %v3640
        %v3897 = vcvt.s32.f32 %v3641
        %v3898 = vcvt.s32.f32 %v3642
        %v3899 = vcvt.s32.f32 %v3643
        %v3900 = vcvt.s32.f32 %v3644
        %v3901 = vcvt.s32.f32 %v3645
        %v3902 = vcvt.s32.f32 %v3646
        %v3903 = vcvt.s32.f32 %v3647
        %v3904 = vcvt.s32.f32 %v3648
        %v3905 = vcvt.s32.f32 %v3649
        %v3906 = vcvt.s32.f32 %v3650
        %v3907 = vcvt.s32.f32 %v3651
        %v3908 = vcvt.s32.f32 %v3652
        %v3909 = vcvt.s32.f32 %v3653
        %v3910 = vcvt.s32.f32 %v3654
        %v3911 = vcvt.s32.f32 %v3655
        %v3912 = vcvt.s32.f32 %v3656
        %v3913 = vcvt.s32.f32 %v3657
        %v3914 = vcvt.s32.f32 %v3658
        %v3915 = vcvt.s32.f32 %v3659
        %v3916 = vcvt.s32.f32 %v3660
        %v3917 = vcvt.s32.f32 %v3661
        %v3918 = vcvt.s32.f32 %v3662
        %v3919 = vcvt.s32.f32 %v3663
        %v3920 = vcvt.s32.f32 %v3664
        %v3921 = vcvt.s32.f32 %v3665
        %v3922 = vcvt.s32.f32 %v3666
        %v3923 = vcvt.s32.f32 %v3667
        %v3924 = vcvt.s32.f32 %v3668
        %v3925 = vcvt.s32.f32 %v3669
        %v3926 = vcvt.s32.f32 %v3670
        %v3927 = vcvt.s32.f32 %v3671
        %v3928 = vcvt.s32.f32 %v3672
        %v3929 = vcvt.s32.f32 %v3673
        %v3930 = vcvt.s32.f32 %v3674
        %v3931 = vcvt.s32.f32 %v3675
        %v3932 = vcvt.s32.f32 %v3676
        %v3933 = vcvt.s32.f32 %v3677
        %v3934 = vcvt.s32.f32 %v3678
        %v3935 = vcvt.s32.f32 %v3679
        %v3936 = vcvt.s32.f32 %v3680
        %v3937 = vcvt.s32.f32 %v3681
        %v3938 = vcvt.s32.f32 %v3682
        %v3939 = vcvt.s32.f32 %v3683
        %v3940 = vcvt.s32.f32 %v3684
        %v3941 = vcvt.s32.f32 %v3685
        %v3942 = vcvt.s32.f32 %v3686
        %v3943 = vcvt.s32.f32 %v3687
        %v3944 = vcvt.s32.f32 %v3688
        %v3945 = vcvt.s32.f32 %v3689
        %v3946 = vcvt.s32.f32 %v3690
        %v3947 = vcvt.s32.f32 %v3691
        %v3948 = vcvt.s32.f32 %v3692
        %v3949 = vcvt.s32.f32 %v3693
        %v3950 = vcvt.s32.f32 %v3694
        %v3951 = vcvt.s32.f32 %v3695
        %v3952 = vcvt.s32.f32 %v3696
        %v3953 = vcvt.s32.f32 %v3697
        %v3954 = vcvt.s32.f32 %v3698
        %v3955 = vcvt.s32.f32 %v3699
        %v3956 = vcvt.s32.f32 %v3700
        %v3957 = vcvt.s32.f32 %v3701
        %v3958 = vcvt.s32.f32 %v3702
        %v3959 = vcvt.s32.f32 %v3703
        %v3960 = vcvt.s32.f32 %v3704
        %v3961 = vcvt.s32.f32 %v3705
        %v3962 = vcvt.s32.f32 %v3706
        %v3963 = vcvt.s32.f32 %v3707
        %v3964 = vcvt.s32.f32 %v3708
        %v3965 = vcvt.s32.f32 %v3709
        %v3966 = vcvt.s32.f32 %v3710
        %v3967 = vcvt.s32.f32 %v3711
        %v3968 = vcvt.s32.f32 %v3712
        %v3969 = vcvt.s32.f32 %v3713
        %v3970 = vcvt.s32.f32 %v3714
        %v3971 = vcvt.s32.f32 %v3715
        %v3972 = vcvt.s32.f32 %v3716
        %v3973 = vcvt.s32.f32 %v3717
        %v3974 = vcvt.s32.f32 %v3718
        %v3975 = vcvt.s32.f32 %v3719
        %v3976 = vcvt.s32.f32 %v3720
        %v3977 = vcvt.s32.f32 %v3721
        %v3978 = vcvt.s32.f32 %v3722
        %v3979 = vcvt.s32.f32 %v3723
        %v3980 = vcvt.s32.f32 %v3724
        %v3981 = vcvt.s32.f32 %v3725
        %v3982 = vcvt.s32.f32 %v3726
        %v3983 = vcvt.s32.f32 %v3727
        %v3984 = vcvt.s32.f32 %v3728
        %v3985 = vcvt.s32.f32 %v3729
        %v3986 = vcvt.s32.f32 %v3730
        %v3987 = vcvt.s32.f32 %v3731
        %v3988 = vcvt.s32.f32 %v3732
        %v3989 = vcvt.s32.f32 %v3733
        %v3990 = vcvt.s32.f32 %v3734
        %v3991 = vcvt.s32.f32 %v3735
        %v3992 = vcvt.s32.f32 %v3736
        %v3993 = vcvt.s32.f32 %v3737
        %v3994 = vcvt.s32.f32 %v3738
        %v3995 = vcvt.s32.f32 %v3739
        %v3996 = vcvt.s32.f32 %v3740
        %v3997 = vcvt.s32.f32 %v3741
        %v3998 = vcvt.s32.f32 %v3742
        %v3999 = vcvt.s32.f32 %v3743
        %v4000 = vcvt.s32.f32 %v3744
        %v4001 = vcvt.s32.f32 %v3745
        %v4002 = vcvt.s32.f32 %v3746
        %v4003 = vcvt.s32.f32 %v3747
        %v4004 = vcvt.s32.f32 %v3748
        %v4005 = vcvt.s32.f32 %v3749
        %v4006 = vcvt.s32.f32 %v3750
        %v4007 = vcvt.s32.f32 %v3751
        %v4008 = vcvt.s32.f32 %v3752
        %v4009 = vcvt.s32.f32 %v3753
        %v4010 = vcvt.s32.f32 %v3754
        %v4011 = vcvt.s32.f32 %v3755
        %v4012 = vcvt.s32.f32 %v3756
        %v4013 = vcvt.s32.f32 %v3757
        %v4014 = vcvt.s32.f32 %v3758
        %v4015 = vcvt.s32.f32 %v3759
        %v4016 = vcvt.s32.f32 %v3760
        %v4017 = vcvt.s32.f32 %v3761
        %v4018 = vcvt.s32.f32 %v3762
        %v4019 = vcvt.s32.f32 %v3763
        %v4020 = vcvt.s32.f32 %v3764
        %v4021 = vcvt.s32.f32 %v3765
        %v4022 = vcvt.s32.f32 %v3766
        %v4023 = vcvt.s32.f32 %v3767
        %v4024 = vcvt.s32.f32 %v3768
        %v4025 = vcvt.s32.f32 %v3769
        %v4026 = vcvt.s32.f32 %v3770
        %v4027 = vcvt.s32.f32 %v3771
        %v4028 = vcvt.s32.f32 %v3772
        %v4029 = vcvt.s32.f32 %v3773
        %v4030 = vcvt.s32.f32 %v3774
        %v4031 = vcvt.s32.f32 %v3775
        %v4032 = vcvt.s32.f32 %v3776
        %v4033 = vcvt.s32.f32 %v3777
        %v4034 = vcvt.s32.f32 %v3778
        %v4035 = vcvt.s32.f32 %v3779
        %v4036 = vcvt.s32.f32 %v3780
        %v4037 = vcvt.s32.f32 %v3781
        %v4038 = vcvt.s32.f32 %v3782
        %v4039 = vcvt.s32.f32 %v3783
        %v4040 = vcvt.s32.f32 %v3784
        %v4041 = vcvt.s32.f32 %v3785
        %v4042 = vcvt.s32.f32 %v3786
        %v4043 = vcvt.s32.f32 %v3787
        %v4044 = vcvt.s32.f32 %v3788
        %v4045 = vcvt.s32.f32 %v3789
        %v4046 = vmul.f32 %v3790, %v3231
        %v4047 = vmul.f32 %v3791, %v3231
        %v4048 = vmul.f32 %v3792, %v3231
        %v4049 = vmul.f32 %v3793, %v3231
        %v4050 = vmul.f32 %v3794, %v3231
        %v4051 = vmul.f32 %v3795, %v3231
        %v4052 = vmul.f32 %v3796, %v3231
        %v4053 = vmul.f32 %v3797, %v3231
        %v4054 = vmul.f32 %v3798, %v3231
        %v4055 = vmul.f32 %v3799, %v3231
        %v4056 = vmul.f32 %v3800, %v3231
        %v4057 = vmul.f32 %v3801, %v3231
        %v4058 = vmul.f32 %v3802, %v3231
        %v4059 = vmul.f32 %v3803, %v3231
        %v4060 = vmul.f32 %v3804, %v3231
        %v4061 = vmul.f32 %v3805, %v3231
        %v4062 = vmul.f32 %v3806, %v3233
        %v4063 = vmul.f32 %v3807, %v3233
        %v4064 = vmul.f32 %v3808, %v3233
        %v4065 = vmul.f32 %v3809, %v3233
        %v4066 = vmul.f32 %v3810, %v3233
        %v4067 = vmul.f32 %v3811, %v3233
        %v4068 = vmul.f32 %v3812, %v3233
        %v4069 = vmul.f32 %v3813, %v3233
        %v4070 = vmul.f32 %v3814, %v3233
        %v4071 = vmul.f32 %v3815, %v3233
        %v4072 = vmul.f32 %v3816, %v3233
        %v4073 = vmul.f32 %v3817, %v3233
        %v4074 = vmul.f32 %v3818, %v3233
        %v4075 = vmul.f32 %v3819, %v3233
        %v4076 = vmul.f32 %v3820, %v3233
        %v4077 = vmul.f32 %v3821, %v3233
        %v4078 = vmul.f32 %v3822, %v3235
        %v4079 = vmul.f32 %v3823, %v3235
        %v4080 = vmul.f32 %v3824, %v3235
        %v4081 = vmul.f32 %v3825, %v3235
        %v4082 = vmul.f32 %v3826, %v3235
        %v4083 = vmul.f32 %v3827, %v3235
        %v4084 = vmul.f32 %v3828, %v3235
        %v4085 = vmul.f32 %v3829, %v3235
        %v4086 = vmul.f32 %v3830, %v3235
        %v4087 = vmul.f32 %v3831, %v3235
        %v4088 = vmul.f32 %v3832, %v3235
        %v4089 = vmul.f32 %v3833, %v3235
        %v4090 = vmul.f32 %v3834, %v3235
        %v4091 = vmul.f32 %v3835, %v3235
        %v4092 = vmul.f32 %v3836, %v3235
        %v4093 = vmul.f32 %v3837, %v3235
        %v4094 = vmul.f32 %v3838, %v3237
        %v4095 = vmul.f32 %v3839, %v3237
        %v4096 = vmul.f32 %v3840, %v3237
        %v4097 = vmul.f32 %v3841, %v3237
        %v4098 = vmul.f32 %v3842, %v3237
        %v4099 = vmul.f32 %v3843, %v3237
        %v4100 = vmul.f32 %v3844, %v3237
        %v4101 = vmul.f32 %v3845, %v3237
        %v4102 = vmul.f32 %v3846, %v3237
        %v4103 = vmul.f32 %v3847, %v3237
        %v4104 = vmul.f32 %v3848, %v3237
        %v4105 = vmul.f32 %v3849, %v3237
        %v4106 = vmul.f32 %v3850, %v3237
        %v4107 = vmul.f32 %v3851, %v3237
        %v4108 = vmul.f32 %v3852, %v3237
        %v4109 = vmul.f32 %v3853, %v3237
        %v4110 = vmul.f32 %v3854, %v3239
        %v4111 = vmul.f32 %v3855, %v3239
        %v4112 = vmul.f32 %v3856, %v3239
        %v4113 = vmul.f32 %v3857, %v3239
        %v4114 = vmul.f32 %v3858, %v3239
        %v4115 = vmul.f32 %v3859, %v3239
        %v4116 = vmul.f32 %v3860, %v3239
        %v4117 = vmul.f32 %v3861, %v3239
        %v4118 = vmul.f32 %v3862, %v3239
        %v4119 = vmul.f32 %v3863, %v3239
        %v4120 = vmul.f32 %v3864, %v3239
        %v4121 = vmul.f32 %v3865, %v3239
        %v4122 = vmul.f32 %v3866, %v3239
        %v4123 = vmul.f32 %v3867, %v3239
        %v4124 = vmul.f32 %v3868, %v3239
        %v4125 = vmul.f32 %v3869, %v3239
        %v4126 = vmul.f32 %v3870, %v3241
        %v4127 = vmul.f32 %v3871, %v3241
        %v4128 = vmul.f32 %v3872, %v3241
        %v4129 = vmul.f32 %v3873, %v3241
        %v4130 = vmul.f32 %v3874, %v3241
        %v4131 = vmul.f32 %v3875, %v3241
        %v4132 = vmul.f32 %v3876, %v3241
        %v4133 = vmul.f32 %v3877, %v3241
        %v4134 = vmul.f32 %v3878, %v3241
        %v4135 = vmul.f32 %v3879, %v3241
        %v4136 = vmul.f32 %v3880, %v3241
        %v4137 = vmul.f32 %v3881, %v3241
        %v4138 = vmul.f32 %v3882, %v3241
        %v4139 = vmul.f32 %v3883, %v3241
        %v4140 = vmul.f32 %v3884, %v3241
        %v4141 = vmul.f32 %v3885, %v3241
        %v4142 = vmul.f32 %v3886, %v3243
        %v4143 = vmul.f32 %v3887, %v3243
        %v4144 = vmul.f32 %v3888, %v3243
        %v4145 = vmul.f32 %v3889, %v3243
        %v4146 = vmul.f32 %v3890, %v3243
        %v4147 = vmul.f32 %v3891, %v3243
        %v4148 = vmul.f32 %v3892, %v3243
        %v4149 = vmul.f32 %v3893, %v3243
        %v4150 = vmul.f32 %v3894, %v3243
        %v4151 = vmul.f32 %v3895, %v3243
        %v4152 = vmul.f32 %v3896, %v3243
        %v4153 = vmul.f32 %v3897, %v3243
        %v4154 = vmul.f32 %v3898, %v3243
        %v4155 = vmul.f32 %v3899, %v3243
        %v4156 = vmul.f32 %v3900, %v3243
        %v4157 = vmul.f32 %v3901, %v3243
        %v4158 = vmul.f32 %v3902, %v3245
        %v4159 = vmul.f32 %v3903, %v3245
        %v4160 = vmul.f32 %v3904, %v3245
        %v4161 = vmul.f32 %v3905, %v3245
        %v4162 = vmul.f32 %v3906, %v3245
        %v4163 = vmul.f32 %v3907, %v3245
        %v4164 = vmul.f32 %v3908, %v3245
        %v4165 = vmul.f32 %v3909, %v3245
        %v4166 = vmul.f32 %v3910, %v3245
        %v4167 = vmul.f32 %v3911, %v3245
        %v4168 = vmul.f32 %v3912, %v3245
        %v4169 = vmul.f32 %v3913, %v3245
        %v4170 = vmul.f32 %v3914, %v3245
        %v4171 = vmul.f32 %v3915, %v3245
        %v4172 = vmul.f32 %v3916, %v3245
        %v4173 = vmul.f32 %v3917, %v3245
        %v4174 = vmul.f32 %v3918, %v3247
        %v4175 = vmul.f32 %v3919, %v3247
        %v4176 = vmul.f32 %v3920, %v3247
        %v4177 = vmul.f32 %v3921, %v3247
        %v4178 = vmul.f32 %v3922, %v3247
        %v4179 = vmul.f32 %v3923, %v3247
        %v4180 = vmul.f32 %v3924, %v3247
        %v4181 = vmul.f32 %v3925, %v3247
        %v4182 = vmul.f32 %v3926, %v3247
        %v4183 = vmul.f32 %v3927, %v3247
        %v4184 = vmul.f32 %v3928, %v3247
        %v4185 = vmul.f32 %v3929, %v3247
        %v4186 = vmul.f32 %v3930, %v3247
        %v4187 = vmul.f32 %v3931, %v3247
        %v4188 = vmul.f32 %v3932, %v3247
        %v4189 = vmul.f32 %v3933, %v3247
        %v4190 = vmul.f32 %v3934, %v3249
        %v4191 = vmul.f32 %v3935, %v3249
        %v4192 = vmul.f32 %v3936, %v3249
        %v4193 = vmul.f32 %v3937, %v3249
        %v4194 = vmul.f32 %v3938, %v3249
        %v4195 = vmul.f32 %v3939, %v3249
        %v4196 = vmul.f32 %v3940, %v3249
        %v4197 = vmul.f32 %v3941, %v3249
        %v4198 = vmul.f32 %v3942, %v3249
        %v4199 = vmul.f32 %v3943, %v3249
        %v4200 = vmul.f32 %v3944, %v3249
        %v4201 = vmul.f32 %v3945, %v3249
        %v4202 = vmul.f32 %v3946, %v3249
        %v4203 = vmul.f32 %v3947, %v3249
        %v4204 = vmul.f32 %v3948, %v3249
        %v4205 = vmul.f32 %v3949, %v3249
        %v4206 = vmul.f32 %v3950, %v3251
        %v4207 = vmul.f32 %v3951, %v3251
        %v4208 = vmul.f32 %v3952, %v3251
        %v4209 = vmul.f32 %v3953, %v3251
        %v4210 = vmul.f32 %v3954, %v3251
        %v4211 = vmul.f32 %v3955, %v3251
        %v4212 = vmul.f32 %v3956, %v3251
        %v4213 = vmul.f32 %v3957, %v3251
        %v4214 = vmul.f32 %v3958, %v3251
        %v4215 = vmul.f32 %v3959, %v3251
        %v4216 = vmul.f32 %v3960, %v3251
        %v4217 = vmul.f32 %v3961, %v3251
        %v4218 = vmul.f32 %v3962, %v3251
        %v4219 = vmul.f32 %v3963, %v3251
        %v4220 = vmul.f32 %v3964, %v3251
        %v4221 = vmul.f32 %v3965, %v3251
        %v4222 = vmul.f32 %v3966, %v3253
        %v4223 = vmul.f32 %v3967, %v3253
        %v4224 = vmul.f32 %v3968, %v3253
        %v4225 = vmul.f32 %v3969, %v3253
        %v4226 = vmul.f32 %v3970, %v3253
        %v4227 = vmul.f32 %v3971, %v3253
        %v4228 = vmul.f32 %v3972, %v3253
        %v4229 = vmul.f32 %v3973, %v3253
        %v4230 = vmul.f32 %v3974, %v3253
        %v4231 = vmul.f32 %v3975, %v3253
        %v4232 = vmul.f32 %v3976, %v3253
        %v4233 = vmul.f32 %v3977, %v3253
        %v4234 = vmul.f32 %v3978, %v3253
        %v4235 = vmul.f32 %v3979, %v3253
        %v4236 = vmul.f32 %v3980, %v3253
        %v4237 = vmul.f32 %v3981, %v3253
        %v4238 = vmul.f32 %v3982, %v3255
        %v4239 = vmul.f32 %v3983, %v3255
        %v4240 = vmul.f32 %v3984, %v3255
        %v4241 = vmul.f32 %v3985, %v3255
        %v4242 = vmul.f32 %v3986, %v3255
        %v4243 = vmul.f32 %v3987, %v3255
        %v4244 = vmul.f32 %v3988, %v3255
        %v4245 = vmul.f32 %v3989, %v3255
        %v4246 = vmul.f32 %v3990, %v3255
        %v4247 = vmul.f32 %v3991, %v3255
        %v4248 = vmul.f32 %v3992, %v3255
        %v4249 = vmul.f32 %v3993, %v3255
        %v4250 = vmul.f32 %v3994, %v3255
        %v4251 = vmul.f32 %v3995, %v3255
        %v4252 = vmul.f32 %v3996, %v3255
        %v4253 = vmul.f32 %v3997, %v3255
        %v4254 = vmul.f32 %v3998, %v3257
        %v4255 = vmul.f32 %v3999, %v3257
        %v4256 = vmul.f32 %v4000, %v3257
        %v4257 = vmul.f32 %v4001, %v3257
        %v4258 = vmul.f32 %v4002, %v3257
        %v4259 = vmul.f32 %v4003, %v3257
        %v4260 = vmul.f32 %v4004, %v3257
        %v4261 = vmul.f32 %v4005, %v3257
        %v4262 = vmul.f32 %v4006, %v3257
        %v4263 = vmul.f32 %v4007, %v3257
        %v4264 = vmul.f32 %v4008, %v3257
        %v4265 = vmul.f32 %v4009, %v3257
        %v4266 = vmul.f32 %v4010, %v3257
        %v4267 = vmul.f32 %v4011, %v3257
        %v4268 = vmul.f32 %v4012, %v3257
        %v4269 = vmul.f32 %v4013, %v3257
        %v4270 = vmul.f32 %v4014, %v3259
        %v4271 = vmul.f32 %v4015, %v3259
        %v4272 = vmul.f32 %v4016, %v3259
        %v4273 = vmul.f32 %v4017, %v3259
        %v4274 = vmul.f32 %v4018, %v3259
        %v4275 = vmul.f32 %v4019, %v3259
        %v4276 = vmul.f32 %v4020, %v3259
        %v4277 = vmul.f32 %v4021, %v3259
        %v4278 = vmul.f32 %v4022, %v3259
        %v4279 = vmul.f32 %v4023, %v3259
        %v4280 = vmul.f32 %v4024, %v3259
        %v4281 = vmul.f32 %v4025, %v3259
        %v4282 = vmul.f32 %v4026, %v3259
        %v4283 = vmul.f32 %v4027, %v3259
        %v4284 = vmul.f32 %v4028, %v3259
        %v4285 = vmul.f32 %v4029, %v3259
        %v4286 = vmul.f32 %v4030, %v3261
        %v4287 = vmul.f32 %v4031, %v3261
        %v4288 = vmul.f32 %v4032, %v3261
        %v4289 = vmul.f32 %v4033, %v3261
        %v4290 = vmul.f32 %v4034, %v3261
        %v4291 = vmul.f32 %v4035, %v3261
        %v4292 = vmul.f32 %v4036, %v3261
        %v4293 = vmul.f32 %v4037, %v3261
        %v4294 = vmul.f32 %v4038, %v3261
        %v4295 = vmul.f32 %v4039, %v3261
        %v4296 = vmul.f32 %v4040, %v3261
        %v4297 = vmul.f32 %v4041, %v3261
        %v4298 = vmul.f32 %v4042, %v3261
        %v4299 = vmul.f32 %v4043, %v3261
        %v4300 = vmul.f32 %v4044, %v3261
        %v4301 = vmul.f32 %v4045, %v3261
        %v4302 = vadd.f32 %v2078, %v3262
        %v4303 = vadd.f32 %v2079, %v3263
        %v4304 = vadd.f32 %v2080, %v3264
        %v4305 = vadd.f32 %v2081, %v3265
        %v4306 = vadd.f32 %v2082, %v3266
        %v4307 = vadd.f32 %v2083, %v3267
        %v4308 = vadd.f32 %v2084, %v3268
        %v4309 = vadd.f32 %v2085, %v3269
        %v4310 = vadd.f32 %v2086, %v3270
        %v4311 = vadd.f32 %v2087, %v3271
        %v4312 = vadd.f32 %v2088, %v3272
        %v4313 = vadd.f32 %v2089, %v3273
        %v4314 = vadd.f32 %v2090, %v3274
        %v4315 = vadd.f32 %v2091, %v3275
        %v4316 = vadd.f32 %v2092, %v3276
        %v4317 = vadd.f32 %v2093, %v3277
        %v4318 = vadd.f32 %v2862, %v4046
        %v4319 = vadd.f32 %v2863, %v4047
        %v4320 = vadd.f32 %v2864, %v4048
        %v4321 = vadd.f32 %v2865, %v4049
        %v4322 = vadd.f32 %v2866, %v4050
        %v4323 = vadd.f32 %v2867, %v4051
        %v4324 = vadd.f32 %v2868, %v4052
        %v4325 = vadd.f32 %v2869, %v4053
        %v4326 = vadd.f32 %v2870, %v4054
        %v4327 = vadd.f32 %v2871, %v4055
        %v4328 = vadd.f32 %v2872, %v4056
        %v4329 = vadd.f32 %v2873, %v4057
        %v4330 = vadd.f32 %v2874, %v4058
        %v4331 = vadd.f32 %v2875, %v4059
        %v4332 = vadd.f32 %v2876, %v4060
        %v4333 = vadd.f32 %v2877, %v4061
        %v4334 = vadd.f32 %v2878, %v4062
        %v4335 = vadd.f32 %v2879, %v4063
        %v4336 = vadd.f32 %v2880, %v4064
        %v4337 = vadd.f32 %v2881, %v4065
        %v4338 = vadd.f32 %v2882, %v4066
        %v4339 = vadd.f32 %v2883, %v4067
        %v4340 = vadd.f32 %v2884, %v4068
        %v4341 = vadd.f32 %v2885, %v4069
        %v4342 = vadd.f32 %v2886, %v4070
        %v4343 = vadd.f32 %v2887, %v4071
        %v4344 = vadd.f32 %v2888, %v4072
        %v4345 = vadd.f32 %v2889, %v4073
        %v4346 = vadd.f32 %v2890, %v4074
        %v4347 = vadd.f32 %v2891, %v4075
        %v4348 = vadd.f32 %v2892, %v4076
        %v4349 = vadd.f32 %v2893, %v4077
        %v4350 = vadd.f32 %v2894, %v4078
        %v4351 = vadd.f32 %v2895, %v4079
        %v4352 = vadd.f32 %v2896, %v4080
        %v4353 = vadd.f32 %v2897, %v4081
        %v4354 = vadd.f32 %v2898, %v4082
        %v4355 = vadd.f32 %v2899, %v4083
        %v4356 = vadd.f32 %v2900, %v4084
        %v4357 = vadd.f32 %v2901, %v4085
        %v4358 = vadd.f32 %v2902, %v4086
        %v4359 = vadd.f32 %v2903, %v4087
        %v4360 = vadd.f32 %v2904, %v4088
        %v4361 = vadd.f32 %v2905, %v4089
        %v4362 = vadd.f32 %v2906, %v4090
        %v4363 = vadd.f32 %v2907, %v4091
        %v4364 = vadd.f32 %v2908, %v4092
        %v4365 = vadd.f32 %v2909, %v4093
        %v4366 = vadd.f32 %v2910, %v4094
        %v4367 = vadd.f32 %v2911, %v4095
        %v4368 = vadd.f32 %v2912, %v4096
        %v4369 = vadd.f32 %v2913, %v4097
        %v4370 = vadd.f32 %v2914, %v4098
        %v4371 = vadd.f32 %v2915, %v4099
        %v4372 = vadd.f32 %v2916, %v4100
        %v4373 = vadd.f32 %v2917, %v4101
        %v4374 = vadd.f32 %v2918, %v4102
        %v4375 = vadd.f32 %v2919, %v4103
        %v4376 = vadd.f32 %v2920, %v4104
        %v4377 = vadd.f32 %v2921, %v4105
        %v4378 = vadd.f32 %v2922, %v4106
        %v4379 = vadd.f32 %v2923, %v4107
        %v4380 = vadd.f32 %v2924, %v4108
        %v4381 = vadd.f32 %v2925, %v4109
        %v4382 = vadd.f32 %v2926, %v4110
        %v4383 = vadd.f32 %v2927, %v4111
        %v4384 = vadd.f32 %v2928, %v4112
        %v4385 = vadd.f32 %v2929, %v4113
        %v4386 = vadd.f32 %v2930, %v4114
        %v4387 = vadd.f32 %v2931, %v4115
        %v4388 = vadd.f32 %v2932, %v4116
        %v4389 = vadd.f32 %v2933, %v4117
        %v4390 = vadd.f32 %v2934, %v4118
        %v4391 = vadd.f32 %v2935, %v4119
        %v4392 = vadd.f32 %v2936, %v4120
        %v4393 = vadd.f32 %v2937, %v4121
        %v4394 = vadd.f32 %v2938, %v4122
        %v4395 = vadd.f32 %v2939, %v4123
        %v4396 = vadd.f32 %v2940, %v4124
        %v4397 = vadd.f32 %v2941, %v4125
        %v4398 = vadd.f32 %v2942, %v4126
        %v4399 = vadd.f32 %v2943, %v4127
        %v4400 = vadd.f32 %v2944, %v4128
        %v4401 = vadd.f32 %v2945, %v4129
        %v4402 = vadd.f32 %v2946, %v4130
        %v4403 = vadd.f32 %v2947, %v4131
        %v4404 = vadd.f32 %v2948, %v4132
        %v4405 = vadd.f32 %v2949, %v4133
        %v4406 = vadd.f32 %v2950, %v4134
        %v4407 = vadd.f32 %v2951, %v4135
        %v4408 = vadd.f32 %v2952, %v4136
        %v4409 = vadd.f32 %v2953, %v4137
        %v4410 = vadd.f32 %v2954, %v4138
        %v4411 = vadd.f32 %v2955, %v4139
        %v4412 = vadd.f32 %v2956, %v4140
        %v4413 = vadd.f32 %v2957, %v4141
        %v4414 = vadd.f32 %v2958, %v4142
        %v4415 = vadd.f32 %v2959, %v4143
        %v4416 = vadd.f32 %v2960, %v4144
        %v4417 = vadd.f32 %v2961, %v4145
        %v4418 = vadd.f32 %v2962, %v4146
        %v4419 = vadd.f32 %v2963, %v4147
        %v4420 = vadd.f32 %v2964, %v4148
        %v4421 = vadd.f32 %v2965, %v4149
        %v4422 = vadd.f32 %v2966, %v4150
        %v4423 = vadd.f32 %v2967, %v4151
        %v4424 = vadd.f32 %v2968, %v4152
        %v4425 = vadd.f32 %v2969, %v4153
        %v4426 = vadd.f32 %v2970, %v4154
        %v4427 = vadd.f32 %v2971, %v4155
        %v4428 = vadd.f32 %v2972, %v4156
        %v4429 = vadd.f32 %v2973, %v4157
        %v4430 = vadd.f32 %v2974, %v4158
        %v4431 = vadd.f32 %v2975, %v4159
        %v4432 = vadd.f32 %v2976, %v4160
        %v4433 = vadd.f32 %v2977, %v4161
        %v4434 = vadd.f32 %v2978, %v4162
        %v4435 = vadd.f32 %v2979, %v4163
        %v4436 = vadd.f32 %v2980, %v4164
        %v4437 = vadd.f32 %v2981, %v4165
        %v4438 = vadd.f32 %v2982, %v4166
        %v4439 = vadd.f32 %v2983, %v4167
        %v4440 = vadd.f32 %v2984, %v4168
        %v4441 = vadd.f32 %v2985, %v4169
        %v4442 = vadd.f32 %v2986, %v4170
        %v4443 = vadd.f32 %v2987, %v4171
        %v4444 = vadd.f32 %v2988, %v4172
        %v4445 = vadd.f32 %v2989, %v4173
        %v4446 = vadd.f32 %v2990, %v4174
        %v4447 = vadd.f32 %v2991, %v4175
        %v4448 = vadd.f32 %v2992, %v4176
        %v4449 = vadd.f32 %v2993, %v4177
        %v4450 = vadd.f32 %v2994, %v4178
        %v4451 = vadd.f32 %v2995, %v4179
        %v4452 = vadd.f32 %v2996, %v4180
        %v4453 = vadd.f32 %v2997, %v4181
        %v4454 = vadd.f32 %v2998, %v4182
        %v4455 = vadd.f32 %v2999, %v4183
        %v4456 = vadd.f32 %v3000, %v4184
        %v4457 = vadd.f32 %v3001, %v4185
        %v4458 = vadd.f32 %v3002, %v4186
        %v4459 = vadd.f32 %v3003, %v4187
        %v4460 = vadd.f32 %v3004, %v4188
        %v4461 = vadd.f32 %v3005, %v4189
        %v4462 = vadd.f32 %v3006, %v4190
        %v4463 = vadd.f32 %v3007, %v4191
        %v4464 = vadd.f32 %v3008, %v4192
        %v4465 = vadd.f32 %v3009, %v4193
        %v4466 = vadd.f32 %v3010, %v4194
        %v4467 = vadd.f32 %v3011, %v4195
        %v4468 = vadd.f32 %v3012, %v4196
        %v4469 = vadd.f32 %v3013, %v4197
        %v4470 = vadd.f32 %v3014, %v4198
        %v4471 = vadd.f32 %v3015, %v4199
        %v4472 = vadd.f32 %v3016, %v4200
        %v4473 = vadd.f32 %v3017, %v4201
        %v4474 = vadd.f32 %v3018, %v4202
        %v4475 = vadd.f32 %v3019, %v4203
        %v4476 = vadd.f32 %v3020, %v4204
        %v4477 = vadd.f32 %v3021, %v4205
        %v4478 = vadd.f32 %v3022, %v4206
        %v4479 = vadd.f32 %v3023, %v4207
        %v4480 = vadd.f32 %v3024, %v4208
        %v4481 = vadd.f32 %v3025, %v4209
        %v4482 = vadd.f32 %v3026, %v4210
        %v4483 = vadd.f32 %v3027, %v4211
        %v4484 = vadd.f32 %v3028, %v4212
        %v4485 = vadd.f32 %v3029, %v4213
        %v4486 = vadd.f32 %v3030, %v4214
        %v4487 = vadd.f32 %v3031, %v4215
        %v4488 = vadd.f32 %v3032, %v4216
        %v4489 = vadd.f32 %v3033, %v4217
        %v4490 = vadd.f32 %v3034, %v4218
        %v4491 = vadd.f32 %v3035, %v4219
        %v4492 = vadd.f32 %v3036, %v4220
        %v4493 = vadd.f32 %v3037, %v4221
        %v4494 = vadd.f32 %v3038, %v4222
        %v4495 = vadd.f32 %v3039, %v4223
        %v4496 = vadd.f32 %v3040, %v4224
        %v4497 = vadd.f32 %v3041, %v4225
        %v4498 = vadd.f32 %v3042, %v4226
        %v4499 = vadd.f32 %v3043, %v4227
        %v4500 = vadd.f32 %v3044, %v4228
        %v4501 = vadd.f32 %v3045, %v4229
        %v4502 = vadd.f32 %v3046, %v4230
        %v4503 = vadd.f32 %v3047, %v4231
        %v4504 = vadd.f32 %v3048, %v4232
        %v4505 = vadd.f32 %v3049, %v4233
        %v4506 = vadd.f32 %v3050, %v4234
        %v4507 = vadd.f32 %v3051, %v4235
        %v4508 = vadd.f32 %v3052, %v4236
        %v4509 = vadd.f32 %v3053, %v4237
        %v4510 = vadd.f32 %v3054, %v4238
        %v4511 = vadd.f32 %v3055, %v4239
        %v4512 = vadd.f32 %v3056, %v4240
        %v4513 = vadd.f32 %v3057, %v4241
        %v4514 = vadd.f32 %v3058, %v4242
        %v4515 = vadd.f32 %v3059, %v4243
        %v4516 = vadd.f32 %v3060, %v4244
        %v4517 = vadd.f32 %v3061, %v4245
        %v4518 = vadd.f32 %v3062, %v4246
        %v4519 = vadd.f32 %v3063, %v4247
        %v4520 = vadd.f32 %v3064, %v4248
        %v4521 = vadd.f32 %v3065, %v4249
        %v4522 = vadd.f32 %v3066, %v4250
        %v4523 = vadd.f32 %v3067, %v4251
        %v4524 = vadd.f32 %v3068, %v4252
        %v4525 = vadd.f32 %v3069, %v4253
        %v4526 = vadd.f32 %v3070, %v4254
        %v4527 = vadd.f32 %v3071, %v4255
        %v4528 = vadd.f32 %v3072, %v4256
        %v4529 = vadd.f32 %v3073, %v4257
        %v4530 = vadd.f32 %v3074, %v4258
        %v4531 = vadd.f32 %v3075, %v4259
        %v4532 = vadd.f32 %v3076, %v4260
        %v4533 = vadd.f32 %v3077, %v4261
        %v4534 = vadd.f32 %v3078, %v4262
        %v4535 = vadd.f32 %v3079, %v4263
        %v4536 = vadd.f32 %v3080, %v4264
        %v4537 = vadd.f32 %v3081, %v4265
        %v4538 = vadd.f32 %v3082, %v4266
        %v4539 = vadd.f32 %v3083, %v4267
        %v4540 = vadd.f32 %v3084, %v4268
        %v4541 = vadd.f32 %v3085, %v4269
        %v4542 = vadd.f32 %v3086, %v4270
        %v4543 = vadd.f32 %v3087, %v4271
        %v4544 = vadd.f32 %v3088, %v4272
        %v4545 = vadd.f32 %v3089, %v4273
        %v4546 = vadd.f32 %v3090, %v4274
        %v4547 = vadd.f32 %v3091, %v4275
        %v4548 = vadd.f32 %v3092, %v4276
        %v4549 = vadd.f32 %v3093, %v4277
        %v4550 = vadd.f32 %v3094, %v4278
        %v4551 = vadd.f32 %v3095, %v4279
        %v4552 = vadd.f32 %v3096, %v4280
        %v4553 = vadd.f32 %v3097, %v4281
        %v4554 = vadd.f32 %v3098, %v4282
        %v4555 = vadd.f32 %v3099, %v4283
        %v4556 = vadd.f32 %v3100, %v4284
        %v4557 = vadd.f32 %v3101, %v4285
        %v4558 = vadd.f32 %v3102, %v4286
        %v4559 = vadd.f32 %v3103, %v4287
        %v4560 = vadd.f32 %v3104, %v4288
        %v4561 = vadd.f32 %v3105, %v4289
        %v4562 = vadd.f32 %v3106, %v4290
        %v4563 = vadd.f32 %v3107, %v4291
        %v4564 = vadd.f32 %v3108, %v4292
        %v4565 = vadd.f32 %v3109, %v4293
        %v4566 = vadd.f32 %v3110, %v4294
        %v4567 = vadd.f32 %v3111, %v4295
        %v4568 = vadd.f32 %v3112, %v4296
        %v4569 = vadd.f32 %v3113, %v4297
        %v4570 = vadd.f32 %v3114, %v4298
        %v4571 = vadd.f32 %v3115, %v4299
        %v4572 = vadd.f32 %v3116, %v4300
        %v4573 = vadd.f32 %v3117, %v4301
        %s4574 = scalar_lea.vmem %s3, 6
        %v4575 = vld [vmem:[%s4574] ss:$8 sm:$0xf]
        %v4576 = vld [vmem:[%s4574] ss:$8 sm:$0xf0]
        %v4577 = vor.u32 %v4575, %v4576
        %s4578 = scalar_lea.vmem %s3, 70
        %v4579 = vld [vmem:[%s4578] ss:$8 sm:$0xf]
        %v4580 = vld [vmem:[%s4578] ss:$8 sm:$0xf0]
        %v4581 = vor.u32 %v4579, %v4580
        %s4582 = scalar_lea.vmem %s3, 2
        %v4583 = vld [vmem:[%s4582] ss:$8 sm:$0xf]
        %v4584 = vld [vmem:[%s4582] ss:$8 sm:$0xf0]
        %v4585 = vor.u32 %v4583, %v4584
        %s4586 = scalar_lea.vmem %s3, 66
        %v4587 = vld [vmem:[%s4586] ss:$8 sm:$0xf]
        %v4588 = vld [vmem:[%s4586] ss:$8 sm:$0xf0]
        %v4589 = vor.u32 %v4587, %v4588
        %v4590 = vmul.f32 %v476, %v4585
        %v4591 = vmul.f32 %v480, %v4589
        %v4592 = vadd.f32 %v4577, %v4590
        %v4593 = vadd.f32 %v4581, %v4591
        %s4594 = scalar_lea.vmem %s3, 3
        %v4595 = vld [vmem:[%s4594] ss:$8 sm:$0xf]
        %v4596 = vld [vmem:[%s4594] ss:$8 sm:$0xf0]
        %v4597 = vor.u32 %v4595, %v4596
        %s4598 = scalar_lea.vmem %s3, 67
        %v4599 = vld [vmem:[%s4598] ss:$8 sm:$0xf]
        %v4600 = vld [vmem:[%s4598] ss:$8 sm:$0xf0]
        %v4601 = vor.u32 %v4599, %v4600
        %v4602 = vmul.f32 %v1078, %v4597
        %v4603 = vmul.f32 %v1082, %v4601
        %v4604 = vadd.f32 %v4592, %v4602
        %v4605 = vadd.f32 %v4593, %v4603
        %v4606 = vld [vmem:[%s3] ss:$8 sm:$0xf]
        %v4607 = vld [vmem:[%s3] ss:$8 sm:$0xf0]
        %v4608 = vor.u32 %v4606, %v4607
        %s4609 = scalar_lea.vmem %s3, 64
        %v4610 = vld [vmem:[%s4609] ss:$8 sm:$0xf]
        %v4611 = vld [vmem:[%s4609] ss:$8 sm:$0xf0]
        %v4612 = vor.u32 %v4610, %v4611
        %v4615 = vlaneseq
        %v4616 = vshrl.u32 %v4615, 7
        %v4617 = vsub.s32 0, %v4616
        %v4618 = vrot.slane %v4608, %v4617
        %v4619 = vlaneseq
        %v4620 = vshrl.u32 %v4619, 7
        %v4621 = vsub.s32 1, %v4620
        %v4622 = vrot.slane %v4608, %v4621
        %v4623 = vlaneseq
        %v4624 = vshrl.u32 %v4623, 7
        %v4625 = vsub.s32 2, %v4624
        %v4626 = vrot.slane %v4608, %v4625
        %v4627 = vlaneseq
        %v4628 = vshrl.u32 %v4627, 7
        %v4629 = vsub.s32 3, %v4628
        %v4630 = vrot.slane %v4608, %v4629
        %v4631 = vlaneseq
        %v4632 = vshrl.u32 %v4631, 7
        %v4633 = vsub.s32 4, %v4632
        %v4634 = vrot.slane %v4608, %v4633
        %v4635 = vlaneseq
        %v4636 = vshrl.u32 %v4635, 7
        %v4637 = vsub.s32 5, %v4636
        %v4638 = vrot.slane %v4608, %v4637
        %v4639 = vlaneseq
        %v4640 = vshrl.u32 %v4639, 7
        %v4641 = vsub.s32 6, %v4640
        %v4642 = vrot.slane %v4608, %v4641
        %v4643 = vlaneseq
        %v4644 = vshrl.u32 %v4643, 7
        %v4645 = vsub.s32 7, %v4644
        %v4646 = vrot.slane %v4608, %v4645
        %v4647 = vlaneseq
        %v4648 = vshrl.u32 %v4647, 7
        %v4649 = vsub.s32 0, %v4648
        %v4650 = vrot.slane %v4612, %v4649
        %v4651 = vlaneseq
        %v4652 = vshrl.u32 %v4651, 7
        %v4653 = vsub.s32 1, %v4652
        %v4654 = vrot.slane %v4612, %v4653
        %v4655 = vlaneseq
        %v4656 = vshrl.u32 %v4655, 7
        %v4657 = vsub.s32 2, %v4656
        %v4658 = vrot.slane %v4612, %v4657
        %v4659 = vlaneseq
        %v4660 = vshrl.u32 %v4659, 7
        %v4661 = vsub.s32 3, %v4660
        %v4662 = vrot.slane %v4612, %v4661
        %v4663 = vlaneseq
        %v4664 = vshrl.u32 %v4663, 7
        %v4665 = vsub.s32 4, %v4664
        %v4666 = vrot.slane %v4612, %v4665
        %v4667 = vlaneseq
        %v4668 = vshrl.u32 %v4667, 7
        %v4669 = vsub.s32 5, %v4668
        %v4670 = vrot.slane %v4612, %v4669
        %v4671 = vlaneseq
        %v4672 = vshrl.u32 %v4671, 7
        %v4673 = vsub.s32 6, %v4672
        %v4674 = vrot.slane %v4612, %v4673
        %v4675 = vlaneseq
        %v4676 = vshrl.u32 %v4675, 7
        %v4677 = vsub.s32 7, %v4676
        %v4678 = vrot.slane %v4612, %v4677
        %v4695 = vmul.f32 %v244, %v4618
        %v4696 = vmul.f32 %v244, %v4622
        %v4697 = vmul.f32 %v244, %v4626
        %v4698 = vmul.f32 %v244, %v4630
        %v4699 = vmul.f32 %v244, %v4634
        %v4700 = vmul.f32 %v244, %v4638
        %v4701 = vmul.f32 %v244, %v4642
        %v4702 = vmul.f32 %v244, %v4646
        %v4703 = vmul.f32 %v244, %v4650
        %v4704 = vmul.f32 %v244, %v4654
        %v4705 = vmul.f32 %v244, %v4658
        %v4706 = vmul.f32 %v244, %v4662
        %v4707 = vmul.f32 %v244, %v4666
        %v4708 = vmul.f32 %v244, %v4670
        %v4709 = vmul.f32 %v244, %v4674
        %v4710 = vmul.f32 %v244, %v4678
        %v4711 = vmul.f32 %v249, %v4618
        %v4712 = vmul.f32 %v249, %v4622
        %v4713 = vmul.f32 %v249, %v4626
        %v4714 = vmul.f32 %v249, %v4630
        %v4715 = vmul.f32 %v249, %v4634
        %v4716 = vmul.f32 %v249, %v4638
        %v4717 = vmul.f32 %v249, %v4642
        %v4718 = vmul.f32 %v249, %v4646
        %v4719 = vmul.f32 %v249, %v4650
        %v4720 = vmul.f32 %v249, %v4654
        %v4721 = vmul.f32 %v249, %v4658
        %v4722 = vmul.f32 %v249, %v4662
        %v4723 = vmul.f32 %v249, %v4666
        %v4724 = vmul.f32 %v249, %v4670
        %v4725 = vmul.f32 %v249, %v4674
        %v4726 = vmul.f32 %v249, %v4678
        %v4727 = vmul.f32 %v254, %v4618
        %v4728 = vmul.f32 %v254, %v4622
        %v4729 = vmul.f32 %v254, %v4626
        %v4730 = vmul.f32 %v254, %v4630
        %v4731 = vmul.f32 %v254, %v4634
        %v4732 = vmul.f32 %v254, %v4638
        %v4733 = vmul.f32 %v254, %v4642
        %v4734 = vmul.f32 %v254, %v4646
        %v4735 = vmul.f32 %v254, %v4650
        %v4736 = vmul.f32 %v254, %v4654
        %v4737 = vmul.f32 %v254, %v4658
        %v4738 = vmul.f32 %v254, %v4662
        %v4739 = vmul.f32 %v254, %v4666
        %v4740 = vmul.f32 %v254, %v4670
        %v4741 = vmul.f32 %v254, %v4674
        %v4742 = vmul.f32 %v254, %v4678
        %v4743 = vmul.f32 %v259, %v4618
        %v4744 = vmul.f32 %v259, %v4622
        %v4745 = vmul.f32 %v259, %v4626
        %v4746 = vmul.f32 %v259, %v4630
        %v4747 = vmul.f32 %v259, %v4634
        %v4748 = vmul.f32 %v259, %v4638
        %v4749 = vmul.f32 %v259, %v4642
        %v4750 = vmul.f32 %v259, %v4646
        %v4751 = vmul.f32 %v259, %v4650
        %v4752 = vmul.f32 %v259, %v4654
        %v4753 = vmul.f32 %v259, %v4658
        %v4754 = vmul.f32 %v259, %v4662
        %v4755 = vmul.f32 %v259, %v4666
        %v4756 = vmul.f32 %v259, %v4670
        %v4757 = vmul.f32 %v259, %v4674
        %v4758 = vmul.f32 %v259, %v4678
        %v4759 = vmul.f32 %v264, %v4618
        %v4760 = vmul.f32 %v264, %v4622
        %v4761 = vmul.f32 %v264, %v4626
        %v4762 = vmul.f32 %v264, %v4630
        %v4763 = vmul.f32 %v264, %v4634
        %v4764 = vmul.f32 %v264, %v4638
        %v4765 = vmul.f32 %v264, %v4642
        %v4766 = vmul.f32 %v264, %v4646
        %v4767 = vmul.f32 %v264, %v4650
        %v4768 = vmul.f32 %v264, %v4654
        %v4769 = vmul.f32 %v264, %v4658
        %v4770 = vmul.f32 %v264, %v4662
        %v4771 = vmul.f32 %v264, %v4666
        %v4772 = vmul.f32 %v264, %v4670
        %v4773 = vmul.f32 %v264, %v4674
        %v4774 = vmul.f32 %v264, %v4678
        %v4775 = vmul.f32 %v269, %v4618
        %v4776 = vmul.f32 %v269, %v4622
        %v4777 = vmul.f32 %v269, %v4626
        %v4778 = vmul.f32 %v269, %v4630
        %v4779 = vmul.f32 %v269, %v4634
        %v4780 = vmul.f32 %v269, %v4638
        %v4781 = vmul.f32 %v269, %v4642
        %v4782 = vmul.f32 %v269, %v4646
        %v4783 = vmul.f32 %v269, %v4650
        %v4784 = vmul.f32 %v269, %v4654
        %v4785 = vmul.f32 %v269, %v4658
        %v4786 = vmul.f32 %v269, %v4662
        %v4787 = vmul.f32 %v269, %v4666
        %v4788 = vmul.f32 %v269, %v4670
        %v4789 = vmul.f32 %v269, %v4674
        %v4790 = vmul.f32 %v269, %v4678
        %v4791 = vmul.f32 %v274, %v4618
        %v4792 = vmul.f32 %v274, %v4622
        %v4793 = vmul.f32 %v274, %v4626
        %v4794 = vmul.f32 %v274, %v4630
        %v4795 = vmul.f32 %v274, %v4634
        %v4796 = vmul.f32 %v274, %v4638
        %v4797 = vmul.f32 %v274, %v4642
        %v4798 = vmul.f32 %v274, %v4646
        %v4799 = vmul.f32 %v274, %v4650
        %v4800 = vmul.f32 %v274, %v4654
        %v4801 = vmul.f32 %v274, %v4658
        %v4802 = vmul.f32 %v274, %v4662
        %v4803 = vmul.f32 %v274, %v4666
        %v4804 = vmul.f32 %v274, %v4670
        %v4805 = vmul.f32 %v274, %v4674
        %v4806 = vmul.f32 %v274, %v4678
        %v4807 = vmul.f32 %v279, %v4618
        %v4808 = vmul.f32 %v279, %v4622
        %v4809 = vmul.f32 %v279, %v4626
        %v4810 = vmul.f32 %v279, %v4630
        %v4811 = vmul.f32 %v279, %v4634
        %v4812 = vmul.f32 %v279, %v4638
        %v4813 = vmul.f32 %v279, %v4642
        %v4814 = vmul.f32 %v279, %v4646
        %v4815 = vmul.f32 %v279, %v4650
        %v4816 = vmul.f32 %v279, %v4654
        %v4817 = vmul.f32 %v279, %v4658
        %v4818 = vmul.f32 %v279, %v4662
        %v4819 = vmul.f32 %v279, %v4666
        %v4820 = vmul.f32 %v279, %v4670
        %v4821 = vmul.f32 %v279, %v4674
        %v4822 = vmul.f32 %v279, %v4678
        %v4823 = vmul.f32 %v284, %v4618
        %v4824 = vmul.f32 %v284, %v4622
        %v4825 = vmul.f32 %v284, %v4626
        %v4826 = vmul.f32 %v284, %v4630
        %v4827 = vmul.f32 %v284, %v4634
        %v4828 = vmul.f32 %v284, %v4638
        %v4829 = vmul.f32 %v284, %v4642
        %v4830 = vmul.f32 %v284, %v4646
        %v4831 = vmul.f32 %v284, %v4650
        %v4832 = vmul.f32 %v284, %v4654
        %v4833 = vmul.f32 %v284, %v4658
        %v4834 = vmul.f32 %v284, %v4662
        %v4835 = vmul.f32 %v284, %v4666
        %v4836 = vmul.f32 %v284, %v4670
        %v4837 = vmul.f32 %v284, %v4674
        %v4838 = vmul.f32 %v284, %v4678
        %v4839 = vmul.f32 %v289, %v4618
        %v4840 = vmul.f32 %v289, %v4622
        %v4841 = vmul.f32 %v289, %v4626
        %v4842 = vmul.f32 %v289, %v4630
        %v4843 = vmul.f32 %v289, %v4634
        %v4844 = vmul.f32 %v289, %v4638
        %v4845 = vmul.f32 %v289, %v4642
        %v4846 = vmul.f32 %v289, %v4646
        %v4847 = vmul.f32 %v289, %v4650
        %v4848 = vmul.f32 %v289, %v4654
        %v4849 = vmul.f32 %v289, %v4658
        %v4850 = vmul.f32 %v289, %v4662
        %v4851 = vmul.f32 %v289, %v4666
        %v4852 = vmul.f32 %v289, %v4670
        %v4853 = vmul.f32 %v289, %v4674
        %v4854 = vmul.f32 %v289, %v4678
        %v4855 = vmul.f32 %v294, %v4618
        %v4856 = vmul.f32 %v294, %v4622
        %v4857 = vmul.f32 %v294, %v4626
        %v4858 = vmul.f32 %v294, %v4630
        %v4859 = vmul.f32 %v294, %v4634
        %v4860 = vmul.f32 %v294, %v4638
        %v4861 = vmul.f32 %v294, %v4642
        %v4862 = vmul.f32 %v294, %v4646
        %v4863 = vmul.f32 %v294, %v4650
        %v4864 = vmul.f32 %v294, %v4654
        %v4865 = vmul.f32 %v294, %v4658
        %v4866 = vmul.f32 %v294, %v4662
        %v4867 = vmul.f32 %v294, %v4666
        %v4868 = vmul.f32 %v294, %v4670
        %v4869 = vmul.f32 %v294, %v4674
        %v4870 = vmul.f32 %v294, %v4678
        %v4871 = vmul.f32 %v299, %v4618
        %v4872 = vmul.f32 %v299, %v4622
        %v4873 = vmul.f32 %v299, %v4626
        %v4874 = vmul.f32 %v299, %v4630
        %v4875 = vmul.f32 %v299, %v4634
        %v4876 = vmul.f32 %v299, %v4638
        %v4877 = vmul.f32 %v299, %v4642
        %v4878 = vmul.f32 %v299, %v4646
        %v4879 = vmul.f32 %v299, %v4650
        %v4880 = vmul.f32 %v299, %v4654
        %v4881 = vmul.f32 %v299, %v4658
        %v4882 = vmul.f32 %v299, %v4662
        %v4883 = vmul.f32 %v299, %v4666
        %v4884 = vmul.f32 %v299, %v4670
        %v4885 = vmul.f32 %v299, %v4674
        %v4886 = vmul.f32 %v299, %v4678
        %v4887 = vmul.f32 %v304, %v4618
        %v4888 = vmul.f32 %v304, %v4622
        %v4889 = vmul.f32 %v304, %v4626
        %v4890 = vmul.f32 %v304, %v4630
        %v4891 = vmul.f32 %v304, %v4634
        %v4892 = vmul.f32 %v304, %v4638
        %v4893 = vmul.f32 %v304, %v4642
        %v4894 = vmul.f32 %v304, %v4646
        %v4895 = vmul.f32 %v304, %v4650
        %v4896 = vmul.f32 %v304, %v4654
        %v4897 = vmul.f32 %v304, %v4658
        %v4898 = vmul.f32 %v304, %v4662
        %v4899 = vmul.f32 %v304, %v4666
        %v4900 = vmul.f32 %v304, %v4670
        %v4901 = vmul.f32 %v304, %v4674
        %v4902 = vmul.f32 %v304, %v4678
        %v4903 = vmul.f32 %v309, %v4618
        %v4904 = vmul.f32 %v309, %v4622
        %v4905 = vmul.f32 %v309, %v4626
        %v4906 = vmul.f32 %v309, %v4630
        %v4907 = vmul.f32 %v309, %v4634
        %v4908 = vmul.f32 %v309, %v4638
        %v4909 = vmul.f32 %v309, %v4642
        %v4910 = vmul.f32 %v309, %v4646
        %v4911 = vmul.f32 %v309, %v4650
        %v4912 = vmul.f32 %v309, %v4654
        %v4913 = vmul.f32 %v309, %v4658
        %v4914 = vmul.f32 %v309, %v4662
        %v4915 = vmul.f32 %v309, %v4666
        %v4916 = vmul.f32 %v309, %v4670
        %v4917 = vmul.f32 %v309, %v4674
        %v4918 = vmul.f32 %v309, %v4678
        %v4919 = vmul.f32 %v314, %v4618
        %v4920 = vmul.f32 %v314, %v4622
        %v4921 = vmul.f32 %v314, %v4626
        %v4922 = vmul.f32 %v314, %v4630
        %v4923 = vmul.f32 %v314, %v4634
        %v4924 = vmul.f32 %v314, %v4638
        %v4925 = vmul.f32 %v314, %v4642
        %v4926 = vmul.f32 %v314, %v4646
        %v4927 = vmul.f32 %v314, %v4650
        %v4928 = vmul.f32 %v314, %v4654
        %v4929 = vmul.f32 %v314, %v4658
        %v4930 = vmul.f32 %v314, %v4662
        %v4931 = vmul.f32 %v314, %v4666
        %v4932 = vmul.f32 %v314, %v4670
        %v4933 = vmul.f32 %v314, %v4674
        %v4934 = vmul.f32 %v314, %v4678
        %v4935 = vmul.f32 %v319, %v4618
        %v4936 = vmul.f32 %v319, %v4622
        %v4937 = vmul.f32 %v319, %v4626
        %v4938 = vmul.f32 %v319, %v4630
        %v4939 = vmul.f32 %v319, %v4634
        %v4940 = vmul.f32 %v319, %v4638
        %v4941 = vmul.f32 %v319, %v4642
        %v4942 = vmul.f32 %v319, %v4646
        %v4943 = vmul.f32 %v319, %v4650
        %v4944 = vmul.f32 %v319, %v4654
        %v4945 = vmul.f32 %v319, %v4658
        %v4946 = vmul.f32 %v319, %v4662
        %v4947 = vmul.f32 %v319, %v4666
        %v4948 = vmul.f32 %v319, %v4670
        %v4949 = vmul.f32 %v319, %v4674
        %v4950 = vmul.f32 %v319, %v4678
        %v4953 = vlaneseq
        %v4954 = vshrl.u32 %v4953, 7
        %v4955 = vsub.s32 0, %v4954
        %v4956 = vrot.slane %v4604, %v4955
        %v4957 = vlaneseq
        %v4958 = vshrl.u32 %v4957, 7
        %v4959 = vsub.s32 1, %v4958
        %v4960 = vrot.slane %v4604, %v4959
        %v4961 = vlaneseq
        %v4962 = vshrl.u32 %v4961, 7
        %v4963 = vsub.s32 2, %v4962
        %v4964 = vrot.slane %v4604, %v4963
        %v4965 = vlaneseq
        %v4966 = vshrl.u32 %v4965, 7
        %v4967 = vsub.s32 3, %v4966
        %v4968 = vrot.slane %v4604, %v4967
        %v4969 = vlaneseq
        %v4970 = vshrl.u32 %v4969, 7
        %v4971 = vsub.s32 4, %v4970
        %v4972 = vrot.slane %v4604, %v4971
        %v4973 = vlaneseq
        %v4974 = vshrl.u32 %v4973, 7
        %v4975 = vsub.s32 5, %v4974
        %v4976 = vrot.slane %v4604, %v4975
        %v4977 = vlaneseq
        %v4978 = vshrl.u32 %v4977, 7
        %v4979 = vsub.s32 6, %v4978
        %v4980 = vrot.slane %v4604, %v4979
        %v4981 = vlaneseq
        %v4982 = vshrl.u32 %v4981, 7
        %v4983 = vsub.s32 7, %v4982
        %v4984 = vrot.slane %v4604, %v4983
        %v4985 = vlaneseq
        %v4986 = vshrl.u32 %v4985, 7
        %v4987 = vsub.s32 0, %v4986
        %v4988 = vrot.slane %v4605, %v4987
        %v4989 = vlaneseq
        %v4990 = vshrl.u32 %v4989, 7
        %v4991 = vsub.s32 1, %v4990
        %v4992 = vrot.slane %v4605, %v4991
        %v4993 = vlaneseq
        %v4994 = vshrl.u32 %v4993, 7
        %v4995 = vsub.s32 2, %v4994
        %v4996 = vrot.slane %v4605, %v4995
        %v4997 = vlaneseq
        %v4998 = vshrl.u32 %v4997, 7
        %v4999 = vsub.s32 3, %v4998
        %v5000 = vrot.slane %v4605, %v4999
        %v5001 = vlaneseq
        %v5002 = vshrl.u32 %v5001, 7
        %v5003 = vsub.s32 4, %v5002
        %v5004 = vrot.slane %v4605, %v5003
        %v5005 = vlaneseq
        %v5006 = vshrl.u32 %v5005, 7
        %v5007 = vsub.s32 5, %v5006
        %v5008 = vrot.slane %v4605, %v5007
        %v5009 = vlaneseq
        %v5010 = vshrl.u32 %v5009, 7
        %v5011 = vsub.s32 6, %v5010
        %v5012 = vrot.slane %v4605, %v5011
        %v5013 = vlaneseq
        %v5014 = vshrl.u32 %v5013, 7
        %v5015 = vsub.s32 7, %v5014
        %v5016 = vrot.slane %v4605, %v5015
        %v5033 = vadd.f32 %v4956, %v4695
        %v5034 = vadd.f32 %v4960, %v4696
        %v5035 = vadd.f32 %v4964, %v4697
        %v5036 = vadd.f32 %v4968, %v4698
        %v5037 = vadd.f32 %v4972, %v4699
        %v5038 = vadd.f32 %v4976, %v4700
        %v5039 = vadd.f32 %v4980, %v4701
        %v5040 = vadd.f32 %v4984, %v4702
        %v5041 = vadd.f32 %v4988, %v4703
        %v5042 = vadd.f32 %v4992, %v4704
        %v5043 = vadd.f32 %v4996, %v4705
        %v5044 = vadd.f32 %v5000, %v4706
        %v5045 = vadd.f32 %v5004, %v4707
        %v5046 = vadd.f32 %v5008, %v4708
        %v5047 = vadd.f32 %v5012, %v4709
        %v5048 = vadd.f32 %v5016, %v4710
        %v5049 = vadd.f32 %v4956, %v4711
        %v5050 = vadd.f32 %v4960, %v4712
        %v5051 = vadd.f32 %v4964, %v4713
        %v5052 = vadd.f32 %v4968, %v4714
        %v5053 = vadd.f32 %v4972, %v4715
        %v5054 = vadd.f32 %v4976, %v4716
        %v5055 = vadd.f32 %v4980, %v4717
        %v5056 = vadd.f32 %v4984, %v4718
        %v5057 = vadd.f32 %v4988, %v4719
        %v5058 = vadd.f32 %v4992, %v4720
        %v5059 = vadd.f32 %v4996, %v4721
        %v5060 = vadd.f32 %v5000, %v4722
        %v5061 = vadd.f32 %v5004, %v4723
        %v5062 = vadd.f32 %v5008, %v4724
        %v5063 = vadd.f32 %v5012, %v4725
        %v5064 = vadd.f32 %v5016, %v4726
        %v5065 = vadd.f32 %v4956, %v4727
        %v5066 = vadd.f32 %v4960, %v4728
        %v5067 = vadd.f32 %v4964, %v4729
        %v5068 = vadd.f32 %v4968, %v4730
        %v5069 = vadd.f32 %v4972, %v4731
        %v5070 = vadd.f32 %v4976, %v4732
        %v5071 = vadd.f32 %v4980, %v4733
        %v5072 = vadd.f32 %v4984, %v4734
        %v5073 = vadd.f32 %v4988, %v4735
        %v5074 = vadd.f32 %v4992, %v4736
        %v5075 = vadd.f32 %v4996, %v4737
        %v5076 = vadd.f32 %v5000, %v4738
        %v5077 = vadd.f32 %v5004, %v4739
        %v5078 = vadd.f32 %v5008, %v4740
        %v5079 = vadd.f32 %v5012, %v4741
        %v5080 = vadd.f32 %v5016, %v4742
        %v5081 = vadd.f32 %v4956, %v4743
        %v5082 = vadd.f32 %v4960, %v4744
        %v5083 = vadd.f32 %v4964, %v4745
        %v5084 = vadd.f32 %v4968, %v4746
        %v5085 = vadd.f32 %v4972, %v4747
        %v5086 = vadd.f32 %v4976, %v4748
        %v5087 = vadd.f32 %v4980, %v4749
        %v5088 = vadd.f32 %v4984, %v4750
        %v5089 = vadd.f32 %v4988, %v4751
        %v5090 = vadd.f32 %v4992, %v4752
        %v5091 = vadd.f32 %v4996, %v4753
        %v5092 = vadd.f32 %v5000, %v4754
        %v5093 = vadd.f32 %v5004, %v4755
        %v5094 = vadd.f32 %v5008, %v4756
        %v5095 = vadd.f32 %v5012, %v4757
        %v5096 = vadd.f32 %v5016, %v4758
        %v5097 = vadd.f32 %v4956, %v4759
        %v5098 = vadd.f32 %v4960, %v4760
        %v5099 = vadd.f32 %v4964, %v4761
        %v5100 = vadd.f32 %v4968, %v4762
        %v5101 = vadd.f32 %v4972, %v4763
        %v5102 = vadd.f32 %v4976, %v4764
        %v5103 = vadd.f32 %v4980, %v4765
        %v5104 = vadd.f32 %v4984, %v4766
        %v5105 = vadd.f32 %v4988, %v4767
        %v5106 = vadd.f32 %v4992, %v4768
        %v5107 = vadd.f32 %v4996, %v4769
        %v5108 = vadd.f32 %v5000, %v4770
        %v5109 = vadd.f32 %v5004, %v4771
        %v5110 = vadd.f32 %v5008, %v4772
        %v5111 = vadd.f32 %v5012, %v4773
        %v5112 = vadd.f32 %v5016, %v4774
        %v5113 = vadd.f32 %v4956, %v4775
        %v5114 = vadd.f32 %v4960, %v4776
        %v5115 = vadd.f32 %v4964, %v4777
        %v5116 = vadd.f32 %v4968, %v4778
        %v5117 = vadd.f32 %v4972, %v4779
        %v5118 = vadd.f32 %v4976, %v4780
        %v5119 = vadd.f32 %v4980, %v4781
        %v5120 = vadd.f32 %v4984, %v4782
        %v5121 = vadd.f32 %v4988, %v4783
        %v5122 = vadd.f32 %v4992, %v4784
        %v5123 = vadd.f32 %v4996, %v4785
        %v5124 = vadd.f32 %v5000, %v4786
        %v5125 = vadd.f32 %v5004, %v4787
        %v5126 = vadd.f32 %v5008, %v4788
        %v5127 = vadd.f32 %v5012, %v4789
        %v5128 = vadd.f32 %v5016, %v4790
        %v5129 = vadd.f32 %v4956, %v4791
        %v5130 = vadd.f32 %v4960, %v4792
        %v5131 = vadd.f32 %v4964, %v4793
        %v5132 = vadd.f32 %v4968, %v4794
        %v5133 = vadd.f32 %v4972, %v4795
        %v5134 = vadd.f32 %v4976, %v4796
        %v5135 = vadd.f32 %v4980, %v4797
        %v5136 = vadd.f32 %v4984, %v4798
        %v5137 = vadd.f32 %v4988, %v4799
        %v5138 = vadd.f32 %v4992, %v4800
        %v5139 = vadd.f32 %v4996, %v4801
        %v5140 = vadd.f32 %v5000, %v4802
        %v5141 = vadd.f32 %v5004, %v4803
        %v5142 = vadd.f32 %v5008, %v4804
        %v5143 = vadd.f32 %v5012, %v4805
        %v5144 = vadd.f32 %v5016, %v4806
        %v5145 = vadd.f32 %v4956, %v4807
        %v5146 = vadd.f32 %v4960, %v4808
        %v5147 = vadd.f32 %v4964, %v4809
        %v5148 = vadd.f32 %v4968, %v4810
        %v5149 = vadd.f32 %v4972, %v4811
        %v5150 = vadd.f32 %v4976, %v4812
        %v5151 = vadd.f32 %v4980, %v4813
        %v5152 = vadd.f32 %v4984, %v4814
        %v5153 = vadd.f32 %v4988, %v4815
        %v5154 = vadd.f32 %v4992, %v4816
        %v5155 = vadd.f32 %v4996, %v4817
        %v5156 = vadd.f32 %v5000, %v4818
        %v5157 = vadd.f32 %v5004, %v4819
        %v5158 = vadd.f32 %v5008, %v4820
        %v5159 = vadd.f32 %v5012, %v4821
        %v5160 = vadd.f32 %v5016, %v4822
        %v5161 = vadd.f32 %v4956, %v4823
        %v5162 = vadd.f32 %v4960, %v4824
        %v5163 = vadd.f32 %v4964, %v4825
        %v5164 = vadd.f32 %v4968, %v4826
        %v5165 = vadd.f32 %v4972, %v4827
        %v5166 = vadd.f32 %v4976, %v4828
        %v5167 = vadd.f32 %v4980, %v4829
        %v5168 = vadd.f32 %v4984, %v4830
        %v5169 = vadd.f32 %v4988, %v4831
        %v5170 = vadd.f32 %v4992, %v4832
        %v5171 = vadd.f32 %v4996, %v4833
        %v5172 = vadd.f32 %v5000, %v4834
        %v5173 = vadd.f32 %v5004, %v4835
        %v5174 = vadd.f32 %v5008, %v4836
        %v5175 = vadd.f32 %v5012, %v4837
        %v5176 = vadd.f32 %v5016, %v4838
        %v5177 = vadd.f32 %v4956, %v4839
        %v5178 = vadd.f32 %v4960, %v4840
        %v5179 = vadd.f32 %v4964, %v4841
        %v5180 = vadd.f32 %v4968, %v4842
        %v5181 = vadd.f32 %v4972, %v4843
        %v5182 = vadd.f32 %v4976, %v4844
        %v5183 = vadd.f32 %v4980, %v4845
        %v5184 = vadd.f32 %v4984, %v4846
        %v5185 = vadd.f32 %v4988, %v4847
        %v5186 = vadd.f32 %v4992, %v4848
        %v5187 = vadd.f32 %v4996, %v4849
        %v5188 = vadd.f32 %v5000, %v4850
        %v5189 = vadd.f32 %v5004, %v4851
        %v5190 = vadd.f32 %v5008, %v4852
        %v5191 = vadd.f32 %v5012, %v4853
        %v5192 = vadd.f32 %v5016, %v4854
        %v5193 = vadd.f32 %v4956, %v4855
        %v5194 = vadd.f32 %v4960, %v4856
        %v5195 = vadd.f32 %v4964, %v4857
        %v5196 = vadd.f32 %v4968, %v4858
        %v5197 = vadd.f32 %v4972, %v4859
        %v5198 = vadd.f32 %v4976, %v4860
        %v5199 = vadd.f32 %v4980, %v4861
        %v5200 = vadd.f32 %v4984, %v4862
        %v5201 = vadd.f32 %v4988, %v4863
        %v5202 = vadd.f32 %v4992, %v4864
        %v5203 = vadd.f32 %v4996, %v4865
        %v5204 = vadd.f32 %v5000, %v4866
        %v5205 = vadd.f32 %v5004, %v4867
        %v5206 = vadd.f32 %v5008, %v4868
        %v5207 = vadd.f32 %v5012, %v4869
        %v5208 = vadd.f32 %v5016, %v4870
        %v5209 = vadd.f32 %v4956, %v4871
        %v5210 = vadd.f32 %v4960, %v4872
        %v5211 = vadd.f32 %v4964, %v4873
        %v5212 = vadd.f32 %v4968, %v4874
        %v5213 = vadd.f32 %v4972, %v4875
        %v5214 = vadd.f32 %v4976, %v4876
        %v5215 = vadd.f32 %v4980, %v4877
        %v5216 = vadd.f32 %v4984, %v4878
        %v5217 = vadd.f32 %v4988, %v4879
        %v5218 = vadd.f32 %v4992, %v4880
        %v5219 = vadd.f32 %v4996, %v4881
        %v5220 = vadd.f32 %v5000, %v4882
        %v5221 = vadd.f32 %v5004, %v4883
        %v5222 = vadd.f32 %v5008, %v4884
        %v5223 = vadd.f32 %v5012, %v4885
        %v5224 = vadd.f32 %v5016, %v4886
        %v5225 = vadd.f32 %v4956, %v4887
        %v5226 = vadd.f32 %v4960, %v4888
        %v5227 = vadd.f32 %v4964, %v4889
        %v5228 = vadd.f32 %v4968, %v4890
        %v5229 = vadd.f32 %v4972, %v4891
        %v5230 = vadd.f32 %v4976, %v4892
        %v5231 = vadd.f32 %v4980, %v4893
        %v5232 = vadd.f32 %v4984, %v4894
        %v5233 = vadd.f32 %v4988, %v4895
        %v5234 = vadd.f32 %v4992, %v4896
        %v5235 = vadd.f32 %v4996, %v4897
        %v5236 = vadd.f32 %v5000, %v4898
        %v5237 = vadd.f32 %v5004, %v4899
        %v5238 = vadd.f32 %v5008, %v4900
        %v5239 = vadd.f32 %v5012, %v4901
        %v5240 = vadd.f32 %v5016, %v4902
        %v5241 = vadd.f32 %v4956, %v4903
        %v5242 = vadd.f32 %v4960, %v4904
        %v5243 = vadd.f32 %v4964, %v4905
        %v5244 = vadd.f32 %v4968, %v4906
        %v5245 = vadd.f32 %v4972, %v4907
        %v5246 = vadd.f32 %v4976, %v4908
        %v5247 = vadd.f32 %v4980, %v4909
        %v5248 = vadd.f32 %v4984, %v4910
        %v5249 = vadd.f32 %v4988, %v4911
        %v5250 = vadd.f32 %v4992, %v4912
        %v5251 = vadd.f32 %v4996, %v4913
        %v5252 = vadd.f32 %v5000, %v4914
        %v5253 = vadd.f32 %v5004, %v4915
        %v5254 = vadd.f32 %v5008, %v4916
        %v5255 = vadd.f32 %v5012, %v4917
        %v5256 = vadd.f32 %v5016, %v4918
        %v5257 = vadd.f32 %v4956, %v4919
        %v5258 = vadd.f32 %v4960, %v4920
        %v5259 = vadd.f32 %v4964, %v4921
        %v5260 = vadd.f32 %v4968, %v4922
        %v5261 = vadd.f32 %v4972, %v4923
        %v5262 = vadd.f32 %v4976, %v4924
        %v5263 = vadd.f32 %v4980, %v4925
        %v5264 = vadd.f32 %v4984, %v4926
        %v5265 = vadd.f32 %v4988, %v4927
        %v5266 = vadd.f32 %v4992, %v4928
        %v5267 = vadd.f32 %v4996, %v4929
        %v5268 = vadd.f32 %v5000, %v4930
        %v5269 = vadd.f32 %v5004, %v4931
        %v5270 = vadd.f32 %v5008, %v4932
        %v5271 = vadd.f32 %v5012, %v4933
        %v5272 = vadd.f32 %v5016, %v4934
        %v5273 = vadd.f32 %v4956, %v4935
        %v5274 = vadd.f32 %v4960, %v4936
        %v5275 = vadd.f32 %v4964, %v4937
        %v5276 = vadd.f32 %v4968, %v4938
        %v5277 = vadd.f32 %v4972, %v4939
        %v5278 = vadd.f32 %v4976, %v4940
        %v5279 = vadd.f32 %v4980, %v4941
        %v5280 = vadd.f32 %v4984, %v4942
        %v5281 = vadd.f32 %v4988, %v4943
        %v5282 = vadd.f32 %v4992, %v4944
        %v5283 = vadd.f32 %v4996, %v4945
        %v5284 = vadd.f32 %v5000, %v4946
        %v5285 = vadd.f32 %v5004, %v4947
        %v5286 = vadd.f32 %v5008, %v4948
        %v5287 = vadd.f32 %v5012, %v4949
        %v5288 = vadd.f32 %v5016, %v4950
        %s5289 = scalar_lea.vmem %s3, 1
        %v5290 = vld [vmem:[%s5289] ss:$8 sm:$0xf]
        %v5291 = vld [vmem:[%s5289] ss:$8 sm:$0xf0]
        %v5292 = vor.u32 %v5290, %v5291
        %s5293 = scalar_lea.vmem %s3, 65
        %v5294 = vld [vmem:[%s5293] ss:$8 sm:$0xf]
        %v5295 = vld [vmem:[%s5293] ss:$8 sm:$0xf0]
        %v5296 = vor.u32 %v5294, %v5295
        %v5299 = vlaneseq
        %v5300 = vshrl.u32 %v5299, 7
        %v5301 = vsub.s32 0, %v5300
        %v5302 = vrot.slane %v5292, %v5301
        %v5303 = vlaneseq
        %v5304 = vshrl.u32 %v5303, 7
        %v5305 = vsub.s32 1, %v5304
        %v5306 = vrot.slane %v5292, %v5305
        %v5307 = vlaneseq
        %v5308 = vshrl.u32 %v5307, 7
        %v5309 = vsub.s32 2, %v5308
        %v5310 = vrot.slane %v5292, %v5309
        %v5311 = vlaneseq
        %v5312 = vshrl.u32 %v5311, 7
        %v5313 = vsub.s32 3, %v5312
        %v5314 = vrot.slane %v5292, %v5313
        %v5315 = vlaneseq
        %v5316 = vshrl.u32 %v5315, 7
        %v5317 = vsub.s32 4, %v5316
        %v5318 = vrot.slane %v5292, %v5317
        %v5319 = vlaneseq
        %v5320 = vshrl.u32 %v5319, 7
        %v5321 = vsub.s32 5, %v5320
        %v5322 = vrot.slane %v5292, %v5321
        %v5323 = vlaneseq
        %v5324 = vshrl.u32 %v5323, 7
        %v5325 = vsub.s32 6, %v5324
        %v5326 = vrot.slane %v5292, %v5325
        %v5327 = vlaneseq
        %v5328 = vshrl.u32 %v5327, 7
        %v5329 = vsub.s32 7, %v5328
        %v5330 = vrot.slane %v5292, %v5329
        %v5331 = vlaneseq
        %v5332 = vshrl.u32 %v5331, 7
        %v5333 = vsub.s32 0, %v5332
        %v5334 = vrot.slane %v5296, %v5333
        %v5335 = vlaneseq
        %v5336 = vshrl.u32 %v5335, 7
        %v5337 = vsub.s32 1, %v5336
        %v5338 = vrot.slane %v5296, %v5337
        %v5339 = vlaneseq
        %v5340 = vshrl.u32 %v5339, 7
        %v5341 = vsub.s32 2, %v5340
        %v5342 = vrot.slane %v5296, %v5341
        %v5343 = vlaneseq
        %v5344 = vshrl.u32 %v5343, 7
        %v5345 = vsub.s32 3, %v5344
        %v5346 = vrot.slane %v5296, %v5345
        %v5347 = vlaneseq
        %v5348 = vshrl.u32 %v5347, 7
        %v5349 = vsub.s32 4, %v5348
        %v5350 = vrot.slane %v5296, %v5349
        %v5351 = vlaneseq
        %v5352 = vshrl.u32 %v5351, 7
        %v5353 = vsub.s32 5, %v5352
        %v5354 = vrot.slane %v5296, %v5353
        %v5355 = vlaneseq
        %v5356 = vshrl.u32 %v5355, 7
        %v5357 = vsub.s32 6, %v5356
        %v5358 = vrot.slane %v5296, %v5357
        %v5359 = vlaneseq
        %v5360 = vshrl.u32 %v5359, 7
        %v5361 = vsub.s32 7, %v5360
        %v5362 = vrot.slane %v5296, %v5361
        %v5379 = vmul.f32 %v359, %v5302
        %v5380 = vmul.f32 %v359, %v5306
        %v5381 = vmul.f32 %v359, %v5310
        %v5382 = vmul.f32 %v359, %v5314
        %v5383 = vmul.f32 %v359, %v5318
        %v5384 = vmul.f32 %v359, %v5322
        %v5385 = vmul.f32 %v359, %v5326
        %v5386 = vmul.f32 %v359, %v5330
        %v5387 = vmul.f32 %v359, %v5334
        %v5388 = vmul.f32 %v359, %v5338
        %v5389 = vmul.f32 %v359, %v5342
        %v5390 = vmul.f32 %v359, %v5346
        %v5391 = vmul.f32 %v359, %v5350
        %v5392 = vmul.f32 %v359, %v5354
        %v5393 = vmul.f32 %v359, %v5358
        %v5394 = vmul.f32 %v359, %v5362
        %v5395 = vmul.f32 %v363, %v5302
        %v5396 = vmul.f32 %v363, %v5306
        %v5397 = vmul.f32 %v363, %v5310
        %v5398 = vmul.f32 %v363, %v5314
        %v5399 = vmul.f32 %v363, %v5318
        %v5400 = vmul.f32 %v363, %v5322
        %v5401 = vmul.f32 %v363, %v5326
        %v5402 = vmul.f32 %v363, %v5330
        %v5403 = vmul.f32 %v363, %v5334
        %v5404 = vmul.f32 %v363, %v5338
        %v5405 = vmul.f32 %v363, %v5342
        %v5406 = vmul.f32 %v363, %v5346
        %v5407 = vmul.f32 %v363, %v5350
        %v5408 = vmul.f32 %v363, %v5354
        %v5409 = vmul.f32 %v363, %v5358
        %v5410 = vmul.f32 %v363, %v5362
        %v5411 = vmul.f32 %v367, %v5302
        %v5412 = vmul.f32 %v367, %v5306
        %v5413 = vmul.f32 %v367, %v5310
        %v5414 = vmul.f32 %v367, %v5314
        %v5415 = vmul.f32 %v367, %v5318
        %v5416 = vmul.f32 %v367, %v5322
        %v5417 = vmul.f32 %v367, %v5326
        %v5418 = vmul.f32 %v367, %v5330
        %v5419 = vmul.f32 %v367, %v5334
        %v5420 = vmul.f32 %v367, %v5338
        %v5421 = vmul.f32 %v367, %v5342
        %v5422 = vmul.f32 %v367, %v5346
        %v5423 = vmul.f32 %v367, %v5350
        %v5424 = vmul.f32 %v367, %v5354
        %v5425 = vmul.f32 %v367, %v5358
        %v5426 = vmul.f32 %v367, %v5362
        %v5427 = vmul.f32 %v371, %v5302
        %v5428 = vmul.f32 %v371, %v5306
        %v5429 = vmul.f32 %v371, %v5310
        %v5430 = vmul.f32 %v371, %v5314
        %v5431 = vmul.f32 %v371, %v5318
        %v5432 = vmul.f32 %v371, %v5322
        %v5433 = vmul.f32 %v371, %v5326
        %v5434 = vmul.f32 %v371, %v5330
        %v5435 = vmul.f32 %v371, %v5334
        %v5436 = vmul.f32 %v371, %v5338
        %v5437 = vmul.f32 %v371, %v5342
        %v5438 = vmul.f32 %v371, %v5346
        %v5439 = vmul.f32 %v371, %v5350
        %v5440 = vmul.f32 %v371, %v5354
        %v5441 = vmul.f32 %v371, %v5358
        %v5442 = vmul.f32 %v371, %v5362
        %v5443 = vmul.f32 %v375, %v5302
        %v5444 = vmul.f32 %v375, %v5306
        %v5445 = vmul.f32 %v375, %v5310
        %v5446 = vmul.f32 %v375, %v5314
        %v5447 = vmul.f32 %v375, %v5318
        %v5448 = vmul.f32 %v375, %v5322
        %v5449 = vmul.f32 %v375, %v5326
        %v5450 = vmul.f32 %v375, %v5330
        %v5451 = vmul.f32 %v375, %v5334
        %v5452 = vmul.f32 %v375, %v5338
        %v5453 = vmul.f32 %v375, %v5342
        %v5454 = vmul.f32 %v375, %v5346
        %v5455 = vmul.f32 %v375, %v5350
        %v5456 = vmul.f32 %v375, %v5354
        %v5457 = vmul.f32 %v375, %v5358
        %v5458 = vmul.f32 %v375, %v5362
        %v5459 = vmul.f32 %v379, %v5302
        %v5460 = vmul.f32 %v379, %v5306
        %v5461 = vmul.f32 %v379, %v5310
        %v5462 = vmul.f32 %v379, %v5314
        %v5463 = vmul.f32 %v379, %v5318
        %v5464 = vmul.f32 %v379, %v5322
        %v5465 = vmul.f32 %v379, %v5326
        %v5466 = vmul.f32 %v379, %v5330
        %v5467 = vmul.f32 %v379, %v5334
        %v5468 = vmul.f32 %v379, %v5338
        %v5469 = vmul.f32 %v379, %v5342
        %v5470 = vmul.f32 %v379, %v5346
        %v5471 = vmul.f32 %v379, %v5350
        %v5472 = vmul.f32 %v379, %v5354
        %v5473 = vmul.f32 %v379, %v5358
        %v5474 = vmul.f32 %v379, %v5362
        %v5475 = vmul.f32 %v383, %v5302
        %v5476 = vmul.f32 %v383, %v5306
        %v5477 = vmul.f32 %v383, %v5310
        %v5478 = vmul.f32 %v383, %v5314
        %v5479 = vmul.f32 %v383, %v5318
        %v5480 = vmul.f32 %v383, %v5322
        %v5481 = vmul.f32 %v383, %v5326
        %v5482 = vmul.f32 %v383, %v5330
        %v5483 = vmul.f32 %v383, %v5334
        %v5484 = vmul.f32 %v383, %v5338
        %v5485 = vmul.f32 %v383, %v5342
        %v5486 = vmul.f32 %v383, %v5346
        %v5487 = vmul.f32 %v383, %v5350
        %v5488 = vmul.f32 %v383, %v5354
        %v5489 = vmul.f32 %v383, %v5358
        %v5490 = vmul.f32 %v383, %v5362
        %v5491 = vmul.f32 %v387, %v5302
        %v5492 = vmul.f32 %v387, %v5306
        %v5493 = vmul.f32 %v387, %v5310
        %v5494 = vmul.f32 %v387, %v5314
        %v5495 = vmul.f32 %v387, %v5318
        %v5496 = vmul.f32 %v387, %v5322
        %v5497 = vmul.f32 %v387, %v5326
        %v5498 = vmul.f32 %v387, %v5330
        %v5499 = vmul.f32 %v387, %v5334
        %v5500 = vmul.f32 %v387, %v5338
        %v5501 = vmul.f32 %v387, %v5342
        %v5502 = vmul.f32 %v387, %v5346
        %v5503 = vmul.f32 %v387, %v5350
        %v5504 = vmul.f32 %v387, %v5354
        %v5505 = vmul.f32 %v387, %v5358
        %v5506 = vmul.f32 %v387, %v5362
        %v5507 = vmul.f32 %v391, %v5302
        %v5508 = vmul.f32 %v391, %v5306
        %v5509 = vmul.f32 %v391, %v5310
        %v5510 = vmul.f32 %v391, %v5314
        %v5511 = vmul.f32 %v391, %v5318
        %v5512 = vmul.f32 %v391, %v5322
        %v5513 = vmul.f32 %v391, %v5326
        %v5514 = vmul.f32 %v391, %v5330
        %v5515 = vmul.f32 %v391, %v5334
        %v5516 = vmul.f32 %v391, %v5338
        %v5517 = vmul.f32 %v391, %v5342
        %v5518 = vmul.f32 %v391, %v5346
        %v5519 = vmul.f32 %v391, %v5350
        %v5520 = vmul.f32 %v391, %v5354
        %v5521 = vmul.f32 %v391, %v5358
        %v5522 = vmul.f32 %v391, %v5362
        %v5523 = vmul.f32 %v395, %v5302
        %v5524 = vmul.f32 %v395, %v5306
        %v5525 = vmul.f32 %v395, %v5310
        %v5526 = vmul.f32 %v395, %v5314
        %v5527 = vmul.f32 %v395, %v5318
        %v5528 = vmul.f32 %v395, %v5322
        %v5529 = vmul.f32 %v395, %v5326
        %v5530 = vmul.f32 %v395, %v5330
        %v5531 = vmul.f32 %v395, %v5334
        %v5532 = vmul.f32 %v395, %v5338
        %v5533 = vmul.f32 %v395, %v5342
        %v5534 = vmul.f32 %v395, %v5346
        %v5535 = vmul.f32 %v395, %v5350
        %v5536 = vmul.f32 %v395, %v5354
        %v5537 = vmul.f32 %v395, %v5358
        %v5538 = vmul.f32 %v395, %v5362
        %v5539 = vmul.f32 %v399, %v5302
        %v5540 = vmul.f32 %v399, %v5306
        %v5541 = vmul.f32 %v399, %v5310
        %v5542 = vmul.f32 %v399, %v5314
        %v5543 = vmul.f32 %v399, %v5318
        %v5544 = vmul.f32 %v399, %v5322
        %v5545 = vmul.f32 %v399, %v5326
        %v5546 = vmul.f32 %v399, %v5330
        %v5547 = vmul.f32 %v399, %v5334
        %v5548 = vmul.f32 %v399, %v5338
        %v5549 = vmul.f32 %v399, %v5342
        %v5550 = vmul.f32 %v399, %v5346
        %v5551 = vmul.f32 %v399, %v5350
        %v5552 = vmul.f32 %v399, %v5354
        %v5553 = vmul.f32 %v399, %v5358
        %v5554 = vmul.f32 %v399, %v5362
        %v5555 = vmul.f32 %v403, %v5302
        %v5556 = vmul.f32 %v403, %v5306
        %v5557 = vmul.f32 %v403, %v5310
        %v5558 = vmul.f32 %v403, %v5314
        %v5559 = vmul.f32 %v403, %v5318
        %v5560 = vmul.f32 %v403, %v5322
        %v5561 = vmul.f32 %v403, %v5326
        %v5562 = vmul.f32 %v403, %v5330
        %v5563 = vmul.f32 %v403, %v5334
        %v5564 = vmul.f32 %v403, %v5338
        %v5565 = vmul.f32 %v403, %v5342
        %v5566 = vmul.f32 %v403, %v5346
        %v5567 = vmul.f32 %v403, %v5350
        %v5568 = vmul.f32 %v403, %v5354
        %v5569 = vmul.f32 %v403, %v5358
        %v5570 = vmul.f32 %v403, %v5362
        %v5571 = vmul.f32 %v407, %v5302
        %v5572 = vmul.f32 %v407, %v5306
        %v5573 = vmul.f32 %v407, %v5310
        %v5574 = vmul.f32 %v407, %v5314
        %v5575 = vmul.f32 %v407, %v5318
        %v5576 = vmul.f32 %v407, %v5322
        %v5577 = vmul.f32 %v407, %v5326
        %v5578 = vmul.f32 %v407, %v5330
        %v5579 = vmul.f32 %v407, %v5334
        %v5580 = vmul.f32 %v407, %v5338
        %v5581 = vmul.f32 %v407, %v5342
        %v5582 = vmul.f32 %v407, %v5346
        %v5583 = vmul.f32 %v407, %v5350
        %v5584 = vmul.f32 %v407, %v5354
        %v5585 = vmul.f32 %v407, %v5358
        %v5586 = vmul.f32 %v407, %v5362
        %v5587 = vmul.f32 %v411, %v5302
        %v5588 = vmul.f32 %v411, %v5306
        %v5589 = vmul.f32 %v411, %v5310
        %v5590 = vmul.f32 %v411, %v5314
        %v5591 = vmul.f32 %v411, %v5318
        %v5592 = vmul.f32 %v411, %v5322
        %v5593 = vmul.f32 %v411, %v5326
        %v5594 = vmul.f32 %v411, %v5330
        %v5595 = vmul.f32 %v411, %v5334
        %v5596 = vmul.f32 %v411, %v5338
        %v5597 = vmul.f32 %v411, %v5342
        %v5598 = vmul.f32 %v411, %v5346
        %v5599 = vmul.f32 %v411, %v5350
        %v5600 = vmul.f32 %v411, %v5354
        %v5601 = vmul.f32 %v411, %v5358
        %v5602 = vmul.f32 %v411, %v5362
        %v5603 = vmul.f32 %v415, %v5302
        %v5604 = vmul.f32 %v415, %v5306
        %v5605 = vmul.f32 %v415, %v5310
        %v5606 = vmul.f32 %v415, %v5314
        %v5607 = vmul.f32 %v415, %v5318
        %v5608 = vmul.f32 %v415, %v5322
        %v5609 = vmul.f32 %v415, %v5326
        %v5610 = vmul.f32 %v415, %v5330
        %v5611 = vmul.f32 %v415, %v5334
        %v5612 = vmul.f32 %v415, %v5338
        %v5613 = vmul.f32 %v415, %v5342
        %v5614 = vmul.f32 %v415, %v5346
        %v5615 = vmul.f32 %v415, %v5350
        %v5616 = vmul.f32 %v415, %v5354
        %v5617 = vmul.f32 %v415, %v5358
        %v5618 = vmul.f32 %v415, %v5362
        %v5619 = vmul.f32 %v419, %v5302
        %v5620 = vmul.f32 %v419, %v5306
        %v5621 = vmul.f32 %v419, %v5310
        %v5622 = vmul.f32 %v419, %v5314
        %v5623 = vmul.f32 %v419, %v5318
        %v5624 = vmul.f32 %v419, %v5322
        %v5625 = vmul.f32 %v419, %v5326
        %v5626 = vmul.f32 %v419, %v5330
        %v5627 = vmul.f32 %v419, %v5334
        %v5628 = vmul.f32 %v419, %v5338
        %v5629 = vmul.f32 %v419, %v5342
        %v5630 = vmul.f32 %v419, %v5346
        %v5631 = vmul.f32 %v419, %v5350
        %v5632 = vmul.f32 %v419, %v5354
        %v5633 = vmul.f32 %v419, %v5358
        %v5634 = vmul.f32 %v419, %v5362
        %v5635 = vadd.f32 %v5033, %v5379
        %v5636 = vadd.f32 %v5034, %v5380
        %v5637 = vadd.f32 %v5035, %v5381
        %v5638 = vadd.f32 %v5036, %v5382
        %v5639 = vadd.f32 %v5037, %v5383
        %v5640 = vadd.f32 %v5038, %v5384
        %v5641 = vadd.f32 %v5039, %v5385
        %v5642 = vadd.f32 %v5040, %v5386
        %v5643 = vadd.f32 %v5041, %v5387
        %v5644 = vadd.f32 %v5042, %v5388
        %v5645 = vadd.f32 %v5043, %v5389
        %v5646 = vadd.f32 %v5044, %v5390
        %v5647 = vadd.f32 %v5045, %v5391
        %v5648 = vadd.f32 %v5046, %v5392
        %v5649 = vadd.f32 %v5047, %v5393
        %v5650 = vadd.f32 %v5048, %v5394
        %v5651 = vadd.f32 %v5049, %v5395
        %v5652 = vadd.f32 %v5050, %v5396
        %v5653 = vadd.f32 %v5051, %v5397
        %v5654 = vadd.f32 %v5052, %v5398
        %v5655 = vadd.f32 %v5053, %v5399
        %v5656 = vadd.f32 %v5054, %v5400
        %v5657 = vadd.f32 %v5055, %v5401
        %v5658 = vadd.f32 %v5056, %v5402
        %v5659 = vadd.f32 %v5057, %v5403
        %v5660 = vadd.f32 %v5058, %v5404
        %v5661 = vadd.f32 %v5059, %v5405
        %v5662 = vadd.f32 %v5060, %v5406
        %v5663 = vadd.f32 %v5061, %v5407
        %v5664 = vadd.f32 %v5062, %v5408
        %v5665 = vadd.f32 %v5063, %v5409
        %v5666 = vadd.f32 %v5064, %v5410
        %v5667 = vadd.f32 %v5065, %v5411
        %v5668 = vadd.f32 %v5066, %v5412
        %v5669 = vadd.f32 %v5067, %v5413
        %v5670 = vadd.f32 %v5068, %v5414
        %v5671 = vadd.f32 %v5069, %v5415
        %v5672 = vadd.f32 %v5070, %v5416
        %v5673 = vadd.f32 %v5071, %v5417
        %v5674 = vadd.f32 %v5072, %v5418
        %v5675 = vadd.f32 %v5073, %v5419
        %v5676 = vadd.f32 %v5074, %v5420
        %v5677 = vadd.f32 %v5075, %v5421
        %v5678 = vadd.f32 %v5076, %v5422
        %v5679 = vadd.f32 %v5077, %v5423
        %v5680 = vadd.f32 %v5078, %v5424
        %v5681 = vadd.f32 %v5079, %v5425
        %v5682 = vadd.f32 %v5080, %v5426
        %v5683 = vadd.f32 %v5081, %v5427
        %v5684 = vadd.f32 %v5082, %v5428
        %v5685 = vadd.f32 %v5083, %v5429
        %v5686 = vadd.f32 %v5084, %v5430
        %v5687 = vadd.f32 %v5085, %v5431
        %v5688 = vadd.f32 %v5086, %v5432
        %v5689 = vadd.f32 %v5087, %v5433
        %v5690 = vadd.f32 %v5088, %v5434
        %v5691 = vadd.f32 %v5089, %v5435
        %v5692 = vadd.f32 %v5090, %v5436
        %v5693 = vadd.f32 %v5091, %v5437
        %v5694 = vadd.f32 %v5092, %v5438
        %v5695 = vadd.f32 %v5093, %v5439
        %v5696 = vadd.f32 %v5094, %v5440
        %v5697 = vadd.f32 %v5095, %v5441
        %v5698 = vadd.f32 %v5096, %v5442
        %v5699 = vadd.f32 %v5097, %v5443
        %v5700 = vadd.f32 %v5098, %v5444
        %v5701 = vadd.f32 %v5099, %v5445
        %v5702 = vadd.f32 %v5100, %v5446
        %v5703 = vadd.f32 %v5101, %v5447
        %v5704 = vadd.f32 %v5102, %v5448
        %v5705 = vadd.f32 %v5103, %v5449
        %v5706 = vadd.f32 %v5104, %v5450
        %v5707 = vadd.f32 %v5105, %v5451
        %v5708 = vadd.f32 %v5106, %v5452
        %v5709 = vadd.f32 %v5107, %v5453
        %v5710 = vadd.f32 %v5108, %v5454
        %v5711 = vadd.f32 %v5109, %v5455
        %v5712 = vadd.f32 %v5110, %v5456
        %v5713 = vadd.f32 %v5111, %v5457
        %v5714 = vadd.f32 %v5112, %v5458
        %v5715 = vadd.f32 %v5113, %v5459
        %v5716 = vadd.f32 %v5114, %v5460
        %v5717 = vadd.f32 %v5115, %v5461
        %v5718 = vadd.f32 %v5116, %v5462
        %v5719 = vadd.f32 %v5117, %v5463
        %v5720 = vadd.f32 %v5118, %v5464
        %v5721 = vadd.f32 %v5119, %v5465
        %v5722 = vadd.f32 %v5120, %v5466
        %v5723 = vadd.f32 %v5121, %v5467
        %v5724 = vadd.f32 %v5122, %v5468
        %v5725 = vadd.f32 %v5123, %v5469
        %v5726 = vadd.f32 %v5124, %v5470
        %v5727 = vadd.f32 %v5125, %v5471
        %v5728 = vadd.f32 %v5126, %v5472
        %v5729 = vadd.f32 %v5127, %v5473
        %v5730 = vadd.f32 %v5128, %v5474
        %v5731 = vadd.f32 %v5129, %v5475
        %v5732 = vadd.f32 %v5130, %v5476
        %v5733 = vadd.f32 %v5131, %v5477
        %v5734 = vadd.f32 %v5132, %v5478
        %v5735 = vadd.f32 %v5133, %v5479
        %v5736 = vadd.f32 %v5134, %v5480
        %v5737 = vadd.f32 %v5135, %v5481
        %v5738 = vadd.f32 %v5136, %v5482
        %v5739 = vadd.f32 %v5137, %v5483
        %v5740 = vadd.f32 %v5138, %v5484
        %v5741 = vadd.f32 %v5139, %v5485
        %v5742 = vadd.f32 %v5140, %v5486
        %v5743 = vadd.f32 %v5141, %v5487
        %v5744 = vadd.f32 %v5142, %v5488
        %v5745 = vadd.f32 %v5143, %v5489
        %v5746 = vadd.f32 %v5144, %v5490
        %v5747 = vadd.f32 %v5145, %v5491
        %v5748 = vadd.f32 %v5146, %v5492
        %v5749 = vadd.f32 %v5147, %v5493
        %v5750 = vadd.f32 %v5148, %v5494
        %v5751 = vadd.f32 %v5149, %v5495
        %v5752 = vadd.f32 %v5150, %v5496
        %v5753 = vadd.f32 %v5151, %v5497
        %v5754 = vadd.f32 %v5152, %v5498
        %v5755 = vadd.f32 %v5153, %v5499
        %v5756 = vadd.f32 %v5154, %v5500
        %v5757 = vadd.f32 %v5155, %v5501
        %v5758 = vadd.f32 %v5156, %v5502
        %v5759 = vadd.f32 %v5157, %v5503
        %v5760 = vadd.f32 %v5158, %v5504
        %v5761 = vadd.f32 %v5159, %v5505
        %v5762 = vadd.f32 %v5160, %v5506
        %v5763 = vadd.f32 %v5161, %v5507
        %v5764 = vadd.f32 %v5162, %v5508
        %v5765 = vadd.f32 %v5163, %v5509
        %v5766 = vadd.f32 %v5164, %v5510
        %v5767 = vadd.f32 %v5165, %v5511
        %v5768 = vadd.f32 %v5166, %v5512
        %v5769 = vadd.f32 %v5167, %v5513
        %v5770 = vadd.f32 %v5168, %v5514
        %v5771 = vadd.f32 %v5169, %v5515
        %v5772 = vadd.f32 %v5170, %v5516
        %v5773 = vadd.f32 %v5171, %v5517
        %v5774 = vadd.f32 %v5172, %v5518
        %v5775 = vadd.f32 %v5173, %v5519
        %v5776 = vadd.f32 %v5174, %v5520
        %v5777 = vadd.f32 %v5175, %v5521
        %v5778 = vadd.f32 %v5176, %v5522
        %v5779 = vadd.f32 %v5177, %v5523
        %v5780 = vadd.f32 %v5178, %v5524
        %v5781 = vadd.f32 %v5179, %v5525
        %v5782 = vadd.f32 %v5180, %v5526
        %v5783 = vadd.f32 %v5181, %v5527
        %v5784 = vadd.f32 %v5182, %v5528
        %v5785 = vadd.f32 %v5183, %v5529
        %v5786 = vadd.f32 %v5184, %v5530
        %v5787 = vadd.f32 %v5185, %v5531
        %v5788 = vadd.f32 %v5186, %v5532
        %v5789 = vadd.f32 %v5187, %v5533
        %v5790 = vadd.f32 %v5188, %v5534
        %v5791 = vadd.f32 %v5189, %v5535
        %v5792 = vadd.f32 %v5190, %v5536
        %v5793 = vadd.f32 %v5191, %v5537
        %v5794 = vadd.f32 %v5192, %v5538
        %v5795 = vadd.f32 %v5193, %v5539
        %v5796 = vadd.f32 %v5194, %v5540
        %v5797 = vadd.f32 %v5195, %v5541
        %v5798 = vadd.f32 %v5196, %v5542
        %v5799 = vadd.f32 %v5197, %v5543
        %v5800 = vadd.f32 %v5198, %v5544
        %v5801 = vadd.f32 %v5199, %v5545
        %v5802 = vadd.f32 %v5200, %v5546
        %v5803 = vadd.f32 %v5201, %v5547
        %v5804 = vadd.f32 %v5202, %v5548
        %v5805 = vadd.f32 %v5203, %v5549
        %v5806 = vadd.f32 %v5204, %v5550
        %v5807 = vadd.f32 %v5205, %v5551
        %v5808 = vadd.f32 %v5206, %v5552
        %v5809 = vadd.f32 %v5207, %v5553
        %v5810 = vadd.f32 %v5208, %v5554
        %v5811 = vadd.f32 %v5209, %v5555
        %v5812 = vadd.f32 %v5210, %v5556
        %v5813 = vadd.f32 %v5211, %v5557
        %v5814 = vadd.f32 %v5212, %v5558
        %v5815 = vadd.f32 %v5213, %v5559
        %v5816 = vadd.f32 %v5214, %v5560
        %v5817 = vadd.f32 %v5215, %v5561
        %v5818 = vadd.f32 %v5216, %v5562
        %v5819 = vadd.f32 %v5217, %v5563
        %v5820 = vadd.f32 %v5218, %v5564
        %v5821 = vadd.f32 %v5219, %v5565
        %v5822 = vadd.f32 %v5220, %v5566
        %v5823 = vadd.f32 %v5221, %v5567
        %v5824 = vadd.f32 %v5222, %v5568
        %v5825 = vadd.f32 %v5223, %v5569
        %v5826 = vadd.f32 %v5224, %v5570
        %v5827 = vadd.f32 %v5225, %v5571
        %v5828 = vadd.f32 %v5226, %v5572
        %v5829 = vadd.f32 %v5227, %v5573
        %v5830 = vadd.f32 %v5228, %v5574
        %v5831 = vadd.f32 %v5229, %v5575
        %v5832 = vadd.f32 %v5230, %v5576
        %v5833 = vadd.f32 %v5231, %v5577
        %v5834 = vadd.f32 %v5232, %v5578
        %v5835 = vadd.f32 %v5233, %v5579
        %v5836 = vadd.f32 %v5234, %v5580
        %v5837 = vadd.f32 %v5235, %v5581
        %v5838 = vadd.f32 %v5236, %v5582
        %v5839 = vadd.f32 %v5237, %v5583
        %v5840 = vadd.f32 %v5238, %v5584
        %v5841 = vadd.f32 %v5239, %v5585
        %v5842 = vadd.f32 %v5240, %v5586
        %v5843 = vadd.f32 %v5241, %v5587
        %v5844 = vadd.f32 %v5242, %v5588
        %v5845 = vadd.f32 %v5243, %v5589
        %v5846 = vadd.f32 %v5244, %v5590
        %v5847 = vadd.f32 %v5245, %v5591
        %v5848 = vadd.f32 %v5246, %v5592
        %v5849 = vadd.f32 %v5247, %v5593
        %v5850 = vadd.f32 %v5248, %v5594
        %v5851 = vadd.f32 %v5249, %v5595
        %v5852 = vadd.f32 %v5250, %v5596
        %v5853 = vadd.f32 %v5251, %v5597
        %v5854 = vadd.f32 %v5252, %v5598
        %v5855 = vadd.f32 %v5253, %v5599
        %v5856 = vadd.f32 %v5254, %v5600
        %v5857 = vadd.f32 %v5255, %v5601
        %v5858 = vadd.f32 %v5256, %v5602
        %v5859 = vadd.f32 %v5257, %v5603
        %v5860 = vadd.f32 %v5258, %v5604
        %v5861 = vadd.f32 %v5259, %v5605
        %v5862 = vadd.f32 %v5260, %v5606
        %v5863 = vadd.f32 %v5261, %v5607
        %v5864 = vadd.f32 %v5262, %v5608
        %v5865 = vadd.f32 %v5263, %v5609
        %v5866 = vadd.f32 %v5264, %v5610
        %v5867 = vadd.f32 %v5265, %v5611
        %v5868 = vadd.f32 %v5266, %v5612
        %v5869 = vadd.f32 %v5267, %v5613
        %v5870 = vadd.f32 %v5268, %v5614
        %v5871 = vadd.f32 %v5269, %v5615
        %v5872 = vadd.f32 %v5270, %v5616
        %v5873 = vadd.f32 %v5271, %v5617
        %v5874 = vadd.f32 %v5272, %v5618
        %v5875 = vadd.f32 %v5273, %v5619
        %v5876 = vadd.f32 %v5274, %v5620
        %v5877 = vadd.f32 %v5275, %v5621
        %v5878 = vadd.f32 %v5276, %v5622
        %v5879 = vadd.f32 %v5277, %v5623
        %v5880 = vadd.f32 %v5278, %v5624
        %v5881 = vadd.f32 %v5279, %v5625
        %v5882 = vadd.f32 %v5280, %v5626
        %v5883 = vadd.f32 %v5281, %v5627
        %v5884 = vadd.f32 %v5282, %v5628
        %v5885 = vadd.f32 %v5283, %v5629
        %v5886 = vadd.f32 %v5284, %v5630
        %v5887 = vadd.f32 %v5285, %v5631
        %v5888 = vadd.f32 %v5286, %v5632
        %v5889 = vadd.f32 %v5287, %v5633
        %v5890 = vadd.f32 %v5288, %v5634
        %v5891 = vmul.f32 %v5635, %v5635
        %v5892 = vmul.f32 %v5636, %v5636
        %v5893 = vmul.f32 %v5637, %v5637
        %v5894 = vmul.f32 %v5638, %v5638
        %v5895 = vmul.f32 %v5639, %v5639
        %v5896 = vmul.f32 %v5640, %v5640
        %v5897 = vmul.f32 %v5641, %v5641
        %v5898 = vmul.f32 %v5642, %v5642
        %v5899 = vmul.f32 %v5643, %v5643
        %v5900 = vmul.f32 %v5644, %v5644
        %v5901 = vmul.f32 %v5645, %v5645
        %v5902 = vmul.f32 %v5646, %v5646
        %v5903 = vmul.f32 %v5647, %v5647
        %v5904 = vmul.f32 %v5648, %v5648
        %v5905 = vmul.f32 %v5649, %v5649
        %v5906 = vmul.f32 %v5650, %v5650
        %v5907 = vmul.f32 %v5651, %v5651
        %v5908 = vmul.f32 %v5652, %v5652
        %v5909 = vmul.f32 %v5653, %v5653
        %v5910 = vmul.f32 %v5654, %v5654
        %v5911 = vmul.f32 %v5655, %v5655
        %v5912 = vmul.f32 %v5656, %v5656
        %v5913 = vmul.f32 %v5657, %v5657
        %v5914 = vmul.f32 %v5658, %v5658
        %v5915 = vmul.f32 %v5659, %v5659
        %v5916 = vmul.f32 %v5660, %v5660
        %v5917 = vmul.f32 %v5661, %v5661
        %v5918 = vmul.f32 %v5662, %v5662
        %v5919 = vmul.f32 %v5663, %v5663
        %v5920 = vmul.f32 %v5664, %v5664
        %v5921 = vmul.f32 %v5665, %v5665
        %v5922 = vmul.f32 %v5666, %v5666
        %v5923 = vmul.f32 %v5667, %v5667
        %v5924 = vmul.f32 %v5668, %v5668
        %v5925 = vmul.f32 %v5669, %v5669
        %v5926 = vmul.f32 %v5670, %v5670
        %v5927 = vmul.f32 %v5671, %v5671
        %v5928 = vmul.f32 %v5672, %v5672
        %v5929 = vmul.f32 %v5673, %v5673
        %v5930 = vmul.f32 %v5674, %v5674
        %v5931 = vmul.f32 %v5675, %v5675
        %v5932 = vmul.f32 %v5676, %v5676
        %v5933 = vmul.f32 %v5677, %v5677
        %v5934 = vmul.f32 %v5678, %v5678
        %v5935 = vmul.f32 %v5679, %v5679
        %v5936 = vmul.f32 %v5680, %v5680
        %v5937 = vmul.f32 %v5681, %v5681
        %v5938 = vmul.f32 %v5682, %v5682
        %v5939 = vmul.f32 %v5683, %v5683
        %v5940 = vmul.f32 %v5684, %v5684
        %v5941 = vmul.f32 %v5685, %v5685
        %v5942 = vmul.f32 %v5686, %v5686
        %v5943 = vmul.f32 %v5687, %v5687
        %v5944 = vmul.f32 %v5688, %v5688
        %v5945 = vmul.f32 %v5689, %v5689
        %v5946 = vmul.f32 %v5690, %v5690
        %v5947 = vmul.f32 %v5691, %v5691
        %v5948 = vmul.f32 %v5692, %v5692
        %v5949 = vmul.f32 %v5693, %v5693
        %v5950 = vmul.f32 %v5694, %v5694
        %v5951 = vmul.f32 %v5695, %v5695
        %v5952 = vmul.f32 %v5696, %v5696
        %v5953 = vmul.f32 %v5697, %v5697
        %v5954 = vmul.f32 %v5698, %v5698
        %v5955 = vmul.f32 %v5699, %v5699
        %v5956 = vmul.f32 %v5700, %v5700
        %v5957 = vmul.f32 %v5701, %v5701
        %v5958 = vmul.f32 %v5702, %v5702
        %v5959 = vmul.f32 %v5703, %v5703
        %v5960 = vmul.f32 %v5704, %v5704
        %v5961 = vmul.f32 %v5705, %v5705
        %v5962 = vmul.f32 %v5706, %v5706
        %v5963 = vmul.f32 %v5707, %v5707
        %v5964 = vmul.f32 %v5708, %v5708
        %v5965 = vmul.f32 %v5709, %v5709
        %v5966 = vmul.f32 %v5710, %v5710
        %v5967 = vmul.f32 %v5711, %v5711
        %v5968 = vmul.f32 %v5712, %v5712
        %v5969 = vmul.f32 %v5713, %v5713
        %v5970 = vmul.f32 %v5714, %v5714
        %v5971 = vmul.f32 %v5715, %v5715
        %v5972 = vmul.f32 %v5716, %v5716
        %v5973 = vmul.f32 %v5717, %v5717
        %v5974 = vmul.f32 %v5718, %v5718
        %v5975 = vmul.f32 %v5719, %v5719
        %v5976 = vmul.f32 %v5720, %v5720
        %v5977 = vmul.f32 %v5721, %v5721
        %v5978 = vmul.f32 %v5722, %v5722
        %v5979 = vmul.f32 %v5723, %v5723
        %v5980 = vmul.f32 %v5724, %v5724
        %v5981 = vmul.f32 %v5725, %v5725
        %v5982 = vmul.f32 %v5726, %v5726
        %v5983 = vmul.f32 %v5727, %v5727
        %v5984 = vmul.f32 %v5728, %v5728
        %v5985 = vmul.f32 %v5729, %v5729
        %v5986 = vmul.f32 %v5730, %v5730
        %v5987 = vmul.f32 %v5731, %v5731
        %v5988 = vmul.f32 %v5732, %v5732
        %v5989 = vmul.f32 %v5733, %v5733
        %v5990 = vmul.f32 %v5734, %v5734
        %v5991 = vmul.f32 %v5735, %v5735
        %v5992 = vmul.f32 %v5736, %v5736
        %v5993 = vmul.f32 %v5737, %v5737
        %v5994 = vmul.f32 %v5738, %v5738
        %v5995 = vmul.f32 %v5739, %v5739
        %v5996 = vmul.f32 %v5740, %v5740
        %v5997 = vmul.f32 %v5741, %v5741
        %v5998 = vmul.f32 %v5742, %v5742
        %v5999 = vmul.f32 %v5743, %v5743
        %v6000 = vmul.f32 %v5744, %v5744
        %v6001 = vmul.f32 %v5745, %v5745
        %v6002 = vmul.f32 %v5746, %v5746
        %v6003 = vmul.f32 %v5747, %v5747
        %v6004 = vmul.f32 %v5748, %v5748
        %v6005 = vmul.f32 %v5749, %v5749
        %v6006 = vmul.f32 %v5750, %v5750
        %v6007 = vmul.f32 %v5751, %v5751
        %v6008 = vmul.f32 %v5752, %v5752
        %v6009 = vmul.f32 %v5753, %v5753
        %v6010 = vmul.f32 %v5754, %v5754
        %v6011 = vmul.f32 %v5755, %v5755
        %v6012 = vmul.f32 %v5756, %v5756
        %v6013 = vmul.f32 %v5757, %v5757
        %v6014 = vmul.f32 %v5758, %v5758
        %v6015 = vmul.f32 %v5759, %v5759
        %v6016 = vmul.f32 %v5760, %v5760
        %v6017 = vmul.f32 %v5761, %v5761
        %v6018 = vmul.f32 %v5762, %v5762
        %v6019 = vmul.f32 %v5763, %v5763
        %v6020 = vmul.f32 %v5764, %v5764
        %v6021 = vmul.f32 %v5765, %v5765
        %v6022 = vmul.f32 %v5766, %v5766
        %v6023 = vmul.f32 %v5767, %v5767
        %v6024 = vmul.f32 %v5768, %v5768
        %v6025 = vmul.f32 %v5769, %v5769
        %v6026 = vmul.f32 %v5770, %v5770
        %v6027 = vmul.f32 %v5771, %v5771
        %v6028 = vmul.f32 %v5772, %v5772
        %v6029 = vmul.f32 %v5773, %v5773
        %v6030 = vmul.f32 %v5774, %v5774
        %v6031 = vmul.f32 %v5775, %v5775
        %v6032 = vmul.f32 %v5776, %v5776
        %v6033 = vmul.f32 %v5777, %v5777
        %v6034 = vmul.f32 %v5778, %v5778
        %v6035 = vmul.f32 %v5779, %v5779
        %v6036 = vmul.f32 %v5780, %v5780
        %v6037 = vmul.f32 %v5781, %v5781
        %v6038 = vmul.f32 %v5782, %v5782
        %v6039 = vmul.f32 %v5783, %v5783
        %v6040 = vmul.f32 %v5784, %v5784
        %v6041 = vmul.f32 %v5785, %v5785
        %v6042 = vmul.f32 %v5786, %v5786
        %v6043 = vmul.f32 %v5787, %v5787
        %v6044 = vmul.f32 %v5788, %v5788
        %v6045 = vmul.f32 %v5789, %v5789
        %v6046 = vmul.f32 %v5790, %v5790
        %v6047 = vmul.f32 %v5791, %v5791
        %v6048 = vmul.f32 %v5792, %v5792
        %v6049 = vmul.f32 %v5793, %v5793
        %v6050 = vmul.f32 %v5794, %v5794
        %v6051 = vmul.f32 %v5795, %v5795
        %v6052 = vmul.f32 %v5796, %v5796
        %v6053 = vmul.f32 %v5797, %v5797
        %v6054 = vmul.f32 %v5798, %v5798
        %v6055 = vmul.f32 %v5799, %v5799
        %v6056 = vmul.f32 %v5800, %v5800
        %v6057 = vmul.f32 %v5801, %v5801
        %v6058 = vmul.f32 %v5802, %v5802
        %v6059 = vmul.f32 %v5803, %v5803
        %v6060 = vmul.f32 %v5804, %v5804
        %v6061 = vmul.f32 %v5805, %v5805
        %v6062 = vmul.f32 %v5806, %v5806
        %v6063 = vmul.f32 %v5807, %v5807
        %v6064 = vmul.f32 %v5808, %v5808
        %v6065 = vmul.f32 %v5809, %v5809
        %v6066 = vmul.f32 %v5810, %v5810
        %v6067 = vmul.f32 %v5811, %v5811
        %v6068 = vmul.f32 %v5812, %v5812
        %v6069 = vmul.f32 %v5813, %v5813
        %v6070 = vmul.f32 %v5814, %v5814
        %v6071 = vmul.f32 %v5815, %v5815
        %v6072 = vmul.f32 %v5816, %v5816
        %v6073 = vmul.f32 %v5817, %v5817
        %v6074 = vmul.f32 %v5818, %v5818
        %v6075 = vmul.f32 %v5819, %v5819
        %v6076 = vmul.f32 %v5820, %v5820
        %v6077 = vmul.f32 %v5821, %v5821
        %v6078 = vmul.f32 %v5822, %v5822
        %v6079 = vmul.f32 %v5823, %v5823
        %v6080 = vmul.f32 %v5824, %v5824
        %v6081 = vmul.f32 %v5825, %v5825
        %v6082 = vmul.f32 %v5826, %v5826
        %v6083 = vmul.f32 %v5827, %v5827
        %v6084 = vmul.f32 %v5828, %v5828
        %v6085 = vmul.f32 %v5829, %v5829
        %v6086 = vmul.f32 %v5830, %v5830
        %v6087 = vmul.f32 %v5831, %v5831
        %v6088 = vmul.f32 %v5832, %v5832
        %v6089 = vmul.f32 %v5833, %v5833
        %v6090 = vmul.f32 %v5834, %v5834
        %v6091 = vmul.f32 %v5835, %v5835
        %v6092 = vmul.f32 %v5836, %v5836
        %v6093 = vmul.f32 %v5837, %v5837
        %v6094 = vmul.f32 %v5838, %v5838
        %v6095 = vmul.f32 %v5839, %v5839
        %v6096 = vmul.f32 %v5840, %v5840
        %v6097 = vmul.f32 %v5841, %v5841
        %v6098 = vmul.f32 %v5842, %v5842
        %v6099 = vmul.f32 %v5843, %v5843
        %v6100 = vmul.f32 %v5844, %v5844
        %v6101 = vmul.f32 %v5845, %v5845
        %v6102 = vmul.f32 %v5846, %v5846
        %v6103 = vmul.f32 %v5847, %v5847
        %v6104 = vmul.f32 %v5848, %v5848
        %v6105 = vmul.f32 %v5849, %v5849
        %v6106 = vmul.f32 %v5850, %v5850
        %v6107 = vmul.f32 %v5851, %v5851
        %v6108 = vmul.f32 %v5852, %v5852
        %v6109 = vmul.f32 %v5853, %v5853
        %v6110 = vmul.f32 %v5854, %v5854
        %v6111 = vmul.f32 %v5855, %v5855
        %v6112 = vmul.f32 %v5856, %v5856
        %v6113 = vmul.f32 %v5857, %v5857
        %v6114 = vmul.f32 %v5858, %v5858
        %v6115 = vmul.f32 %v5859, %v5859
        %v6116 = vmul.f32 %v5860, %v5860
        %v6117 = vmul.f32 %v5861, %v5861
        %v6118 = vmul.f32 %v5862, %v5862
        %v6119 = vmul.f32 %v5863, %v5863
        %v6120 = vmul.f32 %v5864, %v5864
        %v6121 = vmul.f32 %v5865, %v5865
        %v6122 = vmul.f32 %v5866, %v5866
        %v6123 = vmul.f32 %v5867, %v5867
        %v6124 = vmul.f32 %v5868, %v5868
        %v6125 = vmul.f32 %v5869, %v5869
        %v6126 = vmul.f32 %v5870, %v5870
        %v6127 = vmul.f32 %v5871, %v5871
        %v6128 = vmul.f32 %v5872, %v5872
        %v6129 = vmul.f32 %v5873, %v5873
        %v6130 = vmul.f32 %v5874, %v5874
        %v6131 = vmul.f32 %v5875, %v5875
        %v6132 = vmul.f32 %v5876, %v5876
        %v6133 = vmul.f32 %v5877, %v5877
        %v6134 = vmul.f32 %v5878, %v5878
        %v6135 = vmul.f32 %v5879, %v5879
        %v6136 = vmul.f32 %v5880, %v5880
        %v6137 = vmul.f32 %v5881, %v5881
        %v6138 = vmul.f32 %v5882, %v5882
        %v6139 = vmul.f32 %v5883, %v5883
        %v6140 = vmul.f32 %v5884, %v5884
        %v6141 = vmul.f32 %v5885, %v5885
        %v6142 = vmul.f32 %v5886, %v5886
        %v6143 = vmul.f32 %v5887, %v5887
        %v6144 = vmul.f32 %v5888, %v5888
        %v6145 = vmul.f32 %v5889, %v5889
        %v6146 = vmul.f32 %v5890, %v5890
        %v6147 = vmul.f32 %v5635, %v5891
        %v6148 = vmul.f32 %v5636, %v5892
        %v6149 = vmul.f32 %v5637, %v5893
        %v6150 = vmul.f32 %v5638, %v5894
        %v6151 = vmul.f32 %v5639, %v5895
        %v6152 = vmul.f32 %v5640, %v5896
        %v6153 = vmul.f32 %v5641, %v5897
        %v6154 = vmul.f32 %v5642, %v5898
        %v6155 = vmul.f32 %v5643, %v5899
        %v6156 = vmul.f32 %v5644, %v5900
        %v6157 = vmul.f32 %v5645, %v5901
        %v6158 = vmul.f32 %v5646, %v5902
        %v6159 = vmul.f32 %v5647, %v5903
        %v6160 = vmul.f32 %v5648, %v5904
        %v6161 = vmul.f32 %v5649, %v5905
        %v6162 = vmul.f32 %v5650, %v5906
        %v6163 = vmul.f32 %v5651, %v5907
        %v6164 = vmul.f32 %v5652, %v5908
        %v6165 = vmul.f32 %v5653, %v5909
        %v6166 = vmul.f32 %v5654, %v5910
        %v6167 = vmul.f32 %v5655, %v5911
        %v6168 = vmul.f32 %v5656, %v5912
        %v6169 = vmul.f32 %v5657, %v5913
        %v6170 = vmul.f32 %v5658, %v5914
        %v6171 = vmul.f32 %v5659, %v5915
        %v6172 = vmul.f32 %v5660, %v5916
        %v6173 = vmul.f32 %v5661, %v5917
        %v6174 = vmul.f32 %v5662, %v5918
        %v6175 = vmul.f32 %v5663, %v5919
        %v6176 = vmul.f32 %v5664, %v5920
        %v6177 = vmul.f32 %v5665, %v5921
        %v6178 = vmul.f32 %v5666, %v5922
        %v6179 = vmul.f32 %v5667, %v5923
        %v6180 = vmul.f32 %v5668, %v5924
        %v6181 = vmul.f32 %v5669, %v5925
        %v6182 = vmul.f32 %v5670, %v5926
        %v6183 = vmul.f32 %v5671, %v5927
        %v6184 = vmul.f32 %v5672, %v5928
        %v6185 = vmul.f32 %v5673, %v5929
        %v6186 = vmul.f32 %v5674, %v5930
        %v6187 = vmul.f32 %v5675, %v5931
        %v6188 = vmul.f32 %v5676, %v5932
        %v6189 = vmul.f32 %v5677, %v5933
        %v6190 = vmul.f32 %v5678, %v5934
        %v6191 = vmul.f32 %v5679, %v5935
        %v6192 = vmul.f32 %v5680, %v5936
        %v6193 = vmul.f32 %v5681, %v5937
        %v6194 = vmul.f32 %v5682, %v5938
        %v6195 = vmul.f32 %v5683, %v5939
        %v6196 = vmul.f32 %v5684, %v5940
        %v6197 = vmul.f32 %v5685, %v5941
        %v6198 = vmul.f32 %v5686, %v5942
        %v6199 = vmul.f32 %v5687, %v5943
        %v6200 = vmul.f32 %v5688, %v5944
        %v6201 = vmul.f32 %v5689, %v5945
        %v6202 = vmul.f32 %v5690, %v5946
        %v6203 = vmul.f32 %v5691, %v5947
        %v6204 = vmul.f32 %v5692, %v5948
        %v6205 = vmul.f32 %v5693, %v5949
        %v6206 = vmul.f32 %v5694, %v5950
        %v6207 = vmul.f32 %v5695, %v5951
        %v6208 = vmul.f32 %v5696, %v5952
        %v6209 = vmul.f32 %v5697, %v5953
        %v6210 = vmul.f32 %v5698, %v5954
        %v6211 = vmul.f32 %v5699, %v5955
        %v6212 = vmul.f32 %v5700, %v5956
        %v6213 = vmul.f32 %v5701, %v5957
        %v6214 = vmul.f32 %v5702, %v5958
        %v6215 = vmul.f32 %v5703, %v5959
        %v6216 = vmul.f32 %v5704, %v5960
        %v6217 = vmul.f32 %v5705, %v5961
        %v6218 = vmul.f32 %v5706, %v5962
        %v6219 = vmul.f32 %v5707, %v5963
        %v6220 = vmul.f32 %v5708, %v5964
        %v6221 = vmul.f32 %v5709, %v5965
        %v6222 = vmul.f32 %v5710, %v5966
        %v6223 = vmul.f32 %v5711, %v5967
        %v6224 = vmul.f32 %v5712, %v5968
        %v6225 = vmul.f32 %v5713, %v5969
        %v6226 = vmul.f32 %v5714, %v5970
        %v6227 = vmul.f32 %v5715, %v5971
        %v6228 = vmul.f32 %v5716, %v5972
        %v6229 = vmul.f32 %v5717, %v5973
        %v6230 = vmul.f32 %v5718, %v5974
        %v6231 = vmul.f32 %v5719, %v5975
        %v6232 = vmul.f32 %v5720, %v5976
        %v6233 = vmul.f32 %v5721, %v5977
        %v6234 = vmul.f32 %v5722, %v5978
        %v6235 = vmul.f32 %v5723, %v5979
        %v6236 = vmul.f32 %v5724, %v5980
        %v6237 = vmul.f32 %v5725, %v5981
        %v6238 = vmul.f32 %v5726, %v5982
        %v6239 = vmul.f32 %v5727, %v5983
        %v6240 = vmul.f32 %v5728, %v5984
        %v6241 = vmul.f32 %v5729, %v5985
        %v6242 = vmul.f32 %v5730, %v5986
        %v6243 = vmul.f32 %v5731, %v5987
        %v6244 = vmul.f32 %v5732, %v5988
        %v6245 = vmul.f32 %v5733, %v5989
        %v6246 = vmul.f32 %v5734, %v5990
        %v6247 = vmul.f32 %v5735, %v5991
        %v6248 = vmul.f32 %v5736, %v5992
        %v6249 = vmul.f32 %v5737, %v5993
        %v6250 = vmul.f32 %v5738, %v5994
        %v6251 = vmul.f32 %v5739, %v5995
        %v6252 = vmul.f32 %v5740, %v5996
        %v6253 = vmul.f32 %v5741, %v5997
        %v6254 = vmul.f32 %v5742, %v5998
        %v6255 = vmul.f32 %v5743, %v5999
        %v6256 = vmul.f32 %v5744, %v6000
        %v6257 = vmul.f32 %v5745, %v6001
        %v6258 = vmul.f32 %v5746, %v6002
        %v6259 = vmul.f32 %v5747, %v6003
        %v6260 = vmul.f32 %v5748, %v6004
        %v6261 = vmul.f32 %v5749, %v6005
        %v6262 = vmul.f32 %v5750, %v6006
        %v6263 = vmul.f32 %v5751, %v6007
        %v6264 = vmul.f32 %v5752, %v6008
        %v6265 = vmul.f32 %v5753, %v6009
        %v6266 = vmul.f32 %v5754, %v6010
        %v6267 = vmul.f32 %v5755, %v6011
        %v6268 = vmul.f32 %v5756, %v6012
        %v6269 = vmul.f32 %v5757, %v6013
        %v6270 = vmul.f32 %v5758, %v6014
        %v6271 = vmul.f32 %v5759, %v6015
        %v6272 = vmul.f32 %v5760, %v6016
        %v6273 = vmul.f32 %v5761, %v6017
        %v6274 = vmul.f32 %v5762, %v6018
        %v6275 = vmul.f32 %v5763, %v6019
        %v6276 = vmul.f32 %v5764, %v6020
        %v6277 = vmul.f32 %v5765, %v6021
        %v6278 = vmul.f32 %v5766, %v6022
        %v6279 = vmul.f32 %v5767, %v6023
        %v6280 = vmul.f32 %v5768, %v6024
        %v6281 = vmul.f32 %v5769, %v6025
        %v6282 = vmul.f32 %v5770, %v6026
        %v6283 = vmul.f32 %v5771, %v6027
        %v6284 = vmul.f32 %v5772, %v6028
        %v6285 = vmul.f32 %v5773, %v6029
        %v6286 = vmul.f32 %v5774, %v6030
        %v6287 = vmul.f32 %v5775, %v6031
        %v6288 = vmul.f32 %v5776, %v6032
        %v6289 = vmul.f32 %v5777, %v6033
        %v6290 = vmul.f32 %v5778, %v6034
        %v6291 = vmul.f32 %v5779, %v6035
        %v6292 = vmul.f32 %v5780, %v6036
        %v6293 = vmul.f32 %v5781, %v6037
        %v6294 = vmul.f32 %v5782, %v6038
        %v6295 = vmul.f32 %v5783, %v6039
        %v6296 = vmul.f32 %v5784, %v6040
        %v6297 = vmul.f32 %v5785, %v6041
        %v6298 = vmul.f32 %v5786, %v6042
        %v6299 = vmul.f32 %v5787, %v6043
        %v6300 = vmul.f32 %v5788, %v6044
        %v6301 = vmul.f32 %v5789, %v6045
        %v6302 = vmul.f32 %v5790, %v6046
        %v6303 = vmul.f32 %v5791, %v6047
        %v6304 = vmul.f32 %v5792, %v6048
        %v6305 = vmul.f32 %v5793, %v6049
        %v6306 = vmul.f32 %v5794, %v6050
        %v6307 = vmul.f32 %v5795, %v6051
        %v6308 = vmul.f32 %v5796, %v6052
        %v6309 = vmul.f32 %v5797, %v6053
        %v6310 = vmul.f32 %v5798, %v6054
        %v6311 = vmul.f32 %v5799, %v6055
        %v6312 = vmul.f32 %v5800, %v6056
        %v6313 = vmul.f32 %v5801, %v6057
        %v6314 = vmul.f32 %v5802, %v6058
        %v6315 = vmul.f32 %v5803, %v6059
        %v6316 = vmul.f32 %v5804, %v6060
        %v6317 = vmul.f32 %v5805, %v6061
        %v6318 = vmul.f32 %v5806, %v6062
        %v6319 = vmul.f32 %v5807, %v6063
        %v6320 = vmul.f32 %v5808, %v6064
        %v6321 = vmul.f32 %v5809, %v6065
        %v6322 = vmul.f32 %v5810, %v6066
        %v6323 = vmul.f32 %v5811, %v6067
        %v6324 = vmul.f32 %v5812, %v6068
        %v6325 = vmul.f32 %v5813, %v6069
        %v6326 = vmul.f32 %v5814, %v6070
        %v6327 = vmul.f32 %v5815, %v6071
        %v6328 = vmul.f32 %v5816, %v6072
        %v6329 = vmul.f32 %v5817, %v6073
        %v6330 = vmul.f32 %v5818, %v6074
        %v6331 = vmul.f32 %v5819, %v6075
        %v6332 = vmul.f32 %v5820, %v6076
        %v6333 = vmul.f32 %v5821, %v6077
        %v6334 = vmul.f32 %v5822, %v6078
        %v6335 = vmul.f32 %v5823, %v6079
        %v6336 = vmul.f32 %v5824, %v6080
        %v6337 = vmul.f32 %v5825, %v6081
        %v6338 = vmul.f32 %v5826, %v6082
        %v6339 = vmul.f32 %v5827, %v6083
        %v6340 = vmul.f32 %v5828, %v6084
        %v6341 = vmul.f32 %v5829, %v6085
        %v6342 = vmul.f32 %v5830, %v6086
        %v6343 = vmul.f32 %v5831, %v6087
        %v6344 = vmul.f32 %v5832, %v6088
        %v6345 = vmul.f32 %v5833, %v6089
        %v6346 = vmul.f32 %v5834, %v6090
        %v6347 = vmul.f32 %v5835, %v6091
        %v6348 = vmul.f32 %v5836, %v6092
        %v6349 = vmul.f32 %v5837, %v6093
        %v6350 = vmul.f32 %v5838, %v6094
        %v6351 = vmul.f32 %v5839, %v6095
        %v6352 = vmul.f32 %v5840, %v6096
        %v6353 = vmul.f32 %v5841, %v6097
        %v6354 = vmul.f32 %v5842, %v6098
        %v6355 = vmul.f32 %v5843, %v6099
        %v6356 = vmul.f32 %v5844, %v6100
        %v6357 = vmul.f32 %v5845, %v6101
        %v6358 = vmul.f32 %v5846, %v6102
        %v6359 = vmul.f32 %v5847, %v6103
        %v6360 = vmul.f32 %v5848, %v6104
        %v6361 = vmul.f32 %v5849, %v6105
        %v6362 = vmul.f32 %v5850, %v6106
        %v6363 = vmul.f32 %v5851, %v6107
        %v6364 = vmul.f32 %v5852, %v6108
        %v6365 = vmul.f32 %v5853, %v6109
        %v6366 = vmul.f32 %v5854, %v6110
        %v6367 = vmul.f32 %v5855, %v6111
        %v6368 = vmul.f32 %v5856, %v6112
        %v6369 = vmul.f32 %v5857, %v6113
        %v6370 = vmul.f32 %v5858, %v6114
        %v6371 = vmul.f32 %v5859, %v6115
        %v6372 = vmul.f32 %v5860, %v6116
        %v6373 = vmul.f32 %v5861, %v6117
        %v6374 = vmul.f32 %v5862, %v6118
        %v6375 = vmul.f32 %v5863, %v6119
        %v6376 = vmul.f32 %v5864, %v6120
        %v6377 = vmul.f32 %v5865, %v6121
        %v6378 = vmul.f32 %v5866, %v6122
        %v6379 = vmul.f32 %v5867, %v6123
        %v6380 = vmul.f32 %v5868, %v6124
        %v6381 = vmul.f32 %v5869, %v6125
        %v6382 = vmul.f32 %v5870, %v6126
        %v6383 = vmul.f32 %v5871, %v6127
        %v6384 = vmul.f32 %v5872, %v6128
        %v6385 = vmul.f32 %v5873, %v6129
        %v6386 = vmul.f32 %v5874, %v6130
        %v6387 = vmul.f32 %v5875, %v6131
        %v6388 = vmul.f32 %v5876, %v6132
        %v6389 = vmul.f32 %v5877, %v6133
        %v6390 = vmul.f32 %v5878, %v6134
        %v6391 = vmul.f32 %v5879, %v6135
        %v6392 = vmul.f32 %v5880, %v6136
        %v6393 = vmul.f32 %v5881, %v6137
        %v6394 = vmul.f32 %v5882, %v6138
        %v6395 = vmul.f32 %v5883, %v6139
        %v6396 = vmul.f32 %v5884, %v6140
        %v6397 = vmul.f32 %v5885, %v6141
        %v6398 = vmul.f32 %v5886, %v6142
        %v6399 = vmul.f32 %v5887, %v6143
        %v6400 = vmul.f32 %v5888, %v6144
        %v6401 = vmul.f32 %v5889, %v6145
        %v6402 = vmul.f32 %v5890, %v6146
        %v6403 = vmul.f32 %v6147, 0.044715
        %v6404 = vmul.f32 %v6148, 0.044715
        %v6405 = vmul.f32 %v6149, 0.044715
        %v6406 = vmul.f32 %v6150, 0.044715
        %v6407 = vmul.f32 %v6151, 0.044715
        %v6408 = vmul.f32 %v6152, 0.044715
        %v6409 = vmul.f32 %v6153, 0.044715
        %v6410 = vmul.f32 %v6154, 0.044715
        %v6411 = vmul.f32 %v6155, 0.044715
        %v6412 = vmul.f32 %v6156, 0.044715
        %v6413 = vmul.f32 %v6157, 0.044715
        %v6414 = vmul.f32 %v6158, 0.044715
        %v6415 = vmul.f32 %v6159, 0.044715
        %v6416 = vmul.f32 %v6160, 0.044715
        %v6417 = vmul.f32 %v6161, 0.044715
        %v6418 = vmul.f32 %v6162, 0.044715
        %v6419 = vmul.f32 %v6163, 0.044715
        %v6420 = vmul.f32 %v6164, 0.044715
        %v6421 = vmul.f32 %v6165, 0.044715
        %v6422 = vmul.f32 %v6166, 0.044715
        %v6423 = vmul.f32 %v6167, 0.044715
        %v6424 = vmul.f32 %v6168, 0.044715
        %v6425 = vmul.f32 %v6169, 0.044715
        %v6426 = vmul.f32 %v6170, 0.044715
        %v6427 = vmul.f32 %v6171, 0.044715
        %v6428 = vmul.f32 %v6172, 0.044715
        %v6429 = vmul.f32 %v6173, 0.044715
        %v6430 = vmul.f32 %v6174, 0.044715
        %v6431 = vmul.f32 %v6175, 0.044715
        %v6432 = vmul.f32 %v6176, 0.044715
        %v6433 = vmul.f32 %v6177, 0.044715
        %v6434 = vmul.f32 %v6178, 0.044715
        %v6435 = vmul.f32 %v6179, 0.044715
        %v6436 = vmul.f32 %v6180, 0.044715
        %v6437 = vmul.f32 %v6181, 0.044715
        %v6438 = vmul.f32 %v6182, 0.044715
        %v6439 = vmul.f32 %v6183, 0.044715
        %v6440 = vmul.f32 %v6184, 0.044715
        %v6441 = vmul.f32 %v6185, 0.044715
        %v6442 = vmul.f32 %v6186, 0.044715
        %v6443 = vmul.f32 %v6187, 0.044715
        %v6444 = vmul.f32 %v6188, 0.044715
        %v6445 = vmul.f32 %v6189, 0.044715
        %v6446 = vmul.f32 %v6190, 0.044715
        %v6447 = vmul.f32 %v6191, 0.044715
        %v6448 = vmul.f32 %v6192, 0.044715
        %v6449 = vmul.f32 %v6193, 0.044715
        %v6450 = vmul.f32 %v6194, 0.044715
        %v6451 = vmul.f32 %v6195, 0.044715
        %v6452 = vmul.f32 %v6196, 0.044715
        %v6453 = vmul.f32 %v6197, 0.044715
        %v6454 = vmul.f32 %v6198, 0.044715
        %v6455 = vmul.f32 %v6199, 0.044715
        %v6456 = vmul.f32 %v6200, 0.044715
        %v6457 = vmul.f32 %v6201, 0.044715
        %v6458 = vmul.f32 %v6202, 0.044715
        %v6459 = vmul.f32 %v6203, 0.044715
        %v6460 = vmul.f32 %v6204, 0.044715
        %v6461 = vmul.f32 %v6205, 0.044715
        %v6462 = vmul.f32 %v6206, 0.044715
        %v6463 = vmul.f32 %v6207, 0.044715
        %v6464 = vmul.f32 %v6208, 0.044715
        %v6465 = vmul.f32 %v6209, 0.044715
        %v6466 = vmul.f32 %v6210, 0.044715
        %v6467 = vmul.f32 %v6211, 0.044715
        %v6468 = vmul.f32 %v6212, 0.044715
        %v6469 = vmul.f32 %v6213, 0.044715
        %v6470 = vmul.f32 %v6214, 0.044715
        %v6471 = vmul.f32 %v6215, 0.044715
        %v6472 = vmul.f32 %v6216, 0.044715
        %v6473 = vmul.f32 %v6217, 0.044715
        %v6474 = vmul.f32 %v6218, 0.044715
        %v6475 = vmul.f32 %v6219, 0.044715
        %v6476 = vmul.f32 %v6220, 0.044715
        %v6477 = vmul.f32 %v6221, 0.044715
        %v6478 = vmul.f32 %v6222, 0.044715
        %v6479 = vmul.f32 %v6223, 0.044715
        %v6480 = vmul.f32 %v6224, 0.044715
        %v6481 = vmul.f32 %v6225, 0.044715
        %v6482 = vmul.f32 %v6226, 0.044715
        %v6483 = vmul.f32 %v6227, 0.044715
        %v6484 = vmul.f32 %v6228, 0.044715
        %v6485 = vmul.f32 %v6229, 0.044715
        %v6486 = vmul.f32 %v6230, 0.044715
        %v6487 = vmul.f32 %v6231, 0.044715
        %v6488 = vmul.f32 %v6232, 0.044715
        %v6489 = vmul.f32 %v6233, 0.044715
        %v6490 = vmul.f32 %v6234, 0.044715
        %v6491 = vmul.f32 %v6235, 0.044715
        %v6492 = vmul.f32 %v6236, 0.044715
        %v6493 = vmul.f32 %v6237, 0.044715
        %v6494 = vmul.f32 %v6238, 0.044715
        %v6495 = vmul.f32 %v6239, 0.044715
        %v6496 = vmul.f32 %v6240, 0.044715
        %v6497 = vmul.f32 %v6241, 0.044715
        %v6498 = vmul.f32 %v6242, 0.044715
        %v6499 = vmul.f32 %v6243, 0.044715
        %v6500 = vmul.f32 %v6244, 0.044715
        %v6501 = vmul.f32 %v6245, 0.044715
        %v6502 = vmul.f32 %v6246, 0.044715
        %v6503 = vmul.f32 %v6247, 0.044715
        %v6504 = vmul.f32 %v6248, 0.044715
        %v6505 = vmul.f32 %v6249, 0.044715
        %v6506 = vmul.f32 %v6250, 0.044715
        %v6507 = vmul.f32 %v6251, 0.044715
        %v6508 = vmul.f32 %v6252, 0.044715
        %v6509 = vmul.f32 %v6253, 0.044715
        %v6510 = vmul.f32 %v6254, 0.044715
        %v6511 = vmul.f32 %v6255, 0.044715
        %v6512 = vmul.f32 %v6256, 0.044715
        %v6513 = vmul.f32 %v6257, 0.044715
        %v6514 = vmul.f32 %v6258, 0.044715
        %v6515 = vmul.f32 %v6259, 0.044715
        %v6516 = vmul.f32 %v6260, 0.044715
        %v6517 = vmul.f32 %v6261, 0.044715
        %v6518 = vmul.f32 %v6262, 0.044715
        %v6519 = vmul.f32 %v6263, 0.044715
        %v6520 = vmul.f32 %v6264, 0.044715
        %v6521 = vmul.f32 %v6265, 0.044715
        %v6522 = vmul.f32 %v6266, 0.044715
        %v6523 = vmul.f32 %v6267, 0.044715
        %v6524 = vmul.f32 %v6268, 0.044715
        %v6525 = vmul.f32 %v6269, 0.044715
        %v6526 = vmul.f32 %v6270, 0.044715
        %v6527 = vmul.f32 %v6271, 0.044715
        %v6528 = vmul.f32 %v6272, 0.044715
        %v6529 = vmul.f32 %v6273, 0.044715
        %v6530 = vmul.f32 %v6274, 0.044715
        %v6531 = vmul.f32 %v6275, 0.044715
        %v6532 = vmul.f32 %v6276, 0.044715
        %v6533 = vmul.f32 %v6277, 0.044715
        %v6534 = vmul.f32 %v6278, 0.044715
        %v6535 = vmul.f32 %v6279, 0.044715
        %v6536 = vmul.f32 %v6280, 0.044715
        %v6537 = vmul.f32 %v6281, 0.044715
        %v6538 = vmul.f32 %v6282, 0.044715
        %v6539 = vmul.f32 %v6283, 0.044715
        %v6540 = vmul.f32 %v6284, 0.044715
        %v6541 = vmul.f32 %v6285, 0.044715
        %v6542 = vmul.f32 %v6286, 0.044715
        %v6543 = vmul.f32 %v6287, 0.044715
        %v6544 = vmul.f32 %v6288, 0.044715
        %v6545 = vmul.f32 %v6289, 0.044715
        %v6546 = vmul.f32 %v6290, 0.044715
        %v6547 = vmul.f32 %v6291, 0.044715
        %v6548 = vmul.f32 %v6292, 0.044715
        %v6549 = vmul.f32 %v6293, 0.044715
        %v6550 = vmul.f32 %v6294, 0.044715
        %v6551 = vmul.f32 %v6295, 0.044715
        %v6552 = vmul.f32 %v6296, 0.044715
        %v6553 = vmul.f32 %v6297, 0.044715
        %v6554 = vmul.f32 %v6298, 0.044715
        %v6555 = vmul.f32 %v6299, 0.044715
        %v6556 = vmul.f32 %v6300, 0.044715
        %v6557 = vmul.f32 %v6301, 0.044715
        %v6558 = vmul.f32 %v6302, 0.044715
        %v6559 = vmul.f32 %v6303, 0.044715
        %v6560 = vmul.f32 %v6304, 0.044715
        %v6561 = vmul.f32 %v6305, 0.044715
        %v6562 = vmul.f32 %v6306, 0.044715
        %v6563 = vmul.f32 %v6307, 0.044715
        %v6564 = vmul.f32 %v6308, 0.044715
        %v6565 = vmul.f32 %v6309, 0.044715
        %v6566 = vmul.f32 %v6310, 0.044715
        %v6567 = vmul.f32 %v6311, 0.044715
        %v6568 = vmul.f32 %v6312, 0.044715
        %v6569 = vmul.f32 %v6313, 0.044715
        %v6570 = vmul.f32 %v6314, 0.044715
        %v6571 = vmul.f32 %v6315, 0.044715
        %v6572 = vmul.f32 %v6316, 0.044715
        %v6573 = vmul.f32 %v6317, 0.044715
        %v6574 = vmul.f32 %v6318, 0.044715
        %v6575 = vmul.f32 %v6319, 0.044715
        %v6576 = vmul.f32 %v6320, 0.044715
        %v6577 = vmul.f32 %v6321, 0.044715
        %v6578 = vmul.f32 %v6322, 0.044715
        %v6579 = vmul.f32 %v6323, 0.044715
        %v6580 = vmul.f32 %v6324, 0.044715
        %v6581 = vmul.f32 %v6325, 0.044715
        %v6582 = vmul.f32 %v6326, 0.044715
        %v6583 = vmul.f32 %v6327, 0.044715
        %v6584 = vmul.f32 %v6328, 0.044715
        %v6585 = vmul.f32 %v6329, 0.044715
        %v6586 = vmul.f32 %v6330, 0.044715
        %v6587 = vmul.f32 %v6331, 0.044715
        %v6588 = vmul.f32 %v6332, 0.044715
        %v6589 = vmul.f32 %v6333, 0.044715
        %v6590 = vmul.f32 %v6334, 0.044715
        %v6591 = vmul.f32 %v6335, 0.044715
        %v6592 = vmul.f32 %v6336, 0.044715
        %v6593 = vmul.f32 %v6337, 0.044715
        %v6594 = vmul.f32 %v6338, 0.044715
        %v6595 = vmul.f32 %v6339, 0.044715
        %v6596 = vmul.f32 %v6340, 0.044715
        %v6597 = vmul.f32 %v6341, 0.044715
        %v6598 = vmul.f32 %v6342, 0.044715
        %v6599 = vmul.f32 %v6343, 0.044715
        %v6600 = vmul.f32 %v6344, 0.044715
        %v6601 = vmul.f32 %v6345, 0.044715
        %v6602 = vmul.f32 %v6346, 0.044715
        %v6603 = vmul.f32 %v6347, 0.044715
        %v6604 = vmul.f32 %v6348, 0.044715
        %v6605 = vmul.f32 %v6349, 0.044715
        %v6606 = vmul.f32 %v6350, 0.044715
        %v6607 = vmul.f32 %v6351, 0.044715
        %v6608 = vmul.f32 %v6352, 0.044715
        %v6609 = vmul.f32 %v6353, 0.044715
        %v6610 = vmul.f32 %v6354, 0.044715
        %v6611 = vmul.f32 %v6355, 0.044715
        %v6612 = vmul.f32 %v6356, 0.044715
        %v6613 = vmul.f32 %v6357, 0.044715
        %v6614 = vmul.f32 %v6358, 0.044715
        %v6615 = vmul.f32 %v6359, 0.044715
        %v6616 = vmul.f32 %v6360, 0.044715
        %v6617 = vmul.f32 %v6361, 0.044715
        %v6618 = vmul.f32 %v6362, 0.044715
        %v6619 = vmul.f32 %v6363, 0.044715
        %v6620 = vmul.f32 %v6364, 0.044715
        %v6621 = vmul.f32 %v6365, 0.044715
        %v6622 = vmul.f32 %v6366, 0.044715
        %v6623 = vmul.f32 %v6367, 0.044715
        %v6624 = vmul.f32 %v6368, 0.044715
        %v6625 = vmul.f32 %v6369, 0.044715
        %v6626 = vmul.f32 %v6370, 0.044715
        %v6627 = vmul.f32 %v6371, 0.044715
        %v6628 = vmul.f32 %v6372, 0.044715
        %v6629 = vmul.f32 %v6373, 0.044715
        %v6630 = vmul.f32 %v6374, 0.044715
        %v6631 = vmul.f32 %v6375, 0.044715
        %v6632 = vmul.f32 %v6376, 0.044715
        %v6633 = vmul.f32 %v6377, 0.044715
        %v6634 = vmul.f32 %v6378, 0.044715
        %v6635 = vmul.f32 %v6379, 0.044715
        %v6636 = vmul.f32 %v6380, 0.044715
        %v6637 = vmul.f32 %v6381, 0.044715
        %v6638 = vmul.f32 %v6382, 0.044715
        %v6639 = vmul.f32 %v6383, 0.044715
        %v6640 = vmul.f32 %v6384, 0.044715
        %v6641 = vmul.f32 %v6385, 0.044715
        %v6642 = vmul.f32 %v6386, 0.044715
        %v6643 = vmul.f32 %v6387, 0.044715
        %v6644 = vmul.f32 %v6388, 0.044715
        %v6645 = vmul.f32 %v6389, 0.044715
        %v6646 = vmul.f32 %v6390, 0.044715
        %v6647 = vmul.f32 %v6391, 0.044715
        %v6648 = vmul.f32 %v6392, 0.044715
        %v6649 = vmul.f32 %v6393, 0.044715
        %v6650 = vmul.f32 %v6394, 0.044715
        %v6651 = vmul.f32 %v6395, 0.044715
        %v6652 = vmul.f32 %v6396, 0.044715
        %v6653 = vmul.f32 %v6397, 0.044715
        %v6654 = vmul.f32 %v6398, 0.044715
        %v6655 = vmul.f32 %v6399, 0.044715
        %v6656 = vmul.f32 %v6400, 0.044715
        %v6657 = vmul.f32 %v6401, 0.044715
        %v6658 = vmul.f32 %v6402, 0.044715
        %v6659 = vadd.f32 %v5635, %v6403
        %v6660 = vadd.f32 %v5636, %v6404
        %v6661 = vadd.f32 %v5637, %v6405
        %v6662 = vadd.f32 %v5638, %v6406
        %v6663 = vadd.f32 %v5639, %v6407
        %v6664 = vadd.f32 %v5640, %v6408
        %v6665 = vadd.f32 %v5641, %v6409
        %v6666 = vadd.f32 %v5642, %v6410
        %v6667 = vadd.f32 %v5643, %v6411
        %v6668 = vadd.f32 %v5644, %v6412
        %v6669 = vadd.f32 %v5645, %v6413
        %v6670 = vadd.f32 %v5646, %v6414
        %v6671 = vadd.f32 %v5647, %v6415
        %v6672 = vadd.f32 %v5648, %v6416
        %v6673 = vadd.f32 %v5649, %v6417
        %v6674 = vadd.f32 %v5650, %v6418
        %v6675 = vadd.f32 %v5651, %v6419
        %v6676 = vadd.f32 %v5652, %v6420
        %v6677 = vadd.f32 %v5653, %v6421
        %v6678 = vadd.f32 %v5654, %v6422
        %v6679 = vadd.f32 %v5655, %v6423
        %v6680 = vadd.f32 %v5656, %v6424
        %v6681 = vadd.f32 %v5657, %v6425
        %v6682 = vadd.f32 %v5658, %v6426
        %v6683 = vadd.f32 %v5659, %v6427
        %v6684 = vadd.f32 %v5660, %v6428
        %v6685 = vadd.f32 %v5661, %v6429
        %v6686 = vadd.f32 %v5662, %v6430
        %v6687 = vadd.f32 %v5663, %v6431
        %v6688 = vadd.f32 %v5664, %v6432
        %v6689 = vadd.f32 %v5665, %v6433
        %v6690 = vadd.f32 %v5666, %v6434
        %v6691 = vadd.f32 %v5667, %v6435
        %v6692 = vadd.f32 %v5668, %v6436
        %v6693 = vadd.f32 %v5669, %v6437
        %v6694 = vadd.f32 %v5670, %v6438
        %v6695 = vadd.f32 %v5671, %v6439
        %v6696 = vadd.f32 %v5672, %v6440
        %v6697 = vadd.f32 %v5673, %v6441
        %v6698 = vadd.f32 %v5674, %v6442
        %v6699 = vadd.f32 %v5675, %v6443
        %v6700 = vadd.f32 %v5676, %v6444
        %v6701 = vadd.f32 %v5677, %v6445
        %v6702 = vadd.f32 %v5678, %v6446
        %v6703 = vadd.f32 %v5679, %v6447
        %v6704 = vadd.f32 %v5680, %v6448
        %v6705 = vadd.f32 %v5681, %v6449
        %v6706 = vadd.f32 %v5682, %v6450
        %v6707 = vadd.f32 %v5683, %v6451
        %v6708 = vadd.f32 %v5684, %v6452
        %v6709 = vadd.f32 %v5685, %v6453
        %v6710 = vadd.f32 %v5686, %v6454
        %v6711 = vadd.f32 %v5687, %v6455
        %v6712 = vadd.f32 %v5688, %v6456
        %v6713 = vadd.f32 %v5689, %v6457
        %v6714 = vadd.f32 %v5690, %v6458
        %v6715 = vadd.f32 %v5691, %v6459
        %v6716 = vadd.f32 %v5692, %v6460
        %v6717 = vadd.f32 %v5693, %v6461
        %v6718 = vadd.f32 %v5694, %v6462
        %v6719 = vadd.f32 %v5695, %v6463
        %v6720 = vadd.f32 %v5696, %v6464
        %v6721 = vadd.f32 %v5697, %v6465
        %v6722 = vadd.f32 %v5698, %v6466
        %v6723 = vadd.f32 %v5699, %v6467
        %v6724 = vadd.f32 %v5700, %v6468
        %v6725 = vadd.f32 %v5701, %v6469
        %v6726 = vadd.f32 %v5702, %v6470
        %v6727 = vadd.f32 %v5703, %v6471
        %v6728 = vadd.f32 %v5704, %v6472
        %v6729 = vadd.f32 %v5705, %v6473
        %v6730 = vadd.f32 %v5706, %v6474
        %v6731 = vadd.f32 %v5707, %v6475
        %v6732 = vadd.f32 %v5708, %v6476
        %v6733 = vadd.f32 %v5709, %v6477
        %v6734 = vadd.f32 %v5710, %v6478
        %v6735 = vadd.f32 %v5711, %v6479
        %v6736 = vadd.f32 %v5712, %v6480
        %v6737 = vadd.f32 %v5713, %v6481
        %v6738 = vadd.f32 %v5714, %v6482
        %v6739 = vadd.f32 %v5715, %v6483
        %v6740 = vadd.f32 %v5716, %v6484
        %v6741 = vadd.f32 %v5717, %v6485
        %v6742 = vadd.f32 %v5718, %v6486
        %v6743 = vadd.f32 %v5719, %v6487
        %v6744 = vadd.f32 %v5720, %v6488
        %v6745 = vadd.f32 %v5721, %v6489
        %v6746 = vadd.f32 %v5722, %v6490
        %v6747 = vadd.f32 %v5723, %v6491
        %v6748 = vadd.f32 %v5724, %v6492
        %v6749 = vadd.f32 %v5725, %v6493
        %v6750 = vadd.f32 %v5726, %v6494
        %v6751 = vadd.f32 %v5727, %v6495
        %v6752 = vadd.f32 %v5728, %v6496
        %v6753 = vadd.f32 %v5729, %v6497
        %v6754 = vadd.f32 %v5730, %v6498
        %v6755 = vadd.f32 %v5731, %v6499
        %v6756 = vadd.f32 %v5732, %v6500
        %v6757 = vadd.f32 %v5733, %v6501
        %v6758 = vadd.f32 %v5734, %v6502
        %v6759 = vadd.f32 %v5735, %v6503
        %v6760 = vadd.f32 %v5736, %v6504
        %v6761 = vadd.f32 %v5737, %v6505
        %v6762 = vadd.f32 %v5738, %v6506
        %v6763 = vadd.f32 %v5739, %v6507
        %v6764 = vadd.f32 %v5740, %v6508
        %v6765 = vadd.f32 %v5741, %v6509
        %v6766 = vadd.f32 %v5742, %v6510
        %v6767 = vadd.f32 %v5743, %v6511
        %v6768 = vadd.f32 %v5744, %v6512
        %v6769 = vadd.f32 %v5745, %v6513
        %v6770 = vadd.f32 %v5746, %v6514
        %v6771 = vadd.f32 %v5747, %v6515
        %v6772 = vadd.f32 %v5748, %v6516
        %v6773 = vadd.f32 %v5749, %v6517
        %v6774 = vadd.f32 %v5750, %v6518
        %v6775 = vadd.f32 %v5751, %v6519
        %v6776 = vadd.f32 %v5752, %v6520
        %v6777 = vadd.f32 %v5753, %v6521
        %v6778 = vadd.f32 %v5754, %v6522
        %v6779 = vadd.f32 %v5755, %v6523
        %v6780 = vadd.f32 %v5756, %v6524
        %v6781 = vadd.f32 %v5757, %v6525
        %v6782 = vadd.f32 %v5758, %v6526
        %v6783 = vadd.f32 %v5759, %v6527
        %v6784 = vadd.f32 %v5760, %v6528
        %v6785 = vadd.f32 %v5761, %v6529
        %v6786 = vadd.f32 %v5762, %v6530
        %v6787 = vadd.f32 %v5763, %v6531
        %v6788 = vadd.f32 %v5764, %v6532
        %v6789 = vadd.f32 %v5765, %v6533
        %v6790 = vadd.f32 %v5766, %v6534
        %v6791 = vadd.f32 %v5767, %v6535
        %v6792 = vadd.f32 %v5768, %v6536
        %v6793 = vadd.f32 %v5769, %v6537
        %v6794 = vadd.f32 %v5770, %v6538
        %v6795 = vadd.f32 %v5771, %v6539
        %v6796 = vadd.f32 %v5772, %v6540
        %v6797 = vadd.f32 %v5773, %v6541
        %v6798 = vadd.f32 %v5774, %v6542
        %v6799 = vadd.f32 %v5775, %v6543
        %v6800 = vadd.f32 %v5776, %v6544
        %v6801 = vadd.f32 %v5777, %v6545
        %v6802 = vadd.f32 %v5778, %v6546
        %v6803 = vadd.f32 %v5779, %v6547
        %v6804 = vadd.f32 %v5780, %v6548
        %v6805 = vadd.f32 %v5781, %v6549
        %v6806 = vadd.f32 %v5782, %v6550
        %v6807 = vadd.f32 %v5783, %v6551
        %v6808 = vadd.f32 %v5784, %v6552
        %v6809 = vadd.f32 %v5785, %v6553
        %v6810 = vadd.f32 %v5786, %v6554
        %v6811 = vadd.f32 %v5787, %v6555
        %v6812 = vadd.f32 %v5788, %v6556
        %v6813 = vadd.f32 %v5789, %v6557
        %v6814 = vadd.f32 %v5790, %v6558
        %v6815 = vadd.f32 %v5791, %v6559
        %v6816 = vadd.f32 %v5792, %v6560
        %v6817 = vadd.f32 %v5793, %v6561
        %v6818 = vadd.f32 %v5794, %v6562
        %v6819 = vadd.f32 %v5795, %v6563
        %v6820 = vadd.f32 %v5796, %v6564
        %v6821 = vadd.f32 %v5797, %v6565
        %v6822 = vadd.f32 %v5798, %v6566
        %v6823 = vadd.f32 %v5799, %v6567
        %v6824 = vadd.f32 %v5800, %v6568
        %v6825 = vadd.f32 %v5801, %v6569
        %v6826 = vadd.f32 %v5802, %v6570
        %v6827 = vadd.f32 %v5803, %v6571
        %v6828 = vadd.f32 %v5804, %v6572
        %v6829 = vadd.f32 %v5805, %v6573
        %v6830 = vadd.f32 %v5806, %v6574
        %v6831 = vadd.f32 %v5807, %v6575
        %v6832 = vadd.f32 %v5808, %v6576
        %v6833 = vadd.f32 %v5809, %v6577
        %v6834 = vadd.f32 %v5810, %v6578
        %v6835 = vadd.f32 %v5811, %v6579
        %v6836 = vadd.f32 %v5812, %v6580
        %v6837 = vadd.f32 %v5813, %v6581
        %v6838 = vadd.f32 %v5814, %v6582
        %v6839 = vadd.f32 %v5815, %v6583
        %v6840 = vadd.f32 %v5816, %v6584
        %v6841 = vadd.f32 %v5817, %v6585
        %v6842 = vadd.f32 %v5818, %v6586
        %v6843 = vadd.f32 %v5819, %v6587
        %v6844 = vadd.f32 %v5820, %v6588
        %v6845 = vadd.f32 %v5821, %v6589
        %v6846 = vadd.f32 %v5822, %v6590
        %v6847 = vadd.f32 %v5823, %v6591
        %v6848 = vadd.f32 %v5824, %v6592
        %v6849 = vadd.f32 %v5825, %v6593
        %v6850 = vadd.f32 %v5826, %v6594
        %v6851 = vadd.f32 %v5827, %v6595
        %v6852 = vadd.f32 %v5828, %v6596
        %v6853 = vadd.f32 %v5829, %v6597
        %v6854 = vadd.f32 %v5830, %v6598
        %v6855 = vadd.f32 %v5831, %v6599
        %v6856 = vadd.f32 %v5832, %v6600
        %v6857 = vadd.f32 %v5833, %v6601
        %v6858 = vadd.f32 %v5834, %v6602
        %v6859 = vadd.f32 %v5835, %v6603
        %v6860 = vadd.f32 %v5836, %v6604
        %v6861 = vadd.f32 %v5837, %v6605
        %v6862 = vadd.f32 %v5838, %v6606
        %v6863 = vadd.f32 %v5839, %v6607
        %v6864 = vadd.f32 %v5840, %v6608
        %v6865 = vadd.f32 %v5841, %v6609
        %v6866 = vadd.f32 %v5842, %v6610
        %v6867 = vadd.f32 %v5843, %v6611
        %v6868 = vadd.f32 %v5844, %v6612
        %v6869 = vadd.f32 %v5845, %v6613
        %v6870 = vadd.f32 %v5846, %v6614
        %v6871 = vadd.f32 %v5847, %v6615
        %v6872 = vadd.f32 %v5848, %v6616
        %v6873 = vadd.f32 %v5849, %v6617
        %v6874 = vadd.f32 %v5850, %v6618
        %v6875 = vadd.f32 %v5851, %v6619
        %v6876 = vadd.f32 %v5852, %v6620
        %v6877 = vadd.f32 %v5853, %v6621
        %v6878 = vadd.f32 %v5854, %v6622
        %v6879 = vadd.f32 %v5855, %v6623
        %v6880 = vadd.f32 %v5856, %v6624
        %v6881 = vadd.f32 %v5857, %v6625
        %v6882 = vadd.f32 %v5858, %v6626
        %v6883 = vadd.f32 %v5859, %v6627
        %v6884 = vadd.f32 %v5860, %v6628
        %v6885 = vadd.f32 %v5861, %v6629
        %v6886 = vadd.f32 %v5862, %v6630
        %v6887 = vadd.f32 %v5863, %v6631
        %v6888 = vadd.f32 %v5864, %v6632
        %v6889 = vadd.f32 %v5865, %v6633
        %v6890 = vadd.f32 %v5866, %v6634
        %v6891 = vadd.f32 %v5867, %v6635
        %v6892 = vadd.f32 %v5868, %v6636
        %v6893 = vadd.f32 %v5869, %v6637
        %v6894 = vadd.f32 %v5870, %v6638
        %v6895 = vadd.f32 %v5871, %v6639
        %v6896 = vadd.f32 %v5872, %v6640
        %v6897 = vadd.f32 %v5873, %v6641
        %v6898 = vadd.f32 %v5874, %v6642
        %v6899 = vadd.f32 %v5875, %v6643
        %v6900 = vadd.f32 %v5876, %v6644
        %v6901 = vadd.f32 %v5877, %v6645
        %v6902 = vadd.f32 %v5878, %v6646
        %v6903 = vadd.f32 %v5879, %v6647
        %v6904 = vadd.f32 %v5880, %v6648
        %v6905 = vadd.f32 %v5881, %v6649
        %v6906 = vadd.f32 %v5882, %v6650
        %v6907 = vadd.f32 %v5883, %v6651
        %v6908 = vadd.f32 %v5884, %v6652
        %v6909 = vadd.f32 %v5885, %v6653
        %v6910 = vadd.f32 %v5886, %v6654
        %v6911 = vadd.f32 %v5887, %v6655
        %v6912 = vadd.f32 %v5888, %v6656
        %v6913 = vadd.f32 %v5889, %v6657
        %v6914 = vadd.f32 %v5890, %v6658
        %v6915 = vmul.f32 %v6659, 0.7978846
        %v6916 = vmul.f32 %v6660, 0.7978846
        %v6917 = vmul.f32 %v6661, 0.7978846
        %v6918 = vmul.f32 %v6662, 0.7978846
        %v6919 = vmul.f32 %v6663, 0.7978846
        %v6920 = vmul.f32 %v6664, 0.7978846
        %v6921 = vmul.f32 %v6665, 0.7978846
        %v6922 = vmul.f32 %v6666, 0.7978846
        %v6923 = vmul.f32 %v6667, 0.7978846
        %v6924 = vmul.f32 %v6668, 0.7978846
        %v6925 = vmul.f32 %v6669, 0.7978846
        %v6926 = vmul.f32 %v6670, 0.7978846
        %v6927 = vmul.f32 %v6671, 0.7978846
        %v6928 = vmul.f32 %v6672, 0.7978846
        %v6929 = vmul.f32 %v6673, 0.7978846
        %v6930 = vmul.f32 %v6674, 0.7978846
        %v6931 = vmul.f32 %v6675, 0.7978846
        %v6932 = vmul.f32 %v6676, 0.7978846
        %v6933 = vmul.f32 %v6677, 0.7978846
        %v6934 = vmul.f32 %v6678, 0.7978846
        %v6935 = vmul.f32 %v6679, 0.7978846
        %v6936 = vmul.f32 %v6680, 0.7978846
        %v6937 = vmul.f32 %v6681, 0.7978846
        %v6938 = vmul.f32 %v6682, 0.7978846
        %v6939 = vmul.f32 %v6683, 0.7978846
        %v6940 = vmul.f32 %v6684, 0.7978846
        %v6941 = vmul.f32 %v6685, 0.7978846
        %v6942 = vmul.f32 %v6686, 0.7978846
        %v6943 = vmul.f32 %v6687, 0.7978846
        %v6944 = vmul.f32 %v6688, 0.7978846
        %v6945 = vmul.f32 %v6689, 0.7978846
        %v6946 = vmul.f32 %v6690, 0.7978846
        %v6947 = vmul.f32 %v6691, 0.7978846
        %v6948 = vmul.f32 %v6692, 0.7978846
        %v6949 = vmul.f32 %v6693, 0.7978846
        %v6950 = vmul.f32 %v6694, 0.7978846
        %v6951 = vmul.f32 %v6695, 0.7978846
        %v6952 = vmul.f32 %v6696, 0.7978846
        %v6953 = vmul.f32 %v6697, 0.7978846
        %v6954 = vmul.f32 %v6698, 0.7978846
        %v6955 = vmul.f32 %v6699, 0.7978846
        %v6956 = vmul.f32 %v6700, 0.7978846
        %v6957 = vmul.f32 %v6701, 0.7978846
        %v6958 = vmul.f32 %v6702, 0.7978846
        %v6959 = vmul.f32 %v6703, 0.7978846
        %v6960 = vmul.f32 %v6704, 0.7978846
        %v6961 = vmul.f32 %v6705, 0.7978846
        %v6962 = vmul.f32 %v6706, 0.7978846
        %v6963 = vmul.f32 %v6707, 0.7978846
        %v6964 = vmul.f32 %v6708, 0.7978846
        %v6965 = vmul.f32 %v6709, 0.7978846
        %v6966 = vmul.f32 %v6710, 0.7978846
        %v6967 = vmul.f32 %v6711, 0.7978846
        %v6968 = vmul.f32 %v6712, 0.7978846
        %v6969 = vmul.f32 %v6713, 0.7978846
        %v6970 = vmul.f32 %v6714, 0.7978846
        %v6971 = vmul.f32 %v6715, 0.7978846
        %v6972 = vmul.f32 %v6716, 0.7978846
        %v6973 = vmul.f32 %v6717, 0.7978846
        %v6974 = vmul.f32 %v6718, 0.7978846
        %v6975 = vmul.f32 %v6719, 0.7978846
        %v6976 = vmul.f32 %v6720, 0.7978846
        %v6977 = vmul.f32 %v6721, 0.7978846
        %v6978 = vmul.f32 %v6722, 0.7978846
        %v6979 = vmul.f32 %v6723, 0.7978846
        %v6980 = vmul.f32 %v6724, 0.7978846
        %v6981 = vmul.f32 %v6725, 0.7978846
        %v6982 = vmul.f32 %v6726, 0.7978846
        %v6983 = vmul.f32 %v6727, 0.7978846
        %v6984 = vmul.f32 %v6728, 0.7978846
        %v6985 = vmul.f32 %v6729, 0.7978846
        %v6986 = vmul.f32 %v6730, 0.7978846
        %v6987 = vmul.f32 %v6731, 0.7978846
        %v6988 = vmul.f32 %v6732, 0.7978846
        %v6989 = vmul.f32 %v6733, 0.7978846
        %v6990 = vmul.f32 %v6734, 0.7978846
        %v6991 = vmul.f32 %v6735, 0.7978846
        %v6992 = vmul.f32 %v6736, 0.7978846
        %v6993 = vmul.f32 %v6737, 0.7978846
        %v6994 = vmul.f32 %v6738, 0.7978846
        %v6995 = vmul.f32 %v6739, 0.7978846
        %v6996 = vmul.f32 %v6740, 0.7978846
        %v6997 = vmul.f32 %v6741, 0.7978846
        %v6998 = vmul.f32 %v6742, 0.7978846
        %v6999 = vmul.f32 %v6743, 0.7978846
        %v7000 = vmul.f32 %v6744, 0.7978846
        %v7001 = vmul.f32 %v6745, 0.7978846
        %v7002 = vmul.f32 %v6746, 0.7978846
        %v7003 = vmul.f32 %v6747, 0.7978846
        %v7004 = vmul.f32 %v6748, 0.7978846
        %v7005 = vmul.f32 %v6749, 0.7978846
        %v7006 = vmul.f32 %v6750, 0.7978846
        %v7007 = vmul.f32 %v6751, 0.7978846
        %v7008 = vmul.f32 %v6752, 0.7978846
        %v7009 = vmul.f32 %v6753, 0.7978846
        %v7010 = vmul.f32 %v6754, 0.7978846
        %v7011 = vmul.f32 %v6755, 0.7978846
        %v7012 = vmul.f32 %v6756, 0.7978846
        %v7013 = vmul.f32 %v6757, 0.7978846
        %v7014 = vmul.f32 %v6758, 0.7978846
        %v7015 = vmul.f32 %v6759, 0.7978846
        %v7016 = vmul.f32 %v6760, 0.7978846
        %v7017 = vmul.f32 %v6761, 0.7978846
        %v7018 = vmul.f32 %v6762, 0.7978846
        %v7019 = vmul.f32 %v6763, 0.7978846
        %v7020 = vmul.f32 %v6764, 0.7978846
        %v7021 = vmul.f32 %v6765, 0.7978846
        %v7022 = vmul.f32 %v6766, 0.7978846
        %v7023 = vmul.f32 %v6767, 0.7978846
        %v7024 = vmul.f32 %v6768, 0.7978846
        %v7025 = vmul.f32 %v6769, 0.7978846
        %v7026 = vmul.f32 %v6770, 0.7978846
        %v7027 = vmul.f32 %v6771, 0.7978846
        %v7028 = vmul.f32 %v6772, 0.7978846
        %v7029 = vmul.f32 %v6773, 0.7978846
        %v7030 = vmul.f32 %v6774, 0.7978846
        %v7031 = vmul.f32 %v6775, 0.7978846
        %v7032 = vmul.f32 %v6776, 0.7978846
        %v7033 = vmul.f32 %v6777, 0.7978846
        %v7034 = vmul.f32 %v6778, 0.7978846
        %v7035 = vmul.f32 %v6779, 0.7978846
        %v7036 = vmul.f32 %v6780, 0.7978846
        %v7037 = vmul.f32 %v6781, 0.7978846
        %v7038 = vmul.f32 %v6782, 0.7978846
        %v7039 = vmul.f32 %v6783, 0.7978846
        %v7040 = vmul.f32 %v6784, 0.7978846
        %v7041 = vmul.f32 %v6785, 0.7978846
        %v7042 = vmul.f32 %v6786, 0.7978846
        %v7043 = vmul.f32 %v6787, 0.7978846
        %v7044 = vmul.f32 %v6788, 0.7978846
        %v7045 = vmul.f32 %v6789, 0.7978846
        %v7046 = vmul.f32 %v6790, 0.7978846
        %v7047 = vmul.f32 %v6791, 0.7978846
        %v7048 = vmul.f32 %v6792, 0.7978846
        %v7049 = vmul.f32 %v6793, 0.7978846
        %v7050 = vmul.f32 %v6794, 0.7978846
        %v7051 = vmul.f32 %v6795, 0.7978846
        %v7052 = vmul.f32 %v6796, 0.7978846
        %v7053 = vmul.f32 %v6797, 0.7978846
        %v7054 = vmul.f32 %v6798, 0.7978846
        %v7055 = vmul.f32 %v6799, 0.7978846
        %v7056 = vmul.f32 %v6800, 0.7978846
        %v7057 = vmul.f32 %v6801, 0.7978846
        %v7058 = vmul.f32 %v6802, 0.7978846
        %v7059 = vmul.f32 %v6803, 0.7978846
        %v7060 = vmul.f32 %v6804, 0.7978846
        %v7061 = vmul.f32 %v6805, 0.7978846
        %v7062 = vmul.f32 %v6806, 0.7978846
        %v7063 = vmul.f32 %v6807, 0.7978846
        %v7064 = vmul.f32 %v6808, 0.7978846
        %v7065 = vmul.f32 %v6809, 0.7978846
        %v7066 = vmul.f32 %v6810, 0.7978846
        %v7067 = vmul.f32 %v6811, 0.7978846
        %v7068 = vmul.f32 %v6812, 0.7978846
        %v7069 = vmul.f32 %v6813, 0.7978846
        %v7070 = vmul.f32 %v6814, 0.7978846
        %v7071 = vmul.f32 %v6815, 0.7978846
        %v7072 = vmul.f32 %v6816, 0.7978846
        %v7073 = vmul.f32 %v6817, 0.7978846
        %v7074 = vmul.f32 %v6818, 0.7978846
        %v7075 = vmul.f32 %v6819, 0.7978846
        %v7076 = vmul.f32 %v6820, 0.7978846
        %v7077 = vmul.f32 %v6821, 0.7978846
        %v7078 = vmul.f32 %v6822, 0.7978846
        %v7079 = vmul.f32 %v6823, 0.7978846
        %v7080 = vmul.f32 %v6824, 0.7978846
        %v7081 = vmul.f32 %v6825, 0.7978846
        %v7082 = vmul.f32 %v6826, 0.7978846
        %v7083 = vmul.f32 %v6827, 0.7978846
        %v7084 = vmul.f32 %v6828, 0.7978846
        %v7085 = vmul.f32 %v6829, 0.7978846
        %v7086 = vmul.f32 %v6830, 0.7978846
        %v7087 = vmul.f32 %v6831, 0.7978846
        %v7088 = vmul.f32 %v6832, 0.7978846
        %v7089 = vmul.f32 %v6833, 0.7978846
        %v7090 = vmul.f32 %v6834, 0.7978846
        %v7091 = vmul.f32 %v6835, 0.7978846
        %v7092 = vmul.f32 %v6836, 0.7978846
        %v7093 = vmul.f32 %v6837, 0.7978846
        %v7094 = vmul.f32 %v6838, 0.7978846
        %v7095 = vmul.f32 %v6839, 0.7978846
        %v7096 = vmul.f32 %v6840, 0.7978846
        %v7097 = vmul.f32 %v6841, 0.7978846
        %v7098 = vmul.f32 %v6842, 0.7978846
        %v7099 = vmul.f32 %v6843, 0.7978846
        %v7100 = vmul.f32 %v6844, 0.7978846
        %v7101 = vmul.f32 %v6845, 0.7978846
        %v7102 = vmul.f32 %v6846, 0.7978846
        %v7103 = vmul.f32 %v6847, 0.7978846
        %v7104 = vmul.f32 %v6848, 0.7978846
        %v7105 = vmul.f32 %v6849, 0.7978846
        %v7106 = vmul.f32 %v6850, 0.7978846
        %v7107 = vmul.f32 %v6851, 0.7978846
        %v7108 = vmul.f32 %v6852, 0.7978846
        %v7109 = vmul.f32 %v6853, 0.7978846
        %v7110 = vmul.f32 %v6854, 0.7978846
        %v7111 = vmul.f32 %v6855, 0.7978846
        %v7112 = vmul.f32 %v6856, 0.7978846
        %v7113 = vmul.f32 %v6857, 0.7978846
        %v7114 = vmul.f32 %v6858, 0.7978846
        %v7115 = vmul.f32 %v6859, 0.7978846
        %v7116 = vmul.f32 %v6860, 0.7978846
        %v7117 = vmul.f32 %v6861, 0.7978846
        %v7118 = vmul.f32 %v6862, 0.7978846
        %v7119 = vmul.f32 %v6863, 0.7978846
        %v7120 = vmul.f32 %v6864, 0.7978846
        %v7121 = vmul.f32 %v6865, 0.7978846
        %v7122 = vmul.f32 %v6866, 0.7978846
        %v7123 = vmul.f32 %v6867, 0.7978846
        %v7124 = vmul.f32 %v6868, 0.7978846
        %v7125 = vmul.f32 %v6869, 0.7978846
        %v7126 = vmul.f32 %v6870, 0.7978846
        %v7127 = vmul.f32 %v6871, 0.7978846
        %v7128 = vmul.f32 %v6872, 0.7978846
        %v7129 = vmul.f32 %v6873, 0.7978846
        %v7130 = vmul.f32 %v6874, 0.7978846
        %v7131 = vmul.f32 %v6875, 0.7978846
        %v7132 = vmul.f32 %v6876, 0.7978846
        %v7133 = vmul.f32 %v6877, 0.7978846
        %v7134 = vmul.f32 %v6878, 0.7978846
        %v7135 = vmul.f32 %v6879, 0.7978846
        %v7136 = vmul.f32 %v6880, 0.7978846
        %v7137 = vmul.f32 %v6881, 0.7978846
        %v7138 = vmul.f32 %v6882, 0.7978846
        %v7139 = vmul.f32 %v6883, 0.7978846
        %v7140 = vmul.f32 %v6884, 0.7978846
        %v7141 = vmul.f32 %v6885, 0.7978846
        %v7142 = vmul.f32 %v6886, 0.7978846
        %v7143 = vmul.f32 %v6887, 0.7978846
        %v7144 = vmul.f32 %v6888, 0.7978846
        %v7145 = vmul.f32 %v6889, 0.7978846
        %v7146 = vmul.f32 %v6890, 0.7978846
        %v7147 = vmul.f32 %v6891, 0.7978846
        %v7148 = vmul.f32 %v6892, 0.7978846
        %v7149 = vmul.f32 %v6893, 0.7978846
        %v7150 = vmul.f32 %v6894, 0.7978846
        %v7151 = vmul.f32 %v6895, 0.7978846
        %v7152 = vmul.f32 %v6896, 0.7978846
        %v7153 = vmul.f32 %v6897, 0.7978846
        %v7154 = vmul.f32 %v6898, 0.7978846
        %v7155 = vmul.f32 %v6899, 0.7978846
        %v7156 = vmul.f32 %v6900, 0.7978846
        %v7157 = vmul.f32 %v6901, 0.7978846
        %v7158 = vmul.f32 %v6902, 0.7978846
        %v7159 = vmul.f32 %v6903, 0.7978846
        %v7160 = vmul.f32 %v6904, 0.7978846
        %v7161 = vmul.f32 %v6905, 0.7978846
        %v7162 = vmul.f32 %v6906, 0.7978846
        %v7163 = vmul.f32 %v6907, 0.7978846
        %v7164 = vmul.f32 %v6908, 0.7978846
        %v7165 = vmul.f32 %v6909, 0.7978846
        %v7166 = vmul.f32 %v6910, 0.7978846
        %v7167 = vmul.f32 %v6911, 0.7978846
        %v7168 = vmul.f32 %v6912, 0.7978846
        %v7169 = vmul.f32 %v6913, 0.7978846
        %v7170 = vmul.f32 %v6914, 0.7978846
        %v7171 = vtanh.pop %v6915
        %v7172 = vtanh.pop %v6916
        %v7173 = vtanh.pop %v6917
        %v7174 = vtanh.pop %v6918
        %v7175 = vtanh.pop %v6919
        %v7176 = vtanh.pop %v6920
        %v7177 = vtanh.pop %v6921
        %v7178 = vtanh.pop %v6922
        %v7179 = vtanh.pop %v6923
        %v7180 = vtanh.pop %v6924
        %v7181 = vtanh.pop %v6925
        %v7182 = vtanh.pop %v6926
        %v7183 = vtanh.pop %v6927
        %v7184 = vtanh.pop %v6928
        %v7185 = vtanh.pop %v6929
        %v7186 = vtanh.pop %v6930
        %v7187 = vtanh.pop %v6931
        %v7188 = vtanh.pop %v6932
        %v7189 = vtanh.pop %v6933
        %v7190 = vtanh.pop %v6934
        %v7191 = vtanh.pop %v6935
        %v7192 = vtanh.pop %v6936
        %v7193 = vtanh.pop %v6937
        %v7194 = vtanh.pop %v6938
        %v7195 = vtanh.pop %v6939
        %v7196 = vtanh.pop %v6940
        %v7197 = vtanh.pop %v6941
        %v7198 = vtanh.pop %v6942
        %v7199 = vtanh.pop %v6943
        %v7200 = vtanh.pop %v6944
        %v7201 = vtanh.pop %v6945
        %v7202 = vtanh.pop %v6946
        %v7203 = vtanh.pop %v6947
        %v7204 = vtanh.pop %v6948
        %v7205 = vtanh.pop %v6949
        %v7206 = vtanh.pop %v6950
        %v7207 = vtanh.pop %v6951
        %v7208 = vtanh.pop %v6952
        %v7209 = vtanh.pop %v6953
        %v7210 = vtanh.pop %v6954
        %v7211 = vtanh.pop %v6955
        %v7212 = vtanh.pop %v6956
        %v7213 = vtanh.pop %v6957
        %v7214 = vtanh.pop %v6958
        %v7215 = vtanh.pop %v6959
        %v7216 = vtanh.pop %v6960
        %v7217 = vtanh.pop %v6961
        %v7218 = vtanh.pop %v6962
        %v7219 = vtanh.pop %v6963
        %v7220 = vtanh.pop %v6964
        %v7221 = vtanh.pop %v6965
        %v7222 = vtanh.pop %v6966
        %v7223 = vtanh.pop %v6967
        %v7224 = vtanh.pop %v6968
        %v7225 = vtanh.pop %v6969
        %v7226 = vtanh.pop %v6970
        %v7227 = vtanh.pop %v6971
        %v7228 = vtanh.pop %v6972
        %v7229 = vtanh.pop %v6973
        %v7230 = vtanh.pop %v6974
        %v7231 = vtanh.pop %v6975
        %v7232 = vtanh.pop %v6976
        %v7233 = vtanh.pop %v6977
        %v7234 = vtanh.pop %v6978
        %v7235 = vtanh.pop %v6979
        %v7236 = vtanh.pop %v6980
        %v7237 = vtanh.pop %v6981
        %v7238 = vtanh.pop %v6982
        %v7239 = vtanh.pop %v6983
        %v7240 = vtanh.pop %v6984
        %v7241 = vtanh.pop %v6985
        %v7242 = vtanh.pop %v6986
        %v7243 = vtanh.pop %v6987
        %v7244 = vtanh.pop %v6988
        %v7245 = vtanh.pop %v6989
        %v7246 = vtanh.pop %v6990
        %v7247 = vtanh.pop %v6991
        %v7248 = vtanh.pop %v6992
        %v7249 = vtanh.pop %v6993
        %v7250 = vtanh.pop %v6994
        %v7251 = vtanh.pop %v6995
        %v7252 = vtanh.pop %v6996
        %v7253 = vtanh.pop %v6997
        %v7254 = vtanh.pop %v6998
        %v7255 = vtanh.pop %v6999
        %v7256 = vtanh.pop %v7000
        %v7257 = vtanh.pop %v7001
        %v7258 = vtanh.pop %v7002
        %v7259 = vtanh.pop %v7003
        %v7260 = vtanh.pop %v7004
        %v7261 = vtanh.pop %v7005
        %v7262 = vtanh.pop %v7006
        %v7263 = vtanh.pop %v7007
        %v7264 = vtanh.pop %v7008
        %v7265 = vtanh.pop %v7009
        %v7266 = vtanh.pop %v7010
        %v7267 = vtanh.pop %v7011
        %v7268 = vtanh.pop %v7012
        %v7269 = vtanh.pop %v7013
        %v7270 = vtanh.pop %v7014
        %v7271 = vtanh.pop %v7015
        %v7272 = vtanh.pop %v7016
        %v7273 = vtanh.pop %v7017
        %v7274 = vtanh.pop %v7018
        %v7275 = vtanh.pop %v7019
        %v7276 = vtanh.pop %v7020
        %v7277 = vtanh.pop %v7021
        %v7278 = vtanh.pop %v7022
        %v7279 = vtanh.pop %v7023
        %v7280 = vtanh.pop %v7024
        %v7281 = vtanh.pop %v7025
        %v7282 = vtanh.pop %v7026
        %v7283 = vtanh.pop %v7027
        %v7284 = vtanh.pop %v7028
        %v7285 = vtanh.pop %v7029
        %v7286 = vtanh.pop %v7030
        %v7287 = vtanh.pop %v7031
        %v7288 = vtanh.pop %v7032
        %v7289 = vtanh.pop %v7033
        %v7290 = vtanh.pop %v7034
        %v7291 = vtanh.pop %v7035
        %v7292 = vtanh.pop %v7036
        %v7293 = vtanh.pop %v7037
        %v7294 = vtanh.pop %v7038
        %v7295 = vtanh.pop %v7039
        %v7296 = vtanh.pop %v7040
        %v7297 = vtanh.pop %v7041
        %v7298 = vtanh.pop %v7042
        %v7299 = vtanh.pop %v7043
        %v7300 = vtanh.pop %v7044
        %v7301 = vtanh.pop %v7045
        %v7302 = vtanh.pop %v7046
        %v7303 = vtanh.pop %v7047
        %v7304 = vtanh.pop %v7048
        %v7305 = vtanh.pop %v7049
        %v7306 = vtanh.pop %v7050
        %v7307 = vtanh.pop %v7051
        %v7308 = vtanh.pop %v7052
        %v7309 = vtanh.pop %v7053
        %v7310 = vtanh.pop %v7054
        %v7311 = vtanh.pop %v7055
        %v7312 = vtanh.pop %v7056
        %v7313 = vtanh.pop %v7057
        %v7314 = vtanh.pop %v7058
        %v7315 = vtanh.pop %v7059
        %v7316 = vtanh.pop %v7060
        %v7317 = vtanh.pop %v7061
        %v7318 = vtanh.pop %v7062
        %v7319 = vtanh.pop %v7063
        %v7320 = vtanh.pop %v7064
        %v7321 = vtanh.pop %v7065
        %v7322 = vtanh.pop %v7066
        %v7323 = vtanh.pop %v7067
        %v7324 = vtanh.pop %v7068
        %v7325 = vtanh.pop %v7069
        %v7326 = vtanh.pop %v7070
        %v7327 = vtanh.pop %v7071
        %v7328 = vtanh.pop %v7072
        %v7329 = vtanh.pop %v7073
        %v7330 = vtanh.pop %v7074
        %v7331 = vtanh.pop %v7075
        %v7332 = vtanh.pop %v7076
        %v7333 = vtanh.pop %v7077
        %v7334 = vtanh.pop %v7078
        %v7335 = vtanh.pop %v7079
        %v7336 = vtanh.pop %v7080
        %v7337 = vtanh.pop %v7081
        %v7338 = vtanh.pop %v7082
        %v7339 = vtanh.pop %v7083
        %v7340 = vtanh.pop %v7084
        %v7341 = vtanh.pop %v7085
        %v7342 = vtanh.pop %v7086
        %v7343 = vtanh.pop %v7087
        %v7344 = vtanh.pop %v7088
        %v7345 = vtanh.pop %v7089
        %v7346 = vtanh.pop %v7090
        %v7347 = vtanh.pop %v7091
        %v7348 = vtanh.pop %v7092
        %v7349 = vtanh.pop %v7093
        %v7350 = vtanh.pop %v7094
        %v7351 = vtanh.pop %v7095
        %v7352 = vtanh.pop %v7096
        %v7353 = vtanh.pop %v7097
        %v7354 = vtanh.pop %v7098
        %v7355 = vtanh.pop %v7099
        %v7356 = vtanh.pop %v7100
        %v7357 = vtanh.pop %v7101
        %v7358 = vtanh.pop %v7102
        %v7359 = vtanh.pop %v7103
        %v7360 = vtanh.pop %v7104
        %v7361 = vtanh.pop %v7105
        %v7362 = vtanh.pop %v7106
        %v7363 = vtanh.pop %v7107
        %v7364 = vtanh.pop %v7108
        %v7365 = vtanh.pop %v7109
        %v7366 = vtanh.pop %v7110
        %v7367 = vtanh.pop %v7111
        %v7368 = vtanh.pop %v7112
        %v7369 = vtanh.pop %v7113
        %v7370 = vtanh.pop %v7114
        %v7371 = vtanh.pop %v7115
        %v7372 = vtanh.pop %v7116
        %v7373 = vtanh.pop %v7117
        %v7374 = vtanh.pop %v7118
        %v7375 = vtanh.pop %v7119
        %v7376 = vtanh.pop %v7120
        %v7377 = vtanh.pop %v7121
        %v7378 = vtanh.pop %v7122
        %v7379 = vtanh.pop %v7123
        %v7380 = vtanh.pop %v7124
        %v7381 = vtanh.pop %v7125
        %v7382 = vtanh.pop %v7126
        %v7383 = vtanh.pop %v7127
        %v7384 = vtanh.pop %v7128
        %v7385 = vtanh.pop %v7129
        %v7386 = vtanh.pop %v7130
        %v7387 = vtanh.pop %v7131
        %v7388 = vtanh.pop %v7132
        %v7389 = vtanh.pop %v7133
        %v7390 = vtanh.pop %v7134
        %v7391 = vtanh.pop %v7135
        %v7392 = vtanh.pop %v7136
        %v7393 = vtanh.pop %v7137
        %v7394 = vtanh.pop %v7138
        %v7395 = vtanh.pop %v7139
        %v7396 = vtanh.pop %v7140
        %v7397 = vtanh.pop %v7141
        %v7398 = vtanh.pop %v7142
        %v7399 = vtanh.pop %v7143
        %v7400 = vtanh.pop %v7144
        %v7401 = vtanh.pop %v7145
        %v7402 = vtanh.pop %v7146
        %v7403 = vtanh.pop %v7147
        %v7404 = vtanh.pop %v7148
        %v7405 = vtanh.pop %v7149
        %v7406 = vtanh.pop %v7150
        %v7407 = vtanh.pop %v7151
        %v7408 = vtanh.pop %v7152
        %v7409 = vtanh.pop %v7153
        %v7410 = vtanh.pop %v7154
        %v7411 = vtanh.pop %v7155
        %v7412 = vtanh.pop %v7156
        %v7413 = vtanh.pop %v7157
        %v7414 = vtanh.pop %v7158
        %v7415 = vtanh.pop %v7159
        %v7416 = vtanh.pop %v7160
        %v7417 = vtanh.pop %v7161
        %v7418 = vtanh.pop %v7162
        %v7419 = vtanh.pop %v7163
        %v7420 = vtanh.pop %v7164
        %v7421 = vtanh.pop %v7165
        %v7422 = vtanh.pop %v7166
        %v7423 = vtanh.pop %v7167
        %v7424 = vtanh.pop %v7168
        %v7425 = vtanh.pop %v7169
        %v7426 = vtanh.pop %v7170
        %v7427 = vadd.f32 %v7171, 1.0
        %v7428 = vadd.f32 %v7172, 1.0
        %v7429 = vadd.f32 %v7173, 1.0
        %v7430 = vadd.f32 %v7174, 1.0
        %v7431 = vadd.f32 %v7175, 1.0
        %v7432 = vadd.f32 %v7176, 1.0
        %v7433 = vadd.f32 %v7177, 1.0
        %v7434 = vadd.f32 %v7178, 1.0
        %v7435 = vadd.f32 %v7179, 1.0
        %v7436 = vadd.f32 %v7180, 1.0
        %v7437 = vadd.f32 %v7181, 1.0
        %v7438 = vadd.f32 %v7182, 1.0
        %v7439 = vadd.f32 %v7183, 1.0
        %v7440 = vadd.f32 %v7184, 1.0
        %v7441 = vadd.f32 %v7185, 1.0
        %v7442 = vadd.f32 %v7186, 1.0
        %v7443 = vadd.f32 %v7187, 1.0
        %v7444 = vadd.f32 %v7188, 1.0
        %v7445 = vadd.f32 %v7189, 1.0
        %v7446 = vadd.f32 %v7190, 1.0
        %v7447 = vadd.f32 %v7191, 1.0
        %v7448 = vadd.f32 %v7192, 1.0
        %v7449 = vadd.f32 %v7193, 1.0
        %v7450 = vadd.f32 %v7194, 1.0
        %v7451 = vadd.f32 %v7195, 1.0
        %v7452 = vadd.f32 %v7196, 1.0
        %v7453 = vadd.f32 %v7197, 1.0
        %v7454 = vadd.f32 %v7198, 1.0
        %v7455 = vadd.f32 %v7199, 1.0
        %v7456 = vadd.f32 %v7200, 1.0
        %v7457 = vadd.f32 %v7201, 1.0
        %v7458 = vadd.f32 %v7202, 1.0
        %v7459 = vadd.f32 %v7203, 1.0
        %v7460 = vadd.f32 %v7204, 1.0
        %v7461 = vadd.f32 %v7205, 1.0
        %v7462 = vadd.f32 %v7206, 1.0
        %v7463 = vadd.f32 %v7207, 1.0
        %v7464 = vadd.f32 %v7208, 1.0
        %v7465 = vadd.f32 %v7209, 1.0
        %v7466 = vadd.f32 %v7210, 1.0
        %v7467 = vadd.f32 %v7211, 1.0
        %v7468 = vadd.f32 %v7212, 1.0
        %v7469 = vadd.f32 %v7213, 1.0
        %v7470 = vadd.f32 %v7214, 1.0
        %v7471 = vadd.f32 %v7215, 1.0
        %v7472 = vadd.f32 %v7216, 1.0
        %v7473 = vadd.f32 %v7217, 1.0
        %v7474 = vadd.f32 %v7218, 1.0
        %v7475 = vadd.f32 %v7219, 1.0
        %v7476 = vadd.f32 %v7220, 1.0
        %v7477 = vadd.f32 %v7221, 1.0
        %v7478 = vadd.f32 %v7222, 1.0
        %v7479 = vadd.f32 %v7223, 1.0
        %v7480 = vadd.f32 %v7224, 1.0
        %v7481 = vadd.f32 %v7225, 1.0
        %v7482 = vadd.f32 %v7226, 1.0
        %v7483 = vadd.f32 %v7227, 1.0
        %v7484 = vadd.f32 %v7228, 1.0
        %v7485 = vadd.f32 %v7229, 1.0
        %v7486 = vadd.f32 %v7230, 1.0
        %v7487 = vadd.f32 %v7231, 1.0
        %v7488 = vadd.f32 %v7232, 1.0
        %v7489 = vadd.f32 %v7233, 1.0
        %v7490 = vadd.f32 %v7234, 1.0
        %v7491 = vadd.f32 %v7235, 1.0
        %v7492 = vadd.f32 %v7236, 1.0
        %v7493 = vadd.f32 %v7237, 1.0
        %v7494 = vadd.f32 %v7238, 1.0
        %v7495 = vadd.f32 %v7239, 1.0
        %v7496 = vadd.f32 %v7240, 1.0
        %v7497 = vadd.f32 %v7241, 1.0
        %v7498 = vadd.f32 %v7242, 1.0
        %v7499 = vadd.f32 %v7243, 1.0
        %v7500 = vadd.f32 %v7244, 1.0
        %v7501 = vadd.f32 %v7245, 1.0
        %v7502 = vadd.f32 %v7246, 1.0
        %v7503 = vadd.f32 %v7247, 1.0
        %v7504 = vadd.f32 %v7248, 1.0
        %v7505 = vadd.f32 %v7249, 1.0
        %v7506 = vadd.f32 %v7250, 1.0
        %v7507 = vadd.f32 %v7251, 1.0
        %v7508 = vadd.f32 %v7252, 1.0
        %v7509 = vadd.f32 %v7253, 1.0
        %v7510 = vadd.f32 %v7254, 1.0
        %v7511 = vadd.f32 %v7255, 1.0
        %v7512 = vadd.f32 %v7256, 1.0
        %v7513 = vadd.f32 %v7257, 1.0
        %v7514 = vadd.f32 %v7258, 1.0
        %v7515 = vadd.f32 %v7259, 1.0
        %v7516 = vadd.f32 %v7260, 1.0
        %v7517 = vadd.f32 %v7261, 1.0
        %v7518 = vadd.f32 %v7262, 1.0
        %v7519 = vadd.f32 %v7263, 1.0
        %v7520 = vadd.f32 %v7264, 1.0
        %v7521 = vadd.f32 %v7265, 1.0
        %v7522 = vadd.f32 %v7266, 1.0
        %v7523 = vadd.f32 %v7267, 1.0
        %v7524 = vadd.f32 %v7268, 1.0
        %v7525 = vadd.f32 %v7269, 1.0
        %v7526 = vadd.f32 %v7270, 1.0
        %v7527 = vadd.f32 %v7271, 1.0
        %v7528 = vadd.f32 %v7272, 1.0
        %v7529 = vadd.f32 %v7273, 1.0
        %v7530 = vadd.f32 %v7274, 1.0
        %v7531 = vadd.f32 %v7275, 1.0
        %v7532 = vadd.f32 %v7276, 1.0
        %v7533 = vadd.f32 %v7277, 1.0
        %v7534 = vadd.f32 %v7278, 1.0
        %v7535 = vadd.f32 %v7279, 1.0
        %v7536 = vadd.f32 %v7280, 1.0
        %v7537 = vadd.f32 %v7281, 1.0
        %v7538 = vadd.f32 %v7282, 1.0
        %v7539 = vadd.f32 %v7283, 1.0
        %v7540 = vadd.f32 %v7284, 1.0
        %v7541 = vadd.f32 %v7285, 1.0
        %v7542 = vadd.f32 %v7286, 1.0
        %v7543 = vadd.f32 %v7287, 1.0
        %v7544 = vadd.f32 %v7288, 1.0
        %v7545 = vadd.f32 %v7289, 1.0
        %v7546 = vadd.f32 %v7290, 1.0
        %v7547 = vadd.f32 %v7291, 1.0
        %v7548 = vadd.f32 %v7292, 1.0
        %v7549 = vadd.f32 %v7293, 1.0
        %v7550 = vadd.f32 %v7294, 1.0
        %v7551 = vadd.f32 %v7295, 1.0
        %v7552 = vadd.f32 %v7296, 1.0
        %v7553 = vadd.f32 %v7297, 1.0
        %v7554 = vadd.f32 %v7298, 1.0
        %v7555 = vadd.f32 %v7299, 1.0
        %v7556 = vadd.f32 %v7300, 1.0
        %v7557 = vadd.f32 %v7301, 1.0
        %v7558 = vadd.f32 %v7302, 1.0
        %v7559 = vadd.f32 %v7303, 1.0
        %v7560 = vadd.f32 %v7304, 1.0
        %v7561 = vadd.f32 %v7305, 1.0
        %v7562 = vadd.f32 %v7306, 1.0
        %v7563 = vadd.f32 %v7307, 1.0
        %v7564 = vadd.f32 %v7308, 1.0
        %v7565 = vadd.f32 %v7309, 1.0
        %v7566 = vadd.f32 %v7310, 1.0
        %v7567 = vadd.f32 %v7311, 1.0
        %v7568 = vadd.f32 %v7312, 1.0
        %v7569 = vadd.f32 %v7313, 1.0
        %v7570 = vadd.f32 %v7314, 1.0
        %v7571 = vadd.f32 %v7315, 1.0
        %v7572 = vadd.f32 %v7316, 1.0
        %v7573 = vadd.f32 %v7317, 1.0
        %v7574 = vadd.f32 %v7318, 1.0
        %v7575 = vadd.f32 %v7319, 1.0
        %v7576 = vadd.f32 %v7320, 1.0
        %v7577 = vadd.f32 %v7321, 1.0
        %v7578 = vadd.f32 %v7322, 1.0
        %v7579 = vadd.f32 %v7323, 1.0
        %v7580 = vadd.f32 %v7324, 1.0
        %v7581 = vadd.f32 %v7325, 1.0
        %v7582 = vadd.f32 %v7326, 1.0
        %v7583 = vadd.f32 %v7327, 1.0
        %v7584 = vadd.f32 %v7328, 1.0
        %v7585 = vadd.f32 %v7329, 1.0
        %v7586 = vadd.f32 %v7330, 1.0
        %v7587 = vadd.f32 %v7331, 1.0
        %v7588 = vadd.f32 %v7332, 1.0
        %v7589 = vadd.f32 %v7333, 1.0
        %v7590 = vadd.f32 %v7334, 1.0
        %v7591 = vadd.f32 %v7335, 1.0
        %v7592 = vadd.f32 %v7336, 1.0
        %v7593 = vadd.f32 %v7337, 1.0
        %v7594 = vadd.f32 %v7338, 1.0
        %v7595 = vadd.f32 %v7339, 1.0
        %v7596 = vadd.f32 %v7340, 1.0
        %v7597 = vadd.f32 %v7341, 1.0
        %v7598 = vadd.f32 %v7342, 1.0
        %v7599 = vadd.f32 %v7343, 1.0
        %v7600 = vadd.f32 %v7344, 1.0
        %v7601 = vadd.f32 %v7345, 1.0
        %v7602 = vadd.f32 %v7346, 1.0
        %v7603 = vadd.f32 %v7347, 1.0
        %v7604 = vadd.f32 %v7348, 1.0
        %v7605 = vadd.f32 %v7349, 1.0
        %v7606 = vadd.f32 %v7350, 1.0
        %v7607 = vadd.f32 %v7351, 1.0
        %v7608 = vadd.f32 %v7352, 1.0
        %v7609 = vadd.f32 %v7353, 1.0
        %v7610 = vadd.f32 %v7354, 1.0
        %v7611 = vadd.f32 %v7355, 1.0
        %v7612 = vadd.f32 %v7356, 1.0
        %v7613 = vadd.f32 %v7357, 1.0
        %v7614 = vadd.f32 %v7358, 1.0
        %v7615 = vadd.f32 %v7359, 1.0
        %v7616 = vadd.f32 %v7360, 1.0
        %v7617 = vadd.f32 %v7361, 1.0
        %v7618 = vadd.f32 %v7362, 1.0
        %v7619 = vadd.f32 %v7363, 1.0
        %v7620 = vadd.f32 %v7364, 1.0
        %v7621 = vadd.f32 %v7365, 1.0
        %v7622 = vadd.f32 %v7366, 1.0
        %v7623 = vadd.f32 %v7367, 1.0
        %v7624 = vadd.f32 %v7368, 1.0
        %v7625 = vadd.f32 %v7369, 1.0
        %v7626 = vadd.f32 %v7370, 1.0
        %v7627 = vadd.f32 %v7371, 1.0
        %v7628 = vadd.f32 %v7372, 1.0
        %v7629 = vadd.f32 %v7373, 1.0
        %v7630 = vadd.f32 %v7374, 1.0
        %v7631 = vadd.f32 %v7375, 1.0
        %v7632 = vadd.f32 %v7376, 1.0
        %v7633 = vadd.f32 %v7377, 1.0
        %v7634 = vadd.f32 %v7378, 1.0
        %v7635 = vadd.f32 %v7379, 1.0
        %v7636 = vadd.f32 %v7380, 1.0
        %v7637 = vadd.f32 %v7381, 1.0
        %v7638 = vadd.f32 %v7382, 1.0
        %v7639 = vadd.f32 %v7383, 1.0
        %v7640 = vadd.f32 %v7384, 1.0
        %v7641 = vadd.f32 %v7385, 1.0
        %v7642 = vadd.f32 %v7386, 1.0
        %v7643 = vadd.f32 %v7387, 1.0
        %v7644 = vadd.f32 %v7388, 1.0
        %v7645 = vadd.f32 %v7389, 1.0
        %v7646 = vadd.f32 %v7390, 1.0
        %v7647 = vadd.f32 %v7391, 1.0
        %v7648 = vadd.f32 %v7392, 1.0
        %v7649 = vadd.f32 %v7393, 1.0
        %v7650 = vadd.f32 %v7394, 1.0
        %v7651 = vadd.f32 %v7395, 1.0
        %v7652 = vadd.f32 %v7396, 1.0
        %v7653 = vadd.f32 %v7397, 1.0
        %v7654 = vadd.f32 %v7398, 1.0
        %v7655 = vadd.f32 %v7399, 1.0
        %v7656 = vadd.f32 %v7400, 1.0
        %v7657 = vadd.f32 %v7401, 1.0
        %v7658 = vadd.f32 %v7402, 1.0
        %v7659 = vadd.f32 %v7403, 1.0
        %v7660 = vadd.f32 %v7404, 1.0
        %v7661 = vadd.f32 %v7405, 1.0
        %v7662 = vadd.f32 %v7406, 1.0
        %v7663 = vadd.f32 %v7407, 1.0
        %v7664 = vadd.f32 %v7408, 1.0
        %v7665 = vadd.f32 %v7409, 1.0
        %v7666 = vadd.f32 %v7410, 1.0
        %v7667 = vadd.f32 %v7411, 1.0
        %v7668 = vadd.f32 %v7412, 1.0
        %v7669 = vadd.f32 %v7413, 1.0
        %v7670 = vadd.f32 %v7414, 1.0
        %v7671 = vadd.f32 %v7415, 1.0
        %v7672 = vadd.f32 %v7416, 1.0
        %v7673 = vadd.f32 %v7417, 1.0
        %v7674 = vadd.f32 %v7418, 1.0
        %v7675 = vadd.f32 %v7419, 1.0
        %v7676 = vadd.f32 %v7420, 1.0
        %v7677 = vadd.f32 %v7421, 1.0
        %v7678 = vadd.f32 %v7422, 1.0
        %v7679 = vadd.f32 %v7423, 1.0
        %v7680 = vadd.f32 %v7424, 1.0
        %v7681 = vadd.f32 %v7425, 1.0
        %v7682 = vadd.f32 %v7426, 1.0
        %v7683 = vmul.f32 %v7427, 0.5
        %v7684 = vmul.f32 %v7428, 0.5
        %v7685 = vmul.f32 %v7429, 0.5
        %v7686 = vmul.f32 %v7430, 0.5
        %v7687 = vmul.f32 %v7431, 0.5
        %v7688 = vmul.f32 %v7432, 0.5
        %v7689 = vmul.f32 %v7433, 0.5
        %v7690 = vmul.f32 %v7434, 0.5
        %v7691 = vmul.f32 %v7435, 0.5
        %v7692 = vmul.f32 %v7436, 0.5
        %v7693 = vmul.f32 %v7437, 0.5
        %v7694 = vmul.f32 %v7438, 0.5
        %v7695 = vmul.f32 %v7439, 0.5
        %v7696 = vmul.f32 %v7440, 0.5
        %v7697 = vmul.f32 %v7441, 0.5
        %v7698 = vmul.f32 %v7442, 0.5
        %v7699 = vmul.f32 %v7443, 0.5
        %v7700 = vmul.f32 %v7444, 0.5
        %v7701 = vmul.f32 %v7445, 0.5
        %v7702 = vmul.f32 %v7446, 0.5
        %v7703 = vmul.f32 %v7447, 0.5
        %v7704 = vmul.f32 %v7448, 0.5
        %v7705 = vmul.f32 %v7449, 0.5
        %v7706 = vmul.f32 %v7450, 0.5
        %v7707 = vmul.f32 %v7451, 0.5
        %v7708 = vmul.f32 %v7452, 0.5
        %v7709 = vmul.f32 %v7453, 0.5
        %v7710 = vmul.f32 %v7454, 0.5
        %v7711 = vmul.f32 %v7455, 0.5
        %v7712 = vmul.f32 %v7456, 0.5
        %v7713 = vmul.f32 %v7457, 0.5
        %v7714 = vmul.f32 %v7458, 0.5
        %v7715 = vmul.f32 %v7459, 0.5
        %v7716 = vmul.f32 %v7460, 0.5
        %v7717 = vmul.f32 %v7461, 0.5
        %v7718 = vmul.f32 %v7462, 0.5
        %v7719 = vmul.f32 %v7463, 0.5
        %v7720 = vmul.f32 %v7464, 0.5
        %v7721 = vmul.f32 %v7465, 0.5
        %v7722 = vmul.f32 %v7466, 0.5
        %v7723 = vmul.f32 %v7467, 0.5
        %v7724 = vmul.f32 %v7468, 0.5
        %v7725 = vmul.f32 %v7469, 0.5
        %v7726 = vmul.f32 %v7470, 0.5
        %v7727 = vmul.f32 %v7471, 0.5
        %v7728 = vmul.f32 %v7472, 0.5
        %v7729 = vmul.f32 %v7473, 0.5
        %v7730 = vmul.f32 %v7474, 0.5
        %v7731 = vmul.f32 %v7475, 0.5
        %v7732 = vmul.f32 %v7476, 0.5
        %v7733 = vmul.f32 %v7477, 0.5
        %v7734 = vmul.f32 %v7478, 0.5
        %v7735 = vmul.f32 %v7479, 0.5
        %v7736 = vmul.f32 %v7480, 0.5
        %v7737 = vmul.f32 %v7481, 0.5
        %v7738 = vmul.f32 %v7482, 0.5
        %v7739 = vmul.f32 %v7483, 0.5
        %v7740 = vmul.f32 %v7484, 0.5
        %v7741 = vmul.f32 %v7485, 0.5
        %v7742 = vmul.f32 %v7486, 0.5
        %v7743 = vmul.f32 %v7487, 0.5
        %v7744 = vmul.f32 %v7488, 0.5
        %v7745 = vmul.f32 %v7489, 0.5
        %v7746 = vmul.f32 %v7490, 0.5
        %v7747 = vmul.f32 %v7491, 0.5
        %v7748 = vmul.f32 %v7492, 0.5
        %v7749 = vmul.f32 %v7493, 0.5
        %v7750 = vmul.f32 %v7494, 0.5
        %v7751 = vmul.f32 %v7495, 0.5
        %v7752 = vmul.f32 %v7496, 0.5
        %v7753 = vmul.f32 %v7497, 0.5
        %v7754 = vmul.f32 %v7498, 0.5
        %v7755 = vmul.f32 %v7499, 0.5
        %v7756 = vmul.f32 %v7500, 0.5
        %v7757 = vmul.f32 %v7501, 0.5
        %v7758 = vmul.f32 %v7502, 0.5
        %v7759 = vmul.f32 %v7503, 0.5
        %v7760 = vmul.f32 %v7504, 0.5
        %v7761 = vmul.f32 %v7505, 0.5
        %v7762 = vmul.f32 %v7506, 0.5
        %v7763 = vmul.f32 %v7507, 0.5
        %v7764 = vmul.f32 %v7508, 0.5
        %v7765 = vmul.f32 %v7509, 0.5
        %v7766 = vmul.f32 %v7510, 0.5
        %v7767 = vmul.f32 %v7511, 0.5
        %v7768 = vmul.f32 %v7512, 0.5
        %v7769 = vmul.f32 %v7513, 0.5
        %v7770 = vmul.f32 %v7514, 0.5
        %v7771 = vmul.f32 %v7515, 0.5
        %v7772 = vmul.f32 %v7516, 0.5
        %v7773 = vmul.f32 %v7517, 0.5
        %v7774 = vmul.f32 %v7518, 0.5
        %v7775 = vmul.f32 %v7519, 0.5
        %v7776 = vmul.f32 %v7520, 0.5
        %v7777 = vmul.f32 %v7521, 0.5
        %v7778 = vmul.f32 %v7522, 0.5
        %v7779 = vmul.f32 %v7523, 0.5
        %v7780 = vmul.f32 %v7524, 0.5
        %v7781 = vmul.f32 %v7525, 0.5
        %v7782 = vmul.f32 %v7526, 0.5
        %v7783 = vmul.f32 %v7527, 0.5
        %v7784 = vmul.f32 %v7528, 0.5
        %v7785 = vmul.f32 %v7529, 0.5
        %v7786 = vmul.f32 %v7530, 0.5
        %v7787 = vmul.f32 %v7531, 0.5
        %v7788 = vmul.f32 %v7532, 0.5
        %v7789 = vmul.f32 %v7533, 0.5
        %v7790 = vmul.f32 %v7534, 0.5
        %v7791 = vmul.f32 %v7535, 0.5
        %v7792 = vmul.f32 %v7536, 0.5
        %v7793 = vmul.f32 %v7537, 0.5
        %v7794 = vmul.f32 %v7538, 0.5
        %v7795 = vmul.f32 %v7539, 0.5
        %v7796 = vmul.f32 %v7540, 0.5
        %v7797 = vmul.f32 %v7541, 0.5
        %v7798 = vmul.f32 %v7542, 0.5
        %v7799 = vmul.f32 %v7543, 0.5
        %v7800 = vmul.f32 %v7544, 0.5
        %v7801 = vmul.f32 %v7545, 0.5
        %v7802 = vmul.f32 %v7546, 0.5
        %v7803 = vmul.f32 %v7547, 0.5
        %v7804 = vmul.f32 %v7548, 0.5
        %v7805 = vmul.f32 %v7549, 0.5
        %v7806 = vmul.f32 %v7550, 0.5
        %v7807 = vmul.f32 %v7551, 0.5
        %v7808 = vmul.f32 %v7552, 0.5
        %v7809 = vmul.f32 %v7553, 0.5
        %v7810 = vmul.f32 %v7554, 0.5
        %v7811 = vmul.f32 %v7555, 0.5
        %v7812 = vmul.f32 %v7556, 0.5
        %v7813 = vmul.f32 %v7557, 0.5
        %v7814 = vmul.f32 %v7558, 0.5
        %v7815 = vmul.f32 %v7559, 0.5
        %v7816 = vmul.f32 %v7560, 0.5
        %v7817 = vmul.f32 %v7561, 0.5
        %v7818 = vmul.f32 %v7562, 0.5
        %v7819 = vmul.f32 %v7563, 0.5
        %v7820 = vmul.f32 %v7564, 0.5
        %v7821 = vmul.f32 %v7565, 0.5
        %v7822 = vmul.f32 %v7566, 0.5
        %v7823 = vmul.f32 %v7567, 0.5
        %v7824 = vmul.f32 %v7568, 0.5
        %v7825 = vmul.f32 %v7569, 0.5
        %v7826 = vmul.f32 %v7570, 0.5
        %v7827 = vmul.f32 %v7571, 0.5
        %v7828 = vmul.f32 %v7572, 0.5
        %v7829 = vmul.f32 %v7573, 0.5
        %v7830 = vmul.f32 %v7574, 0.5
        %v7831 = vmul.f32 %v7575, 0.5
        %v7832 = vmul.f32 %v7576, 0.5
        %v7833 = vmul.f32 %v7577, 0.5
        %v7834 = vmul.f32 %v7578, 0.5
        %v7835 = vmul.f32 %v7579, 0.5
        %v7836 = vmul.f32 %v7580, 0.5
        %v7837 = vmul.f32 %v7581, 0.5
        %v7838 = vmul.f32 %v7582, 0.5
        %v7839 = vmul.f32 %v7583, 0.5
        %v7840 = vmul.f32 %v7584, 0.5
        %v7841 = vmul.f32 %v7585, 0.5
        %v7842 = vmul.f32 %v7586, 0.5
        %v7843 = vmul.f32 %v7587, 0.5
        %v7844 = vmul.f32 %v7588, 0.5
        %v7845 = vmul.f32 %v7589, 0.5
        %v7846 = vmul.f32 %v7590, 0.5
        %v7847 = vmul.f32 %v7591, 0.5
        %v7848 = vmul.f32 %v7592, 0.5
        %v7849 = vmul.f32 %v7593, 0.5
        %v7850 = vmul.f32 %v7594, 0.5
        %v7851 = vmul.f32 %v7595, 0.5
        %v7852 = vmul.f32 %v7596, 0.5
        %v7853 = vmul.f32 %v7597, 0.5
        %v7854 = vmul.f32 %v7598, 0.5
        %v7855 = vmul.f32 %v7599, 0.5
        %v7856 = vmul.f32 %v7600, 0.5
        %v7857 = vmul.f32 %v7601, 0.5
        %v7858 = vmul.f32 %v7602, 0.5
        %v7859 = vmul.f32 %v7603, 0.5
        %v7860 = vmul.f32 %v7604, 0.5
        %v7861 = vmul.f32 %v7605, 0.5
        %v7862 = vmul.f32 %v7606, 0.5
        %v7863 = vmul.f32 %v7607, 0.5
        %v7864 = vmul.f32 %v7608, 0.5
        %v7865 = vmul.f32 %v7609, 0.5
        %v7866 = vmul.f32 %v7610, 0.5
        %v7867 = vmul.f32 %v7611, 0.5
        %v7868 = vmul.f32 %v7612, 0.5
        %v7869 = vmul.f32 %v7613, 0.5
        %v7870 = vmul.f32 %v7614, 0.5
        %v7871 = vmul.f32 %v7615, 0.5
        %v7872 = vmul.f32 %v7616, 0.5
        %v7873 = vmul.f32 %v7617, 0.5
        %v7874 = vmul.f32 %v7618, 0.5
        %v7875 = vmul.f32 %v7619, 0.5
        %v7876 = vmul.f32 %v7620, 0.5
        %v7877 = vmul.f32 %v7621, 0.5
        %v7878 = vmul.f32 %v7622, 0.5
        %v7879 = vmul.f32 %v7623, 0.5
        %v7880 = vmul.f32 %v7624, 0.5
        %v7881 = vmul.f32 %v7625, 0.5
        %v7882 = vmul.f32 %v7626, 0.5
        %v7883 = vmul.f32 %v7627, 0.5
        %v7884 = vmul.f32 %v7628, 0.5
        %v7885 = vmul.f32 %v7629, 0.5
        %v7886 = vmul.f32 %v7630, 0.5
        %v7887 = vmul.f32 %v7631, 0.5
        %v7888 = vmul.f32 %v7632, 0.5
        %v7889 = vmul.f32 %v7633, 0.5
        %v7890 = vmul.f32 %v7634, 0.5
        %v7891 = vmul.f32 %v7635, 0.5
        %v7892 = vmul.f32 %v7636, 0.5
        %v7893 = vmul.f32 %v7637, 0.5
        %v7894 = vmul.f32 %v7638, 0.5
        %v7895 = vmul.f32 %v7639, 0.5
        %v7896 = vmul.f32 %v7640, 0.5
        %v7897 = vmul.f32 %v7641, 0.5
        %v7898 = vmul.f32 %v7642, 0.5
        %v7899 = vmul.f32 %v7643, 0.5
        %v7900 = vmul.f32 %v7644, 0.5
        %v7901 = vmul.f32 %v7645, 0.5
        %v7902 = vmul.f32 %v7646, 0.5
        %v7903 = vmul.f32 %v7647, 0.5
        %v7904 = vmul.f32 %v7648, 0.5
        %v7905 = vmul.f32 %v7649, 0.5
        %v7906 = vmul.f32 %v7650, 0.5
        %v7907 = vmul.f32 %v7651, 0.5
        %v7908 = vmul.f32 %v7652, 0.5
        %v7909 = vmul.f32 %v7653, 0.5
        %v7910 = vmul.f32 %v7654, 0.5
        %v7911 = vmul.f32 %v7655, 0.5
        %v7912 = vmul.f32 %v7656, 0.5
        %v7913 = vmul.f32 %v7657, 0.5
        %v7914 = vmul.f32 %v7658, 0.5
        %v7915 = vmul.f32 %v7659, 0.5
        %v7916 = vmul.f32 %v7660, 0.5
        %v7917 = vmul.f32 %v7661, 0.5
        %v7918 = vmul.f32 %v7662, 0.5
        %v7919 = vmul.f32 %v7663, 0.5
        %v7920 = vmul.f32 %v7664, 0.5
        %v7921 = vmul.f32 %v7665, 0.5
        %v7922 = vmul.f32 %v7666, 0.5
        %v7923 = vmul.f32 %v7667, 0.5
        %v7924 = vmul.f32 %v7668, 0.5
        %v7925 = vmul.f32 %v7669, 0.5
        %v7926 = vmul.f32 %v7670, 0.5
        %v7927 = vmul.f32 %v7671, 0.5
        %v7928 = vmul.f32 %v7672, 0.5
        %v7929 = vmul.f32 %v7673, 0.5
        %v7930 = vmul.f32 %v7674, 0.5
        %v7931 = vmul.f32 %v7675, 0.5
        %v7932 = vmul.f32 %v7676, 0.5
        %v7933 = vmul.f32 %v7677, 0.5
        %v7934 = vmul.f32 %v7678, 0.5
        %v7935 = vmul.f32 %v7679, 0.5
        %v7936 = vmul.f32 %v7680, 0.5
        %v7937 = vmul.f32 %v7681, 0.5
        %v7938 = vmul.f32 %v7682, 0.5
        %v7939 = vmul.f32 %v5635, %v7683
        %v7940 = vmul.f32 %v5636, %v7684
        %v7941 = vmul.f32 %v5637, %v7685
        %v7942 = vmul.f32 %v5638, %v7686
        %v7943 = vmul.f32 %v5639, %v7687
        %v7944 = vmul.f32 %v5640, %v7688
        %v7945 = vmul.f32 %v5641, %v7689
        %v7946 = vmul.f32 %v5642, %v7690
        %v7947 = vmul.f32 %v5643, %v7691
        %v7948 = vmul.f32 %v5644, %v7692
        %v7949 = vmul.f32 %v5645, %v7693
        %v7950 = vmul.f32 %v5646, %v7694
        %v7951 = vmul.f32 %v5647, %v7695
        %v7952 = vmul.f32 %v5648, %v7696
        %v7953 = vmul.f32 %v5649, %v7697
        %v7954 = vmul.f32 %v5650, %v7698
        %v7955 = vmul.f32 %v5651, %v7699
        %v7956 = vmul.f32 %v5652, %v7700
        %v7957 = vmul.f32 %v5653, %v7701
        %v7958 = vmul.f32 %v5654, %v7702
        %v7959 = vmul.f32 %v5655, %v7703
        %v7960 = vmul.f32 %v5656, %v7704
        %v7961 = vmul.f32 %v5657, %v7705
        %v7962 = vmul.f32 %v5658, %v7706
        %v7963 = vmul.f32 %v5659, %v7707
        %v7964 = vmul.f32 %v5660, %v7708
        %v7965 = vmul.f32 %v5661, %v7709
        %v7966 = vmul.f32 %v5662, %v7710
        %v7967 = vmul.f32 %v5663, %v7711
        %v7968 = vmul.f32 %v5664, %v7712
        %v7969 = vmul.f32 %v5665, %v7713
        %v7970 = vmul.f32 %v5666, %v7714
        %v7971 = vmul.f32 %v5667, %v7715
        %v7972 = vmul.f32 %v5668, %v7716
        %v7973 = vmul.f32 %v5669, %v7717
        %v7974 = vmul.f32 %v5670, %v7718
        %v7975 = vmul.f32 %v5671, %v7719
        %v7976 = vmul.f32 %v5672, %v7720
        %v7977 = vmul.f32 %v5673, %v7721
        %v7978 = vmul.f32 %v5674, %v7722
        %v7979 = vmul.f32 %v5675, %v7723
        %v7980 = vmul.f32 %v5676, %v7724
        %v7981 = vmul.f32 %v5677, %v7725
        %v7982 = vmul.f32 %v5678, %v7726
        %v7983 = vmul.f32 %v5679, %v7727
        %v7984 = vmul.f32 %v5680, %v7728
        %v7985 = vmul.f32 %v5681, %v7729
        %v7986 = vmul.f32 %v5682, %v7730
        %v7987 = vmul.f32 %v5683, %v7731
        %v7988 = vmul.f32 %v5684, %v7732
        %v7989 = vmul.f32 %v5685, %v7733
        %v7990 = vmul.f32 %v5686, %v7734
        %v7991 = vmul.f32 %v5687, %v7735
        %v7992 = vmul.f32 %v5688, %v7736
        %v7993 = vmul.f32 %v5689, %v7737
        %v7994 = vmul.f32 %v5690, %v7738
        %v7995 = vmul.f32 %v5691, %v7739
        %v7996 = vmul.f32 %v5692, %v7740
        %v7997 = vmul.f32 %v5693, %v7741
        %v7998 = vmul.f32 %v5694, %v7742
        %v7999 = vmul.f32 %v5695, %v7743
        %v8000 = vmul.f32 %v5696, %v7744
        %v8001 = vmul.f32 %v5697, %v7745
        %v8002 = vmul.f32 %v5698, %v7746
        %v8003 = vmul.f32 %v5699, %v7747
        %v8004 = vmul.f32 %v5700, %v7748
        %v8005 = vmul.f32 %v5701, %v7749
        %v8006 = vmul.f32 %v5702, %v7750
        %v8007 = vmul.f32 %v5703, %v7751
        %v8008 = vmul.f32 %v5704, %v7752
        %v8009 = vmul.f32 %v5705, %v7753
        %v8010 = vmul.f32 %v5706, %v7754
        %v8011 = vmul.f32 %v5707, %v7755
        %v8012 = vmul.f32 %v5708, %v7756
        %v8013 = vmul.f32 %v5709, %v7757
        %v8014 = vmul.f32 %v5710, %v7758
        %v8015 = vmul.f32 %v5711, %v7759
        %v8016 = vmul.f32 %v5712, %v7760
        %v8017 = vmul.f32 %v5713, %v7761
        %v8018 = vmul.f32 %v5714, %v7762
        %v8019 = vmul.f32 %v5715, %v7763
        %v8020 = vmul.f32 %v5716, %v7764
        %v8021 = vmul.f32 %v5717, %v7765
        %v8022 = vmul.f32 %v5718, %v7766
        %v8023 = vmul.f32 %v5719, %v7767
        %v8024 = vmul.f32 %v5720, %v7768
        %v8025 = vmul.f32 %v5721, %v7769
        %v8026 = vmul.f32 %v5722, %v7770
        %v8027 = vmul.f32 %v5723, %v7771
        %v8028 = vmul.f32 %v5724, %v7772
        %v8029 = vmul.f32 %v5725, %v7773
        %v8030 = vmul.f32 %v5726, %v7774
        %v8031 = vmul.f32 %v5727, %v7775
        %v8032 = vmul.f32 %v5728, %v7776
        %v8033 = vmul.f32 %v5729, %v7777
        %v8034 = vmul.f32 %v5730, %v7778
        %v8035 = vmul.f32 %v5731, %v7779
        %v8036 = vmul.f32 %v5732, %v7780
        %v8037 = vmul.f32 %v5733, %v7781
        %v8038 = vmul.f32 %v5734, %v7782
        %v8039 = vmul.f32 %v5735, %v7783
        %v8040 = vmul.f32 %v5736, %v7784
        %v8041 = vmul.f32 %v5737, %v7785
        %v8042 = vmul.f32 %v5738, %v7786
        %v8043 = vmul.f32 %v5739, %v7787
        %v8044 = vmul.f32 %v5740, %v7788
        %v8045 = vmul.f32 %v5741, %v7789
        %v8046 = vmul.f32 %v5742, %v7790
        %v8047 = vmul.f32 %v5743, %v7791
        %v8048 = vmul.f32 %v5744, %v7792
        %v8049 = vmul.f32 %v5745, %v7793
        %v8050 = vmul.f32 %v5746, %v7794
        %v8051 = vmul.f32 %v5747, %v7795
        %v8052 = vmul.f32 %v5748, %v7796
        %v8053 = vmul.f32 %v5749, %v7797
        %v8054 = vmul.f32 %v5750, %v7798
        %v8055 = vmul.f32 %v5751, %v7799
        %v8056 = vmul.f32 %v5752, %v7800
        %v8057 = vmul.f32 %v5753, %v7801
        %v8058 = vmul.f32 %v5754, %v7802
        %v8059 = vmul.f32 %v5755, %v7803
        %v8060 = vmul.f32 %v5756, %v7804
        %v8061 = vmul.f32 %v5757, %v7805
        %v8062 = vmul.f32 %v5758, %v7806
        %v8063 = vmul.f32 %v5759, %v7807
        %v8064 = vmul.f32 %v5760, %v7808
        %v8065 = vmul.f32 %v5761, %v7809
        %v8066 = vmul.f32 %v5762, %v7810
        %v8067 = vmul.f32 %v5763, %v7811
        %v8068 = vmul.f32 %v5764, %v7812
        %v8069 = vmul.f32 %v5765, %v7813
        %v8070 = vmul.f32 %v5766, %v7814
        %v8071 = vmul.f32 %v5767, %v7815
        %v8072 = vmul.f32 %v5768, %v7816
        %v8073 = vmul.f32 %v5769, %v7817
        %v8074 = vmul.f32 %v5770, %v7818
        %v8075 = vmul.f32 %v5771, %v7819
        %v8076 = vmul.f32 %v5772, %v7820
        %v8077 = vmul.f32 %v5773, %v7821
        %v8078 = vmul.f32 %v5774, %v7822
        %v8079 = vmul.f32 %v5775, %v7823
        %v8080 = vmul.f32 %v5776, %v7824
        %v8081 = vmul.f32 %v5777, %v7825
        %v8082 = vmul.f32 %v5778, %v7826
        %v8083 = vmul.f32 %v5779, %v7827
        %v8084 = vmul.f32 %v5780, %v7828
        %v8085 = vmul.f32 %v5781, %v7829
        %v8086 = vmul.f32 %v5782, %v7830
        %v8087 = vmul.f32 %v5783, %v7831
        %v8088 = vmul.f32 %v5784, %v7832
        %v8089 = vmul.f32 %v5785, %v7833
        %v8090 = vmul.f32 %v5786, %v7834
        %v8091 = vmul.f32 %v5787, %v7835
        %v8092 = vmul.f32 %v5788, %v7836
        %v8093 = vmul.f32 %v5789, %v7837
        %v8094 = vmul.f32 %v5790, %v7838
        %v8095 = vmul.f32 %v5791, %v7839
        %v8096 = vmul.f32 %v5792, %v7840
        %v8097 = vmul.f32 %v5793, %v7841
        %v8098 = vmul.f32 %v5794, %v7842
        %v8099 = vmul.f32 %v5795, %v7843
        %v8100 = vmul.f32 %v5796, %v7844
        %v8101 = vmul.f32 %v5797, %v7845
        %v8102 = vmul.f32 %v5798, %v7846
        %v8103 = vmul.f32 %v5799, %v7847
        %v8104 = vmul.f32 %v5800, %v7848
        %v8105 = vmul.f32 %v5801, %v7849
        %v8106 = vmul.f32 %v5802, %v7850
        %v8107 = vmul.f32 %v5803, %v7851
        %v8108 = vmul.f32 %v5804, %v7852
        %v8109 = vmul.f32 %v5805, %v7853
        %v8110 = vmul.f32 %v5806, %v7854
        %v8111 = vmul.f32 %v5807, %v7855
        %v8112 = vmul.f32 %v5808, %v7856
        %v8113 = vmul.f32 %v5809, %v7857
        %v8114 = vmul.f32 %v5810, %v7858
        %v8115 = vmul.f32 %v5811, %v7859
        %v8116 = vmul.f32 %v5812, %v7860
        %v8117 = vmul.f32 %v5813, %v7861
        %v8118 = vmul.f32 %v5814, %v7862
        %v8119 = vmul.f32 %v5815, %v7863
        %v8120 = vmul.f32 %v5816, %v7864
        %v8121 = vmul.f32 %v5817, %v7865
        %v8122 = vmul.f32 %v5818, %v7866
        %v8123 = vmul.f32 %v5819, %v7867
        %v8124 = vmul.f32 %v5820, %v7868
        %v8125 = vmul.f32 %v5821, %v7869
        %v8126 = vmul.f32 %v5822, %v7870
        %v8127 = vmul.f32 %v5823, %v7871
        %v8128 = vmul.f32 %v5824, %v7872
        %v8129 = vmul.f32 %v5825, %v7873
        %v8130 = vmul.f32 %v5826, %v7874
        %v8131 = vmul.f32 %v5827, %v7875
        %v8132 = vmul.f32 %v5828, %v7876
        %v8133 = vmul.f32 %v5829, %v7877
        %v8134 = vmul.f32 %v5830, %v7878
        %v8135 = vmul.f32 %v5831, %v7879
        %v8136 = vmul.f32 %v5832, %v7880
        %v8137 = vmul.f32 %v5833, %v7881
        %v8138 = vmul.f32 %v5834, %v7882
        %v8139 = vmul.f32 %v5835, %v7883
        %v8140 = vmul.f32 %v5836, %v7884
        %v8141 = vmul.f32 %v5837, %v7885
        %v8142 = vmul.f32 %v5838, %v7886
        %v8143 = vmul.f32 %v5839, %v7887
        %v8144 = vmul.f32 %v5840, %v7888
        %v8145 = vmul.f32 %v5841, %v7889
        %v8146 = vmul.f32 %v5842, %v7890
        %v8147 = vmul.f32 %v5843, %v7891
        %v8148 = vmul.f32 %v5844, %v7892
        %v8149 = vmul.f32 %v5845, %v7893
        %v8150 = vmul.f32 %v5846, %v7894
        %v8151 = vmul.f32 %v5847, %v7895
        %v8152 = vmul.f32 %v5848, %v7896
        %v8153 = vmul.f32 %v5849, %v7897
        %v8154 = vmul.f32 %v5850, %v7898
        %v8155 = vmul.f32 %v5851, %v7899
        %v8156 = vmul.f32 %v5852, %v7900
        %v8157 = vmul.f32 %v5853, %v7901
        %v8158 = vmul.f32 %v5854, %v7902
        %v8159 = vmul.f32 %v5855, %v7903
        %v8160 = vmul.f32 %v5856, %v7904
        %v8161 = vmul.f32 %v5857, %v7905
        %v8162 = vmul.f32 %v5858, %v7906
        %v8163 = vmul.f32 %v5859, %v7907
        %v8164 = vmul.f32 %v5860, %v7908
        %v8165 = vmul.f32 %v5861, %v7909
        %v8166 = vmul.f32 %v5862, %v7910
        %v8167 = vmul.f32 %v5863, %v7911
        %v8168 = vmul.f32 %v5864, %v7912
        %v8169 = vmul.f32 %v5865, %v7913
        %v8170 = vmul.f32 %v5866, %v7914
        %v8171 = vmul.f32 %v5867, %v7915
        %v8172 = vmul.f32 %v5868, %v7916
        %v8173 = vmul.f32 %v5869, %v7917
        %v8174 = vmul.f32 %v5870, %v7918
        %v8175 = vmul.f32 %v5871, %v7919
        %v8176 = vmul.f32 %v5872, %v7920
        %v8177 = vmul.f32 %v5873, %v7921
        %v8178 = vmul.f32 %v5874, %v7922
        %v8179 = vmul.f32 %v5875, %v7923
        %v8180 = vmul.f32 %v5876, %v7924
        %v8181 = vmul.f32 %v5877, %v7925
        %v8182 = vmul.f32 %v5878, %v7926
        %v8183 = vmul.f32 %v5879, %v7927
        %v8184 = vmul.f32 %v5880, %v7928
        %v8185 = vmul.f32 %v5881, %v7929
        %v8186 = vmul.f32 %v5882, %v7930
        %v8187 = vmul.f32 %v5883, %v7931
        %v8188 = vmul.f32 %v5884, %v7932
        %v8189 = vmul.f32 %v5885, %v7933
        %v8190 = vmul.f32 %v5886, %v7934
        %v8191 = vmul.f32 %v5887, %v7935
        %v8192 = vmul.f32 %v5888, %v7936
        %v8193 = vmul.f32 %v5889, %v7937
        %v8194 = vmul.f32 %v5890, %v7938
        %v8195 = vmul.f32 %v7939, %v4318
        %v8196 = vmul.f32 %v7940, %v4319
        %v8197 = vmul.f32 %v7941, %v4320
        %v8198 = vmul.f32 %v7942, %v4321
        %v8199 = vmul.f32 %v7943, %v4322
        %v8200 = vmul.f32 %v7944, %v4323
        %v8201 = vmul.f32 %v7945, %v4324
        %v8202 = vmul.f32 %v7946, %v4325
        %v8203 = vmul.f32 %v7947, %v4326
        %v8204 = vmul.f32 %v7948, %v4327
        %v8205 = vmul.f32 %v7949, %v4328
        %v8206 = vmul.f32 %v7950, %v4329
        %v8207 = vmul.f32 %v7951, %v4330
        %v8208 = vmul.f32 %v7952, %v4331
        %v8209 = vmul.f32 %v7953, %v4332
        %v8210 = vmul.f32 %v7954, %v4333
        %v8211 = vmul.f32 %v7955, %v4334
        %v8212 = vmul.f32 %v7956, %v4335
        %v8213 = vmul.f32 %v7957, %v4336
        %v8214 = vmul.f32 %v7958, %v4337
        %v8215 = vmul.f32 %v7959, %v4338
        %v8216 = vmul.f32 %v7960, %v4339
        %v8217 = vmul.f32 %v7961, %v4340
        %v8218 = vmul.f32 %v7962, %v4341
        %v8219 = vmul.f32 %v7963, %v4342
        %v8220 = vmul.f32 %v7964, %v4343
        %v8221 = vmul.f32 %v7965, %v4344
        %v8222 = vmul.f32 %v7966, %v4345
        %v8223 = vmul.f32 %v7967, %v4346
        %v8224 = vmul.f32 %v7968, %v4347
        %v8225 = vmul.f32 %v7969, %v4348
        %v8226 = vmul.f32 %v7970, %v4349
        %v8227 = vmul.f32 %v7971, %v4350
        %v8228 = vmul.f32 %v7972, %v4351
        %v8229 = vmul.f32 %v7973, %v4352
        %v8230 = vmul.f32 %v7974, %v4353
        %v8231 = vmul.f32 %v7975, %v4354
        %v8232 = vmul.f32 %v7976, %v4355
        %v8233 = vmul.f32 %v7977, %v4356
        %v8234 = vmul.f32 %v7978, %v4357
        %v8235 = vmul.f32 %v7979, %v4358
        %v8236 = vmul.f32 %v7980, %v4359
        %v8237 = vmul.f32 %v7981, %v4360
        %v8238 = vmul.f32 %v7982, %v4361
        %v8239 = vmul.f32 %v7983, %v4362
        %v8240 = vmul.f32 %v7984, %v4363
        %v8241 = vmul.f32 %v7985, %v4364
        %v8242 = vmul.f32 %v7986, %v4365
        %v8243 = vmul.f32 %v7987, %v4366
        %v8244 = vmul.f32 %v7988, %v4367
        %v8245 = vmul.f32 %v7989, %v4368
        %v8246 = vmul.f32 %v7990, %v4369
        %v8247 = vmul.f32 %v7991, %v4370
        %v8248 = vmul.f32 %v7992, %v4371
        %v8249 = vmul.f32 %v7993, %v4372
        %v8250 = vmul.f32 %v7994, %v4373
        %v8251 = vmul.f32 %v7995, %v4374
        %v8252 = vmul.f32 %v7996, %v4375
        %v8253 = vmul.f32 %v7997, %v4376
        %v8254 = vmul.f32 %v7998, %v4377
        %v8255 = vmul.f32 %v7999, %v4378
        %v8256 = vmul.f32 %v8000, %v4379
        %v8257 = vmul.f32 %v8001, %v4380
        %v8258 = vmul.f32 %v8002, %v4381
        %v8259 = vmul.f32 %v8003, %v4382
        %v8260 = vmul.f32 %v8004, %v4383
        %v8261 = vmul.f32 %v8005, %v4384
        %v8262 = vmul.f32 %v8006, %v4385
        %v8263 = vmul.f32 %v8007, %v4386
        %v8264 = vmul.f32 %v8008, %v4387
        %v8265 = vmul.f32 %v8009, %v4388
        %v8266 = vmul.f32 %v8010, %v4389
        %v8267 = vmul.f32 %v8011, %v4390
        %v8268 = vmul.f32 %v8012, %v4391
        %v8269 = vmul.f32 %v8013, %v4392
        %v8270 = vmul.f32 %v8014, %v4393
        %v8271 = vmul.f32 %v8015, %v4394
        %v8272 = vmul.f32 %v8016, %v4395
        %v8273 = vmul.f32 %v8017, %v4396
        %v8274 = vmul.f32 %v8018, %v4397
        %v8275 = vmul.f32 %v8019, %v4398
        %v8276 = vmul.f32 %v8020, %v4399
        %v8277 = vmul.f32 %v8021, %v4400
        %v8278 = vmul.f32 %v8022, %v4401
        %v8279 = vmul.f32 %v8023, %v4402
        %v8280 = vmul.f32 %v8024, %v4403
        %v8281 = vmul.f32 %v8025, %v4404
        %v8282 = vmul.f32 %v8026, %v4405
        %v8283 = vmul.f32 %v8027, %v4406
        %v8284 = vmul.f32 %v8028, %v4407
        %v8285 = vmul.f32 %v8029, %v4408
        %v8286 = vmul.f32 %v8030, %v4409
        %v8287 = vmul.f32 %v8031, %v4410
        %v8288 = vmul.f32 %v8032, %v4411
        %v8289 = vmul.f32 %v8033, %v4412
        %v8290 = vmul.f32 %v8034, %v4413
        %v8291 = vmul.f32 %v8035, %v4414
        %v8292 = vmul.f32 %v8036, %v4415
        %v8293 = vmul.f32 %v8037, %v4416
        %v8294 = vmul.f32 %v8038, %v4417
        %v8295 = vmul.f32 %v8039, %v4418
        %v8296 = vmul.f32 %v8040, %v4419
        %v8297 = vmul.f32 %v8041, %v4420
        %v8298 = vmul.f32 %v8042, %v4421
        %v8299 = vmul.f32 %v8043, %v4422
        %v8300 = vmul.f32 %v8044, %v4423
        %v8301 = vmul.f32 %v8045, %v4424
        %v8302 = vmul.f32 %v8046, %v4425
        %v8303 = vmul.f32 %v8047, %v4426
        %v8304 = vmul.f32 %v8048, %v4427
        %v8305 = vmul.f32 %v8049, %v4428
        %v8306 = vmul.f32 %v8050, %v4429
        %v8307 = vmul.f32 %v8051, %v4430
        %v8308 = vmul.f32 %v8052, %v4431
        %v8309 = vmul.f32 %v8053, %v4432
        %v8310 = vmul.f32 %v8054, %v4433
        %v8311 = vmul.f32 %v8055, %v4434
        %v8312 = vmul.f32 %v8056, %v4435
        %v8313 = vmul.f32 %v8057, %v4436
        %v8314 = vmul.f32 %v8058, %v4437
        %v8315 = vmul.f32 %v8059, %v4438
        %v8316 = vmul.f32 %v8060, %v4439
        %v8317 = vmul.f32 %v8061, %v4440
        %v8318 = vmul.f32 %v8062, %v4441
        %v8319 = vmul.f32 %v8063, %v4442
        %v8320 = vmul.f32 %v8064, %v4443
        %v8321 = vmul.f32 %v8065, %v4444
        %v8322 = vmul.f32 %v8066, %v4445
        %v8323 = vmul.f32 %v8067, %v4446
        %v8324 = vmul.f32 %v8068, %v4447
        %v8325 = vmul.f32 %v8069, %v4448
        %v8326 = vmul.f32 %v8070, %v4449
        %v8327 = vmul.f32 %v8071, %v4450
        %v8328 = vmul.f32 %v8072, %v4451
        %v8329 = vmul.f32 %v8073, %v4452
        %v8330 = vmul.f32 %v8074, %v4453
        %v8331 = vmul.f32 %v8075, %v4454
        %v8332 = vmul.f32 %v8076, %v4455
        %v8333 = vmul.f32 %v8077, %v4456
        %v8334 = vmul.f32 %v8078, %v4457
        %v8335 = vmul.f32 %v8079, %v4458
        %v8336 = vmul.f32 %v8080, %v4459
        %v8337 = vmul.f32 %v8081, %v4460
        %v8338 = vmul.f32 %v8082, %v4461
        %v8339 = vmul.f32 %v8083, %v4462
        %v8340 = vmul.f32 %v8084, %v4463
        %v8341 = vmul.f32 %v8085, %v4464
        %v8342 = vmul.f32 %v8086, %v4465
        %v8343 = vmul.f32 %v8087, %v4466
        %v8344 = vmul.f32 %v8088, %v4467
        %v8345 = vmul.f32 %v8089, %v4468
        %v8346 = vmul.f32 %v8090, %v4469
        %v8347 = vmul.f32 %v8091, %v4470
        %v8348 = vmul.f32 %v8092, %v4471
        %v8349 = vmul.f32 %v8093, %v4472
        %v8350 = vmul.f32 %v8094, %v4473
        %v8351 = vmul.f32 %v8095, %v4474
        %v8352 = vmul.f32 %v8096, %v4475
        %v8353 = vmul.f32 %v8097, %v4476
        %v8354 = vmul.f32 %v8098, %v4477
        %v8355 = vmul.f32 %v8099, %v4478
        %v8356 = vmul.f32 %v8100, %v4479
        %v8357 = vmul.f32 %v8101, %v4480
        %v8358 = vmul.f32 %v8102, %v4481
        %v8359 = vmul.f32 %v8103, %v4482
        %v8360 = vmul.f32 %v8104, %v4483
        %v8361 = vmul.f32 %v8105, %v4484
        %v8362 = vmul.f32 %v8106, %v4485
        %v8363 = vmul.f32 %v8107, %v4486
        %v8364 = vmul.f32 %v8108, %v4487
        %v8365 = vmul.f32 %v8109, %v4488
        %v8366 = vmul.f32 %v8110, %v4489
        %v8367 = vmul.f32 %v8111, %v4490
        %v8368 = vmul.f32 %v8112, %v4491
        %v8369 = vmul.f32 %v8113, %v4492
        %v8370 = vmul.f32 %v8114, %v4493
        %v8371 = vmul.f32 %v8115, %v4494
        %v8372 = vmul.f32 %v8116, %v4495
        %v8373 = vmul.f32 %v8117, %v4496
        %v8374 = vmul.f32 %v8118, %v4497
        %v8375 = vmul.f32 %v8119, %v4498
        %v8376 = vmul.f32 %v8120, %v4499
        %v8377 = vmul.f32 %v8121, %v4500
        %v8378 = vmul.f32 %v8122, %v4501
        %v8379 = vmul.f32 %v8123, %v4502
        %v8380 = vmul.f32 %v8124, %v4503
        %v8381 = vmul.f32 %v8125, %v4504
        %v8382 = vmul.f32 %v8126, %v4505
        %v8383 = vmul.f32 %v8127, %v4506
        %v8384 = vmul.f32 %v8128, %v4507
        %v8385 = vmul.f32 %v8129, %v4508
        %v8386 = vmul.f32 %v8130, %v4509
        %v8387 = vmul.f32 %v8131, %v4510
        %v8388 = vmul.f32 %v8132, %v4511
        %v8389 = vmul.f32 %v8133, %v4512
        %v8390 = vmul.f32 %v8134, %v4513
        %v8391 = vmul.f32 %v8135, %v4514
        %v8392 = vmul.f32 %v8136, %v4515
        %v8393 = vmul.f32 %v8137, %v4516
        %v8394 = vmul.f32 %v8138, %v4517
        %v8395 = vmul.f32 %v8139, %v4518
        %v8396 = vmul.f32 %v8140, %v4519
        %v8397 = vmul.f32 %v8141, %v4520
        %v8398 = vmul.f32 %v8142, %v4521
        %v8399 = vmul.f32 %v8143, %v4522
        %v8400 = vmul.f32 %v8144, %v4523
        %v8401 = vmul.f32 %v8145, %v4524
        %v8402 = vmul.f32 %v8146, %v4525
        %v8403 = vmul.f32 %v8147, %v4526
        %v8404 = vmul.f32 %v8148, %v4527
        %v8405 = vmul.f32 %v8149, %v4528
        %v8406 = vmul.f32 %v8150, %v4529
        %v8407 = vmul.f32 %v8151, %v4530
        %v8408 = vmul.f32 %v8152, %v4531
        %v8409 = vmul.f32 %v8153, %v4532
        %v8410 = vmul.f32 %v8154, %v4533
        %v8411 = vmul.f32 %v8155, %v4534
        %v8412 = vmul.f32 %v8156, %v4535
        %v8413 = vmul.f32 %v8157, %v4536
        %v8414 = vmul.f32 %v8158, %v4537
        %v8415 = vmul.f32 %v8159, %v4538
        %v8416 = vmul.f32 %v8160, %v4539
        %v8417 = vmul.f32 %v8161, %v4540
        %v8418 = vmul.f32 %v8162, %v4541
        %v8419 = vmul.f32 %v8163, %v4542
        %v8420 = vmul.f32 %v8164, %v4543
        %v8421 = vmul.f32 %v8165, %v4544
        %v8422 = vmul.f32 %v8166, %v4545
        %v8423 = vmul.f32 %v8167, %v4546
        %v8424 = vmul.f32 %v8168, %v4547
        %v8425 = vmul.f32 %v8169, %v4548
        %v8426 = vmul.f32 %v8170, %v4549
        %v8427 = vmul.f32 %v8171, %v4550
        %v8428 = vmul.f32 %v8172, %v4551
        %v8429 = vmul.f32 %v8173, %v4552
        %v8430 = vmul.f32 %v8174, %v4553
        %v8431 = vmul.f32 %v8175, %v4554
        %v8432 = vmul.f32 %v8176, %v4555
        %v8433 = vmul.f32 %v8177, %v4556
        %v8434 = vmul.f32 %v8178, %v4557
        %v8435 = vmul.f32 %v8179, %v4558
        %v8436 = vmul.f32 %v8180, %v4559
        %v8437 = vmul.f32 %v8181, %v4560
        %v8438 = vmul.f32 %v8182, %v4561
        %v8439 = vmul.f32 %v8183, %v4562
        %v8440 = vmul.f32 %v8184, %v4563
        %v8441 = vmul.f32 %v8185, %v4564
        %v8442 = vmul.f32 %v8186, %v4565
        %v8443 = vmul.f32 %v8187, %v4566
        %v8444 = vmul.f32 %v8188, %v4567
        %v8445 = vmul.f32 %v8189, %v4568
        %v8446 = vmul.f32 %v8190, %v4569
        %v8447 = vmul.f32 %v8191, %v4570
        %v8448 = vmul.f32 %v8192, %v4571
        %v8449 = vmul.f32 %v8193, %v4572
        %v8450 = vmul.f32 %v8194, %v4573
        %v8451 = vld [vmem:[%s2 + $0x8] sm:$0xff]
        %v8452 = vld [vmem:[%s2 + $0x10] sm:$0xff]
        %v8453 = vld [vmem:[%s2 + $0x18] sm:$0xff]
        %v8454 = vld [vmem:[%s2 + $0x20] sm:$0xff]
        %v8463 = vcombine.high %v232, %v232
        %v8465 = vunpack.c.l.s4 1966171168
        %v8466 = vunpack.c.0.s8 %v8465
        %v8467 = vlaneseq
        %v8468 = vshrl.u32 %v8467, 7
        %v8469 = vsub.s32 %v8466, %v8468
        %v8470 = vrot.slane %v232, %v8469
        %v8472 = vunpack.c.l.s4 1966171168
        %v8473 = vunpack.c.0.s8 %v8472
        %v8474 = vlaneseq
        %v8475 = vshrl.u32 %v8474, 7
        %v8476 = vsub.s32 %v8473, %v8475
        %v8477 = vrot.slane %v8463, %v8476
        %v8478 = vcombine.high %v8470, %v8470
        %v8479 = vcombine.high %v8477, %v8477
        %v8481 = vunpack.c.l.s4 1966171168
        %v8482 = vunpack.c.0.s8 %v8481
        %v8483 = vlaneseq
        %v8484 = vshrl.u32 %v8483, 7
        %v8485 = vsub.s32 %v8482, %v8484
        %v8486 = vrot.slane %v8470, %v8485
        %v8488 = vunpack.c.l.s4 1966171168
        %v8489 = vunpack.c.0.s8 %v8488
        %v8490 = vlaneseq
        %v8491 = vshrl.u32 %v8490, 7
        %v8492 = vsub.s32 %v8489, %v8491
        %v8493 = vrot.slane %v8477, %v8492
        %v8495 = vunpack.c.l.s4 1966171168
        %v8496 = vunpack.c.0.s8 %v8495
        %v8497 = vlaneseq
        %v8498 = vshrl.u32 %v8497, 7
        %v8499 = vsub.s32 %v8496, %v8498
        %v8500 = vrot.slane %v8478, %v8499
        %v8502 = vunpack.c.l.s4 1966171168
        %v8503 = vunpack.c.0.s8 %v8502
        %v8504 = vlaneseq
        %v8505 = vshrl.u32 %v8504, 7
        %v8506 = vsub.s32 %v8503, %v8505
        %v8507 = vrot.slane %v8479, %v8506
        %v8508 = vcombine.high %v8486, %v8486
        %v8509 = vcombine.high %v8493, %v8493
        %v8510 = vcombine.high %v8500, %v8500
        %v8511 = vcombine.high %v8507, %v8507
        %v8512 = vcombine.high %v233, %v233
        %v8514 = vunpack.c.l.s4 1966171168
        %v8515 = vunpack.c.0.s8 %v8514
        %v8516 = vlaneseq
        %v8517 = vshrl.u32 %v8516, 7
        %v8518 = vsub.s32 %v8515, %v8517
        %v8519 = vrot.slane %v233, %v8518
        %v8521 = vunpack.c.l.s4 1966171168
        %v8522 = vunpack.c.0.s8 %v8521
        %v8523 = vlaneseq
        %v8524 = vshrl.u32 %v8523, 7
        %v8525 = vsub.s32 %v8522, %v8524
        %v8526 = vrot.slane %v8512, %v8525
        %v8527 = vcombine.high %v8519, %v8519
        %v8528 = vcombine.high %v8526, %v8526
        %v8530 = vunpack.c.l.s4 1966171168
        %v8531 = vunpack.c.0.s8 %v8530
        %v8532 = vlaneseq
        %v8533 = vshrl.u32 %v8532, 7
        %v8534 = vsub.s32 %v8531, %v8533
        %v8535 = vrot.slane %v8519, %v8534
        %v8537 = vunpack.c.l.s4 1966171168
        %v8538 = vunpack.c.0.s8 %v8537
        %v8539 = vlaneseq
        %v8540 = vshrl.u32 %v8539, 7
        %v8541 = vsub.s32 %v8538, %v8540
        %v8542 = vrot.slane %v8526, %v8541
        %v8544 = vunpack.c.l.s4 1966171168
        %v8545 = vunpack.c.0.s8 %v8544
        %v8546 = vlaneseq
        %v8547 = vshrl.u32 %v8546, 7
        %v8548 = vsub.s32 %v8545, %v8547
        %v8549 = vrot.slane %v8527, %v8548
        %v8551 = vunpack.c.l.s4 1966171168
        %v8552 = vunpack.c.0.s8 %v8551
        %v8553 = vlaneseq
        %v8554 = vshrl.u32 %v8553, 7
        %v8555 = vsub.s32 %v8552, %v8554
        %v8556 = vrot.slane %v8528, %v8555
        %v8557 = vcombine.high %v8535, %v8535
        %v8558 = vcombine.high %v8542, %v8542
        %v8559 = vcombine.high %v8549, %v8549
        %v8560 = vcombine.high %v8556, %v8556
        %v8561 = vcombine.high %v234, %v234
        %v8563 = vunpack.c.l.s4 1966171168
        %v8564 = vunpack.c.0.s8 %v8563
        %v8565 = vlaneseq
        %v8566 = vshrl.u32 %v8565, 7
        %v8567 = vsub.s32 %v8564, %v8566
        %v8568 = vrot.slane %v234, %v8567
        %v8570 = vunpack.c.l.s4 1966171168
        %v8571 = vunpack.c.0.s8 %v8570
        %v8572 = vlaneseq
        %v8573 = vshrl.u32 %v8572, 7
        %v8574 = vsub.s32 %v8571, %v8573
        %v8575 = vrot.slane %v8561, %v8574
        %v8576 = vcombine.high %v8568, %v8568
        %v8577 = vcombine.high %v8575, %v8575
        %v8579 = vunpack.c.l.s4 1966171168
        %v8580 = vunpack.c.0.s8 %v8579
        %v8581 = vlaneseq
        %v8582 = vshrl.u32 %v8581, 7
        %v8583 = vsub.s32 %v8580, %v8582
        %v8584 = vrot.slane %v8568, %v8583
        %v8586 = vunpack.c.l.s4 1966171168
        %v8587 = vunpack.c.0.s8 %v8586
        %v8588 = vlaneseq
        %v8589 = vshrl.u32 %v8588, 7
        %v8590 = vsub.s32 %v8587, %v8589
        %v8591 = vrot.slane %v8575, %v8590
        %v8593 = vunpack.c.l.s4 1966171168
        %v8594 = vunpack.c.0.s8 %v8593
        %v8595 = vlaneseq
        %v8596 = vshrl.u32 %v8595, 7
        %v8597 = vsub.s32 %v8594, %v8596
        %v8598 = vrot.slane %v8576, %v8597
        %v8600 = vunpack.c.l.s4 1966171168
        %v8601 = vunpack.c.0.s8 %v8600
        %v8602 = vlaneseq
        %v8603 = vshrl.u32 %v8602, 7
        %v8604 = vsub.s32 %v8601, %v8603
        %v8605 = vrot.slane %v8577, %v8604
        %v8606 = vcombine.high %v8584, %v8584
        %v8607 = vcombine.high %v8591, %v8591
        %v8608 = vcombine.high %v8598, %v8598
        %v8609 = vcombine.high %v8605, %v8605
        %v8610 = vcombine.high %v235, %v235
        %v8612 = vunpack.c.l.s4 1966171168
        %v8613 = vunpack.c.0.s8 %v8612
        %v8614 = vlaneseq
        %v8615 = vshrl.u32 %v8614, 7
        %v8616 = vsub.s32 %v8613, %v8615
        %v8617 = vrot.slane %v235, %v8616
        %v8619 = vunpack.c.l.s4 1966171168
        %v8620 = vunpack.c.0.s8 %v8619
        %v8621 = vlaneseq
        %v8622 = vshrl.u32 %v8621, 7
        %v8623 = vsub.s32 %v8620, %v8622
        %v8624 = vrot.slane %v8610, %v8623
        %v8625 = vcombine.high %v8617, %v8617
        %v8626 = vcombine.high %v8624, %v8624
        %v8628 = vunpack.c.l.s4 1966171168
        %v8629 = vunpack.c.0.s8 %v8628
        %v8630 = vlaneseq
        %v8631 = vshrl.u32 %v8630, 7
        %v8632 = vsub.s32 %v8629, %v8631
        %v8633 = vrot.slane %v8617, %v8632
        %v8635 = vunpack.c.l.s4 1966171168
        %v8636 = vunpack.c.0.s8 %v8635
        %v8637 = vlaneseq
        %v8638 = vshrl.u32 %v8637, 7
        %v8639 = vsub.s32 %v8636, %v8638
        %v8640 = vrot.slane %v8624, %v8639
        %v8642 = vunpack.c.l.s4 1966171168
        %v8643 = vunpack.c.0.s8 %v8642
        %v8644 = vlaneseq
        %v8645 = vshrl.u32 %v8644, 7
        %v8646 = vsub.s32 %v8643, %v8645
        %v8647 = vrot.slane %v8625, %v8646
        %v8649 = vunpack.c.l.s4 1966171168
        %v8650 = vunpack.c.0.s8 %v8649
        %v8651 = vlaneseq
        %v8652 = vshrl.u32 %v8651, 7
        %v8653 = vsub.s32 %v8650, %v8652
        %v8654 = vrot.slane %v8626, %v8653
        %v8655 = vcombine.high %v8633, %v8633
        %v8656 = vcombine.high %v8640, %v8640
        %v8657 = vcombine.high %v8647, %v8647
        %v8658 = vcombine.high %v8654, %v8654
        %v8659 = vcombine.high %v236, %v236
        %v8661 = vunpack.c.l.s4 1966171168
        %v8662 = vunpack.c.0.s8 %v8661
        %v8663 = vlaneseq
        %v8664 = vshrl.u32 %v8663, 7
        %v8665 = vsub.s32 %v8662, %v8664
        %v8666 = vrot.slane %v236, %v8665
        %v8668 = vunpack.c.l.s4 1966171168
        %v8669 = vunpack.c.0.s8 %v8668
        %v8670 = vlaneseq
        %v8671 = vshrl.u32 %v8670, 7
        %v8672 = vsub.s32 %v8669, %v8671
        %v8673 = vrot.slane %v8659, %v8672
        %v8674 = vcombine.high %v8666, %v8666
        %v8675 = vcombine.high %v8673, %v8673
        %v8677 = vunpack.c.l.s4 1966171168
        %v8678 = vunpack.c.0.s8 %v8677
        %v8679 = vlaneseq
        %v8680 = vshrl.u32 %v8679, 7
        %v8681 = vsub.s32 %v8678, %v8680
        %v8682 = vrot.slane %v8666, %v8681
        %v8684 = vunpack.c.l.s4 1966171168
        %v8685 = vunpack.c.0.s8 %v8684
        %v8686 = vlaneseq
        %v8687 = vshrl.u32 %v8686, 7
        %v8688 = vsub.s32 %v8685, %v8687
        %v8689 = vrot.slane %v8673, %v8688
        %v8691 = vunpack.c.l.s4 1966171168
        %v8692 = vunpack.c.0.s8 %v8691
        %v8693 = vlaneseq
        %v8694 = vshrl.u32 %v8693, 7
        %v8695 = vsub.s32 %v8692, %v8694
        %v8696 = vrot.slane %v8674, %v8695
        %v8698 = vunpack.c.l.s4 1966171168
        %v8699 = vunpack.c.0.s8 %v8698
        %v8700 = vlaneseq
        %v8701 = vshrl.u32 %v8700, 7
        %v8702 = vsub.s32 %v8699, %v8701
        %v8703 = vrot.slane %v8675, %v8702
        %v8704 = vcombine.high %v8682, %v8682
        %v8705 = vcombine.high %v8689, %v8689
        %v8706 = vcombine.high %v8696, %v8696
        %v8707 = vcombine.high %v8703, %v8703
        %v8708 = vcombine.high %v237, %v237
        %v8710 = vunpack.c.l.s4 1966171168
        %v8711 = vunpack.c.0.s8 %v8710
        %v8712 = vlaneseq
        %v8713 = vshrl.u32 %v8712, 7
        %v8714 = vsub.s32 %v8711, %v8713
        %v8715 = vrot.slane %v237, %v8714
        %v8717 = vunpack.c.l.s4 1966171168
        %v8718 = vunpack.c.0.s8 %v8717
        %v8719 = vlaneseq
        %v8720 = vshrl.u32 %v8719, 7
        %v8721 = vsub.s32 %v8718, %v8720
        %v8722 = vrot.slane %v8708, %v8721
        %v8723 = vcombine.high %v8715, %v8715
        %v8724 = vcombine.high %v8722, %v8722
        %v8726 = vunpack.c.l.s4 1966171168
        %v8727 = vunpack.c.0.s8 %v8726
        %v8728 = vlaneseq
        %v8729 = vshrl.u32 %v8728, 7
        %v8730 = vsub.s32 %v8727, %v8729
        %v8731 = vrot.slane %v8715, %v8730
        %v8733 = vunpack.c.l.s4 1966171168
        %v8734 = vunpack.c.0.s8 %v8733
        %v8735 = vlaneseq
        %v8736 = vshrl.u32 %v8735, 7
        %v8737 = vsub.s32 %v8734, %v8736
        %v8738 = vrot.slane %v8722, %v8737
        %v8740 = vunpack.c.l.s4 1966171168
        %v8741 = vunpack.c.0.s8 %v8740
        %v8742 = vlaneseq
        %v8743 = vshrl.u32 %v8742, 7
        %v8744 = vsub.s32 %v8741, %v8743
        %v8745 = vrot.slane %v8723, %v8744
        %v8747 = vunpack.c.l.s4 1966171168
        %v8748 = vunpack.c.0.s8 %v8747
        %v8749 = vlaneseq
        %v8750 = vshrl.u32 %v8749, 7
        %v8751 = vsub.s32 %v8748, %v8750
        %v8752 = vrot.slane %v8724, %v8751
        %v8753 = vcombine.high %v8731, %v8731
        %v8754 = vcombine.high %v8738, %v8738
        %v8755 = vcombine.high %v8745, %v8745
        %v8756 = vcombine.high %v8752, %v8752
        %v8757 = vcombine.high %v238, %v238
        %v8759 = vunpack.c.l.s4 1966171168
        %v8760 = vunpack.c.0.s8 %v8759
        %v8761 = vlaneseq
        %v8762 = vshrl.u32 %v8761, 7
        %v8763 = vsub.s32 %v8760, %v8762
        %v8764 = vrot.slane %v238, %v8763
        %v8766 = vunpack.c.l.s4 1966171168
        %v8767 = vunpack.c.0.s8 %v8766
        %v8768 = vlaneseq
        %v8769 = vshrl.u32 %v8768, 7
        %v8770 = vsub.s32 %v8767, %v8769
        %v8771 = vrot.slane %v8757, %v8770
        %v8772 = vcombine.high %v8764, %v8764
        %v8773 = vcombine.high %v8771, %v8771
        %v8775 = vunpack.c.l.s4 1966171168
        %v8776 = vunpack.c.0.s8 %v8775
        %v8777 = vlaneseq
        %v8778 = vshrl.u32 %v8777, 7
        %v8779 = vsub.s32 %v8776, %v8778
        %v8780 = vrot.slane %v8764, %v8779
        %v8782 = vunpack.c.l.s4 1966171168
        %v8783 = vunpack.c.0.s8 %v8782
        %v8784 = vlaneseq
        %v8785 = vshrl.u32 %v8784, 7
        %v8786 = vsub.s32 %v8783, %v8785
        %v8787 = vrot.slane %v8771, %v8786
        %v8789 = vunpack.c.l.s4 1966171168
        %v8790 = vunpack.c.0.s8 %v8789
        %v8791 = vlaneseq
        %v8792 = vshrl.u32 %v8791, 7
        %v8793 = vsub.s32 %v8790, %v8792
        %v8794 = vrot.slane %v8772, %v8793
        %v8796 = vunpack.c.l.s4 1966171168
        %v8797 = vunpack.c.0.s8 %v8796
        %v8798 = vlaneseq
        %v8799 = vshrl.u32 %v8798, 7
        %v8800 = vsub.s32 %v8797, %v8799
        %v8801 = vrot.slane %v8773, %v8800
        %v8802 = vcombine.high %v8780, %v8780
        %v8803 = vcombine.high %v8787, %v8787
        %v8804 = vcombine.high %v8794, %v8794
        %v8805 = vcombine.high %v8801, %v8801
        %v8806 = vcombine.high %v239, %v239
        %v8808 = vunpack.c.l.s4 1966171168
        %v8809 = vunpack.c.0.s8 %v8808
        %v8810 = vlaneseq
        %v8811 = vshrl.u32 %v8810, 7
        %v8812 = vsub.s32 %v8809, %v8811
        %v8813 = vrot.slane %v239, %v8812
        %v8815 = vunpack.c.l.s4 1966171168
        %v8816 = vunpack.c.0.s8 %v8815
        %v8817 = vlaneseq
        %v8818 = vshrl.u32 %v8817, 7
        %v8819 = vsub.s32 %v8816, %v8818
        %v8820 = vrot.slane %v8806, %v8819
        %v8821 = vcombine.high %v8813, %v8813
        %v8822 = vcombine.high %v8820, %v8820
        %v8824 = vunpack.c.l.s4 1966171168
        %v8825 = vunpack.c.0.s8 %v8824
        %v8826 = vlaneseq
        %v8827 = vshrl.u32 %v8826, 7
        %v8828 = vsub.s32 %v8825, %v8827
        %v8829 = vrot.slane %v8813, %v8828
        %v8831 = vunpack.c.l.s4 1966171168
        %v8832 = vunpack.c.0.s8 %v8831
        %v8833 = vlaneseq
        %v8834 = vshrl.u32 %v8833, 7
        %v8835 = vsub.s32 %v8832, %v8834
        %v8836 = vrot.slane %v8820, %v8835
        %v8838 = vunpack.c.l.s4 1966171168
        %v8839 = vunpack.c.0.s8 %v8838
        %v8840 = vlaneseq
        %v8841 = vshrl.u32 %v8840, 7
        %v8842 = vsub.s32 %v8839, %v8841
        %v8843 = vrot.slane %v8821, %v8842
        %v8845 = vunpack.c.l.s4 1966171168
        %v8846 = vunpack.c.0.s8 %v8845
        %v8847 = vlaneseq
        %v8848 = vshrl.u32 %v8847, 7
        %v8849 = vsub.s32 %v8846, %v8848
        %v8850 = vrot.slane %v8822, %v8849
        %v8851 = vcombine.high %v8829, %v8829
        %v8852 = vcombine.high %v8836, %v8836
        %v8853 = vcombine.high %v8843, %v8843
        %v8854 = vcombine.high %v8850, %v8850
        %v8855 = vlaneseq
        %v8856 = vshrl.u32 %v8855, 7
        %v8857 = vsub.s32 0, %v8856
        %v8858 = vrot.slane %v8486, %v8857
        %v8859 = vlaneseq
        %v8860 = vshrl.u32 %v8859, 7
        %v8861 = vsub.s32 0, %v8860
        %v8862 = vrot.slane %v8500, %v8861
        %v8863 = vlaneseq
        %v8864 = vshrl.u32 %v8863, 7
        %v8865 = vsub.s32 0, %v8864
        %v8866 = vrot.slane %v8508, %v8865
        %v8867 = vlaneseq
        %v8868 = vshrl.u32 %v8867, 7
        %v8869 = vsub.s32 0, %v8868
        %v8870 = vrot.slane %v8510, %v8869
        %v8871 = vlaneseq
        %v8872 = vshrl.u32 %v8871, 7
        %v8873 = vsub.s32 0, %v8872
        %v8874 = vrot.slane %v8493, %v8873
        %v8875 = vlaneseq
        %v8876 = vshrl.u32 %v8875, 7
        %v8877 = vsub.s32 0, %v8876
        %v8878 = vrot.slane %v8507, %v8877
        %v8879 = vlaneseq
        %v8880 = vshrl.u32 %v8879, 7
        %v8881 = vsub.s32 0, %v8880
        %v8882 = vrot.slane %v8509, %v8881
        %v8883 = vlaneseq
        %v8884 = vshrl.u32 %v8883, 7
        %v8885 = vsub.s32 0, %v8884
        %v8886 = vrot.slane %v8511, %v8885
        %v8887 = vlaneseq
        %v8888 = vshrl.u32 %v8887, 7
        %v8889 = vsub.s32 0, %v8888
        %v8890 = vrot.slane %v8535, %v8889
        %v8891 = vlaneseq
        %v8892 = vshrl.u32 %v8891, 7
        %v8893 = vsub.s32 0, %v8892
        %v8894 = vrot.slane %v8549, %v8893
        %v8895 = vlaneseq
        %v8896 = vshrl.u32 %v8895, 7
        %v8897 = vsub.s32 0, %v8896
        %v8898 = vrot.slane %v8557, %v8897
        %v8899 = vlaneseq
        %v8900 = vshrl.u32 %v8899, 7
        %v8901 = vsub.s32 0, %v8900
        %v8902 = vrot.slane %v8559, %v8901
        %v8903 = vlaneseq
        %v8904 = vshrl.u32 %v8903, 7
        %v8905 = vsub.s32 0, %v8904
        %v8906 = vrot.slane %v8542, %v8905
        %v8907 = vlaneseq
        %v8908 = vshrl.u32 %v8907, 7
        %v8909 = vsub.s32 0, %v8908
        %v8910 = vrot.slane %v8556, %v8909
        %v8911 = vlaneseq
        %v8912 = vshrl.u32 %v8911, 7
        %v8913 = vsub.s32 0, %v8912
        %v8914 = vrot.slane %v8558, %v8913
        %v8915 = vlaneseq
        %v8916 = vshrl.u32 %v8915, 7
        %v8917 = vsub.s32 0, %v8916
        %v8918 = vrot.slane %v8560, %v8917
        %v8919 = vlaneseq
        %v8920 = vshrl.u32 %v8919, 7
        %v8921 = vsub.s32 0, %v8920
        %v8922 = vrot.slane %v8584, %v8921
        %v8923 = vlaneseq
        %v8924 = vshrl.u32 %v8923, 7
        %v8925 = vsub.s32 0, %v8924
        %v8926 = vrot.slane %v8598, %v8925
        %v8927 = vlaneseq
        %v8928 = vshrl.u32 %v8927, 7
        %v8929 = vsub.s32 0, %v8928
        %v8930 = vrot.slane %v8606, %v8929
        %v8931 = vlaneseq
        %v8932 = vshrl.u32 %v8931, 7
        %v8933 = vsub.s32 0, %v8932
        %v8934 = vrot.slane %v8608, %v8933
        %v8935 = vlaneseq
        %v8936 = vshrl.u32 %v8935, 7
        %v8937 = vsub.s32 0, %v8936
        %v8938 = vrot.slane %v8591, %v8937
        %v8939 = vlaneseq
        %v8940 = vshrl.u32 %v8939, 7
        %v8941 = vsub.s32 0, %v8940
        %v8942 = vrot.slane %v8605, %v8941
        %v8943 = vlaneseq
        %v8944 = vshrl.u32 %v8943, 7
        %v8945 = vsub.s32 0, %v8944
        %v8946 = vrot.slane %v8607, %v8945
        %v8947 = vlaneseq
        %v8948 = vshrl.u32 %v8947, 7
        %v8949 = vsub.s32 0, %v8948
        %v8950 = vrot.slane %v8609, %v8949
        %v8951 = vlaneseq
        %v8952 = vshrl.u32 %v8951, 7
        %v8953 = vsub.s32 0, %v8952
        %v8954 = vrot.slane %v8633, %v8953
        %v8955 = vlaneseq
        %v8956 = vshrl.u32 %v8955, 7
        %v8957 = vsub.s32 0, %v8956
        %v8958 = vrot.slane %v8647, %v8957
        %v8959 = vlaneseq
        %v8960 = vshrl.u32 %v8959, 7
        %v8961 = vsub.s32 0, %v8960
        %v8962 = vrot.slane %v8655, %v8961
        %v8963 = vlaneseq
        %v8964 = vshrl.u32 %v8963, 7
        %v8965 = vsub.s32 0, %v8964
        %v8966 = vrot.slane %v8657, %v8965
        %v8967 = vlaneseq
        %v8968 = vshrl.u32 %v8967, 7
        %v8969 = vsub.s32 0, %v8968
        %v8970 = vrot.slane %v8640, %v8969
        %v8971 = vlaneseq
        %v8972 = vshrl.u32 %v8971, 7
        %v8973 = vsub.s32 0, %v8972
        %v8974 = vrot.slane %v8654, %v8973
        %v8975 = vlaneseq
        %v8976 = vshrl.u32 %v8975, 7
        %v8977 = vsub.s32 0, %v8976
        %v8978 = vrot.slane %v8656, %v8977
        %v8979 = vlaneseq
        %v8980 = vshrl.u32 %v8979, 7
        %v8981 = vsub.s32 0, %v8980
        %v8982 = vrot.slane %v8658, %v8981
        %v8983 = vlaneseq
        %v8984 = vshrl.u32 %v8983, 7
        %v8985 = vsub.s32 0, %v8984
        %v8986 = vrot.slane %v8682, %v8985
        %v8987 = vlaneseq
        %v8988 = vshrl.u32 %v8987, 7
        %v8989 = vsub.s32 0, %v8988
        %v8990 = vrot.slane %v8696, %v8989
        %v8991 = vlaneseq
        %v8992 = vshrl.u32 %v8991, 7
        %v8993 = vsub.s32 0, %v8992
        %v8994 = vrot.slane %v8704, %v8993
        %v8995 = vlaneseq
        %v8996 = vshrl.u32 %v8995, 7
        %v8997 = vsub.s32 0, %v8996
        %v8998 = vrot.slane %v8706, %v8997
        %v8999 = vlaneseq
        %v9000 = vshrl.u32 %v8999, 7
        %v9001 = vsub.s32 0, %v9000
        %v9002 = vrot.slane %v8689, %v9001
        %v9003 = vlaneseq
        %v9004 = vshrl.u32 %v9003, 7
        %v9005 = vsub.s32 0, %v9004
        %v9006 = vrot.slane %v8703, %v9005
        %v9007 = vlaneseq
        %v9008 = vshrl.u32 %v9007, 7
        %v9009 = vsub.s32 0, %v9008
        %v9010 = vrot.slane %v8705, %v9009
        %v9011 = vlaneseq
        %v9012 = vshrl.u32 %v9011, 7
        %v9013 = vsub.s32 0, %v9012
        %v9014 = vrot.slane %v8707, %v9013
        %v9015 = vlaneseq
        %v9016 = vshrl.u32 %v9015, 7
        %v9017 = vsub.s32 0, %v9016
        %v9018 = vrot.slane %v8731, %v9017
        %v9019 = vlaneseq
        %v9020 = vshrl.u32 %v9019, 7
        %v9021 = vsub.s32 0, %v9020
        %v9022 = vrot.slane %v8745, %v9021
        %v9023 = vlaneseq
        %v9024 = vshrl.u32 %v9023, 7
        %v9025 = vsub.s32 0, %v9024
        %v9026 = vrot.slane %v8753, %v9025
        %v9027 = vlaneseq
        %v9028 = vshrl.u32 %v9027, 7
        %v9029 = vsub.s32 0, %v9028
        %v9030 = vrot.slane %v8755, %v9029
        %v9031 = vlaneseq
        %v9032 = vshrl.u32 %v9031, 7
        %v9033 = vsub.s32 0, %v9032
        %v9034 = vrot.slane %v8738, %v9033
        %v9035 = vlaneseq
        %v9036 = vshrl.u32 %v9035, 7
        %v9037 = vsub.s32 0, %v9036
        %v9038 = vrot.slane %v8752, %v9037
        %v9039 = vlaneseq
        %v9040 = vshrl.u32 %v9039, 7
        %v9041 = vsub.s32 0, %v9040
        %v9042 = vrot.slane %v8754, %v9041
        %v9043 = vlaneseq
        %v9044 = vshrl.u32 %v9043, 7
        %v9045 = vsub.s32 0, %v9044
        %v9046 = vrot.slane %v8756, %v9045
        %v9047 = vlaneseq
        %v9048 = vshrl.u32 %v9047, 7
        %v9049 = vsub.s32 0, %v9048
        %v9050 = vrot.slane %v8780, %v9049
        %v9051 = vlaneseq
        %v9052 = vshrl.u32 %v9051, 7
        %v9053 = vsub.s32 0, %v9052
        %v9054 = vrot.slane %v8794, %v9053
        %v9055 = vlaneseq
        %v9056 = vshrl.u32 %v9055, 7
        %v9057 = vsub.s32 0, %v9056
        %v9058 = vrot.slane %v8802, %v9057
        %v9059 = vlaneseq
        %v9060 = vshrl.u32 %v9059, 7
        %v9061 = vsub.s32 0, %v9060
        %v9062 = vrot.slane %v8804, %v9061
        %v9063 = vlaneseq
        %v9064 = vshrl.u32 %v9063, 7
        %v9065 = vsub.s32 0, %v9064
        %v9066 = vrot.slane %v8787, %v9065
        %v9067 = vlaneseq
        %v9068 = vshrl.u32 %v9067, 7
        %v9069 = vsub.s32 0, %v9068
        %v9070 = vrot.slane %v8801, %v9069
        %v9071 = vlaneseq
        %v9072 = vshrl.u32 %v9071, 7
        %v9073 = vsub.s32 0, %v9072
        %v9074 = vrot.slane %v8803, %v9073
        %v9075 = vlaneseq
        %v9076 = vshrl.u32 %v9075, 7
        %v9077 = vsub.s32 0, %v9076
        %v9078 = vrot.slane %v8805, %v9077
        %v9079 = vlaneseq
        %v9080 = vshrl.u32 %v9079, 7
        %v9081 = vsub.s32 0, %v9080
        %v9082 = vrot.slane %v8829, %v9081
        %v9083 = vlaneseq
        %v9084 = vshrl.u32 %v9083, 7
        %v9085 = vsub.s32 0, %v9084
        %v9086 = vrot.slane %v8843, %v9085
        %v9087 = vlaneseq
        %v9088 = vshrl.u32 %v9087, 7
        %v9089 = vsub.s32 0, %v9088
        %v9090 = vrot.slane %v8851, %v9089
        %v9091 = vlaneseq
        %v9092 = vshrl.u32 %v9091, 7
        %v9093 = vsub.s32 0, %v9092
        %v9094 = vrot.slane %v8853, %v9093
        %v9095 = vlaneseq
        %v9096 = vshrl.u32 %v9095, 7
        %v9097 = vsub.s32 0, %v9096
        %v9098 = vrot.slane %v8836, %v9097
        %v9099 = vlaneseq
        %v9100 = vshrl.u32 %v9099, 7
        %v9101 = vsub.s32 0, %v9100
        %v9102 = vrot.slane %v8850, %v9101
        %v9103 = vlaneseq
        %v9104 = vshrl.u32 %v9103, 7
        %v9105 = vsub.s32 0, %v9104
        %v9106 = vrot.slane %v8852, %v9105
        %v9107 = vlaneseq
        %v9108 = vshrl.u32 %v9107, 7
        %v9109 = vsub.s32 0, %v9108
        %v9110 = vrot.slane %v8854, %v9109
        %v9175 = vmul.f32 %v8858, %v8451
        %v9176 = vmul.f32 %v8858, %v8452
        %v9177 = vmul.f32 %v8858, %v8453
        %v9178 = vmul.f32 %v8858, %v8454
        %v9179 = vmul.f32 %v8862, %v8451
        %v9180 = vmul.f32 %v8862, %v8452
        %v9181 = vmul.f32 %v8862, %v8453
        %v9182 = vmul.f32 %v8862, %v8454
        %v9183 = vmul.f32 %v8866, %v8451
        %v9184 = vmul.f32 %v8866, %v8452
        %v9185 = vmul.f32 %v8866, %v8453
        %v9186 = vmul.f32 %v8866, %v8454
        %v9187 = vmul.f32 %v8870, %v8451
        %v9188 = vmul.f32 %v8870, %v8452
        %v9189 = vmul.f32 %v8870, %v8453
        %v9190 = vmul.f32 %v8870, %v8454
        %v9191 = vmul.f32 %v8874, %v8451
        %v9192 = vmul.f32 %v8874, %v8452
        %v9193 = vmul.f32 %v8874, %v8453
        %v9194 = vmul.f32 %v8874, %v8454
        %v9195 = vmul.f32 %v8878, %v8451
        %v9196 = vmul.f32 %v8878, %v8452
        %v9197 = vmul.f32 %v8878, %v8453
        %v9198 = vmul.f32 %v8878, %v8454
        %v9199 = vmul.f32 %v8882, %v8451
        %v9200 = vmul.f32 %v8882, %v8452
        %v9201 = vmul.f32 %v8882, %v8453
        %v9202 = vmul.f32 %v8882, %v8454
        %v9203 = vmul.f32 %v8886, %v8451
        %v9204 = vmul.f32 %v8886, %v8452
        %v9205 = vmul.f32 %v8886, %v8453
        %v9206 = vmul.f32 %v8886, %v8454
        %v9207 = vmul.f32 %v8890, %v8451
        %v9208 = vmul.f32 %v8890, %v8452
        %v9209 = vmul.f32 %v8890, %v8453
        %v9210 = vmul.f32 %v8890, %v8454
        %v9211 = vmul.f32 %v8894, %v8451
        %v9212 = vmul.f32 %v8894, %v8452
        %v9213 = vmul.f32 %v8894, %v8453
        %v9214 = vmul.f32 %v8894, %v8454
        %v9215 = vmul.f32 %v8898, %v8451
        %v9216 = vmul.f32 %v8898, %v8452
        %v9217 = vmul.f32 %v8898, %v8453
        %v9218 = vmul.f32 %v8898, %v8454
        %v9219 = vmul.f32 %v8902, %v8451
        %v9220 = vmul.f32 %v8902, %v8452
        %v9221 = vmul.f32 %v8902, %v8453
        %v9222 = vmul.f32 %v8902, %v8454
        %v9223 = vmul.f32 %v8906, %v8451
        %v9224 = vmul.f32 %v8906, %v8452
        %v9225 = vmul.f32 %v8906, %v8453
        %v9226 = vmul.f32 %v8906, %v8454
        %v9227 = vmul.f32 %v8910, %v8451
        %v9228 = vmul.f32 %v8910, %v8452
        %v9229 = vmul.f32 %v8910, %v8453
        %v9230 = vmul.f32 %v8910, %v8454
        %v9231 = vmul.f32 %v8914, %v8451
        %v9232 = vmul.f32 %v8914, %v8452
        %v9233 = vmul.f32 %v8914, %v8453
        %v9234 = vmul.f32 %v8914, %v8454
        %v9235 = vmul.f32 %v8918, %v8451
        %v9236 = vmul.f32 %v8918, %v8452
        %v9237 = vmul.f32 %v8918, %v8453
        %v9238 = vmul.f32 %v8918, %v8454
        %v9239 = vmul.f32 %v8922, %v8451
        %v9240 = vmul.f32 %v8922, %v8452
        %v9241 = vmul.f32 %v8922, %v8453
        %v9242 = vmul.f32 %v8922, %v8454
        %v9243 = vmul.f32 %v8926, %v8451
        %v9244 = vmul.f32 %v8926, %v8452
        %v9245 = vmul.f32 %v8926, %v8453
        %v9246 = vmul.f32 %v8926, %v8454
        %v9247 = vmul.f32 %v8930, %v8451
        %v9248 = vmul.f32 %v8930, %v8452
        %v9249 = vmul.f32 %v8930, %v8453
        %v9250 = vmul.f32 %v8930, %v8454
        %v9251 = vmul.f32 %v8934, %v8451
        %v9252 = vmul.f32 %v8934, %v8452
        %v9253 = vmul.f32 %v8934, %v8453
        %v9254 = vmul.f32 %v8934, %v8454
        %v9255 = vmul.f32 %v8938, %v8451
        %v9256 = vmul.f32 %v8938, %v8452
        %v9257 = vmul.f32 %v8938, %v8453
        %v9258 = vmul.f32 %v8938, %v8454
        %v9259 = vmul.f32 %v8942, %v8451
        %v9260 = vmul.f32 %v8942, %v8452
        %v9261 = vmul.f32 %v8942, %v8453
        %v9262 = vmul.f32 %v8942, %v8454
        %v9263 = vmul.f32 %v8946, %v8451
        %v9264 = vmul.f32 %v8946, %v8452
        %v9265 = vmul.f32 %v8946, %v8453
        %v9266 = vmul.f32 %v8946, %v8454
        %v9267 = vmul.f32 %v8950, %v8451
        %v9268 = vmul.f32 %v8950, %v8452
        %v9269 = vmul.f32 %v8950, %v8453
        %v9270 = vmul.f32 %v8950, %v8454
        %v9271 = vmul.f32 %v8954, %v8451
        %v9272 = vmul.f32 %v8954, %v8452
        %v9273 = vmul.f32 %v8954, %v8453
        %v9274 = vmul.f32 %v8954, %v8454
        %v9275 = vmul.f32 %v8958, %v8451
        %v9276 = vmul.f32 %v8958, %v8452
        %v9277 = vmul.f32 %v8958, %v8453
        %v9278 = vmul.f32 %v8958, %v8454
        %v9279 = vmul.f32 %v8962, %v8451
        %v9280 = vmul.f32 %v8962, %v8452
        %v9281 = vmul.f32 %v8962, %v8453
        %v9282 = vmul.f32 %v8962, %v8454
        %v9283 = vmul.f32 %v8966, %v8451
        %v9284 = vmul.f32 %v8966, %v8452
        %v9285 = vmul.f32 %v8966, %v8453
        %v9286 = vmul.f32 %v8966, %v8454
        %v9287 = vmul.f32 %v8970, %v8451
        %v9288 = vmul.f32 %v8970, %v8452
        %v9289 = vmul.f32 %v8970, %v8453
        %v9290 = vmul.f32 %v8970, %v8454
        %v9291 = vmul.f32 %v8974, %v8451
        %v9292 = vmul.f32 %v8974, %v8452
        %v9293 = vmul.f32 %v8974, %v8453
        %v9294 = vmul.f32 %v8974, %v8454
        %v9295 = vmul.f32 %v8978, %v8451
        %v9296 = vmul.f32 %v8978, %v8452
        %v9297 = vmul.f32 %v8978, %v8453
        %v9298 = vmul.f32 %v8978, %v8454
        %v9299 = vmul.f32 %v8982, %v8451
        %v9300 = vmul.f32 %v8982, %v8452
        %v9301 = vmul.f32 %v8982, %v8453
        %v9302 = vmul.f32 %v8982, %v8454
        %v9303 = vmul.f32 %v8986, %v8451
        %v9304 = vmul.f32 %v8986, %v8452
        %v9305 = vmul.f32 %v8986, %v8453
        %v9306 = vmul.f32 %v8986, %v8454
        %v9307 = vmul.f32 %v8990, %v8451
        %v9308 = vmul.f32 %v8990, %v8452
        %v9309 = vmul.f32 %v8990, %v8453
        %v9310 = vmul.f32 %v8990, %v8454
        %v9311 = vmul.f32 %v8994, %v8451
        %v9312 = vmul.f32 %v8994, %v8452
        %v9313 = vmul.f32 %v8994, %v8453
        %v9314 = vmul.f32 %v8994, %v8454
        %v9315 = vmul.f32 %v8998, %v8451
        %v9316 = vmul.f32 %v8998, %v8452
        %v9317 = vmul.f32 %v8998, %v8453
        %v9318 = vmul.f32 %v8998, %v8454
        %v9319 = vmul.f32 %v9002, %v8451
        %v9320 = vmul.f32 %v9002, %v8452
        %v9321 = vmul.f32 %v9002, %v8453
        %v9322 = vmul.f32 %v9002, %v8454
        %v9323 = vmul.f32 %v9006, %v8451
        %v9324 = vmul.f32 %v9006, %v8452
        %v9325 = vmul.f32 %v9006, %v8453
        %v9326 = vmul.f32 %v9006, %v8454
        %v9327 = vmul.f32 %v9010, %v8451
        %v9328 = vmul.f32 %v9010, %v8452
        %v9329 = vmul.f32 %v9010, %v8453
        %v9330 = vmul.f32 %v9010, %v8454
        %v9331 = vmul.f32 %v9014, %v8451
        %v9332 = vmul.f32 %v9014, %v8452
        %v9333 = vmul.f32 %v9014, %v8453
        %v9334 = vmul.f32 %v9014, %v8454
        %v9335 = vmul.f32 %v9018, %v8451
        %v9336 = vmul.f32 %v9018, %v8452
        %v9337 = vmul.f32 %v9018, %v8453
        %v9338 = vmul.f32 %v9018, %v8454
        %v9339 = vmul.f32 %v9022, %v8451
        %v9340 = vmul.f32 %v9022, %v8452
        %v9341 = vmul.f32 %v9022, %v8453
        %v9342 = vmul.f32 %v9022, %v8454
        %v9343 = vmul.f32 %v9026, %v8451
        %v9344 = vmul.f32 %v9026, %v8452
        %v9345 = vmul.f32 %v9026, %v8453
        %v9346 = vmul.f32 %v9026, %v8454
        %v9347 = vmul.f32 %v9030, %v8451
        %v9348 = vmul.f32 %v9030, %v8452
        %v9349 = vmul.f32 %v9030, %v8453
        %v9350 = vmul.f32 %v9030, %v8454
        %v9351 = vmul.f32 %v9034, %v8451
        %v9352 = vmul.f32 %v9034, %v8452
        %v9353 = vmul.f32 %v9034, %v8453
        %v9354 = vmul.f32 %v9034, %v8454
        %v9355 = vmul.f32 %v9038, %v8451
        %v9356 = vmul.f32 %v9038, %v8452
        %v9357 = vmul.f32 %v9038, %v8453
        %v9358 = vmul.f32 %v9038, %v8454
        %v9359 = vmul.f32 %v9042, %v8451
        %v9360 = vmul.f32 %v9042, %v8452
        %v9361 = vmul.f32 %v9042, %v8453
        %v9362 = vmul.f32 %v9042, %v8454
        %v9363 = vmul.f32 %v9046, %v8451
        %v9364 = vmul.f32 %v9046, %v8452
        %v9365 = vmul.f32 %v9046, %v8453
        %v9366 = vmul.f32 %v9046, %v8454
        %v9367 = vmul.f32 %v9050, %v8451
        %v9368 = vmul.f32 %v9050, %v8452
        %v9369 = vmul.f32 %v9050, %v8453
        %v9370 = vmul.f32 %v9050, %v8454
        %v9371 = vmul.f32 %v9054, %v8451
        %v9372 = vmul.f32 %v9054, %v8452
        %v9373 = vmul.f32 %v9054, %v8453
        %v9374 = vmul.f32 %v9054, %v8454
        %v9375 = vmul.f32 %v9058, %v8451
        %v9376 = vmul.f32 %v9058, %v8452
        %v9377 = vmul.f32 %v9058, %v8453
        %v9378 = vmul.f32 %v9058, %v8454
        %v9379 = vmul.f32 %v9062, %v8451
        %v9380 = vmul.f32 %v9062, %v8452
        %v9381 = vmul.f32 %v9062, %v8453
        %v9382 = vmul.f32 %v9062, %v8454
        %v9383 = vmul.f32 %v9066, %v8451
        %v9384 = vmul.f32 %v9066, %v8452
        %v9385 = vmul.f32 %v9066, %v8453
        %v9386 = vmul.f32 %v9066, %v8454
        %v9387 = vmul.f32 %v9070, %v8451
        %v9388 = vmul.f32 %v9070, %v8452
        %v9389 = vmul.f32 %v9070, %v8453
        %v9390 = vmul.f32 %v9070, %v8454
        %v9391 = vmul.f32 %v9074, %v8451
        %v9392 = vmul.f32 %v9074, %v8452
        %v9393 = vmul.f32 %v9074, %v8453
        %v9394 = vmul.f32 %v9074, %v8454
        %v9395 = vmul.f32 %v9078, %v8451
        %v9396 = vmul.f32 %v9078, %v8452
        %v9397 = vmul.f32 %v9078, %v8453
        %v9398 = vmul.f32 %v9078, %v8454
        %v9399 = vmul.f32 %v9082, %v8451
        %v9400 = vmul.f32 %v9082, %v8452
        %v9401 = vmul.f32 %v9082, %v8453
        %v9402 = vmul.f32 %v9082, %v8454
        %v9403 = vmul.f32 %v9086, %v8451
        %v9404 = vmul.f32 %v9086, %v8452
        %v9405 = vmul.f32 %v9086, %v8453
        %v9406 = vmul.f32 %v9086, %v8454
        %v9407 = vmul.f32 %v9090, %v8451
        %v9408 = vmul.f32 %v9090, %v8452
        %v9409 = vmul.f32 %v9090, %v8453
        %v9410 = vmul.f32 %v9090, %v8454
        %v9411 = vmul.f32 %v9094, %v8451
        %v9412 = vmul.f32 %v9094, %v8452
        %v9413 = vmul.f32 %v9094, %v8453
        %v9414 = vmul.f32 %v9094, %v8454
        %v9415 = vmul.f32 %v9098, %v8451
        %v9416 = vmul.f32 %v9098, %v8452
        %v9417 = vmul.f32 %v9098, %v8453
        %v9418 = vmul.f32 %v9098, %v8454
        %v9419 = vmul.f32 %v9102, %v8451
        %v9420 = vmul.f32 %v9102, %v8452
        %v9421 = vmul.f32 %v9102, %v8453
        %v9422 = vmul.f32 %v9102, %v8454
        %v9423 = vmul.f32 %v9106, %v8451
        %v9424 = vmul.f32 %v9106, %v8452
        %v9425 = vmul.f32 %v9106, %v8453
        %v9426 = vmul.f32 %v9106, %v8454
        %v9427 = vmul.f32 %v9110, %v8451
        %v9428 = vmul.f32 %v9110, %v8452
        %v9429 = vmul.f32 %v9110, %v8453
        %v9430 = vmul.f32 %v9110, %v8454
        %v9432 = vsel %vm1981, %v4302, 0
        %v9435 = vsel %vm1981, %v4303, 0
        %v9438 = vsel %vm1981, %v4304, 0
        %v9441 = vsel %vm1981, %v4305, 0
        %v9444 = vsel %vm1981, %v4306, 0
        %v9447 = vsel %vm1981, %v4307, 0
        %v9450 = vsel %vm1981, %v4308, 0
        %v9453 = vsel %vm1981, %v4309, 0
        %v9456 = vsel %vm1981, %v4310, 0
        %v9459 = vsel %vm1981, %v4311, 0
        %v9462 = vsel %vm1981, %v4312, 0
        %v9465 = vsel %vm1981, %v4313, 0
        %v9468 = vsel %vm1981, %v4314, 0
        %v9471 = vsel %vm1981, %v4315, 0
        %v9474 = vsel %vm1981, %v4316, 0
        %v9477 = vsel %vm1981, %v4317, 0
        %9479 = vmatprep.subr.mxu0 0.0
        %9480 = vmatpush1.msra.mxu0 %v232
        %9481 = vmatprep.subr.mxu0 0.0
        %9482 = vmatpush1.msra.mxu0 %v233
        %9483 = vmatprep.subr.mxu0 0.0
        %9484 = vmatpush1.msra.mxu0 %v234
        %9485 = vmatprep.subr.mxu0 0.0
        %9486 = vmatpush1.msra.mxu0 %v235
        %9487 = vmatprep.subr.mxu0 0.0
        %9488 = vmatpush1.msra.mxu0 %v236
        %9489 = vmatprep.subr.mxu0 0.0
        %9490 = vmatpush1.msra.mxu0 %v237
        %9491 = vmatprep.subr.mxu0 0.0
        %9492 = vmatpush1.msra.mxu0 %v238
        %9493 = vmatprep.subr.mxu0 0.0
        %9494 = vmatpush1.msra.mxu0 %v239
        %9495 = vmatprep.subr.mxu0 0.0
        %9496 = vmatpush1.msra.mxu0 0.0
        %9497 = vmatprep.subr.mxu0 0.0
        %9498 = vmatpush1.msra.mxu0 0.0
        %9499 = vmatprep.subr.mxu0 0.0
        %9500 = vmatpush1.msra.mxu0 0.0
        %9501 = vmatprep.subr.mxu0 0.0
        %9502 = vmatpush1.msra.mxu0 0.0
        %9503 = vmatprep.subr.mxu0 0.0
        %9504 = vmatpush1.msra.mxu0 0.0
        %9505 = vmatprep.subr.mxu0 0.0
        %9506 = vmatpush1.msra.mxu0 0.0
        %9507 = vmatprep.subr.mxu0 0.0
        %9508 = vmatpush1.msra.mxu0 0.0
        %9509 = vmatprep.subr.mxu0 0.0
        %9510 = vmatpush1.msra.mxu0 0.0
        %9511 = vmatprep.subr.mxu0 0.0
        %9512 = vmatpush1.msra.mxu0 0.0
        %9513 = vmatprep.subr.mxu0 0.0
        %9514 = vmatpush1.msra.mxu0 0.0
        %9515 = vmatprep.subr.mxu0 0.0
        %9516 = vmatpush1.msra.mxu0 0.0
        %9517 = vmatprep.subr.mxu0 0.0
        %9518 = vmatpush1.msra.mxu0 0.0
        %9519 = vmatprep.subr.mxu0 0.0
        %9520 = vmatpush1.msra.mxu0 0.0
        %9521 = vmatprep.subr.mxu0 0.0
        %9522 = vmatpush1.msra.mxu0 0.0
        %9523 = vmatprep.subr.mxu0 0.0
        %9524 = vmatpush1.msra.mxu0 0.0
        %9525 = vmatprep.subr.mxu0 0.0
        %9526 = vmatpush1.msra.mxu0 0.0
        %9527 = vmatprep.subr.mxu0 0.0
        %9528 = vmatpush1.msra.mxu0 0.0
        %9529 = vmatprep.subr.mxu0 0.0
        %9530 = vmatpush1.msra.mxu0 0.0
        %9531 = vmatprep.subr.mxu0 0.0
        %9532 = vmatpush1.msra.mxu0 0.0
        %9533 = vmatprep.subr.mxu0 0.0
        %9534 = vmatpush1.msra.mxu0 0.0
        %9535 = vmatprep.subr.mxu0 0.0
        %9536 = vmatpush1.msra.mxu0 0.0
        %9537 = vmatprep.subr.mxu0 0.0
        %9538 = vmatpush1.msra.mxu0 0.0
        %9539 = vmatprep.subr.mxu0 0.0
        %9540 = vmatpush1.msra.mxu0 0.0
        %9541 = vmatprep.subr.mxu0 0.0
        %9542 = vmatpush1.msra.mxu0 0.0
        %9543 = vmatprep.mubr.f32.mxu0 0.0
        %9544 = vmatmul.mubr.f32.gmra.mrb[0].mxu0 %v9432
        %v9545 = vpop.f32.mrb[0].mxu0
        %v9546 = vadd.f32 0.0, %v9545
        %v9547 = vpop.f32.mrb[0].mxu0
        %9548 = vmatprep.mubr.f32.mxu0 0.0
        %9549 = vmatmul.mubr.f32.gmra.mrb[0].mxu0 %v9435
        %v9550 = vpop.f32.mrb[0].mxu0
        %v9551 = vadd.f32 0.0, %v9550
        %v9552 = vpop.f32.mrb[0].mxu0
        %9553 = vmatprep.mubr.f32.mxu0 0.0
        %9554 = vmatmul.mubr.f32.gmra.mrb[0].mxu0 %v9438
        %v9555 = vpop.f32.mrb[0].mxu0
        %v9556 = vadd.f32 0.0, %v9555
        %v9557 = vpop.f32.mrb[0].mxu0
        %9558 = vmatprep.mubr.f32.mxu0 0.0
        %9559 = vmatmul.mubr.f32.gmra.mrb[0].mxu0 %v9441
        %v9560 = vpop.f32.mrb[0].mxu0
        %v9561 = vadd.f32 0.0, %v9560
        %v9562 = vpop.f32.mrb[0].mxu0
        %9563 = vmatprep.mubr.f32.mxu0 0.0
        %9564 = vmatmul.mubr.f32.gmra.mrb[0].mxu0 %v9444
        %v9565 = vpop.f32.mrb[0].mxu0
        %v9566 = vadd.f32 0.0, %v9565
        %v9567 = vpop.f32.mrb[0].mxu0
        %9568 = vmatprep.mubr.f32.mxu0 0.0
        %9569 = vmatmul.mubr.f32.gmra.mrb[0].mxu0 %v9447
        %v9570 = vpop.f32.mrb[0].mxu0
        %v9571 = vadd.f32 0.0, %v9570
        %v9572 = vpop.f32.mrb[0].mxu0
        %9573 = vmatprep.mubr.f32.mxu0 0.0
        %9574 = vmatmul.mubr.f32.gmra.mrb[0].mxu0 %v9450
        %v9575 = vpop.f32.mrb[0].mxu0
        %v9576 = vadd.f32 0.0, %v9575
        %v9577 = vpop.f32.mrb[0].mxu0
        %9578 = vmatprep.mubr.f32.mxu0 0.0
        %9579 = vmatmul.mubr.f32.gmra.mrb[0].mxu0 %v9453
        %v9580 = vpop.f32.mrb[0].mxu0
        %v9581 = vadd.f32 0.0, %v9580
        %v9582 = vpop.f32.mrb[0].mxu0
        %9583 = vmatprep.mubr.f32.mxu0 0.0
        %9584 = vmatmul.mubr.f32.gmra.mrb[0].mxu0 %v9456
        %v9585 = vpop.f32.mrb[0].mxu0
        %v9586 = vadd.f32 0.0, %v9585
        %v9587 = vpop.f32.mrb[0].mxu0
        %9588 = vmatprep.mubr.f32.mxu0 0.0
        %9589 = vmatmul.mubr.f32.gmra.mrb[0].mxu0 %v9459
        %v9590 = vpop.f32.mrb[0].mxu0
        %v9591 = vadd.f32 0.0, %v9590
        %v9592 = vpop.f32.mrb[0].mxu0
        %9593 = vmatprep.mubr.f32.mxu0 0.0
        %9594 = vmatmul.mubr.f32.gmra.mrb[0].mxu0 %v9462
        %v9595 = vpop.f32.mrb[0].mxu0
        %v9596 = vadd.f32 0.0, %v9595
        %v9597 = vpop.f32.mrb[0].mxu0
        %9598 = vmatprep.mubr.f32.mxu0 0.0
        %9599 = vmatmul.mubr.f32.gmra.mrb[0].mxu0 %v9465
        %v9600 = vpop.f32.mrb[0].mxu0
        %v9601 = vadd.f32 0.0, %v9600
        %v9602 = vpop.f32.mrb[0].mxu0
        %9603 = vmatprep.mubr.f32.mxu0 0.0
        %9604 = vmatmul.mubr.f32.gmra.mrb[0].mxu0 %v9468
        %v9605 = vpop.f32.mrb[0].mxu0
        %v9606 = vadd.f32 0.0, %v9605
        %v9607 = vpop.f32.mrb[0].mxu0
        %9608 = vmatprep.mubr.f32.mxu0 0.0
        %9609 = vmatmul.mubr.f32.gmra.mrb[0].mxu0 %v9471
        %v9610 = vpop.f32.mrb[0].mxu0
        %v9611 = vadd.f32 0.0, %v9610
        %v9612 = vpop.f32.mrb[0].mxu0
        %9613 = vmatprep.mubr.f32.mxu0 0.0
        %9614 = vmatmul.mubr.f32.gmra.mrb[0].mxu0 %v9474
        %v9615 = vpop.f32.mrb[0].mxu0
        %v9616 = vadd.f32 0.0, %v9615
        %v9617 = vpop.f32.mrb[0].mxu0
        %9618 = vmatprep.mubr.f32.mxu0 0.0
        %9619 = vmatmul.mubr.f32.gmra.mrb[0].mxu0 %v9477
        %v9620 = vpop.f32.mrb[0].mxu0
        %v9621 = vadd.f32 0.0, %v9620
        %v9622 = vpop.f32.mrb[0].mxu0
        %9623 = vdwg.mxu0
        %v9624 = vld [vmem:[%s2 + $0x28] sm:$0x1]
        %v9625 = vlaneseq
        %v9626 = vshrl.u32 %v9625, 7
        %v9627 = vsub.s32 0, %v9626
        %v9628 = vrot.slane %v9624, %v9627
        %v9629 = vmul.f32 %v9546, %v9628
        %v9630 = vmul.f32 %v9551, %v9628
        %v9631 = vmul.f32 %v9556, %v9628
        %v9632 = vmul.f32 %v9561, %v9628
        %v9633 = vmul.f32 %v9566, %v9628
        %v9634 = vmul.f32 %v9571, %v9628
        %v9635 = vmul.f32 %v9576, %v9628
        %v9636 = vmul.f32 %v9581, %v9628
        %v9637 = vmul.f32 %v9586, %v9628
        %v9638 = vmul.f32 %v9591, %v9628
        %v9639 = vmul.f32 %v9596, %v9628
        %v9640 = vmul.f32 %v9601, %v9628
        %v9641 = vmul.f32 %v9606, %v9628
        %v9642 = vmul.f32 %v9611, %v9628
        %v9643 = vmul.f32 %v9616, %v9628
        %v9644 = vmul.f32 %v9621, %v9628
        %9645 = vmatprep.subr.mxu0 0.0
        %9646 = vmatpush1.msra.mxu0 %v9175
        %9647 = vmatprep.subr.mxu0 0.0
        %9648 = vmatpush1.msra.mxu0 %v9176
        %9649 = vmatprep.subr.mxu0 0.0
        %9650 = vmatpush1.msra.mxu0 %v9177
        %9651 = vmatprep.subr.mxu0 0.0
        %9652 = vmatpush1.msra.mxu0 %v9178
        %9653 = vmatprep.subr.mxu0 0.0
        %9654 = vmatpush1.msra.mxu0 %v9179
        %9655 = vmatprep.subr.mxu0 0.0
        %9656 = vmatpush1.msra.mxu0 %v9180
        %9657 = vmatprep.subr.mxu0 0.0
        %9658 = vmatpush1.msra.mxu0 %v9181
        %9659 = vmatprep.subr.mxu0 0.0
        %9660 = vmatpush1.msra.mxu0 %v9182
        %9661 = vmatprep.subr.mxu0 0.0
        %9662 = vmatpush1.msra.mxu0 %v9183
        %9663 = vmatprep.subr.mxu0 0.0
        %9664 = vmatpush1.msra.mxu0 %v9184
        %9665 = vmatprep.subr.mxu0 0.0
        %9666 = vmatpush1.msra.mxu0 %v9185
        %9667 = vmatprep.subr.mxu0 0.0
        %9668 = vmatpush1.msra.mxu0 %v9186
        %9669 = vmatprep.subr.mxu0 0.0
        %9670 = vmatpush1.msra.mxu0 %v9187
        %9671 = vmatprep.subr.mxu0 0.0
        %9672 = vmatpush1.msra.mxu0 %v9188
        %9673 = vmatprep.subr.mxu0 0.0
        %9674 = vmatpush1.msra.mxu0 %v9189
        %9675 = vmatprep.subr.mxu0 0.0
        %9676 = vmatpush1.msra.mxu0 %v9190
        %9677 = vmatprep.subr.mxu0 0.0
        %9678 = vmatpush1.msra.mxu0 %v9191
        %9679 = vmatprep.subr.mxu0 0.0
        %9680 = vmatpush1.msra.mxu0 %v9192
        %9681 = vmatprep.subr.mxu0 0.0
        %9682 = vmatpush1.msra.mxu0 %v9193
        %9683 = vmatprep.subr.mxu0 0.0
        %9684 = vmatpush1.msra.mxu0 %v9194
        %9685 = vmatprep.subr.mxu0 0.0
        %9686 = vmatpush1.msra.mxu0 %v9195
        %9687 = vmatprep.subr.mxu0 0.0
        %9688 = vmatpush1.msra.mxu0 %v9196
        %9689 = vmatprep.subr.mxu0 0.0
        %9690 = vmatpush1.msra.mxu0 %v9197
        %9691 = vmatprep.subr.mxu0 0.0
        %9692 = vmatpush1.msra.mxu0 %v9198
        %9693 = vmatprep.subr.mxu0 0.0
        %9694 = vmatpush1.msra.mxu0 %v9199
        %9695 = vmatprep.subr.mxu0 0.0
        %9696 = vmatpush1.msra.mxu0 %v9200
        %9697 = vmatprep.subr.mxu0 0.0
        %9698 = vmatpush1.msra.mxu0 %v9201
        %9699 = vmatprep.subr.mxu0 0.0
        %9700 = vmatpush1.msra.mxu0 %v9202
        %9701 = vmatprep.subr.mxu0 0.0
        %9702 = vmatpush1.msra.mxu0 %v9203
        %9703 = vmatprep.subr.mxu0 0.0
        %9704 = vmatpush1.msra.mxu0 %v9204
        %9705 = vmatprep.subr.mxu0 0.0
        %9706 = vmatpush1.msra.mxu0 %v9205
        %9707 = vmatprep.subr.mxu0 0.0
        %9708 = vmatpush1.msra.mxu0 %v9206
        %9709 = vmatprep.mubr.f32.mxu0 %v8196
        %9710 = vmatmul.mubr.f32.gmra.mrb[0].mxu0 %v8195
        %v9711 = vpop.f32.mrb[0].mxu0
        %v9712 = vadd.f32 %v9629, %v9711
        %v9713 = vpop.f32.mrb[0].mxu0
        %9714 = vmatprep.mubr.f32.mxu0 %v8212
        %9715 = vmatmul.mubr.f32.gmra.mrb[0].mxu0 %v8211
        %v9716 = vpop.f32.mrb[0].mxu0
        %v9717 = vadd.f32 %v9630, %v9716
        %v9718 = vpop.f32.mrb[0].mxu0
        %9719 = vmatprep.mubr.f32.mxu0 %v8228
        %9720 = vmatmul.mubr.f32.gmra.mrb[0].mxu0 %v8227
        %v9721 = vpop.f32.mrb[0].mxu0
        %v9722 = vadd.f32 %v9631, %v9721
        %v9723 = vpop.f32.mrb[0].mxu0
        %9724 = vmatprep.mubr.f32.mxu0 %v8244
        %9725 = vmatmul.mubr.f32.gmra.mrb[0].mxu0 %v8243
        %v9726 = vpop.f32.mrb[0].mxu0
        %v9727 = vadd.f32 %v9632, %v9726
        %v9728 = vpop.f32.mrb[0].mxu0
        %9729 = vmatprep.mubr.f32.mxu0 %v8260
        %9730 = vmatmul.mubr.f32.gmra.mrb[0].mxu0 %v8259
        %v9731 = vpop.f32.mrb[0].mxu0
        %v9732 = vadd.f32 %v9633, %v9731
        %v9733 = vpop.f32.mrb[0].mxu0
        %9734 = vmatprep.mubr.f32.mxu0 %v8276
        %9735 = vmatmul.mubr.f32.gmra.mrb[0].mxu0 %v8275
        %v9736 = vpop.f32.mrb[0].mxu0
        %v9737 = vadd.f32 %v9634, %v9736
        %v9738 = vpop.f32.mrb[0].mxu0
        %9739 = vmatprep.mubr.f32.mxu0 %v8292
        %9740 = vmatmul.mubr.f32.gmra.mrb[0].mxu0 %v8291
        %v9741 = vpop.f32.mrb[0].mxu0
        %v9742 = vadd.f32 %v9635, %v9741
        %v9743 = vpop.f32.mrb[0].mxu0
        %9744 = vmatprep.mubr.f32.mxu0 %v8308
        %9745 = vmatmul.mubr.f32.gmra.mrb[0].mxu0 %v8307
        %v9746 = vpop.f32.mrb[0].mxu0
        %v9747 = vadd.f32 %v9636, %v9746
        %v9748 = vpop.f32.mrb[0].mxu0
        %9749 = vmatprep.mubr.f32.mxu0 %v8324
        %9750 = vmatmul.mubr.f32.gmra.mrb[0].mxu0 %v8323
        %v9751 = vpop.f32.mrb[0].mxu0
        %v9752 = vadd.f32 %v9637, %v9751
        %v9753 = vpop.f32.mrb[0].mxu0
        %9754 = vmatprep.mubr.f32.mxu0 %v8340
        %9755 = vmatmul.mubr.f32.gmra.mrb[0].mxu0 %v8339
        %v9756 = vpop.f32.mrb[0].mxu0
        %v9757 = vadd.f32 %v9638, %v9756
        %v9758 = vpop.f32.mrb[0].mxu0
        %9759 = vmatprep.mubr.f32.mxu0 %v8356
        %9760 = vmatmul.mubr.f32.gmra.mrb[0].mxu0 %v8355
        %v9761 = vpop.f32.mrb[0].mxu0
        %v9762 = vadd.f32 %v9639, %v9761
        %v9763 = vpop.f32.mrb[0].mxu0
        %9764 = vmatprep.mubr.f32.mxu0 %v8372
        %9765 = vmatmul.mubr.f32.gmra.mrb[0].mxu0 %v8371
        %v9766 = vpop.f32.mrb[0].mxu0
        %v9767 = vadd.f32 %v9640, %v9766
        %v9768 = vpop.f32.mrb[0].mxu0
        %9769 = vmatprep.mubr.f32.mxu0 %v8388
        %9770 = vmatmul.mubr.f32.gmra.mrb[0].mxu0 %v8387
        %v9771 = vpop.f32.mrb[0].mxu0
        %v9772 = vadd.f32 %v9641, %v9771
        %v9773 = vpop.f32.mrb[0].mxu0
        %9774 = vmatprep.mubr.f32.mxu0 %v8404
        %9775 = vmatmul.mubr.f32.gmra.mrb[0].mxu0 %v8403
        %v9776 = vpop.f32.mrb[0].mxu0
        %v9777 = vadd.f32 %v9642, %v9776
        %v9778 = vpop.f32.mrb[0].mxu0
        %9779 = vmatprep.mubr.f32.mxu0 %v8420
        %9780 = vmatmul.mubr.f32.gmra.mrb[0].mxu0 %v8419
        %v9781 = vpop.f32.mrb[0].mxu0
        %v9782 = vadd.f32 %v9643, %v9781
        %v9783 = vpop.f32.mrb[0].mxu0
        %9784 = vmatprep.mubr.f32.mxu0 %v8436
        %9785 = vmatmul.mubr.f32.gmra.mrb[0].mxu0 %v8435
        %v9786 = vpop.f32.mrb[0].mxu0
        %v9787 = vadd.f32 %v9644, %v9786
        %v9788 = vpop.f32.mrb[0].mxu0
        %9789 = vdwg.mxu0
        %9790 = vmatprep.subr.mxu0 0.0
        %9791 = vmatpush1.msra.mxu0 %v9207
        %9792 = vmatprep.subr.mxu0 0.0
        %9793 = vmatpush1.msra.mxu0 %v9208
        %9794 = vmatprep.subr.mxu0 0.0
        %9795 = vmatpush1.msra.mxu0 %v9209
        %9796 = vmatprep.subr.mxu0 0.0
        %9797 = vmatpush1.msra.mxu0 %v9210
        %9798 = vmatprep.subr.mxu0 0.0
        %9799 = vmatpush1.msra.mxu0 %v9211
        %9800 = vmatprep.subr.mxu0 0.0
        %9801 = vmatpush1.msra.mxu0 %v9212
        %9802 = vmatprep.subr.mxu0 0.0
        %9803 = vmatpush1.msra.mxu0 %v9213
        %9804 = vmatprep.subr.mxu0 0.0
        %9805 = vmatpush1.msra.mxu0 %v9214
        %9806 = vmatprep.subr.mxu0 0.0
        %9807 = vmatpush1.msra.mxu0 %v9215
        %9808 = vmatprep.subr.mxu0 0.0
        %9809 = vmatpush1.msra.mxu0 %v9216
        %9810 = vmatprep.subr.mxu0 0.0
        %9811 = vmatpush1.msra.mxu0 %v9217
        %9812 = vmatprep.subr.mxu0 0.0
        %9813 = vmatpush1.msra.mxu0 %v9218
        %9814 = vmatprep.subr.mxu0 0.0
        %9815 = vmatpush1.msra.mxu0 %v9219
        %9816 = vmatprep.subr.mxu0 0.0
        %9817 = vmatpush1.msra.mxu0 %v9220
        %9818 = vmatprep.subr.mxu0 0.0
        %9819 = vmatpush1.msra.mxu0 %v9221
        %9820 = vmatprep.subr.mxu0 0.0
        %9821 = vmatpush1.msra.mxu0 %v9222
        %9822 = vmatprep.subr.mxu0 0.0
        %9823 = vmatpush1.msra.mxu0 %v9223
        %9824 = vmatprep.subr.mxu0 0.0
        %9825 = vmatpush1.msra.mxu0 %v9224
        %9826 = vmatprep.subr.mxu0 0.0
        %9827 = vmatpush1.msra.mxu0 %v9225
        %9828 = vmatprep.subr.mxu0 0.0
        %9829 = vmatpush1.msra.mxu0 %v9226
        %9830 = vmatprep.subr.mxu0 0.0
        %9831 = vmatpush1.msra.mxu0 %v9227
        %9832 = vmatprep.subr.mxu0 0.0
        %9833 = vmatpush1.msra.mxu0 %v9228
        %9834 = vmatprep.subr.mxu0 0.0
        %9835 = vmatpush1.msra.mxu0 %v9229
        %9836 = vmatprep.subr.mxu0 0.0
        %9837 = vmatpush1.msra.mxu0 %v9230
        %9838 = vmatprep.subr.mxu0 0.0
        %9839 = vmatpush1.msra.mxu0 %v9231
        %9840 = vmatprep.subr.mxu0 0.0
        %9841 = vmatpush1.msra.mxu0 %v9232
        %9842 = vmatprep.subr.mxu0 0.0
        %9843 = vmatpush1.msra.mxu0 %v9233
        %9844 = vmatprep.subr.mxu0 0.0
        %9845 = vmatpush1.msra.mxu0 %v9234
        %9846 = vmatprep.subr.mxu0 0.0
        %9847 = vmatpush1.msra.mxu0 %v9235
        %9848 = vmatprep.subr.mxu0 0.0
        %9849 = vmatpush1.msra.mxu0 %v9236
        %9850 = vmatprep.subr.mxu0 0.0
        %9851 = vmatpush1.msra.mxu0 %v9237
        %9852 = vmatprep.subr.mxu0 0.0
        %9853 = vmatpush1.msra.mxu0 %v9238
        %9854 = vmatprep.mubr.f32.mxu0 %v8198
        %9855 = vmatmul.mubr.f32.gmra.mrb[0].mxu0 %v8197
        %v9856 = vpop.f32.mrb[0].mxu0
        %v9857 = vadd.f32 %v9712, %v9856
        %v9858 = vpop.f32.mrb[0].mxu0
        %9859 = vmatprep.mubr.f32.mxu0 %v8214
        %9860 = vmatmul.mubr.f32.gmra.mrb[0].mxu0 %v8213
        %v9861 = vpop.f32.mrb[0].mxu0
        %v9862 = vadd.f32 %v9717, %v9861
        %v9863 = vpop.f32.mrb[0].mxu0
        %9864 = vmatprep.mubr.f32.mxu0 %v8230
        %9865 = vmatmul.mubr.f32.gmra.mrb[0].mxu0 %v8229
        %v9866 = vpop.f32.mrb[0].mxu0
        %v9867 = vadd.f32 %v9722, %v9866
        %v9868 = vpop.f32.mrb[0].mxu0
        %9869 = vmatprep.mubr.f32.mxu0 %v8246
        %9870 = vmatmul.mubr.f32.gmra.mrb[0].mxu0 %v8245
        %v9871 = vpop.f32.mrb[0].mxu0
        %v9872 = vadd.f32 %v9727, %v9871
        %v9873 = vpop.f32.mrb[0].mxu0
        %9874 = vmatprep.mubr.f32.mxu0 %v8262
        %9875 = vmatmul.mubr.f32.gmra.mrb[0].mxu0 %v8261
        %v9876 = vpop.f32.mrb[0].mxu0
        %v9877 = vadd.f32 %v9732, %v9876
        %v9878 = vpop.f32.mrb[0].mxu0
        %9879 = vmatprep.mubr.f32.mxu0 %v8278
        %9880 = vmatmul.mubr.f32.gmra.mrb[0].mxu0 %v8277
        %v9881 = vpop.f32.mrb[0].mxu0
        %v9882 = vadd.f32 %v9737, %v9881
        %v9883 = vpop.f32.mrb[0].mxu0
        %9884 = vmatprep.mubr.f32.mxu0 %v8294
        %9885 = vmatmul.mubr.f32.gmra.mrb[0].mxu0 %v8293
        %v9886 = vpop.f32.mrb[0].mxu0
        %v9887 = vadd.f32 %v9742, %v9886
        %v9888 = vpop.f32.mrb[0].mxu0
        %9889 = vmatprep.mubr.f32.mxu0 %v8310
        %9890 = vmatmul.mubr.f32.gmra.mrb[0].mxu0 %v8309
        %v9891 = vpop.f32.mrb[0].mxu0
        %v9892 = vadd.f32 %v9747, %v9891
        %v9893 = vpop.f32.mrb[0].mxu0
        %9894 = vmatprep.mubr.f32.mxu0 %v8326
        %9895 = vmatmul.mubr.f32.gmra.mrb[0].mxu0 %v8325
        %v9896 = vpop.f32.mrb[0].mxu0
        %v9897 = vadd.f32 %v9752, %v9896
        %v9898 = vpop.f32.mrb[0].mxu0
        %9899 = vmatprep.mubr.f32.mxu0 %v8342
        %9900 = vmatmul.mubr.f32.gmra.mrb[0].mxu0 %v8341
        %v9901 = vpop.f32.mrb[0].mxu0
        %v9902 = vadd.f32 %v9757, %v9901
        %v9903 = vpop.f32.mrb[0].mxu0
        %9904 = vmatprep.mubr.f32.mxu0 %v8358
        %9905 = vmatmul.mubr.f32.gmra.mrb[0].mxu0 %v8357
        %v9906 = vpop.f32.mrb[0].mxu0
        %v9907 = vadd.f32 %v9762, %v9906
        %v9908 = vpop.f32.mrb[0].mxu0
        %9909 = vmatprep.mubr.f32.mxu0 %v8374
        %9910 = vmatmul.mubr.f32.gmra.mrb[0].mxu0 %v8373
        %v9911 = vpop.f32.mrb[0].mxu0
        %v9912 = vadd.f32 %v9767, %v9911
        %v9913 = vpop.f32.mrb[0].mxu0
        %9914 = vmatprep.mubr.f32.mxu0 %v8390
        %9915 = vmatmul.mubr.f32.gmra.mrb[0].mxu0 %v8389
        %v9916 = vpop.f32.mrb[0].mxu0
        %v9917 = vadd.f32 %v9772, %v9916
        %v9918 = vpop.f32.mrb[0].mxu0
        %9919 = vmatprep.mubr.f32.mxu0 %v8406
        %9920 = vmatmul.mubr.f32.gmra.mrb[0].mxu0 %v8405
        %v9921 = vpop.f32.mrb[0].mxu0
        %v9922 = vadd.f32 %v9777, %v9921
        %v9923 = vpop.f32.mrb[0].mxu0
        %9924 = vmatprep.mubr.f32.mxu0 %v8422
        %9925 = vmatmul.mubr.f32.gmra.mrb[0].mxu0 %v8421
        %v9926 = vpop.f32.mrb[0].mxu0
        %v9927 = vadd.f32 %v9782, %v9926
        %v9928 = vpop.f32.mrb[0].mxu0
        %9929 = vmatprep.mubr.f32.mxu0 %v8438
        %9930 = vmatmul.mubr.f32.gmra.mrb[0].mxu0 %v8437
        %v9931 = vpop.f32.mrb[0].mxu0
        %v9932 = vadd.f32 %v9787, %v9931
        %v9933 = vpop.f32.mrb[0].mxu0
        %9934 = vdwg.mxu0
        %9935 = vmatprep.subr.mxu0 0.0
        %9936 = vmatpush1.msra.mxu0 %v9239
        %9937 = vmatprep.subr.mxu0 0.0
        %9938 = vmatpush1.msra.mxu0 %v9240
        %9939 = vmatprep.subr.mxu0 0.0
        %9940 = vmatpush1.msra.mxu0 %v9241
        %9941 = vmatprep.subr.mxu0 0.0
        %9942 = vmatpush1.msra.mxu0 %v9242
        %9943 = vmatprep.subr.mxu0 0.0
        %9944 = vmatpush1.msra.mxu0 %v9243
        %9945 = vmatprep.subr.mxu0 0.0
        %9946 = vmatpush1.msra.mxu0 %v9244
        %9947 = vmatprep.subr.mxu0 0.0
        %9948 = vmatpush1.msra.mxu0 %v9245
        %9949 = vmatprep.subr.mxu0 0.0
        %9950 = vmatpush1.msra.mxu0 %v9246
        %9951 = vmatprep.subr.mxu0 0.0
        %9952 = vmatpush1.msra.mxu0 %v9247
        %9953 = vmatprep.subr.mxu0 0.0
        %9954 = vmatpush1.msra.mxu0 %v9248
        %9955 = vmatprep.subr.mxu0 0.0
        %9956 = vmatpush1.msra.mxu0 %v9249
        %9957 = vmatprep.subr.mxu0 0.0
        %9958 = vmatpush1.msra.mxu0 %v9250
        %9959 = vmatprep.subr.mxu0 0.0
        %9960 = vmatpush1.msra.mxu0 %v9251
        %9961 = vmatprep.subr.mxu0 0.0
        %9962 = vmatpush1.msra.mxu0 %v9252
        %9963 = vmatprep.subr.mxu0 0.0
        %9964 = vmatpush1.msra.mxu0 %v9253
        %9965 = vmatprep.subr.mxu0 0.0
        %9966 = vmatpush1.msra.mxu0 %v9254
        %9967 = vmatprep.subr.mxu0 0.0
        %9968 = vmatpush1.msra.mxu0 %v9255
        %9969 = vmatprep.subr.mxu0 0.0
        %9970 = vmatpush1.msra.mxu0 %v9256
        %9971 = vmatprep.subr.mxu0 0.0
        %9972 = vmatpush1.msra.mxu0 %v9257
        %9973 = vmatprep.subr.mxu0 0.0
        %9974 = vmatpush1.msra.mxu0 %v9258
        %9975 = vmatprep.subr.mxu0 0.0
        %9976 = vmatpush1.msra.mxu0 %v9259
        %9977 = vmatprep.subr.mxu0 0.0
        %9978 = vmatpush1.msra.mxu0 %v9260
        %9979 = vmatprep.subr.mxu0 0.0
        %9980 = vmatpush1.msra.mxu0 %v9261
        %9981 = vmatprep.subr.mxu0 0.0
        %9982 = vmatpush1.msra.mxu0 %v9262
        %9983 = vmatprep.subr.mxu0 0.0
        %9984 = vmatpush1.msra.mxu0 %v9263
        %9985 = vmatprep.subr.mxu0 0.0
        %9986 = vmatpush1.msra.mxu0 %v9264
        %9987 = vmatprep.subr.mxu0 0.0
        %9988 = vmatpush1.msra.mxu0 %v9265
        %9989 = vmatprep.subr.mxu0 0.0
        %9990 = vmatpush1.msra.mxu0 %v9266
        %9991 = vmatprep.subr.mxu0 0.0
        %9992 = vmatpush1.msra.mxu0 %v9267
        %9993 = vmatprep.subr.mxu0 0.0
        %9994 = vmatpush1.msra.mxu0 %v9268
        %9995 = vmatprep.subr.mxu0 0.0
        %9996 = vmatpush1.msra.mxu0 %v9269
        %9997 = vmatprep.subr.mxu0 0.0
        %9998 = vmatpush1.msra.mxu0 %v9270
        %9999 = vmatprep.mubr.f32.mxu0 %v8200
        %10000 = vmatmul.mubr.f32.gmra.mrb[0].mxu0 %v8199
        %v10001 = vpop.f32.mrb[0].mxu0
        %v10002 = vadd.f32 %v9857, %v10001
        %v10003 = vpop.f32.mrb[0].mxu0
        %10004 = vmatprep.mubr.f32.mxu0 %v8216
        %10005 = vmatmul.mubr.f32.gmra.mrb[0].mxu0 %v8215
        %v10006 = vpop.f32.mrb[0].mxu0
        %v10007 = vadd.f32 %v9862, %v10006
        %v10008 = vpop.f32.mrb[0].mxu0
        %10009 = vmatprep.mubr.f32.mxu0 %v8232
        %10010 = vmatmul.mubr.f32.gmra.mrb[0].mxu0 %v8231
        %v10011 = vpop.f32.mrb[0].mxu0
        %v10012 = vadd.f32 %v9867, %v10011
        %v10013 = vpop.f32.mrb[0].mxu0
        %10014 = vmatprep.mubr.f32.mxu0 %v8248
        %10015 = vmatmul.mubr.f32.gmra.mrb[0].mxu0 %v8247
        %v10016 = vpop.f32.mrb[0].mxu0
        %v10017 = vadd.f32 %v9872, %v10016
        %v10018 = vpop.f32.mrb[0].mxu0
        %10019 = vmatprep.mubr.f32.mxu0 %v8264
        %10020 = vmatmul.mubr.f32.gmra.mrb[0].mxu0 %v8263
        %v10021 = vpop.f32.mrb[0].mxu0
        %v10022 = vadd.f32 %v9877, %v10021
        %v10023 = vpop.f32.mrb[0].mxu0
        %10024 = vmatprep.mubr.f32.mxu0 %v8280
        %10025 = vmatmul.mubr.f32.gmra.mrb[0].mxu0 %v8279
        %v10026 = vpop.f32.mrb[0].mxu0
        %v10027 = vadd.f32 %v9882, %v10026
        %v10028 = vpop.f32.mrb[0].mxu0
        %10029 = vmatprep.mubr.f32.mxu0 %v8296
        %10030 = vmatmul.mubr.f32.gmra.mrb[0].mxu0 %v8295
        %v10031 = vpop.f32.mrb[0].mxu0
        %v10032 = vadd.f32 %v9887, %v10031
        %v10033 = vpop.f32.mrb[0].mxu0
        %10034 = vmatprep.mubr.f32.mxu0 %v8312
        %10035 = vmatmul.mubr.f32.gmra.mrb[0].mxu0 %v8311
        %v10036 = vpop.f32.mrb[0].mxu0
        %v10037 = vadd.f32 %v9892, %v10036
        %v10038 = vpop.f32.mrb[0].mxu0
        %10039 = vmatprep.mubr.f32.mxu0 %v8328
        %10040 = vmatmul.mubr.f32.gmra.mrb[0].mxu0 %v8327
        %v10041 = vpop.f32.mrb[0].mxu0
        %v10042 = vadd.f32 %v9897, %v10041
        %v10043 = vpop.f32.mrb[0].mxu0
        %10044 = vmatprep.mubr.f32.mxu0 %v8344
        %10045 = vmatmul.mubr.f32.gmra.mrb[0].mxu0 %v8343
        %v10046 = vpop.f32.mrb[0].mxu0
        %v10047 = vadd.f32 %v9902, %v10046
        %v10048 = vpop.f32.mrb[0].mxu0
        %10049 = vmatprep.mubr.f32.mxu0 %v8360
        %10050 = vmatmul.mubr.f32.gmra.mrb[0].mxu0 %v8359
        %v10051 = vpop.f32.mrb[0].mxu0
        %v10052 = vadd.f32 %v9907, %v10051
        %v10053 = vpop.f32.mrb[0].mxu0
        %10054 = vmatprep.mubr.f32.mxu0 %v8376
        %10055 = vmatmul.mubr.f32.gmra.mrb[0].mxu0 %v8375
        %v10056 = vpop.f32.mrb[0].mxu0
        %v10057 = vadd.f32 %v9912, %v10056
        %v10058 = vpop.f32.mrb[0].mxu0
        %10059 = vmatprep.mubr.f32.mxu0 %v8392
        %10060 = vmatmul.mubr.f32.gmra.mrb[0].mxu0 %v8391
        %v10061 = vpop.f32.mrb[0].mxu0
        %v10062 = vadd.f32 %v9917, %v10061
        %v10063 = vpop.f32.mrb[0].mxu0
        %10064 = vmatprep.mubr.f32.mxu0 %v8408
        %10065 = vmatmul.mubr.f32.gmra.mrb[0].mxu0 %v8407
        %v10066 = vpop.f32.mrb[0].mxu0
        %v10067 = vadd.f32 %v9922, %v10066
        %v10068 = vpop.f32.mrb[0].mxu0
        %10069 = vmatprep.mubr.f32.mxu0 %v8424
        %10070 = vmatmul.mubr.f32.gmra.mrb[0].mxu0 %v8423
        %v10071 = vpop.f32.mrb[0].mxu0
        %v10072 = vadd.f32 %v9927, %v10071
        %v10073 = vpop.f32.mrb[0].mxu0
        %10074 = vmatprep.mubr.f32.mxu0 %v8440
        %10075 = vmatmul.mubr.f32.gmra.mrb[0].mxu0 %v8439
        %v10076 = vpop.f32.mrb[0].mxu0
        %v10077 = vadd.f32 %v9932, %v10076
        %v10078 = vpop.f32.mrb[0].mxu0
        %10079 = vdwg.mxu0
        %10080 = vmatprep.subr.mxu0 0.0
        %10081 = vmatpush1.msra.mxu0 %v9271
        %10082 = vmatprep.subr.mxu0 0.0
        %10083 = vmatpush1.msra.mxu0 %v9272
        %10084 = vmatprep.subr.mxu0 0.0
        %10085 = vmatpush1.msra.mxu0 %v9273
        %10086 = vmatprep.subr.mxu0 0.0
        %10087 = vmatpush1.msra.mxu0 %v9274
        %10088 = vmatprep.subr.mxu0 0.0
        %10089 = vmatpush1.msra.mxu0 %v9275
        %10090 = vmatprep.subr.mxu0 0.0
        %10091 = vmatpush1.msra.mxu0 %v9276
        %10092 = vmatprep.subr.mxu0 0.0
        %10093 = vmatpush1.msra.mxu0 %v9277
        %10094 = vmatprep.subr.mxu0 0.0
        %10095 = vmatpush1.msra.mxu0 %v9278
        %10096 = vmatprep.subr.mxu0 0.0
        %10097 = vmatpush1.msra.mxu0 %v9279
        %10098 = vmatprep.subr.mxu0 0.0
        %10099 = vmatpush1.msra.mxu0 %v9280
        %10100 = vmatprep.subr.mxu0 0.0
        %10101 = vmatpush1.msra.mxu0 %v9281
        %10102 = vmatprep.subr.mxu0 0.0
        %10103 = vmatpush1.msra.mxu0 %v9282
        %10104 = vmatprep.subr.mxu0 0.0
        %10105 = vmatpush1.msra.mxu0 %v9283
        %10106 = vmatprep.subr.mxu0 0.0
        %10107 = vmatpush1.msra.mxu0 %v9284
        %10108 = vmatprep.subr.mxu0 0.0
        %10109 = vmatpush1.msra.mxu0 %v9285
        %10110 = vmatprep.subr.mxu0 0.0
        %10111 = vmatpush1.msra.mxu0 %v9286
        %10112 = vmatprep.subr.mxu0 0.0
        %10113 = vmatpush1.msra.mxu0 %v9287
        %10114 = vmatprep.subr.mxu0 0.0
        %10115 = vmatpush1.msra.mxu0 %v9288
        %10116 = vmatprep.subr.mxu0 0.0
        %10117 = vmatpush1.msra.mxu0 %v9289
        %10118 = vmatprep.subr.mxu0 0.0
        %10119 = vmatpush1.msra.mxu0 %v9290
        %10120 = vmatprep.subr.mxu0 0.0
        %10121 = vmatpush1.msra.mxu0 %v9291
        %10122 = vmatprep.subr.mxu0 0.0
        %10123 = vmatpush1.msra.mxu0 %v9292
        %10124 = vmatprep.subr.mxu0 0.0
        %10125 = vmatpush1.msra.mxu0 %v9293
        %10126 = vmatprep.subr.mxu0 0.0
        %10127 = vmatpush1.msra.mxu0 %v9294
        %10128 = vmatprep.subr.mxu0 0.0
        %10129 = vmatpush1.msra.mxu0 %v9295
        %10130 = vmatprep.subr.mxu0 0.0
        %10131 = vmatpush1.msra.mxu0 %v9296
        %10132 = vmatprep.subr.mxu0 0.0
        %10133 = vmatpush1.msra.mxu0 %v9297
        %10134 = vmatprep.subr.mxu0 0.0
        %10135 = vmatpush1.msra.mxu0 %v9298
        %10136 = vmatprep.subr.mxu0 0.0
        %10137 = vmatpush1.msra.mxu0 %v9299
        %10138 = vmatprep.subr.mxu0 0.0
        %10139 = vmatpush1.msra.mxu0 %v9300
        %10140 = vmatprep.subr.mxu0 0.0
        %10141 = vmatpush1.msra.mxu0 %v9301
        %10142 = vmatprep.subr.mxu0 0.0
        %10143 = vmatpush1.msra.mxu0 %v9302
        %10144 = vmatprep.mubr.f32.mxu0 %v8202
        %10145 = vmatmul.mubr.f32.gmra.mrb[0].mxu0 %v8201
        %v10146 = vpop.f32.mrb[0].mxu0
        %v10147 = vadd.f32 %v10002, %v10146
        %v10148 = vpop.f32.mrb[0].mxu0
        %10149 = vmatprep.mubr.f32.mxu0 %v8218
        %10150 = vmatmul.mubr.f32.gmra.mrb[0].mxu0 %v8217
        %v10151 = vpop.f32.mrb[0].mxu0
        %v10152 = vadd.f32 %v10007, %v10151
        %v10153 = vpop.f32.mrb[0].mxu0
        %10154 = vmatprep.mubr.f32.mxu0 %v8234
        %10155 = vmatmul.mubr.f32.gmra.mrb[0].mxu0 %v8233
        %v10156 = vpop.f32.mrb[0].mxu0
        %v10157 = vadd.f32 %v10012, %v10156
        %v10158 = vpop.f32.mrb[0].mxu0
        %10159 = vmatprep.mubr.f32.mxu0 %v8250
        %10160 = vmatmul.mubr.f32.gmra.mrb[0].mxu0 %v8249
        %v10161 = vpop.f32.mrb[0].mxu0
        %v10162 = vadd.f32 %v10017, %v10161
        %v10163 = vpop.f32.mrb[0].mxu0
        %10164 = vmatprep.mubr.f32.mxu0 %v8266
        %10165 = vmatmul.mubr.f32.gmra.mrb[0].mxu0 %v8265
        %v10166 = vpop.f32.mrb[0].mxu0
        %v10167 = vadd.f32 %v10022, %v10166
        %v10168 = vpop.f32.mrb[0].mxu0
        %10169 = vmatprep.mubr.f32.mxu0 %v8282
        %10170 = vmatmul.mubr.f32.gmra.mrb[0].mxu0 %v8281
        %v10171 = vpop.f32.mrb[0].mxu0
        %v10172 = vadd.f32 %v10027, %v10171
        %v10173 = vpop.f32.mrb[0].mxu0
        %10174 = vmatprep.mubr.f32.mxu0 %v8298
        %10175 = vmatmul.mubr.f32.gmra.mrb[0].mxu0 %v8297
        %v10176 = vpop.f32.mrb[0].mxu0
        %v10177 = vadd.f32 %v10032, %v10176
        %v10178 = vpop.f32.mrb[0].mxu0
        %10179 = vmatprep.mubr.f32.mxu0 %v8314
        %10180 = vmatmul.mubr.f32.gmra.mrb[0].mxu0 %v8313
        %v10181 = vpop.f32.mrb[0].mxu0
        %v10182 = vadd.f32 %v10037, %v10181
        %v10183 = vpop.f32.mrb[0].mxu0
        %10184 = vmatprep.mubr.f32.mxu0 %v8330
        %10185 = vmatmul.mubr.f32.gmra.mrb[0].mxu0 %v8329
        %v10186 = vpop.f32.mrb[0].mxu0
        %v10187 = vadd.f32 %v10042, %v10186
        %v10188 = vpop.f32.mrb[0].mxu0
        %10189 = vmatprep.mubr.f32.mxu0 %v8346
        %10190 = vmatmul.mubr.f32.gmra.mrb[0].mxu0 %v8345
        %v10191 = vpop.f32.mrb[0].mxu0
        %v10192 = vadd.f32 %v10047, %v10191
        %v10193 = vpop.f32.mrb[0].mxu0
        %10194 = vmatprep.mubr.f32.mxu0 %v8362
        %10195 = vmatmul.mubr.f32.gmra.mrb[0].mxu0 %v8361
        %v10196 = vpop.f32.mrb[0].mxu0
        %v10197 = vadd.f32 %v10052, %v10196
        %v10198 = vpop.f32.mrb[0].mxu0
        %10199 = vmatprep.mubr.f32.mxu0 %v8378
        %10200 = vmatmul.mubr.f32.gmra.mrb[0].mxu0 %v8377
        %v10201 = vpop.f32.mrb[0].mxu0
        %v10202 = vadd.f32 %v10057, %v10201
        %v10203 = vpop.f32.mrb[0].mxu0
        %10204 = vmatprep.mubr.f32.mxu0 %v8394
        %10205 = vmatmul.mubr.f32.gmra.mrb[0].mxu0 %v8393
        %v10206 = vpop.f32.mrb[0].mxu0
        %v10207 = vadd.f32 %v10062, %v10206
        %v10208 = vpop.f32.mrb[0].mxu0
        %10209 = vmatprep.mubr.f32.mxu0 %v8410
        %10210 = vmatmul.mubr.f32.gmra.mrb[0].mxu0 %v8409
        %v10211 = vpop.f32.mrb[0].mxu0
        %v10212 = vadd.f32 %v10067, %v10211
        %v10213 = vpop.f32.mrb[0].mxu0
        %10214 = vmatprep.mubr.f32.mxu0 %v8426
        %10215 = vmatmul.mubr.f32.gmra.mrb[0].mxu0 %v8425
        %v10216 = vpop.f32.mrb[0].mxu0
        %v10217 = vadd.f32 %v10072, %v10216
        %v10218 = vpop.f32.mrb[0].mxu0
        %10219 = vmatprep.mubr.f32.mxu0 %v8442
        %10220 = vmatmul.mubr.f32.gmra.mrb[0].mxu0 %v8441
        %v10221 = vpop.f32.mrb[0].mxu0
        %v10222 = vadd.f32 %v10077, %v10221
        %v10223 = vpop.f32.mrb[0].mxu0
        %10224 = vdwg.mxu0
        %10225 = vmatprep.subr.mxu0 0.0
        %10226 = vmatpush1.msra.mxu0 %v9303
        %10227 = vmatprep.subr.mxu0 0.0
        %10228 = vmatpush1.msra.mxu0 %v9304
        %10229 = vmatprep.subr.mxu0 0.0
        %10230 = vmatpush1.msra.mxu0 %v9305
        %10231 = vmatprep.subr.mxu0 0.0
        %10232 = vmatpush1.msra.mxu0 %v9306
        %10233 = vmatprep.subr.mxu0 0.0
        %10234 = vmatpush1.msra.mxu0 %v9307
        %10235 = vmatprep.subr.mxu0 0.0
        %10236 = vmatpush1.msra.mxu0 %v9308
        %10237 = vmatprep.subr.mxu0 0.0
        %10238 = vmatpush1.msra.mxu0 %v9309
        %10239 = vmatprep.subr.mxu0 0.0
        %10240 = vmatpush1.msra.mxu0 %v9310
        %10241 = vmatprep.subr.mxu0 0.0
        %10242 = vmatpush1.msra.mxu0 %v9311
        %10243 = vmatprep.subr.mxu0 0.0
        %10244 = vmatpush1.msra.mxu0 %v9312
        %10245 = vmatprep.subr.mxu0 0.0
        %10246 = vmatpush1.msra.mxu0 %v9313
        %10247 = vmatprep.subr.mxu0 0.0
        %10248 = vmatpush1.msra.mxu0 %v9314
        %10249 = vmatprep.subr.mxu0 0.0
        %10250 = vmatpush1.msra.mxu0 %v9315
        %10251 = vmatprep.subr.mxu0 0.0
        %10252 = vmatpush1.msra.mxu0 %v9316
        %10253 = vmatprep.subr.mxu0 0.0
        %10254 = vmatpush1.msra.mxu0 %v9317
        %10255 = vmatprep.subr.mxu0 0.0
        %10256 = vmatpush1.msra.mxu0 %v9318
        %10257 = vmatprep.subr.mxu0 0.0
        %10258 = vmatpush1.msra.mxu0 %v9319
        %10259 = vmatprep.subr.mxu0 0.0
        %10260 = vmatpush1.msra.mxu0 %v9320
        %10261 = vmatprep.subr.mxu0 0.0
        %10262 = vmatpush1.msra.mxu0 %v9321
        %10263 = vmatprep.subr.mxu0 0.0
        %10264 = vmatpush1.msra.mxu0 %v9322
        %10265 = vmatprep.subr.mxu0 0.0
        %10266 = vmatpush1.msra.mxu0 %v9323
        %10267 = vmatprep.subr.mxu0 0.0
        %10268 = vmatpush1.msra.mxu0 %v9324
        %10269 = vmatprep.subr.mxu0 0.0
        %10270 = vmatpush1.msra.mxu0 %v9325
        %10271 = vmatprep.subr.mxu0 0.0
        %10272 = vmatpush1.msra.mxu0 %v9326
        %10273 = vmatprep.subr.mxu0 0.0
        %10274 = vmatpush1.msra.mxu0 %v9327
        %10275 = vmatprep.subr.mxu0 0.0
        %10276 = vmatpush1.msra.mxu0 %v9328
        %10277 = vmatprep.subr.mxu0 0.0
        %10278 = vmatpush1.msra.mxu0 %v9329
        %10279 = vmatprep.subr.mxu0 0.0
        %10280 = vmatpush1.msra.mxu0 %v9330
        %10281 = vmatprep.subr.mxu0 0.0
        %10282 = vmatpush1.msra.mxu0 %v9331
        %10283 = vmatprep.subr.mxu0 0.0
        %10284 = vmatpush1.msra.mxu0 %v9332
        %10285 = vmatprep.subr.mxu0 0.0
        %10286 = vmatpush1.msra.mxu0 %v9333
        %10287 = vmatprep.subr.mxu0 0.0
        %10288 = vmatpush1.msra.mxu0 %v9334
        %10289 = vmatprep.mubr.f32.mxu0 %v8204
        %10290 = vmatmul.mubr.f32.gmra.mrb[0].mxu0 %v8203
        %v10291 = vpop.f32.mrb[0].mxu0
        %v10292 = vadd.f32 %v10147, %v10291
        %v10293 = vpop.f32.mrb[0].mxu0
        %10294 = vmatprep.mubr.f32.mxu0 %v8220
        %10295 = vmatmul.mubr.f32.gmra.mrb[0].mxu0 %v8219
        %v10296 = vpop.f32.mrb[0].mxu0
        %v10297 = vadd.f32 %v10152, %v10296
        %v10298 = vpop.f32.mrb[0].mxu0
        %10299 = vmatprep.mubr.f32.mxu0 %v8236
        %10300 = vmatmul.mubr.f32.gmra.mrb[0].mxu0 %v8235
        %v10301 = vpop.f32.mrb[0].mxu0
        %v10302 = vadd.f32 %v10157, %v10301
        %v10303 = vpop.f32.mrb[0].mxu0
        %10304 = vmatprep.mubr.f32.mxu0 %v8252
        %10305 = vmatmul.mubr.f32.gmra.mrb[0].mxu0 %v8251
        %v10306 = vpop.f32.mrb[0].mxu0
        %v10307 = vadd.f32 %v10162, %v10306
        %v10308 = vpop.f32.mrb[0].mxu0
        %10309 = vmatprep.mubr.f32.mxu0 %v8268
        %10310 = vmatmul.mubr.f32.gmra.mrb[0].mxu0 %v8267
        %v10311 = vpop.f32.mrb[0].mxu0
        %v10312 = vadd.f32 %v10167, %v10311
        %v10313 = vpop.f32.mrb[0].mxu0
        %10314 = vmatprep.mubr.f32.mxu0 %v8284
        %10315 = vmatmul.mubr.f32.gmra.mrb[0].mxu0 %v8283
        %v10316 = vpop.f32.mrb[0].mxu0
        %v10317 = vadd.f32 %v10172, %v10316
        %v10318 = vpop.f32.mrb[0].mxu0
        %10319 = vmatprep.mubr.f32.mxu0 %v8300
        %10320 = vmatmul.mubr.f32.gmra.mrb[0].mxu0 %v8299
        %v10321 = vpop.f32.mrb[0].mxu0
        %v10322 = vadd.f32 %v10177, %v10321
        %v10323 = vpop.f32.mrb[0].mxu0
        %10324 = vmatprep.mubr.f32.mxu0 %v8316
        %10325 = vmatmul.mubr.f32.gmra.mrb[0].mxu0 %v8315
        %v10326 = vpop.f32.mrb[0].mxu0
        %v10327 = vadd.f32 %v10182, %v10326
        %v10328 = vpop.f32.mrb[0].mxu0
        %10329 = vmatprep.mubr.f32.mxu0 %v8332
        %10330 = vmatmul.mubr.f32.gmra.mrb[0].mxu0 %v8331
        %v10331 = vpop.f32.mrb[0].mxu0
        %v10332 = vadd.f32 %v10187, %v10331
        %v10333 = vpop.f32.mrb[0].mxu0
        %10334 = vmatprep.mubr.f32.mxu0 %v8348
        %10335 = vmatmul.mubr.f32.gmra.mrb[0].mxu0 %v8347
        %v10336 = vpop.f32.mrb[0].mxu0
        %v10337 = vadd.f32 %v10192, %v10336
        %v10338 = vpop.f32.mrb[0].mxu0
        %10339 = vmatprep.mubr.f32.mxu0 %v8364
        %10340 = vmatmul.mubr.f32.gmra.mrb[0].mxu0 %v8363
        %v10341 = vpop.f32.mrb[0].mxu0
        %v10342 = vadd.f32 %v10197, %v10341
        %v10343 = vpop.f32.mrb[0].mxu0
        %10344 = vmatprep.mubr.f32.mxu0 %v8380
        %10345 = vmatmul.mubr.f32.gmra.mrb[0].mxu0 %v8379
        %v10346 = vpop.f32.mrb[0].mxu0
        %v10347 = vadd.f32 %v10202, %v10346
        %v10348 = vpop.f32.mrb[0].mxu0
        %10349 = vmatprep.mubr.f32.mxu0 %v8396
        %10350 = vmatmul.mubr.f32.gmra.mrb[0].mxu0 %v8395
        %v10351 = vpop.f32.mrb[0].mxu0
        %v10352 = vadd.f32 %v10207, %v10351
        %v10353 = vpop.f32.mrb[0].mxu0
        %10354 = vmatprep.mubr.f32.mxu0 %v8412
        %10355 = vmatmul.mubr.f32.gmra.mrb[0].mxu0 %v8411
        %v10356 = vpop.f32.mrb[0].mxu0
        %v10357 = vadd.f32 %v10212, %v10356
        %v10358 = vpop.f32.mrb[0].mxu0
        %10359 = vmatprep.mubr.f32.mxu0 %v8428
        %10360 = vmatmul.mubr.f32.gmra.mrb[0].mxu0 %v8427
        %v10361 = vpop.f32.mrb[0].mxu0
        %v10362 = vadd.f32 %v10217, %v10361
        %v10363 = vpop.f32.mrb[0].mxu0
        %10364 = vmatprep.mubr.f32.mxu0 %v8444
        %10365 = vmatmul.mubr.f32.gmra.mrb[0].mxu0 %v8443
        %v10366 = vpop.f32.mrb[0].mxu0
        %v10367 = vadd.f32 %v10222, %v10366
        %v10368 = vpop.f32.mrb[0].mxu0
        %10369 = vdwg.mxu0
        %10370 = vmatprep.subr.mxu0 0.0
        %10371 = vmatpush1.msra.mxu0 %v9335
        %10372 = vmatprep.subr.mxu0 0.0
        %10373 = vmatpush1.msra.mxu0 %v9336
        %10374 = vmatprep.subr.mxu0 0.0
        %10375 = vmatpush1.msra.mxu0 %v9337
        %10376 = vmatprep.subr.mxu0 0.0
        %10377 = vmatpush1.msra.mxu0 %v9338
        %10378 = vmatprep.subr.mxu0 0.0
        %10379 = vmatpush1.msra.mxu0 %v9339
        %10380 = vmatprep.subr.mxu0 0.0
        %10381 = vmatpush1.msra.mxu0 %v9340
        %10382 = vmatprep.subr.mxu0 0.0
        %10383 = vmatpush1.msra.mxu0 %v9341
        %10384 = vmatprep.subr.mxu0 0.0
        %10385 = vmatpush1.msra.mxu0 %v9342
        %10386 = vmatprep.subr.mxu0 0.0
        %10387 = vmatpush1.msra.mxu0 %v9343
        %10388 = vmatprep.subr.mxu0 0.0
        %10389 = vmatpush1.msra.mxu0 %v9344
        %10390 = vmatprep.subr.mxu0 0.0
        %10391 = vmatpush1.msra.mxu0 %v9345
        %10392 = vmatprep.subr.mxu0 0.0
        %10393 = vmatpush1.msra.mxu0 %v9346
        %10394 = vmatprep.subr.mxu0 0.0
        %10395 = vmatpush1.msra.mxu0 %v9347
        %10396 = vmatprep.subr.mxu0 0.0
        %10397 = vmatpush1.msra.mxu0 %v9348
        %10398 = vmatprep.subr.mxu0 0.0
        %10399 = vmatpush1.msra.mxu0 %v9349
        %10400 = vmatprep.subr.mxu0 0.0
        %10401 = vmatpush1.msra.mxu0 %v9350
        %10402 = vmatprep.subr.mxu0 0.0
        %10403 = vmatpush1.msra.mxu0 %v9351
        %10404 = vmatprep.subr.mxu0 0.0
        %10405 = vmatpush1.msra.mxu0 %v9352
        %10406 = vmatprep.subr.mxu0 0.0
        %10407 = vmatpush1.msra.mxu0 %v9353
        %10408 = vmatprep.subr.mxu0 0.0
        %10409 = vmatpush1.msra.mxu0 %v9354
        %10410 = vmatprep.subr.mxu0 0.0
        %10411 = vmatpush1.msra.mxu0 %v9355
        %10412 = vmatprep.subr.mxu0 0.0
        %10413 = vmatpush1.msra.mxu0 %v9356
        %10414 = vmatprep.subr.mxu0 0.0
        %10415 = vmatpush1.msra.mxu0 %v9357
        %10416 = vmatprep.subr.mxu0 0.0
        %10417 = vmatpush1.msra.mxu0 %v9358
        %10418 = vmatprep.subr.mxu0 0.0
        %10419 = vmatpush1.msra.mxu0 %v9359
        %10420 = vmatprep.subr.mxu0 0.0
        %10421 = vmatpush1.msra.mxu0 %v9360
        %10422 = vmatprep.subr.mxu0 0.0
        %10423 = vmatpush1.msra.mxu0 %v9361
        %10424 = vmatprep.subr.mxu0 0.0
        %10425 = vmatpush1.msra.mxu0 %v9362
        %10426 = vmatprep.subr.mxu0 0.0
        %10427 = vmatpush1.msra.mxu0 %v9363
        %10428 = vmatprep.subr.mxu0 0.0
        %10429 = vmatpush1.msra.mxu0 %v9364
        %10430 = vmatprep.subr.mxu0 0.0
        %10431 = vmatpush1.msra.mxu0 %v9365
        %10432 = vmatprep.subr.mxu0 0.0
        %10433 = vmatpush1.msra.mxu0 %v9366
        %10434 = vmatprep.mubr.f32.mxu0 %v8206
        %10435 = vmatmul.mubr.f32.gmra.mrb[0].mxu0 %v8205
        %v10436 = vpop.f32.mrb[0].mxu0
        %v10437 = vadd.f32 %v10292, %v10436
        %v10438 = vpop.f32.mrb[0].mxu0
        %10439 = vmatprep.mubr.f32.mxu0 %v8222
        %10440 = vmatmul.mubr.f32.gmra.mrb[0].mxu0 %v8221
        %v10441 = vpop.f32.mrb[0].mxu0
        %v10442 = vadd.f32 %v10297, %v10441
        %v10443 = vpop.f32.mrb[0].mxu0
        %10444 = vmatprep.mubr.f32.mxu0 %v8238
        %10445 = vmatmul.mubr.f32.gmra.mrb[0].mxu0 %v8237
        %v10446 = vpop.f32.mrb[0].mxu0
        %v10447 = vadd.f32 %v10302, %v10446
        %v10448 = vpop.f32.mrb[0].mxu0
        %10449 = vmatprep.mubr.f32.mxu0 %v8254
        %10450 = vmatmul.mubr.f32.gmra.mrb[0].mxu0 %v8253
        %v10451 = vpop.f32.mrb[0].mxu0
        %v10452 = vadd.f32 %v10307, %v10451
        %v10453 = vpop.f32.mrb[0].mxu0
        %10454 = vmatprep.mubr.f32.mxu0 %v8270
        %10455 = vmatmul.mubr.f32.gmra.mrb[0].mxu0 %v8269
        %v10456 = vpop.f32.mrb[0].mxu0
        %v10457 = vadd.f32 %v10312, %v10456
        %v10458 = vpop.f32.mrb[0].mxu0
        %10459 = vmatprep.mubr.f32.mxu0 %v8286
        %10460 = vmatmul.mubr.f32.gmra.mrb[0].mxu0 %v8285
        %v10461 = vpop.f32.mrb[0].mxu0
        %v10462 = vadd.f32 %v10317, %v10461
        %v10463 = vpop.f32.mrb[0].mxu0
        %10464 = vmatprep.mubr.f32.mxu0 %v8302
        %10465 = vmatmul.mubr.f32.gmra.mrb[0].mxu0 %v8301
        %v10466 = vpop.f32.mrb[0].mxu0
        %v10467 = vadd.f32 %v10322, %v10466
        %v10468 = vpop.f32.mrb[0].mxu0
        %10469 = vmatprep.mubr.f32.mxu0 %v8318
        %10470 = vmatmul.mubr.f32.gmra.mrb[0].mxu0 %v8317
        %v10471 = vpop.f32.mrb[0].mxu0
        %v10472 = vadd.f32 %v10327, %v10471
        %v10473 = vpop.f32.mrb[0].mxu0
        %10474 = vmatprep.mubr.f32.mxu0 %v8334
        %10475 = vmatmul.mubr.f32.gmra.mrb[0].mxu0 %v8333
        %v10476 = vpop.f32.mrb[0].mxu0
        %v10477 = vadd.f32 %v10332, %v10476
        %v10478 = vpop.f32.mrb[0].mxu0
        %10479 = vmatprep.mubr.f32.mxu0 %v8350
        %10480 = vmatmul.mubr.f32.gmra.mrb[0].mxu0 %v8349
        %v10481 = vpop.f32.mrb[0].mxu0
        %v10482 = vadd.f32 %v10337, %v10481
        %v10483 = vpop.f32.mrb[0].mxu0
        %10484 = vmatprep.mubr.f32.mxu0 %v8366
        %10485 = vmatmul.mubr.f32.gmra.mrb[0].mxu0 %v8365
        %v10486 = vpop.f32.mrb[0].mxu0
        %v10487 = vadd.f32 %v10342, %v10486
        %v10488 = vpop.f32.mrb[0].mxu0
        %10489 = vmatprep.mubr.f32.mxu0 %v8382
        %10490 = vmatmul.mubr.f32.gmra.mrb[0].mxu0 %v8381
        %v10491 = vpop.f32.mrb[0].mxu0
        %v10492 = vadd.f32 %v10347, %v10491
        %v10493 = vpop.f32.mrb[0].mxu0
        %10494 = vmatprep.mubr.f32.mxu0 %v8398
        %10495 = vmatmul.mubr.f32.gmra.mrb[0].mxu0 %v8397
        %v10496 = vpop.f32.mrb[0].mxu0
        %v10497 = vadd.f32 %v10352, %v10496
        %v10498 = vpop.f32.mrb[0].mxu0
        %10499 = vmatprep.mubr.f32.mxu0 %v8414
        %10500 = vmatmul.mubr.f32.gmra.mrb[0].mxu0 %v8413
        %v10501 = vpop.f32.mrb[0].mxu0
        %v10502 = vadd.f32 %v10357, %v10501
        %v10503 = vpop.f32.mrb[0].mxu0
        %10504 = vmatprep.mubr.f32.mxu0 %v8430
        %10505 = vmatmul.mubr.f32.gmra.mrb[0].mxu0 %v8429
        %v10506 = vpop.f32.mrb[0].mxu0
        %v10507 = vadd.f32 %v10362, %v10506
        %v10508 = vpop.f32.mrb[0].mxu0
        %10509 = vmatprep.mubr.f32.mxu0 %v8446
        %10510 = vmatmul.mubr.f32.gmra.mrb[0].mxu0 %v8445
        %v10511 = vpop.f32.mrb[0].mxu0
        %v10512 = vadd.f32 %v10367, %v10511
        %v10513 = vpop.f32.mrb[0].mxu0
        %10514 = vdwg.mxu0
        %10515 = vmatprep.subr.mxu0 0.0
        %10516 = vmatpush1.msra.mxu0 %v9367
        %10517 = vmatprep.subr.mxu0 0.0
        %10518 = vmatpush1.msra.mxu0 %v9368
        %10519 = vmatprep.subr.mxu0 0.0
        %10520 = vmatpush1.msra.mxu0 %v9369
        %10521 = vmatprep.subr.mxu0 0.0
        %10522 = vmatpush1.msra.mxu0 %v9370
        %10523 = vmatprep.subr.mxu0 0.0
        %10524 = vmatpush1.msra.mxu0 %v9371
        %10525 = vmatprep.subr.mxu0 0.0
        %10526 = vmatpush1.msra.mxu0 %v9372
        %10527 = vmatprep.subr.mxu0 0.0
        %10528 = vmatpush1.msra.mxu0 %v9373
        %10529 = vmatprep.subr.mxu0 0.0
        %10530 = vmatpush1.msra.mxu0 %v9374
        %10531 = vmatprep.subr.mxu0 0.0
        %10532 = vmatpush1.msra.mxu0 %v9375
        %10533 = vmatprep.subr.mxu0 0.0
        %10534 = vmatpush1.msra.mxu0 %v9376
        %10535 = vmatprep.subr.mxu0 0.0
        %10536 = vmatpush1.msra.mxu0 %v9377
        %10537 = vmatprep.subr.mxu0 0.0
        %10538 = vmatpush1.msra.mxu0 %v9378
        %10539 = vmatprep.subr.mxu0 0.0
        %10540 = vmatpush1.msra.mxu0 %v9379
        %10541 = vmatprep.subr.mxu0 0.0
        %10542 = vmatpush1.msra.mxu0 %v9380
        %10543 = vmatprep.subr.mxu0 0.0
        %10544 = vmatpush1.msra.mxu0 %v9381
        %10545 = vmatprep.subr.mxu0 0.0
        %10546 = vmatpush1.msra.mxu0 %v9382
        %10547 = vmatprep.subr.mxu0 0.0
        %10548 = vmatpush1.msra.mxu0 %v9383
        %10549 = vmatprep.subr.mxu0 0.0
        %10550 = vmatpush1.msra.mxu0 %v9384
        %10551 = vmatprep.subr.mxu0 0.0
        %10552 = vmatpush1.msra.mxu0 %v9385
        %10553 = vmatprep.subr.mxu0 0.0
        %10554 = vmatpush1.msra.mxu0 %v9386
        %10555 = vmatprep.subr.mxu0 0.0
        %10556 = vmatpush1.msra.mxu0 %v9387
        %10557 = vmatprep.subr.mxu0 0.0
        %10558 = vmatpush1.msra.mxu0 %v9388
        %10559 = vmatprep.subr.mxu0 0.0
        %10560 = vmatpush1.msra.mxu0 %v9389
        %10561 = vmatprep.subr.mxu0 0.0
        %10562 = vmatpush1.msra.mxu0 %v9390
        %10563 = vmatprep.subr.mxu0 0.0
        %10564 = vmatpush1.msra.mxu0 %v9391
        %10565 = vmatprep.subr.mxu0 0.0
        %10566 = vmatpush1.msra.mxu0 %v9392
        %10567 = vmatprep.subr.mxu0 0.0
        %10568 = vmatpush1.msra.mxu0 %v9393
        %10569 = vmatprep.subr.mxu0 0.0
        %10570 = vmatpush1.msra.mxu0 %v9394
        %10571 = vmatprep.subr.mxu0 0.0
        %10572 = vmatpush1.msra.mxu0 %v9395
        %10573 = vmatprep.subr.mxu0 0.0
        %10574 = vmatpush1.msra.mxu0 %v9396
        %10575 = vmatprep.subr.mxu0 0.0
        %10576 = vmatpush1.msra.mxu0 %v9397
        %10577 = vmatprep.subr.mxu0 0.0
        %10578 = vmatpush1.msra.mxu0 %v9398
        %10579 = vmatprep.mubr.f32.mxu0 %v8208
        %10580 = vmatmul.mubr.f32.gmra.mrb[0].mxu0 %v8207
        %v10581 = vpop.f32.mrb[0].mxu0
        %v10582 = vadd.f32 %v10437, %v10581
        %v10583 = vpop.f32.mrb[0].mxu0
        %10584 = vmatprep.mubr.f32.mxu0 %v8224
        %10585 = vmatmul.mubr.f32.gmra.mrb[0].mxu0 %v8223
        %v10586 = vpop.f32.mrb[0].mxu0
        %v10587 = vadd.f32 %v10442, %v10586
        %v10588 = vpop.f32.mrb[0].mxu0
        %10589 = vmatprep.mubr.f32.mxu0 %v8240
        %10590 = vmatmul.mubr.f32.gmra.mrb[0].mxu0 %v8239
        %v10591 = vpop.f32.mrb[0].mxu0
        %v10592 = vadd.f32 %v10447, %v10591
        %v10593 = vpop.f32.mrb[0].mxu0
        %10594 = vmatprep.mubr.f32.mxu0 %v8256
        %10595 = vmatmul.mubr.f32.gmra.mrb[0].mxu0 %v8255
        %v10596 = vpop.f32.mrb[0].mxu0
        %v10597 = vadd.f32 %v10452, %v10596
        %v10598 = vpop.f32.mrb[0].mxu0
        %10599 = vmatprep.mubr.f32.mxu0 %v8272
        %10600 = vmatmul.mubr.f32.gmra.mrb[0].mxu0 %v8271
        %v10601 = vpop.f32.mrb[0].mxu0
        %v10602 = vadd.f32 %v10457, %v10601
        %v10603 = vpop.f32.mrb[0].mxu0
        %10604 = vmatprep.mubr.f32.mxu0 %v8288
        %10605 = vmatmul.mubr.f32.gmra.mrb[0].mxu0 %v8287
        %v10606 = vpop.f32.mrb[0].mxu0
        %v10607 = vadd.f32 %v10462, %v10606
        %v10608 = vpop.f32.mrb[0].mxu0
        %10609 = vmatprep.mubr.f32.mxu0 %v8304
        %10610 = vmatmul.mubr.f32.gmra.mrb[0].mxu0 %v8303
        %v10611 = vpop.f32.mrb[0].mxu0
        %v10612 = vadd.f32 %v10467, %v10611
        %v10613 = vpop.f32.mrb[0].mxu0
        %10614 = vmatprep.mubr.f32.mxu0 %v8320
        %10615 = vmatmul.mubr.f32.gmra.mrb[0].mxu0 %v8319
        %v10616 = vpop.f32.mrb[0].mxu0
        %v10617 = vadd.f32 %v10472, %v10616
        %v10618 = vpop.f32.mrb[0].mxu0
        %10619 = vmatprep.mubr.f32.mxu0 %v8336
        %10620 = vmatmul.mubr.f32.gmra.mrb[0].mxu0 %v8335
        %v10621 = vpop.f32.mrb[0].mxu0
        %v10622 = vadd.f32 %v10477, %v10621
        %v10623 = vpop.f32.mrb[0].mxu0
        %10624 = vmatprep.mubr.f32.mxu0 %v8352
        %10625 = vmatmul.mubr.f32.gmra.mrb[0].mxu0 %v8351
        %v10626 = vpop.f32.mrb[0].mxu0
        %v10627 = vadd.f32 %v10482, %v10626
        %v10628 = vpop.f32.mrb[0].mxu0
        %10629 = vmatprep.mubr.f32.mxu0 %v8368
        %10630 = vmatmul.mubr.f32.gmra.mrb[0].mxu0 %v8367
        %v10631 = vpop.f32.mrb[0].mxu0
        %v10632 = vadd.f32 %v10487, %v10631
        %v10633 = vpop.f32.mrb[0].mxu0
        %10634 = vmatprep.mubr.f32.mxu0 %v8384
        %10635 = vmatmul.mubr.f32.gmra.mrb[0].mxu0 %v8383
        %v10636 = vpop.f32.mrb[0].mxu0
        %v10637 = vadd.f32 %v10492, %v10636
        %v10638 = vpop.f32.mrb[0].mxu0
        %10639 = vmatprep.mubr.f32.mxu0 %v8400
        %10640 = vmatmul.mubr.f32.gmra.mrb[0].mxu0 %v8399
        %v10641 = vpop.f32.mrb[0].mxu0
        %v10642 = vadd.f32 %v10497, %v10641
        %v10643 = vpop.f32.mrb[0].mxu0
        %10644 = vmatprep.mubr.f32.mxu0 %v8416
        %10645 = vmatmul.mubr.f32.gmra.mrb[0].mxu0 %v8415
        %v10646 = vpop.f32.mrb[0].mxu0
        %v10647 = vadd.f32 %v10502, %v10646
        %v10648 = vpop.f32.mrb[0].mxu0
        %10649 = vmatprep.mubr.f32.mxu0 %v8432
        %10650 = vmatmul.mubr.f32.gmra.mrb[0].mxu0 %v8431
        %v10651 = vpop.f32.mrb[0].mxu0
        %v10652 = vadd.f32 %v10507, %v10651
        %v10653 = vpop.f32.mrb[0].mxu0
        %10654 = vmatprep.mubr.f32.mxu0 %v8448
        %10655 = vmatmul.mubr.f32.gmra.mrb[0].mxu0 %v8447
        %v10656 = vpop.f32.mrb[0].mxu0
        %v10657 = vadd.f32 %v10512, %v10656
        %v10658 = vpop.f32.mrb[0].mxu0
        %10659 = vdwg.mxu0
        %10660 = vmatprep.subr.mxu0 0.0
        %10661 = vmatpush1.msra.mxu0 %v9399
        %10662 = vmatprep.subr.mxu0 0.0
        %10663 = vmatpush1.msra.mxu0 %v9400
        %10664 = vmatprep.subr.mxu0 0.0
        %10665 = vmatpush1.msra.mxu0 %v9401
        %10666 = vmatprep.subr.mxu0 0.0
        %10667 = vmatpush1.msra.mxu0 %v9402
        %10668 = vmatprep.subr.mxu0 0.0
        %10669 = vmatpush1.msra.mxu0 %v9403
        %10670 = vmatprep.subr.mxu0 0.0
        %10671 = vmatpush1.msra.mxu0 %v9404
        %10672 = vmatprep.subr.mxu0 0.0
        %10673 = vmatpush1.msra.mxu0 %v9405
        %10674 = vmatprep.subr.mxu0 0.0
        %10675 = vmatpush1.msra.mxu0 %v9406
        %10676 = vmatprep.subr.mxu0 0.0
        %10677 = vmatpush1.msra.mxu0 %v9407
        %10678 = vmatprep.subr.mxu0 0.0
        %10679 = vmatpush1.msra.mxu0 %v9408
        %10680 = vmatprep.subr.mxu0 0.0
        %10681 = vmatpush1.msra.mxu0 %v9409
        %10682 = vmatprep.subr.mxu0 0.0
        %10683 = vmatpush1.msra.mxu0 %v9410
        %10684 = vmatprep.subr.mxu0 0.0
        %10685 = vmatpush1.msra.mxu0 %v9411
        %10686 = vmatprep.subr.mxu0 0.0
        %10687 = vmatpush1.msra.mxu0 %v9412
        %10688 = vmatprep.subr.mxu0 0.0
        %10689 = vmatpush1.msra.mxu0 %v9413
        %10690 = vmatprep.subr.mxu0 0.0
        %10691 = vmatpush1.msra.mxu0 %v9414
        %10692 = vmatprep.subr.mxu0 0.0
        %10693 = vmatpush1.msra.mxu0 %v9415
        %10694 = vmatprep.subr.mxu0 0.0
        %10695 = vmatpush1.msra.mxu0 %v9416
        %10696 = vmatprep.subr.mxu0 0.0
        %10697 = vmatpush1.msra.mxu0 %v9417
        %10698 = vmatprep.subr.mxu0 0.0
        %10699 = vmatpush1.msra.mxu0 %v9418
        %10700 = vmatprep.subr.mxu0 0.0
        %10701 = vmatpush1.msra.mxu0 %v9419
        %10702 = vmatprep.subr.mxu0 0.0
        %10703 = vmatpush1.msra.mxu0 %v9420
        %10704 = vmatprep.subr.mxu0 0.0
        %10705 = vmatpush1.msra.mxu0 %v9421
        %10706 = vmatprep.subr.mxu0 0.0
        %10707 = vmatpush1.msra.mxu0 %v9422
        %10708 = vmatprep.subr.mxu0 0.0
        %10709 = vmatpush1.msra.mxu0 %v9423
        %10710 = vmatprep.subr.mxu0 0.0
        %10711 = vmatpush1.msra.mxu0 %v9424
        %10712 = vmatprep.subr.mxu0 0.0
        %10713 = vmatpush1.msra.mxu0 %v9425
        %10714 = vmatprep.subr.mxu0 0.0
        %10715 = vmatpush1.msra.mxu0 %v9426
        %10716 = vmatprep.subr.mxu0 0.0
        %10717 = vmatpush1.msra.mxu0 %v9427
        %10718 = vmatprep.subr.mxu0 0.0
        %10719 = vmatpush1.msra.mxu0 %v9428
        %10720 = vmatprep.subr.mxu0 0.0
        %10721 = vmatpush1.msra.mxu0 %v9429
        %10722 = vmatprep.subr.mxu0 0.0
        %10723 = vmatpush1.msra.mxu0 %v9430
        %10724 = vmatprep.mubr.f32.mxu0 %v8210
        %10725 = vmatmul.mubr.f32.gmra.mrb[0].mxu0 %v8209
        %v10726 = vpop.f32.mrb[0].mxu0
        %v10727 = vadd.f32 %v10582, %v10726
        %v10728 = vpop.f32.mrb[0].mxu0
        %10729 = vmatprep.mubr.f32.mxu0 %v8226
        %10730 = vmatmul.mubr.f32.gmra.mrb[0].mxu0 %v8225
        %v10731 = vpop.f32.mrb[0].mxu0
        %v10732 = vadd.f32 %v10587, %v10731
        %v10733 = vpop.f32.mrb[0].mxu0
        %10734 = vmatprep.mubr.f32.mxu0 %v8242
        %10735 = vmatmul.mubr.f32.gmra.mrb[0].mxu0 %v8241
        %v10736 = vpop.f32.mrb[0].mxu0
        %v10737 = vadd.f32 %v10592, %v10736
        %v10738 = vpop.f32.mrb[0].mxu0
        %10739 = vmatprep.mubr.f32.mxu0 %v8258
        %10740 = vmatmul.mubr.f32.gmra.mrb[0].mxu0 %v8257
        %v10741 = vpop.f32.mrb[0].mxu0
        %v10742 = vadd.f32 %v10597, %v10741
        %v10743 = vpop.f32.mrb[0].mxu0
        %10744 = vmatprep.mubr.f32.mxu0 %v8274
        %10745 = vmatmul.mubr.f32.gmra.mrb[0].mxu0 %v8273
        %v10746 = vpop.f32.mrb[0].mxu0
        %v10747 = vadd.f32 %v10602, %v10746
        %v10748 = vpop.f32.mrb[0].mxu0
        %10749 = vmatprep.mubr.f32.mxu0 %v8290
        %10750 = vmatmul.mubr.f32.gmra.mrb[0].mxu0 %v8289
        %v10751 = vpop.f32.mrb[0].mxu0
        %v10752 = vadd.f32 %v10607, %v10751
        %v10753 = vpop.f32.mrb[0].mxu0
        %10754 = vmatprep.mubr.f32.mxu0 %v8306
        %10755 = vmatmul.mubr.f32.gmra.mrb[0].mxu0 %v8305
        %v10756 = vpop.f32.mrb[0].mxu0
        %v10757 = vadd.f32 %v10612, %v10756
        %v10758 = vpop.f32.mrb[0].mxu0
        %10759 = vmatprep.mubr.f32.mxu0 %v8322
        %10760 = vmatmul.mubr.f32.gmra.mrb[0].mxu0 %v8321
        %v10761 = vpop.f32.mrb[0].mxu0
        %v10762 = vadd.f32 %v10617, %v10761
        %v10763 = vpop.f32.mrb[0].mxu0
        %10764 = vmatprep.mubr.f32.mxu0 %v8338
        %10765 = vmatmul.mubr.f32.gmra.mrb[0].mxu0 %v8337
        %v10766 = vpop.f32.mrb[0].mxu0
        %v10767 = vadd.f32 %v10622, %v10766
        %v10768 = vpop.f32.mrb[0].mxu0
        %10769 = vmatprep.mubr.f32.mxu0 %v8354
        %10770 = vmatmul.mubr.f32.gmra.mrb[0].mxu0 %v8353
        %v10771 = vpop.f32.mrb[0].mxu0
        %v10772 = vadd.f32 %v10627, %v10771
        %v10773 = vpop.f32.mrb[0].mxu0
        %10774 = vmatprep.mubr.f32.mxu0 %v8370
        %10775 = vmatmul.mubr.f32.gmra.mrb[0].mxu0 %v8369
        %v10776 = vpop.f32.mrb[0].mxu0
        %v10777 = vadd.f32 %v10632, %v10776
        %v10778 = vpop.f32.mrb[0].mxu0
        %10779 = vmatprep.mubr.f32.mxu0 %v8386
        %10780 = vmatmul.mubr.f32.gmra.mrb[0].mxu0 %v8385
        %v10781 = vpop.f32.mrb[0].mxu0
        %v10782 = vadd.f32 %v10637, %v10781
        %v10783 = vpop.f32.mrb[0].mxu0
        %10784 = vmatprep.mubr.f32.mxu0 %v8402
        %10785 = vmatmul.mubr.f32.gmra.mrb[0].mxu0 %v8401
        %v10786 = vpop.f32.mrb[0].mxu0
        %v10787 = vadd.f32 %v10642, %v10786
        %v10788 = vpop.f32.mrb[0].mxu0
        %10789 = vmatprep.mubr.f32.mxu0 %v8418
        %10790 = vmatmul.mubr.f32.gmra.mrb[0].mxu0 %v8417
        %v10791 = vpop.f32.mrb[0].mxu0
        %v10792 = vadd.f32 %v10647, %v10791
        %v10793 = vpop.f32.mrb[0].mxu0
        %10794 = vmatprep.mubr.f32.mxu0 %v8434
        %10795 = vmatmul.mubr.f32.gmra.mrb[0].mxu0 %v8433
        %v10796 = vpop.f32.mrb[0].mxu0
        %v10797 = vadd.f32 %v10652, %v10796
        %v10798 = vpop.f32.mrb[0].mxu0
        %10799 = vmatprep.mubr.f32.mxu0 %v8450
        %10800 = vmatmul.mubr.f32.gmra.mrb[0].mxu0 %v8449
        %v10801 = vpop.f32.mrb[0].mxu0
        %v10802 = vadd.f32 %v10657, %v10801
        %v10803 = vpop.f32.mrb[0].mxu0
        %10804 = vdwg.mxu0
        %v10805 = vld [vmem:[%s2 + $0x30] sm:$0xff]
        %v10806 = vld [vmem:[%s2 + $0x38] sm:$0xff]
        %v10807 = vld [vmem:[%s2 + $0x40] sm:$0xff]
        %v10808 = vld [vmem:[%s2 + $0x48] sm:$0xff]
        %v10809 = vld [vmem:[%s2 + $0x58] sm:$0xff]
        %v10810 = vld [vmem:[%s2 + $0x60] sm:$0xff]
        %v10811 = vld [vmem:[%s2 + $0x68] sm:$0xff]
        %v10812 = vld [vmem:[%s2 + $0x70] sm:$0xff]
        %10814 = vset.pattern.permute.xlu0 0
        %10815 = vperm.xlu0 %10814, %v10809
        %v10816 = vpop.permute.xlu0 %10815
        %10819 = vset.pattern.permute.xlu0 0
        %10820 = vperm.xlu0 %10819, %v10810
        %v10821 = vpop.permute.xlu0 %10820
        %10824 = vset.pattern.permute.xlu0 0
        %10825 = vperm.xlu0 %10824, %v10811
        %v10826 = vpop.permute.xlu0 %10825
        %10829 = vset.pattern.permute.xlu0 0
        %10830 = vperm.xlu0 %10829, %v10812
        %v10831 = vpop.permute.xlu0 %10830
        %vm10833 = vcmask 130048
        %v10835 = vsel %vm10833, %v10805, 0
        %v10838 = vsel %vm10833, %v10806, 0
        %v10841 = vsel %vm10833, %v10807, 0
        %v10844 = vsel %vm10833, %v10808, 0
        %v10847 = vsel %vm10833, %v10727, 0
        %v10850 = vsel %vm10833, %v10732, 0
        %v10853 = vsel %vm10833, %v10737, 0
        %v10856 = vsel %vm10833, %v10742, 0
        %v10859 = vsel %vm10833, %v10747, 0
        %v10862 = vsel %vm10833, %v10752, 0
        %v10865 = vsel %vm10833, %v10757, 0
        %v10868 = vsel %vm10833, %v10762, 0
        %v10871 = vsel %vm10833, %v10767, 0
        %v10874 = vsel %vm10833, %v10772, 0
        %v10877 = vsel %vm10833, %v10777, 0
        %v10880 = vsel %vm10833, %v10782, 0
        %v10883 = vsel %vm10833, %v10787, 0
        %v10886 = vsel %vm10833, %v10792, 0
        %v10889 = vsel %vm10833, %v10797, 0
        %v10892 = vsel %vm10833, %v10802, 0
        %10894 = vmatprep.subr.mxu0 0.0
        %10895 = vmatpush1.xpose.msra.mxu0 %v10847
        %10896 = vmatprep.subr.mxu0 0.0
        %10897 = vmatpush1.xpose.msra.mxu0 %v10850
        %10898 = vmatprep.subr.mxu0 0.0
        %10899 = vmatpush1.xpose.msra.mxu0 %v10853
        %10900 = vmatprep.subr.mxu0 0.0
        %10901 = vmatpush1.xpose.msra.mxu0 %v10856
        %10902 = vmatprep.subr.mxu0 0.0
        %10903 = vmatpush1.xpose.msra.mxu0 %v10859
        %10904 = vmatprep.subr.mxu0 0.0
        %10905 = vmatpush1.xpose.msra.mxu0 %v10862
        %10906 = vmatprep.subr.mxu0 0.0
        %10907 = vmatpush1.xpose.msra.mxu0 %v10865
        %10908 = vmatprep.subr.mxu0 0.0
        %10909 = vmatpush1.xpose.msra.mxu0 %v10868
        %10910 = vmatprep.subr.mxu0 0.0
        %10911 = vmatpush1.xpose.msra.mxu0 %v10871
        %10912 = vmatprep.subr.mxu0 0.0
        %10913 = vmatpush1.xpose.msra.mxu0 %v10874
        %10914 = vmatprep.subr.mxu0 0.0
        %10915 = vmatpush1.xpose.msra.mxu0 %v10877
        %10916 = vmatprep.subr.mxu0 0.0
        %10917 = vmatpush1.xpose.msra.mxu0 %v10880
        %10918 = vmatprep.subr.mxu0 0.0
        %10919 = vmatpush1.xpose.msra.mxu0 %v10883
        %10920 = vmatprep.subr.mxu0 0.0
        %10921 = vmatpush1.xpose.msra.mxu0 %v10886
        %10922 = vmatprep.subr.mxu0 0.0
        %10923 = vmatpush1.xpose.msra.mxu0 %v10889
        %10924 = vmatprep.subr.mxu0 0.0
        %10925 = vmatpush1.xpose.msra.mxu0 %v10892
        %10926 = vmatprep.subr.mxu0 0.0
        %10927 = vmatpush1.xpose.msra.mxu0 0.0
        %10928 = vmatprep.subr.mxu0 0.0
        %10929 = vmatpush1.xpose.msra.mxu0 0.0
        %10930 = vmatprep.subr.mxu0 0.0
        %10931 = vmatpush1.xpose.msra.mxu0 0.0
        %10932 = vmatprep.subr.mxu0 0.0
        %10933 = vmatpush1.xpose.msra.mxu0 0.0
        %10934 = vmatprep.subr.mxu0 0.0
        %10935 = vmatpush1.xpose.msra.mxu0 0.0
        %10936 = vmatprep.subr.mxu0 0.0
        %10937 = vmatpush1.xpose.msra.mxu0 0.0
        %10938 = vmatprep.subr.mxu0 0.0
        %10939 = vmatpush1.xpose.msra.mxu0 0.0
        %10940 = vmatprep.subr.mxu0 0.0
        %10941 = vmatpush1.xpose.msra.mxu0 0.0
        %10942 = vmatprep.subr.mxu0 0.0
        %10943 = vmatpush1.xpose.msra.mxu0 0.0
        %10944 = vmatprep.subr.mxu0 0.0
        %10945 = vmatpush1.xpose.msra.mxu0 0.0
        %10946 = vmatprep.subr.mxu0 0.0
        %10947 = vmatpush1.xpose.msra.mxu0 0.0
        %10948 = vmatprep.subr.mxu0 0.0
        %10949 = vmatpush1.xpose.msra.mxu0 0.0
        %10950 = vmatprep.subr.mxu0 0.0
        %10951 = vmatpush1.xpose.msra.mxu0 0.0
        %10952 = vmatprep.subr.mxu0 0.0
        %10953 = vmatpush1.xpose.msra.mxu0 0.0
        %10954 = vmatprep.subr.mxu0 0.0
        %10955 = vmatpush1.xpose.msra.mxu0 0.0
        %10956 = vmatprep.subr.mxu0 0.0
        %10957 = vmatpush1.xpose.msra.mxu0 0.0
        %10958 = vmatprep.mubr.f32.mxu0 0.0
        %10959 = vmatmul.mubr.f32.gmra.mrb[0].mxu0 %v10835
        %v10960 = vpop.f32.mrb[0].mxu0
        %v10961 = vadd.f32 %v10816, %v10960
        %v10962 = vpop.f32.mrb[0].mxu0
        %10963 = vmatprep.mubr.f32.mxu0 0.0
        %10964 = vmatmul.mubr.f32.gmra.mrb[0].mxu0 %v10838
        %v10965 = vpop.f32.mrb[0].mxu0
        %v10966 = vadd.f32 %v10821, %v10965
        %v10967 = vpop.f32.mrb[0].mxu0
        %10968 = vmatprep.mubr.f32.mxu0 0.0
        %10969 = vmatmul.mubr.f32.gmra.mrb[0].mxu0 %v10841
        %v10970 = vpop.f32.mrb[0].mxu0
        %v10971 = vadd.f32 %v10826, %v10970
        %v10972 = vpop.f32.mrb[0].mxu0
        %10973 = vmatprep.mubr.f32.mxu0 0.0
        %10974 = vmatmul.mubr.f32.gmra.mrb[0].mxu0 %v10844
        %v10975 = vpop.f32.mrb[0].mxu0
        %v10976 = vadd.f32 %v10831, %v10975
        %v10977 = vpop.f32.mrb[0].mxu0
        %10978 = vdwg.mxu0
        %v10979 = vmul.f32 %v10961, %v10961
        %v10980 = vmul.f32 %v10966, %v10966
        %v10981 = vmul.f32 %v10971, %v10971
        %v10982 = vmul.f32 %v10976, %v10976
        %v10983 = vmul.f32 %v10961, %v10979
        %v10984 = vmul.f32 %v10966, %v10980
        %v10985 = vmul.f32 %v10971, %v10981
        %v10986 = vmul.f32 %v10976, %v10982
        %v10987 = vmul.f32 %v10983, 0.044715
        %v10988 = vmul.f32 %v10984, 0.044715
        %v10989 = vmul.f32 %v10985, 0.044715
        %v10990 = vmul.f32 %v10986, 0.044715
        %v10991 = vadd.f32 %v10961, %v10987
        %v10992 = vadd.f32 %v10966, %v10988
        %v10993 = vadd.f32 %v10971, %v10989
        %v10994 = vadd.f32 %v10976, %v10990
        %v10995 = vmul.f32 %v10991, 0.7978846
        %v10996 = vmul.f32 %v10992, 0.7978846
        %v10997 = vmul.f32 %v10993, 0.7978846
        %v10998 = vmul.f32 %v10994, 0.7978846
        %v10999 = vtanh.pop %v10995
        %v11000 = vtanh.pop %v10996
        %v11001 = vtanh.pop %v10997
        %v11002 = vtanh.pop %v10998
        %v11003 = vadd.f32 %v10999, 1.0
        %v11004 = vadd.f32 %v11000, 1.0
        %v11005 = vadd.f32 %v11001, 1.0
        %v11006 = vadd.f32 %v11002, 1.0
        %v11007 = vmul.f32 %v11003, 0.5
        %v11008 = vmul.f32 %v11004, 0.5
        %v11009 = vmul.f32 %v11005, 0.5
        %v11010 = vmul.f32 %v11006, 0.5
        %v11011 = vmul.f32 %v10961, %v11007
        %v11012 = vmul.f32 %v10966, %v11008
        %v11013 = vmul.f32 %v10971, %v11009
        %v11014 = vmul.f32 %v10976, %v11010
        %v11015 = vld [vmem:[%s2 + $0x50] sm:$0xf]
        %v11016 = vld [vmem:[%s2 + $0x78] sm:$0xf]
        %11018 = vset.pattern.permute.xlu0 0
        %11019 = vperm.xlu0 %11018, %v11016
        %v11020 = vpop.permute.xlu0 %11019
        %vm11022 = vcmask 261120
        %v11024 = vsel %vm11022, %v11015, 0
        %11026 = vmatprep.subr.mxu0 0.0
        %11027 = vmatpush1.msra.mxu0 %v11011
        %11028 = vmatprep.subr.mxu0 0.0
        %11029 = vmatpush1.msra.mxu0 %v11012
        %11030 = vmatprep.subr.mxu0 0.0
        %11031 = vmatpush1.msra.mxu0 %v11013
        %11032 = vmatprep.subr.mxu0 0.0
        %11033 = vmatpush1.msra.mxu0 %v11014
        %11034 = vmatprep.subr.mxu0 0.0
        %11035 = vmatpush1.msra.mxu0 0.0
        %11036 = vmatprep.subr.mxu0 0.0
        %11037 = vmatpush1.msra.mxu0 0.0
        %11038 = vmatprep.subr.mxu0 0.0
        %11039 = vmatpush1.msra.mxu0 0.0
        %11040 = vmatprep.subr.mxu0 0.0
        %11041 = vmatpush1.msra.mxu0 0.0
        %11042 = vmatprep.subr.mxu0 0.0
        %11043 = vmatpush1.msra.mxu0 0.0
        %11044 = vmatprep.subr.mxu0 0.0
        %11045 = vmatpush1.msra.mxu0 0.0
        %11046 = vmatprep.subr.mxu0 0.0
        %11047 = vmatpush1.msra.mxu0 0.0
        %11048 = vmatprep.subr.mxu0 0.0
        %11049 = vmatpush1.msra.mxu0 0.0
        %11050 = vmatprep.subr.mxu0 0.0
        %11051 = vmatpush1.msra.mxu0 0.0
        %11052 = vmatprep.subr.mxu0 0.0
        %11053 = vmatpush1.msra.mxu0 0.0
        %11054 = vmatprep.subr.mxu0 0.0
        %11055 = vmatpush1.msra.mxu0 0.0
        %11056 = vmatprep.subr.mxu0 0.0
        %11057 = vmatpush1.msra.mxu0 0.0
        %11058 = vmatprep.subr.mxu0 0.0
        %11059 = vmatpush1.msra.mxu0 0.0
        %11060 = vmatprep.subr.mxu0 0.0
        %11061 = vmatpush1.msra.mxu0 0.0
        %11062 = vmatprep.subr.mxu0 0.0
        %11063 = vmatpush1.msra.mxu0 0.0
        %11064 = vmatprep.subr.mxu0 0.0
        %11065 = vmatpush1.msra.mxu0 0.0
        %11066 = vmatprep.subr.mxu0 0.0
        %11067 = vmatpush1.msra.mxu0 0.0
        %11068 = vmatprep.subr.mxu0 0.0
        %11069 = vmatpush1.msra.mxu0 0.0
        %11070 = vmatprep.subr.mxu0 0.0
        %11071 = vmatpush1.msra.mxu0 0.0
        %11072 = vmatprep.subr.mxu0 0.0
        %11073 = vmatpush1.msra.mxu0 0.0
        %11074 = vmatprep.subr.mxu0 0.0
        %11075 = vmatpush1.msra.mxu0 0.0
        %11076 = vmatprep.subr.mxu0 0.0
        %11077 = vmatpush1.msra.mxu0 0.0
        %11078 = vmatprep.subr.mxu0 0.0
        %11079 = vmatpush1.msra.mxu0 0.0
        %11080 = vmatprep.subr.mxu0 0.0
        %11081 = vmatpush1.msra.mxu0 0.0
        %11082 = vmatprep.subr.mxu0 0.0
        %11083 = vmatpush1.msra.mxu0 0.0
        %11084 = vmatprep.subr.mxu0 0.0
        %11085 = vmatpush1.msra.mxu0 0.0
        %11086 = vmatprep.subr.mxu0 0.0
        %11087 = vmatpush1.msra.mxu0 0.0
        %11088 = vmatprep.subr.mxu0 0.0
        %11089 = vmatpush1.msra.mxu0 0.0
        %11090 = vmatprep.mubr.f32.mxu0 0.0
        %11091 = vmatmul.mubr.f32.gmra.mrb[0].mxu0 %v11024
        %v11092 = vpop.f32.mrb[0].mxu0
        %v11093 = vadd.f32 %v11020, %v11092
        %v11094 = vpop.f32.mrb[0].mxu0
        %11095 = vdwg.mxu0
        %11096 = vst [vmem:[%s205] sm:$0xf] %v11093
        %s11097 = sand.u32 %s120, 1
        %s11098 = scalar_lea.sflag [#allocation3], %s11097
        %s11099 = sand.u32 %s120, 1
        %s11100 = smul.addr %s11099, 4
        %s11101 = scalar_lea.vmem [#allocation2], %s11100
        // Predicated region
        $region37: #{tpu_custom_call.1} parent=35 // pred_check
          %p11102 = pneg %p130
        $region38: #{tpu_custom_call.1} parent=35 // pred_check_branch
          %11104 = sbr.rel (%p11102) target = $region40
        $region39: #{tpu_custom_call.1} parent=35 // pred_region
          %s11106 = ssub.s32 64, 64
          %11107 = vsyncadd %s11098, %s11106
          %s11108 = smul.addr %s18, 64
          %s11109 = scalar_lea.hbm %s4, %s11108
          %s11111 = sshll.u32 %s11101, 4
          %s11112 = int_to_ptr.vmem [resolvable:$true] %s11111
          %11114 = dma.vmem_to_hbm [thread:$0]  %s11112, 64, %s11109, %s11098
        $region40: #{tpu_custom_call.1} parent=35 // pred_fallthru
          _
      $region36: #{tpu_custom_call.1} parent=5 // pred_fallthru
        _
      %p11115 = scmp.le.s32.totalorder 2, %s13
      // Predicated region
      $region41: #{tpu_custom_call.1} parent=5 // pred_check
        %p11116 = pneg %p11115
      $region42: #{tpu_custom_call.1} parent=5 // pred_check_branch
        %11118 = sbr.rel (%p11116) target = $region44
      $region43: #{tpu_custom_call.1} parent=5 // pred_region
        %s11119 = ssub.s32 %s13, 2
        // Predicated region
        $region45: #{tpu_custom_call.1} parent=43 // pred_check
          %p11120 = pneg %p136
        $region46: #{tpu_custom_call.1} parent=43 // pred_check_branch
          %11122 = sbr.rel (%p11120) target = $region48
        $region47: #{tpu_custom_call.1} parent=43 // pred_region
          %s11123 = sand.u32 %s121, 1
          %s11124 = scalar_lea.sflag [#allocation3], %s11123
          %s11125 = sand.u32 %s121, 1
          %s11126 = smul.addr %s11125, 4
          %s11127 = scalar_lea.vmem [#allocation2], %s11126
          %11128 = dma.done %s11124, 64
        $region48: #{tpu_custom_call.1} parent=43 // pred_fallthru
          _
      $region44: #{tpu_custom_call.1} parent=5 // pred_fallthru
        _
    $region6: #{tpu_custom_call.1} parent=1 // loop_footer
      %s17 = sadd.s32 1, %s13
    $region7: #{tpu_custom_call.1} parent=1 // loop_footer_branch
      %12 = sbr.rel target = $region3
    $region8: #{tpu_custom_call.1} parent=1 // loop_exit
      _
    %11129 = vsyncpa [#allocation3], 1
    %s11130 = scalar_lea.sflag [#allocation3], 1
    %11131 = vsyncpa %s11130, 1

</llo_original>
